<compile_context>
chip_gen: v7x
topology: tpu7x:2x2x1
jax: 0.10.0
libtpu: 0.0.40
codegen_flags: <defaults>
</compile_context>

<pallas_src>
import functools

import jax
import jax.numpy as jnp
from jax.experimental import pallas as pl
from jax.experimental.pallas import tpu as pltpu

K = 5          # conv kernel size
N_LAYERS = 3   # number of conv layers
COUT = 3       # rgb output channels


def _conv3(src_ref, cin, w_ref, b_ref, *, k, H, W):
    """'same' cross-correlation (PyTorch Conv2d semantics) producing 3 channels.

    src_ref: (3, H+2p, W+2p) VMEM scratch, zero-padded border; channels [0, cin) read.
    w_ref  : (3*cin*k*k,)    SMEM flattened weights, PyTorch OIHW order.
    b_ref  : (3,)            SMEM bias.
    Returns a list of 3 float32 (H, W) values.
    """
    accs = [None, None, None]
    for ci in range(cin):
        for kh in range(k):
            # Sublane offset kh folds into the load address; lanes stay aligned.
            strip = src_ref[ci, kh:kh + H, :]            # (H, W + k - 1)
            for kw in range(k):
                win = strip[:, kw:kw + W]                # (H, W); shared by all co
                for co in range(COUT):
                    w = w_ref[((co * cin + ci) * k + kh) * k + kw]
                    t = win * w
                    accs[co] = t if accs[co] is None else accs[co] + t
    return [accs[co] + b_ref[co] for co in range(COUT)]


def _colorizer_kernel(bw_ref, w1_ref, b1_ref, w2_ref, b2_ref, w3_ref, b3_ref,
                      o_ref, buf_a, buf_b, *, k, H, W):
    p = k // 2
    bw = bw_ref[0, 0].astype(jnp.float32)                # (H, W), loaded once

    # ---- layer 1 input: zero-padded bw in buf_a channel 0 --------------------
    buf_a[...] = jnp.zeros_like(buf_a)
    buf_a[0, p:p + H, p:p + W] = bw
    c1 = _conv3(buf_a, 1, w1_ref, b1_ref, k=k, H=H, W=W)

    # ---- layer 2: activations stay in VMEM (buf_b), border pre-zeroed --------
    buf_b[...] = jnp.zeros_like(buf_b)
    for co in range(COUT):
        buf_b[co, p:p + H, p:p + W] = c1[co]
    c2 = _conv3(buf_b, COUT, w2_ref, b2_ref, k=k, H=H, W=W)

    # ---- layer 3: reuse buf_a (its border is still zero from step 1) ---------
    for co in range(COUT):
        buf_a[co, p:p + H, p:p + W] = c2[co]
    c3 = _conv3(buf_a, COUT, w3_ref, b3_ref, k=k, H=H, W=W)

    # ---- residual folded into the epilogue: out = cat([bw]*3, 1) + conv(bw) --
    for co in range(COUT):
        o_ref[0, co] = (c3[co] + bw).astype(o_ref.dtype)


def colorizer_forward(bw, params):
    """bw: (B, 1, H, W); params: [(w, b)] * 3 with PyTorch-layout OIHW weights."""
    B, cin, H, W = bw.shape
    assert cin == 1 and len(params) == N_LAYERS
    p = K // 2
    Hp, Wp = H + 2 * p, W + 2 * p

    flat = []
    for (w, b) in params:
        flat.append(w.reshape(-1).astype(jnp.float32))
        flat.append(b.astype(jnp.float32))

    # Advisory cost estimate for XLA's scheduler around the custom call.
    flops = 0
    cin_l = 1
    for _ in range(N_LAYERS):
        flops += 2 * COUT * cin_l * K * K * H * W       # MACs -> 2 flops each
        cin_l = COUT
    flops = B * (flops + COUT * H * W)                   # + residual adds
    bytes_accessed = 4 * (B * H * W + B * COUT * H * W + sum(a.size for a in flat))

    kernel = functools.partial(_colorizer_kernel, k=K, H=H, W=W)
    smem_specs = [pl.BlockSpec(memory_space=pltpu.MemorySpace.SMEM)
                  for _ in range(2 * N_LAYERS)]
    return pl.pallas_call(
        kernel,
        out_shape=jax.ShapeDtypeStruct((B, COUT, H, W), bw.dtype),
        grid=(B,),
        in_specs=[pl.BlockSpec((1, 1, H, W), lambda i: (i, 0, 0, 0))] + smem_specs,
        out_specs=pl.BlockSpec((1, COUT, H, W), lambda i: (i, 0, 0, 0)),
        scratch_shapes=[pltpu.VMEM((COUT, Hp, Wp), jnp.float32),
                        pltpu.VMEM((COUT, Hp, Wp), jnp.float32)],
        compiler_params=pltpu.CompilerParams(dimension_semantics=("parallel",)),
        cost_estimate=pl.CostEstimate(flops=flops, transcendentals=0,
                                      bytes_accessed=bytes_accessed),
    )(bw, *flat)


def init_params(key, k=K, n=N_LAYERS):
    """PyTorch Conv2d default init: U(-1/sqrt(fan_in), 1/sqrt(fan_in))."""
    params = []
    cin = 1
    for _ in range(n):
        cout = COUT
        key, kw_key, kb_key = jax.random.split(key, 3)
        bound = 1.0 / ((cin * k * k) ** 0.5)
        w = jax.random.uniform(kw_key, (cout, cin, k, k), jnp.float32, -bound, bound)
        b = jax.random.uniform(kb_key, (cout,), jnp.float32, -bound, bound)
        params.append((w, b))
        cin = cout
    return params


def colorizer_reference(bw, params):
    """Pure-JAX reference of ColorizerModel.forward for correctness check."""
    c = bw
    for (w, b) in params:
        c = jax.lax.conv_general_dilated(
            c, w, window_strides=(1, 1), padding='SAME',
            dimension_numbers=('NCHW', 'OIHW', 'NCHW')) + b[None, :, None, None]
    return jnp.concatenate([bw, bw, bw], axis=1) + c


if __name__ == "__main__":
    key = jax.random.PRNGKey(0)
    k_in, k_par = jax.random.split(key)

    # bwImage: (batch=2, channels=1, H=16, W=16) grayscale batch.
    bw = jax.random.uniform(k_in, (2, 1, 16, 16), dtype=jnp.float32)
    params = init_params(k_par)

    fwd = jax.jit(colorizer_forward)
    out = jax.block_until_ready(fwd(bw, params))

    ref = colorizer_reference(bw, params)
    assert out.shape == (2, 3, 16, 16), out.shape
    assert jnp.allclose(out, ref, atol=1e-4, rtol=1e-4), float(jnp.max(jnp.abs(out - ref)))

    print("KERNEL_OK")
</pallas_src>

<mosaic_0001>
module attributes {stable_mosaic.version = 11 : i64} {
  func.func @_colorizer_kernel(%arg0: i32, %arg1: memref<1x1x16x16xf32, #tpu.memory_space<vmem>>, %arg2: memref<75xf32, #tpu.memory_space<smem>>, %arg3: memref<3xf32, #tpu.memory_space<smem>>, %arg4: memref<225xf32, #tpu.memory_space<smem>>, %arg5: memref<3xf32, #tpu.memory_space<smem>>, %arg6: memref<225xf32, #tpu.memory_space<smem>>, %arg7: memref<3xf32, #tpu.memory_space<smem>>, %arg8: memref<1x3x16x16xf32, #tpu.memory_space<vmem>>, %arg9: memref<3x20x20xf32, #tpu.memory_space<vmem>>, %arg10: memref<3x20x20xf32, #tpu.memory_space<vmem>>) attributes {dimension_semantics = [#tpu.dimension_semantics<parallel>], iteration_bounds = array<i64: 2>, scalar_prefetch = 0 : i64, scratch_operands = 2 : i64, tpu.core_type = #tpu.core_type<tc>, window_params = [{transform_indices = @transform_0, window_bounds = array<i64: 1, 1, 16, 16>}, {transform_indices = @transform_1, window_bounds = array<i64: 75>}, {transform_indices = @transform_2, window_bounds = array<i64: 3>}, {transform_indices = @transform_3, window_bounds = array<i64: 225>}, {transform_indices = @transform_4, window_bounds = array<i64: 3>}, {transform_indices = @transform_5, window_bounds = array<i64: 225>}, {transform_indices = @transform_6, window_bounds = array<i64: 3>}, {transform_indices = @transform_7, window_bounds = array<i64: 1, 3, 16, 16>}]} {
    %c0 = arith.constant 0 : index
    %c0_0 = arith.constant 0 : index
    %c0_1 = arith.constant 0 : index
    %c0_2 = arith.constant 0 : index
    %0 = vector.load %arg1[%c0, %c0_0, %c0_1, %c0_2] : memref<1x1x16x16xf32, #tpu.memory_space<vmem>>, vector<1x1x16x16xf32>
    %1 = vector.shape_cast %0 : vector<1x1x16x16xf32> to vector<16x16xf32>
    %cst = arith.constant 0.000000e+00 : f32
    %2 = vector.broadcast %cst : f32 to vector<3x20x20xf32>
    %c0_3 = arith.constant 0 : index
    %c0_4 = arith.constant 0 : index
    %c0_5 = arith.constant 0 : index
    %3 = vector.load %arg9[%c0_3, %c0_4, %c0_5] : memref<3x20x20xf32, #tpu.memory_space<vmem>>, vector<3x20x20xf32>
    tpu.vector_store %arg9[%c0_3, %c0_4, %c0_5], %2 {strides = array<i32>} : memref<3x20x20xf32, #tpu.memory_space<vmem>>, vector<3x20x20xf32>,
    %c0_6 = arith.constant 0 : index
    %c2 = arith.constant 2 : index
    %c2_7 = arith.constant 2 : index
    %4 = vector.load %arg9[%c0_6, %c2, %c2_7] : memref<3x20x20xf32, #tpu.memory_space<vmem>>, vector<1x16x16xf32>
    %5 = vector.shape_cast %4 : vector<1x16x16xf32> to vector<16x16xf32>
    %6 = vector.shape_cast %1 : vector<16x16xf32> to vector<1x16x16xf32>
    tpu.vector_store %arg9[%c0_6, %c2, %c2_7], %6 {strides = array<i32>} : memref<3x20x20xf32, #tpu.memory_space<vmem>>, vector<1x16x16xf32>,
    %c0_8 = arith.constant 0 : index
    %c0_9 = arith.constant 0 : index
    %c0_10 = arith.constant 0 : index
    %7 = vector.load %arg9[%c0_8, %c0_9, %c0_10] : memref<3x20x20xf32, #tpu.memory_space<vmem>>, vector<1x16x20xf32>
    %8 = vector.shape_cast %7 : vector<1x16x20xf32> to vector<16x20xf32>
    %9 = vector.extract_strided_slice %8 {offsets = [0, 0], sizes = [16, 16], strides = [1, 1]} : vector<16x20xf32> to vector<16x16xf32>
    %c0_11 = arith.constant 0 : index
    %10 = memref.load %arg2[%c0_11] : memref<75xf32, #tpu.memory_space<smem>>
    %11 = vector.broadcast %10 : f32 to vector<16x16xf32>
    %12 = arith.mulf %9, %11 : vector<16x16xf32>
    %c25 = arith.constant 25 : index
    %13 = memref.load %arg2[%c25] : memref<75xf32, #tpu.memory_space<smem>>
    %14 = vector.broadcast %13 : f32 to vector<16x16xf32>
    %15 = arith.mulf %9, %14 : vector<16x16xf32>
    %c50 = arith.constant 50 : index
    %16 = memref.load %arg2[%c50] : memref<75xf32, #tpu.memory_space<smem>>
    %17 = vector.broadcast %16 : f32 to vector<16x16xf32>
    %18 = arith.mulf %9, %17 : vector<16x16xf32>
    %19 = vector.extract_strided_slice %8 {offsets = [0, 1], sizes = [16, 16], strides = [1, 1]} : vector<16x20xf32> to vector<16x16xf32>
    %c1 = arith.constant 1 : index
    %20 = memref.load %arg2[%c1] : memref<75xf32, #tpu.memory_space<smem>>
    %21 = vector.broadcast %20 : f32 to vector<16x16xf32>
    %22 = arith.mulf %19, %21 : vector<16x16xf32>
    %23 = arith.addf %12, %22 : vector<16x16xf32>
    %c26 = arith.constant 26 : index
    %24 = memref.load %arg2[%c26] : memref<75xf32, #tpu.memory_space<smem>>
    %25 = vector.broadcast %24 : f32 to vector<16x16xf32>
    %26 = arith.mulf %19, %25 : vector<16x16xf32>
    %27 = arith.addf %15, %26 : vector<16x16xf32>
    %c51 = arith.constant 51 : index
    %28 = memref.load %arg2[%c51] : memref<75xf32, #tpu.memory_space<smem>>
    %29 = vector.broadcast %28 : f32 to vector<16x16xf32>
    %30 = arith.mulf %19, %29 : vector<16x16xf32>
    %31 = arith.addf %18, %30 : vector<16x16xf32>
    %32 = vector.extract_strided_slice %8 {offsets = [0, 2], sizes = [16, 16], strides = [1, 1]} : vector<16x20xf32> to vector<16x16xf32>
    %c2_12 = arith.constant 2 : index
    %33 = memref.load %arg2[%c2_12] : memref<75xf32, #tpu.memory_space<smem>>
    %34 = vector.broadcast %33 : f32 to vector<16x16xf32>
    %35 = arith.mulf %32, %34 : vector<16x16xf32>
    %36 = arith.addf %23, %35 : vector<16x16xf32>
    %c27 = arith.constant 27 : index
    %37 = memref.load %arg2[%c27] : memref<75xf32, #tpu.memory_space<smem>>
    %38 = vector.broadcast %37 : f32 to vector<16x16xf32>
    %39 = arith.mulf %32, %38 : vector<16x16xf32>
    %40 = arith.addf %27, %39 : vector<16x16xf32>
    %c52 = arith.constant 52 : index
    %41 = memref.load %arg2[%c52] : memref<75xf32, #tpu.memory_space<smem>>
    %42 = vector.broadcast %41 : f32 to vector<16x16xf32>
    %43 = arith.mulf %32, %42 : vector<16x16xf32>
    %44 = arith.addf %31, %43 : vector<16x16xf32>
    %45 = vector.extract_strided_slice %8 {offsets = [0, 3], sizes = [16, 16], strides = [1, 1]} : vector<16x20xf32> to vector<16x16xf32>
    %c3 = arith.constant 3 : index
    %46 = memref.load %arg2[%c3] : memref<75xf32, #tpu.memory_space<smem>>
    %47 = vector.broadcast %46 : f32 to vector<16x16xf32>
    %48 = arith.mulf %45, %47 : vector<16x16xf32>
    %49 = arith.addf %36, %48 : vector<16x16xf32>
    %c28 = arith.constant 28 : index
    %50 = memref.load %arg2[%c28] : memref<75xf32, #tpu.memory_space<smem>>
    %51 = vector.broadcast %50 : f32 to vector<16x16xf32>
    %52 = arith.mulf %45, %51 : vector<16x16xf32>
    %53 = arith.addf %40, %52 : vector<16x16xf32>
    %c53 = arith.constant 53 : index
    %54 = memref.load %arg2[%c53] : memref<75xf32, #tpu.memory_space<smem>>
    %55 = vector.broadcast %54 : f32 to vector<16x16xf32>
    %56 = arith.mulf %45, %55 : vector<16x16xf32>
    %57 = arith.addf %44, %56 : vector<16x16xf32>
    %58 = vector.extract_strided_slice %8 {offsets = [0, 4], sizes = [16, 16], strides = [1, 1]} : vector<16x20xf32> to vector<16x16xf32>
    %c4 = arith.constant 4 : index
    %59 = memref.load %arg2[%c4] : memref<75xf32, #tpu.memory_space<smem>>
    %60 = vector.broadcast %59 : f32 to vector<16x16xf32>
    %61 = arith.mulf %58, %60 : vector<16x16xf32>
    %62 = arith.addf %49, %61 : vector<16x16xf32>
    %c29 = arith.constant 29 : index
    %63 = memref.load %arg2[%c29] : memref<75xf32, #tpu.memory_space<smem>>
    %64 = vector.broadcast %63 : f32 to vector<16x16xf32>
    %65 = arith.mulf %58, %64 : vector<16x16xf32>
    %66 = arith.addf %53, %65 : vector<16x16xf32>
    %c54 = arith.constant 54 : index
    %67 = memref.load %arg2[%c54] : memref<75xf32, #tpu.memory_space<smem>>
    %68 = vector.broadcast %67 : f32 to vector<16x16xf32>
    %69 = arith.mulf %58, %68 : vector<16x16xf32>
    %70 = arith.addf %57, %69 : vector<16x16xf32>
    %c0_13 = arith.constant 0 : index
    %c1_14 = arith.constant 1 : index
    %c0_15 = arith.constant 0 : index
    %71 = vector.load %arg9[%c0_13, %c1_14, %c0_15] : memref<3x20x20xf32, #tpu.memory_space<vmem>>, vector<1x16x20xf32>
    %72 = vector.shape_cast %71 : vector<1x16x20xf32> to vector<16x20xf32>
    %73 = vector.extract_strided_slice %72 {offsets = [0, 0], sizes = [16, 16], strides = [1, 1]} : vector<16x20xf32> to vector<16x16xf32>
    %c5 = arith.constant 5 : index
    %74 = memref.load %arg2[%c5] : memref<75xf32, #tpu.memory_space<smem>>
    %75 = vector.broadcast %74 : f32 to vector<16x16xf32>
    %76 = arith.mulf %73, %75 : vector<16x16xf32>
    %77 = arith.addf %62, %76 : vector<16x16xf32>
    %c30 = arith.constant 30 : index
    %78 = memref.load %arg2[%c30] : memref<75xf32, #tpu.memory_space<smem>>
    %79 = vector.broadcast %78 : f32 to vector<16x16xf32>
    %80 = arith.mulf %73, %79 : vector<16x16xf32>
    %81 = arith.addf %66, %80 : vector<16x16xf32>
    %c55 = arith.constant 55 : index
    %82 = memref.load %arg2[%c55] : memref<75xf32, #tpu.memory_space<smem>>
    %83 = vector.broadcast %82 : f32 to vector<16x16xf32>
    %84 = arith.mulf %73, %83 : vector<16x16xf32>
    %85 = arith.addf %70, %84 : vector<16x16xf32>
    %86 = vector.extract_strided_slice %72 {offsets = [0, 1], sizes = [16, 16], strides = [1, 1]} : vector<16x20xf32> to vector<16x16xf32>
    %c6 = arith.constant 6 : index
    %87 = memref.load %arg2[%c6] : memref<75xf32, #tpu.memory_space<smem>>
    %88 = vector.broadcast %87 : f32 to vector<16x16xf32>
    %89 = arith.mulf %86, %88 : vector<16x16xf32>
    %90 = arith.addf %77, %89 : vector<16x16xf32>
    %c31 = arith.constant 31 : index
    %91 = memref.load %arg2[%c31] : memref<75xf32, #tpu.memory_space<smem>>
    %92 = vector.broadcast %91 : f32 to vector<16x16xf32>
    %93 = arith.mulf %86, %92 : vector<16x16xf32>
    %94 = arith.addf %81, %93 : vector<16x16xf32>
    %c56 = arith.constant 56 : index
    %95 = memref.load %arg2[%c56] : memref<75xf32, #tpu.memory_space<smem>>
    %96 = vector.broadcast %95 : f32 to vector<16x16xf32>
    %97 = arith.mulf %86, %96 : vector<16x16xf32>
    %98 = arith.addf %85, %97 : vector<16x16xf32>
    %99 = vector.extract_strided_slice %72 {offsets = [0, 2], sizes = [16, 16], strides = [1, 1]} : vector<16x20xf32> to vector<16x16xf32>
    %c7 = arith.constant 7 : index
    %100 = memref.load %arg2[%c7] : memref<75xf32, #tpu.memory_space<smem>>
    %101 = vector.broadcast %100 : f32 to vector<16x16xf32>
    %102 = arith.mulf %99, %101 : vector<16x16xf32>
    %103 = arith.addf %90, %102 : vector<16x16xf32>
    %c32 = arith.constant 32 : index
    %104 = memref.load %arg2[%c32] : memref<75xf32, #tpu.memory_space<smem>>
    %105 = vector.broadcast %104 : f32 to vector<16x16xf32>
    %106 = arith.mulf %99, %105 : vector<16x16xf32>
    %107 = arith.addf %94, %106 : vector<16x16xf32>
    %c57 = arith.constant 57 : index
    %108 = memref.load %arg2[%c57] : memref<75xf32, #tpu.memory_space<smem>>
    %109 = vector.broadcast %108 : f32 to vector<16x16xf32>
    %110 = arith.mulf %99, %109 : vector<16x16xf32>
    %111 = arith.addf %98, %110 : vector<16x16xf32>
    %112 = vector.extract_strided_slice %72 {offsets = [0, 3], sizes = [16, 16], strides = [1, 1]} : vector<16x20xf32> to vector<16x16xf32>
    %c8 = arith.constant 8 : index
    %113 = memref.load %arg2[%c8] : memref<75xf32, #tpu.memory_space<smem>>
    %114 = vector.broadcast %113 : f32 to vector<16x16xf32>
    %115 = arith.mulf %112, %114 : vector<16x16xf32>
    %116 = arith.addf %103, %115 : vector<16x16xf32>
    %c33 = arith.constant 33 : index
    %117 = memref.load %arg2[%c33] : memref<75xf32, #tpu.memory_space<smem>>
    %118 = vector.broadcast %117 : f32 to vector<16x16xf32>
    %119 = arith.mulf %112, %118 : vector<16x16xf32>
    %120 = arith.addf %107, %119 : vector<16x16xf32>
    %c58 = arith.constant 58 : index
    %121 = memref.load %arg2[%c58] : memref<75xf32, #tpu.memory_space<smem>>
    %122 = vector.broadcast %121 : f32 to vector<16x16xf32>
    %123 = arith.mulf %112, %122 : vector<16x16xf32>
    %124 = arith.addf %111, %123 : vector<16x16xf32>
    %125 = vector.extract_strided_slice %72 {offsets = [0, 4], sizes = [16, 16], strides = [1, 1]} : vector<16x20xf32> to vector<16x16xf32>
    %c9 = arith.constant 9 : index
    %126 = memref.load %arg2[%c9] : memref<75xf32, #tpu.memory_space<smem>>
    %127 = vector.broadcast %126 : f32 to vector<16x16xf32>
    %128 = arith.mulf %125, %127 : vector<16x16xf32>
    %129 = arith.addf %116, %128 : vector<16x16xf32>
    %c34 = arith.constant 34 : index
    %130 = memref.load %arg2[%c34] : memref<75xf32, #tpu.memory_space<smem>>
    %131 = vector.broadcast %130 : f32 to vector<16x16xf32>
    %132 = arith.mulf %125, %131 : vector<16x16xf32>
    %133 = arith.addf %120, %132 : vector<16x16xf32>
    %c59 = arith.constant 59 : index
    %134 = memref.load %arg2[%c59] : memref<75xf32, #tpu.memory_space<smem>>
    %135 = vector.broadcast %134 : f32 to vector<16x16xf32>
    %136 = arith.mulf %125, %135 : vector<16x16xf32>
    %137 = arith.addf %124, %136 : vector<16x16xf32>
    %c0_16 = arith.constant 0 : index
    %c2_17 = arith.constant 2 : index
    %c0_18 = arith.constant 0 : index
    %138 = vector.load %arg9[%c0_16, %c2_17, %c0_18] : memref<3x20x20xf32, #tpu.memory_space<vmem>>, vector<1x16x20xf32>
    %139 = vector.shape_cast %138 : vector<1x16x20xf32> to vector<16x20xf32>
    %140 = vector.extract_strided_slice %139 {offsets = [0, 0], sizes = [16, 16], strides = [1, 1]} : vector<16x20xf32> to vector<16x16xf32>
    %c10 = arith.constant 10 : index
    %141 = memref.load %arg2[%c10] : memref<75xf32, #tpu.memory_space<smem>>
    %142 = vector.broadcast %141 : f32 to vector<16x16xf32>
    %143 = arith.mulf %140, %142 : vector<16x16xf32>
    %144 = arith.addf %129, %143 : vector<16x16xf32>
    %c35 = arith.constant 35 : index
    %145 = memref.load %arg2[%c35] : memref<75xf32, #tpu.memory_space<smem>>
    %146 = vector.broadcast %145 : f32 to vector<16x16xf32>
    %147 = arith.mulf %140, %146 : vector<16x16xf32>
    %148 = arith.addf %133, %147 : vector<16x16xf32>
    %c60 = arith.constant 60 : index
    %149 = memref.load %arg2[%c60] : memref<75xf32, #tpu.memory_space<smem>>
    %150 = vector.broadcast %149 : f32 to vector<16x16xf32>
    %151 = arith.mulf %140, %150 : vector<16x16xf32>
    %152 = arith.addf %137, %151 : vector<16x16xf32>
    %153 = vector.extract_strided_slice %139 {offsets = [0, 1], sizes = [16, 16], strides = [1, 1]} : vector<16x20xf32> to vector<16x16xf32>
    %c11 = arith.constant 11 : index
    %154 = memref.load %arg2[%c11] : memref<75xf32, #tpu.memory_space<smem>>
    %155 = vector.broadcast %154 : f32 to vector<16x16xf32>
    %156 = arith.mulf %153, %155 : vector<16x16xf32>
    %157 = arith.addf %144, %156 : vector<16x16xf32>
    %c36 = arith.constant 36 : index
    %158 = memref.load %arg2[%c36] : memref<75xf32, #tpu.memory_space<smem>>
    %159 = vector.broadcast %158 : f32 to vector<16x16xf32>
    %160 = arith.mulf %153, %159 : vector<16x16xf32>
    %161 = arith.addf %148, %160 : vector<16x16xf32>
    %c61 = arith.constant 61 : index
    %162 = memref.load %arg2[%c61] : memref<75xf32, #tpu.memory_space<smem>>
    %163 = vector.broadcast %162 : f32 to vector<16x16xf32>
    %164 = arith.mulf %153, %163 : vector<16x16xf32>
    %165 = arith.addf %152, %164 : vector<16x16xf32>
    %166 = vector.extract_strided_slice %139 {offsets = [0, 2], sizes = [16, 16], strides = [1, 1]} : vector<16x20xf32> to vector<16x16xf32>
    %c12 = arith.constant 12 : index
    %167 = memref.load %arg2[%c12] : memref<75xf32, #tpu.memory_space<smem>>
    %168 = vector.broadcast %167 : f32 to vector<16x16xf32>
    %169 = arith.mulf %166, %168 : vector<16x16xf32>
    %170 = arith.addf %157, %169 : vector<16x16xf32>
    %c37 = arith.constant 37 : index
    %171 = memref.load %arg2[%c37] : memref<75xf32, #tpu.memory_space<smem>>
    %172 = vector.broadcast %171 : f32 to vector<16x16xf32>
    %173 = arith.mulf %166, %172 : vector<16x16xf32>
    %174 = arith.addf %161, %173 : vector<16x16xf32>
    %c62 = arith.constant 62 : index
    %175 = memref.load %arg2[%c62] : memref<75xf32, #tpu.memory_space<smem>>
    %176 = vector.broadcast %175 : f32 to vector<16x16xf32>
    %177 = arith.mulf %166, %176 : vector<16x16xf32>
    %178 = arith.addf %165, %177 : vector<16x16xf32>
    %179 = vector.extract_strided_slice %139 {offsets = [0, 3], sizes = [16, 16], strides = [1, 1]} : vector<16x20xf32> to vector<16x16xf32>
    %c13 = arith.constant 13 : index
    %180 = memref.load %arg2[%c13] : memref<75xf32, #tpu.memory_space<smem>>
    %181 = vector.broadcast %180 : f32 to vector<16x16xf32>
    %182 = arith.mulf %179, %181 : vector<16x16xf32>
    %183 = arith.addf %170, %182 : vector<16x16xf32>
    %c38 = arith.constant 38 : index
    %184 = memref.load %arg2[%c38] : memref<75xf32, #tpu.memory_space<smem>>
    %185 = vector.broadcast %184 : f32 to vector<16x16xf32>
    %186 = arith.mulf %179, %185 : vector<16x16xf32>
    %187 = arith.addf %174, %186 : vector<16x16xf32>
    %c63 = arith.constant 63 : index
    %188 = memref.load %arg2[%c63] : memref<75xf32, #tpu.memory_space<smem>>
    %189 = vector.broadcast %188 : f32 to vector<16x16xf32>
    %190 = arith.mulf %179, %189 : vector<16x16xf32>
    %191 = arith.addf %178, %190 : vector<16x16xf32>
    %192 = vector.extract_strided_slice %139 {offsets = [0, 4], sizes = [16, 16], strides = [1, 1]} : vector<16x20xf32> to vector<16x16xf32>
    %c14 = arith.constant 14 : index
    %193 = memref.load %arg2[%c14] : memref<75xf32, #tpu.memory_space<smem>>
    %194 = vector.broadcast %193 : f32 to vector<16x16xf32>
    %195 = arith.mulf %192, %194 : vector<16x16xf32>
    %196 = arith.addf %183, %195 : vector<16x16xf32>
    %c39 = arith.constant 39 : index
    %197 = memref.load %arg2[%c39] : memref<75xf32, #tpu.memory_space<smem>>
    %198 = vector.broadcast %197 : f32 to vector<16x16xf32>
    %199 = arith.mulf %192, %198 : vector<16x16xf32>
    %200 = arith.addf %187, %199 : vector<16x16xf32>
    %c64 = arith.constant 64 : index
    %201 = memref.load %arg2[%c64] : memref<75xf32, #tpu.memory_space<smem>>
    %202 = vector.broadcast %201 : f32 to vector<16x16xf32>
    %203 = arith.mulf %192, %202 : vector<16x16xf32>
    %204 = arith.addf %191, %203 : vector<16x16xf32>
    %c0_19 = arith.constant 0 : index
    %c3_20 = arith.constant 3 : index
    %c0_21 = arith.constant 0 : index
    %205 = vector.load %arg9[%c0_19, %c3_20, %c0_21] : memref<3x20x20xf32, #tpu.memory_space<vmem>>, vector<1x16x20xf32>
    %206 = vector.shape_cast %205 : vector<1x16x20xf32> to vector<16x20xf32>
    %207 = vector.extract_strided_slice %206 {offsets = [0, 0], sizes = [16, 16], strides = [1, 1]} : vector<16x20xf32> to vector<16x16xf32>
    %c15 = arith.constant 15 : index
    %208 = memref.load %arg2[%c15] : memref<75xf32, #tpu.memory_space<smem>>
    %209 = vector.broadcast %208 : f32 to vector<16x16xf32>
    %210 = arith.mulf %207, %209 : vector<16x16xf32>
    %211 = arith.addf %196, %210 : vector<16x16xf32>
    %c40 = arith.constant 40 : index
    %212 = memref.load %arg2[%c40] : memref<75xf32, #tpu.memory_space<smem>>
    %213 = vector.broadcast %212 : f32 to vector<16x16xf32>
    %214 = arith.mulf %207, %213 : vector<16x16xf32>
    %215 = arith.addf %200, %214 : vector<16x16xf32>
    %c65 = arith.constant 65 : index
    %216 = memref.load %arg2[%c65] : memref<75xf32, #tpu.memory_space<smem>>
    %217 = vector.broadcast %216 : f32 to vector<16x16xf32>
    %218 = arith.mulf %207, %217 : vector<16x16xf32>
    %219 = arith.addf %204, %218 : vector<16x16xf32>
    %220 = vector.extract_strided_slice %206 {offsets = [0, 1], sizes = [16, 16], strides = [1, 1]} : vector<16x20xf32> to vector<16x16xf32>
    %c16 = arith.constant 16 : index
    %221 = memref.load %arg2[%c16] : memref<75xf32, #tpu.memory_space<smem>>
    %222 = vector.broadcast %221 : f32 to vector<16x16xf32>
    %223 = arith.mulf %220, %222 : vector<16x16xf32>
    %224 = arith.addf %211, %223 : vector<16x16xf32>
    %c41 = arith.constant 41 : index
    %225 = memref.load %arg2[%c41] : memref<75xf32, #tpu.memory_space<smem>>
    %226 = vector.broadcast %225 : f32 to vector<16x16xf32>
    %227 = arith.mulf %220, %226 : vector<16x16xf32>
    %228 = arith.addf %215, %227 : vector<16x16xf32>
    %c66 = arith.constant 66 : index
    %229 = memref.load %arg2[%c66] : memref<75xf32, #tpu.memory_space<smem>>
    %230 = vector.broadcast %229 : f32 to vector<16x16xf32>
    %231 = arith.mulf %220, %230 : vector<16x16xf32>
    %232 = arith.addf %219, %231 : vector<16x16xf32>
    %233 = vector.extract_strided_slice %206 {offsets = [0, 2], sizes = [16, 16], strides = [1, 1]} : vector<16x20xf32> to vector<16x16xf32>
    %c17 = arith.constant 17 : index
    %234 = memref.load %arg2[%c17] : memref<75xf32, #tpu.memory_space<smem>>
    %235 = vector.broadcast %234 : f32 to vector<16x16xf32>
    %236 = arith.mulf %233, %235 : vector<16x16xf32>
    %237 = arith.addf %224, %236 : vector<16x16xf32>
    %c42 = arith.constant 42 : index
    %238 = memref.load %arg2[%c42] : memref<75xf32, #tpu.memory_space<smem>>
    %239 = vector.broadcast %238 : f32 to vector<16x16xf32>
    %240 = arith.mulf %233, %239 : vector<16x16xf32>
    %241 = arith.addf %228, %240 : vector<16x16xf32>
    %c67 = arith.constant 67 : index
    %242 = memref.load %arg2[%c67] : memref<75xf32, #tpu.memory_space<smem>>
    %243 = vector.broadcast %242 : f32 to vector<16x16xf32>
    %244 = arith.mulf %233, %243 : vector<16x16xf32>
    %245 = arith.addf %232, %244 : vector<16x16xf32>
    %246 = vector.extract_strided_slice %206 {offsets = [0, 3], sizes = [16, 16], strides = [1, 1]} : vector<16x20xf32> to vector<16x16xf32>
    %c18 = arith.constant 18 : index
    %247 = memref.load %arg2[%c18] : memref<75xf32, #tpu.memory_space<smem>>
    %248 = vector.broadcast %247 : f32 to vector<16x16xf32>
    %249 = arith.mulf %246, %248 : vector<16x16xf32>
    %250 = arith.addf %237, %249 : vector<16x16xf32>
    %c43 = arith.constant 43 : index
    %251 = memref.load %arg2[%c43] : memref<75xf32, #tpu.memory_space<smem>>
    %252 = vector.broadcast %251 : f32 to vector<16x16xf32>
    %253 = arith.mulf %246, %252 : vector<16x16xf32>
    %254 = arith.addf %241, %253 : vector<16x16xf32>
    %c68 = arith.constant 68 : index
    %255 = memref.load %arg2[%c68] : memref<75xf32, #tpu.memory_space<smem>>
    %256 = vector.broadcast %255 : f32 to vector<16x16xf32>
    %257 = arith.mulf %246, %256 : vector<16x16xf32>
    %258 = arith.addf %245, %257 : vector<16x16xf32>
    %259 = vector.extract_strided_slice %206 {offsets = [0, 4], sizes = [16, 16], strides = [1, 1]} : vector<16x20xf32> to vector<16x16xf32>
    %c19 = arith.constant 19 : index
    %260 = memref.load %arg2[%c19] : memref<75xf32, #tpu.memory_space<smem>>
    %261 = vector.broadcast %260 : f32 to vector<16x16xf32>
    %262 = arith.mulf %259, %261 : vector<16x16xf32>
    %263 = arith.addf %250, %262 : vector<16x16xf32>
    %c44 = arith.constant 44 : index
    %264 = memref.load %arg2[%c44] : memref<75xf32, #tpu.memory_space<smem>>
    %265 = vector.broadcast %264 : f32 to vector<16x16xf32>
    %266 = arith.mulf %259, %265 : vector<16x16xf32>
    %267 = arith.addf %254, %266 : vector<16x16xf32>
    %c69 = arith.constant 69 : index
    %268 = memref.load %arg2[%c69] : memref<75xf32, #tpu.memory_space<smem>>
    %269 = vector.broadcast %268 : f32 to vector<16x16xf32>
    %270 = arith.mulf %259, %269 : vector<16x16xf32>
    %271 = arith.addf %258, %270 : vector<16x16xf32>
    %c0_22 = arith.constant 0 : index
    %c4_23 = arith.constant 4 : index
    %c0_24 = arith.constant 0 : index
    %272 = vector.load %arg9[%c0_22, %c4_23, %c0_24] : memref<3x20x20xf32, #tpu.memory_space<vmem>>, vector<1x16x20xf32>
    %273 = vector.shape_cast %272 : vector<1x16x20xf32> to vector<16x20xf32>
    %274 = vector.extract_strided_slice %273 {offsets = [0, 0], sizes = [16, 16], strides = [1, 1]} : vector<16x20xf32> to vector<16x16xf32>
    %c20 = arith.constant 20 : index
    %275 = memref.load %arg2[%c20] : memref<75xf32, #tpu.memory_space<smem>>
    %276 = vector.broadcast %275 : f32 to vector<16x16xf32>
    %277 = arith.mulf %274, %276 : vector<16x16xf32>
    %278 = arith.addf %263, %277 : vector<16x16xf32>
    %c45 = arith.constant 45 : index
    %279 = memref.load %arg2[%c45] : memref<75xf32, #tpu.memory_space<smem>>
    %280 = vector.broadcast %279 : f32 to vector<16x16xf32>
    %281 = arith.mulf %274, %280 : vector<16x16xf32>
    %282 = arith.addf %267, %281 : vector<16x16xf32>
    %c70 = arith.constant 70 : index
    %283 = memref.load %arg2[%c70] : memref<75xf32, #tpu.memory_space<smem>>
    %284 = vector.broadcast %283 : f32 to vector<16x16xf32>
    %285 = arith.mulf %274, %284 : vector<16x16xf32>
    %286 = arith.addf %271, %285 : vector<16x16xf32>
    %287 = vector.extract_strided_slice %273 {offsets = [0, 1], sizes = [16, 16], strides = [1, 1]} : vector<16x20xf32> to vector<16x16xf32>
    %c21 = arith.constant 21 : index
    %288 = memref.load %arg2[%c21] : memref<75xf32, #tpu.memory_space<smem>>
    %289 = vector.broadcast %288 : f32 to vector<16x16xf32>
    %290 = arith.mulf %287, %289 : vector<16x16xf32>
    %291 = arith.addf %278, %290 : vector<16x16xf32>
    %c46 = arith.constant 46 : index
    %292 = memref.load %arg2[%c46] : memref<75xf32, #tpu.memory_space<smem>>
    %293 = vector.broadcast %292 : f32 to vector<16x16xf32>
    %294 = arith.mulf %287, %293 : vector<16x16xf32>
    %295 = arith.addf %282, %294 : vector<16x16xf32>
    %c71 = arith.constant 71 : index
    %296 = memref.load %arg2[%c71] : memref<75xf32, #tpu.memory_space<smem>>
    %297 = vector.broadcast %296 : f32 to vector<16x16xf32>
    %298 = arith.mulf %287, %297 : vector<16x16xf32>
    %299 = arith.addf %286, %298 : vector<16x16xf32>
    %300 = vector.extract_strided_slice %273 {offsets = [0, 2], sizes = [16, 16], strides = [1, 1]} : vector<16x20xf32> to vector<16x16xf32>
    %c22 = arith.constant 22 : index
    %301 = memref.load %arg2[%c22] : memref<75xf32, #tpu.memory_space<smem>>
    %302 = vector.broadcast %301 : f32 to vector<16x16xf32>
    %303 = arith.mulf %300, %302 : vector<16x16xf32>
    %304 = arith.addf %291, %303 : vector<16x16xf32>
    %c47 = arith.constant 47 : index
    %305 = memref.load %arg2[%c47] : memref<75xf32, #tpu.memory_space<smem>>
    %306 = vector.broadcast %305 : f32 to vector<16x16xf32>
    %307 = arith.mulf %300, %306 : vector<16x16xf32>
    %308 = arith.addf %295, %307 : vector<16x16xf32>
    %c72 = arith.constant 72 : index
    %309 = memref.load %arg2[%c72] : memref<75xf32, #tpu.memory_space<smem>>
    %310 = vector.broadcast %309 : f32 to vector<16x16xf32>
    %311 = arith.mulf %300, %310 : vector<16x16xf32>
    %312 = arith.addf %299, %311 : vector<16x16xf32>
    %313 = vector.extract_strided_slice %273 {offsets = [0, 3], sizes = [16, 16], strides = [1, 1]} : vector<16x20xf32> to vector<16x16xf32>
    %c23 = arith.constant 23 : index
    %314 = memref.load %arg2[%c23] : memref<75xf32, #tpu.memory_space<smem>>
    %315 = vector.broadcast %314 : f32 to vector<16x16xf32>
    %316 = arith.mulf %313, %315 : vector<16x16xf32>
    %317 = arith.addf %304, %316 : vector<16x16xf32>
    %c48 = arith.constant 48 : index
    %318 = memref.load %arg2[%c48] : memref<75xf32, #tpu.memory_space<smem>>
    %319 = vector.broadcast %318 : f32 to vector<16x16xf32>
    %320 = arith.mulf %313, %319 : vector<16x16xf32>
    %321 = arith.addf %308, %320 : vector<16x16xf32>
    %c73 = arith.constant 73 : index
    %322 = memref.load %arg2[%c73] : memref<75xf32, #tpu.memory_space<smem>>
    %323 = vector.broadcast %322 : f32 to vector<16x16xf32>
    %324 = arith.mulf %313, %323 : vector<16x16xf32>
    %325 = arith.addf %312, %324 : vector<16x16xf32>
    %326 = vector.extract_strided_slice %273 {offsets = [0, 4], sizes = [16, 16], strides = [1, 1]} : vector<16x20xf32> to vector<16x16xf32>
    %c24 = arith.constant 24 : index
    %327 = memref.load %arg2[%c24] : memref<75xf32, #tpu.memory_space<smem>>
    %328 = vector.broadcast %327 : f32 to vector<16x16xf32>
    %329 = arith.mulf %326, %328 : vector<16x16xf32>
    %330 = arith.addf %317, %329 : vector<16x16xf32>
    %c49 = arith.constant 49 : index
    %331 = memref.load %arg2[%c49] : memref<75xf32, #tpu.memory_space<smem>>
    %332 = vector.broadcast %331 : f32 to vector<16x16xf32>
    %333 = arith.mulf %326, %332 : vector<16x16xf32>
    %334 = arith.addf %321, %333 : vector<16x16xf32>
    %c74 = arith.constant 74 : index
    %335 = memref.load %arg2[%c74] : memref<75xf32, #tpu.memory_space<smem>>
    %336 = vector.broadcast %335 : f32 to vector<16x16xf32>
    %337 = arith.mulf %326, %336 : vector<16x16xf32>
    %338 = arith.addf %325, %337 : vector<16x16xf32>
    %c0_25 = arith.constant 0 : index
    %339 = memref.load %arg3[%c0_25] : memref<3xf32, #tpu.memory_space<smem>>
    %340 = vector.broadcast %339 : f32 to vector<16x16xf32>
    %341 = arith.addf %330, %340 : vector<16x16xf32>
    %c1_26 = arith.constant 1 : index
    %342 = memref.load %arg3[%c1_26] : memref<3xf32, #tpu.memory_space<smem>>
    %343 = vector.broadcast %342 : f32 to vector<16x16xf32>
    %344 = arith.addf %334, %343 : vector<16x16xf32>
    %c2_27 = arith.constant 2 : index
    %345 = memref.load %arg3[%c2_27] : memref<3xf32, #tpu.memory_space<smem>>
    %346 = vector.broadcast %345 : f32 to vector<16x16xf32>
    %347 = arith.addf %338, %346 : vector<16x16xf32>
    %cst_28 = arith.constant 0.000000e+00 : f32
    %348 = vector.broadcast %cst_28 : f32 to vector<3x20x20xf32>
    %c0_29 = arith.constant 0 : index
    %c0_30 = arith.constant 0 : index
    %c0_31 = arith.constant 0 : index
    %349 = vector.load %arg10[%c0_29, %c0_30, %c0_31] : memref<3x20x20xf32, #tpu.memory_space<vmem>>, vector<3x20x20xf32>
    tpu.vector_store %arg10[%c0_29, %c0_30, %c0_31], %348 {strides = array<i32>} : memref<3x20x20xf32, #tpu.memory_space<vmem>>, vector<3x20x20xf32>,
    %c0_32 = arith.constant 0 : index
    %c2_33 = arith.constant 2 : index
    %c2_34 = arith.constant 2 : index
    %350 = vector.load %arg10[%c0_32, %c2_33, %c2_34] : memref<3x20x20xf32, #tpu.memory_space<vmem>>, vector<1x16x16xf32>
    %351 = vector.shape_cast %350 : vector<1x16x16xf32> to vector<16x16xf32>
    %352 = vector.shape_cast %341 : vector<16x16xf32> to vector<1x16x16xf32>
    tpu.vector_store %arg10[%c0_32, %c2_33, %c2_34], %352 {strides = array<i32>} : memref<3x20x20xf32, #tpu.memory_space<vmem>>, vector<1x16x16xf32>,
    %c1_35 = arith.constant 1 : index
    %c2_36 = arith.constant 2 : index
    %c2_37 = arith.constant 2 : index
    %353 = vector.load %arg10[%c1_35, %c2_36, %c2_37] : memref<3x20x20xf32, #tpu.memory_space<vmem>>, vector<1x16x16xf32>
    %354 = vector.shape_cast %353 : vector<1x16x16xf32> to vector<16x16xf32>
    %355 = vector.shape_cast %344 : vector<16x16xf32> to vector<1x16x16xf32>
    tpu.vector_store %arg10[%c1_35, %c2_36, %c2_37], %355 {strides = array<i32>} : memref<3x20x20xf32, #tpu.memory_space<vmem>>, vector<1x16x16xf32>,
    %c2_38 = arith.constant 2 : index
    %c2_39 = arith.constant 2 : index
    %c2_40 = arith.constant 2 : index
    %356 = vector.load %arg10[%c2_38, %c2_39, %c2_40] : memref<3x20x20xf32, #tpu.memory_space<vmem>>, vector<1x16x16xf32>
    %357 = vector.shape_cast %356 : vector<1x16x16xf32> to vector<16x16xf32>
    %358 = vector.shape_cast %347 : vector<16x16xf32> to vector<1x16x16xf32>
    tpu.vector_store %arg10[%c2_38, %c2_39, %c2_40], %358 {strides = array<i32>} : memref<3x20x20xf32, #tpu.memory_space<vmem>>, vector<1x16x16xf32>,
    %c0_41 = arith.constant 0 : index
    %c0_42 = arith.constant 0 : index
    %c0_43 = arith.constant 0 : index
    %359 = vector.load %arg10[%c0_41, %c0_42, %c0_43] : memref<3x20x20xf32, #tpu.memory_space<vmem>>, vector<1x16x20xf32>
    %360 = vector.shape_cast %359 : vector<1x16x20xf32> to vector<16x20xf32>
    %361 = vector.extract_strided_slice %360 {offsets = [0, 0], sizes = [16, 16], strides = [1, 1]} : vector<16x20xf32> to vector<16x16xf32>
    %c0_44 = arith.constant 0 : index
    %362 = memref.load %arg4[%c0_44] : memref<225xf32, #tpu.memory_space<smem>>
    %363 = vector.broadcast %362 : f32 to vector<16x16xf32>
    %364 = arith.mulf %361, %363 : vector<16x16xf32>
    %c75 = arith.constant 75 : index
    %365 = memref.load %arg4[%c75] : memref<225xf32, #tpu.memory_space<smem>>
    %366 = vector.broadcast %365 : f32 to vector<16x16xf32>
    %367 = arith.mulf %361, %366 : vector<16x16xf32>
    %c150 = arith.constant 150 : index
    %368 = memref.load %arg4[%c150] : memref<225xf32, #tpu.memory_space<smem>>
    %369 = vector.broadcast %368 : f32 to vector<16x16xf32>
    %370 = arith.mulf %361, %369 : vector<16x16xf32>
    %371 = vector.extract_strided_slice %360 {offsets = [0, 1], sizes = [16, 16], strides = [1, 1]} : vector<16x20xf32> to vector<16x16xf32>
    %c1_45 = arith.constant 1 : index
    %372 = memref.load %arg4[%c1_45] : memref<225xf32, #tpu.memory_space<smem>>
    %373 = vector.broadcast %372 : f32 to vector<16x16xf32>
    %374 = arith.mulf %371, %373 : vector<16x16xf32>
    %375 = arith.addf %364, %374 : vector<16x16xf32>
    %c76 = arith.constant 76 : index
    %376 = memref.load %arg4[%c76] : memref<225xf32, #tpu.memory_space<smem>>
    %377 = vector.broadcast %376 : f32 to vector<16x16xf32>
    %378 = arith.mulf %371, %377 : vector<16x16xf32>
    %379 = arith.addf %367, %378 : vector<16x16xf32>
    %c151 = arith.constant 151 : index
    %380 = memref.load %arg4[%c151] : memref<225xf32, #tpu.memory_space<smem>>
    %381 = vector.broadcast %380 : f32 to vector<16x16xf32>
    %382 = arith.mulf %371, %381 : vector<16x16xf32>
    %383 = arith.addf %370, %382 : vector<16x16xf32>
    %384 = vector.extract_strided_slice %360 {offsets = [0, 2], sizes = [16, 16], strides = [1, 1]} : vector<16x20xf32> to vector<16x16xf32>
    %c2_46 = arith.constant 2 : index
    %385 = memref.load %arg4[%c2_46] : memref<225xf32, #tpu.memory_space<smem>>
    %386 = vector.broadcast %385 : f32 to vector<16x16xf32>
    %387 = arith.mulf %384, %386 : vector<16x16xf32>
    %388 = arith.addf %375, %387 : vector<16x16xf32>
    %c77 = arith.constant 77 : index
    %389 = memref.load %arg4[%c77] : memref<225xf32, #tpu.memory_space<smem>>
    %390 = vector.broadcast %389 : f32 to vector<16x16xf32>
    %391 = arith.mulf %384, %390 : vector<16x16xf32>
    %392 = arith.addf %379, %391 : vector<16x16xf32>
    %c152 = arith.constant 152 : index
    %393 = memref.load %arg4[%c152] : memref<225xf32, #tpu.memory_space<smem>>
    %394 = vector.broadcast %393 : f32 to vector<16x16xf32>
    %395 = arith.mulf %384, %394 : vector<16x16xf32>
    %396 = arith.addf %383, %395 : vector<16x16xf32>
    %397 = vector.extract_strided_slice %360 {offsets = [0, 3], sizes = [16, 16], strides = [1, 1]} : vector<16x20xf32> to vector<16x16xf32>
    %c3_47 = arith.constant 3 : index
    %398 = memref.load %arg4[%c3_47] : memref<225xf32, #tpu.memory_space<smem>>
    %399 = vector.broadcast %398 : f32 to vector<16x16xf32>
    %400 = arith.mulf %397, %399 : vector<16x16xf32>
    %401 = arith.addf %388, %400 : vector<16x16xf32>
    %c78 = arith.constant 78 : index
    %402 = memref.load %arg4[%c78] : memref<225xf32, #tpu.memory_space<smem>>
    %403 = vector.broadcast %402 : f32 to vector<16x16xf32>
    %404 = arith.mulf %397, %403 : vector<16x16xf32>
    %405 = arith.addf %392, %404 : vector<16x16xf32>
    %c153 = arith.constant 153 : index
    %406 = memref.load %arg4[%c153] : memref<225xf32, #tpu.memory_space<smem>>
    %407 = vector.broadcast %406 : f32 to vector<16x16xf32>
    %408 = arith.mulf %397, %407 : vector<16x16xf32>
    %409 = arith.addf %396, %408 : vector<16x16xf32>
    %410 = vector.extract_strided_slice %360 {offsets = [0, 4], sizes = [16, 16], strides = [1, 1]} : vector<16x20xf32> to vector<16x16xf32>
    %c4_48 = arith.constant 4 : index
    %411 = memref.load %arg4[%c4_48] : memref<225xf32, #tpu.memory_space<smem>>
    %412 = vector.broadcast %411 : f32 to vector<16x16xf32>
    %413 = arith.mulf %410, %412 : vector<16x16xf32>
    %414 = arith.addf %401, %413 : vector<16x16xf32>
    %c79 = arith.constant 79 : index
    %415 = memref.load %arg4[%c79] : memref<225xf32, #tpu.memory_space<smem>>
    %416 = vector.broadcast %415 : f32 to vector<16x16xf32>
    %417 = arith.mulf %410, %416 : vector<16x16xf32>
    %418 = arith.addf %405, %417 : vector<16x16xf32>
    %c154 = arith.constant 154 : index
    %419 = memref.load %arg4[%c154] : memref<225xf32, #tpu.memory_space<smem>>
    %420 = vector.broadcast %419 : f32 to vector<16x16xf32>
    %421 = arith.mulf %410, %420 : vector<16x16xf32>
    %422 = arith.addf %409, %421 : vector<16x16xf32>
    %c0_49 = arith.constant 0 : index
    %c1_50 = arith.constant 1 : index
    %c0_51 = arith.constant 0 : index
    %423 = vector.load %arg10[%c0_49, %c1_50, %c0_51] : memref<3x20x20xf32, #tpu.memory_space<vmem>>, vector<1x16x20xf32>
    %424 = vector.shape_cast %423 : vector<1x16x20xf32> to vector<16x20xf32>
    %425 = vector.extract_strided_slice %424 {offsets = [0, 0], sizes = [16, 16], strides = [1, 1]} : vector<16x20xf32> to vector<16x16xf32>
    %c5_52 = arith.constant 5 : index
    %426 = memref.load %arg4[%c5_52] : memref<225xf32, #tpu.memory_space<smem>>
    %427 = vector.broadcast %426 : f32 to vector<16x16xf32>
    %428 = arith.mulf %425, %427 : vector<16x16xf32>
    %429 = arith.addf %414, %428 : vector<16x16xf32>
    %c80 = arith.constant 80 : index
    %430 = memref.load %arg4[%c80] : memref<225xf32, #tpu.memory_space<smem>>
    %431 = vector.broadcast %430 : f32 to vector<16x16xf32>
    %432 = arith.mulf %425, %431 : vector<16x16xf32>
    %433 = arith.addf %418, %432 : vector<16x16xf32>
    %c155 = arith.constant 155 : index
    %434 = memref.load %arg4[%c155] : memref<225xf32, #tpu.memory_space<smem>>
    %435 = vector.broadcast %434 : f32 to vector<16x16xf32>
    %436 = arith.mulf %425, %435 : vector<16x16xf32>
    %437 = arith.addf %422, %436 : vector<16x16xf32>
    %438 = vector.extract_strided_slice %424 {offsets = [0, 1], sizes = [16, 16], strides = [1, 1]} : vector<16x20xf32> to vector<16x16xf32>
    %c6_53 = arith.constant 6 : index
    %439 = memref.load %arg4[%c6_53] : memref<225xf32, #tpu.memory_space<smem>>
    %440 = vector.broadcast %439 : f32 to vector<16x16xf32>
    %441 = arith.mulf %438, %440 : vector<16x16xf32>
    %442 = arith.addf %429, %441 : vector<16x16xf32>
    %c81 = arith.constant 81 : index
    %443 = memref.load %arg4[%c81] : memref<225xf32, #tpu.memory_space<smem>>
    %444 = vector.broadcast %443 : f32 to vector<16x16xf32>
    %445 = arith.mulf %438, %444 : vector<16x16xf32>
    %446 = arith.addf %433, %445 : vector<16x16xf32>
    %c156 = arith.constant 156 : index
    %447 = memref.load %arg4[%c156] : memref<225xf32, #tpu.memory_space<smem>>
    %448 = vector.broadcast %447 : f32 to vector<16x16xf32>
    %449 = arith.mulf %438, %448 : vector<16x16xf32>
    %450 = arith.addf %437, %449 : vector<16x16xf32>
    %451 = vector.extract_strided_slice %424 {offsets = [0, 2], sizes = [16, 16], strides = [1, 1]} : vector<16x20xf32> to vector<16x16xf32>
    %c7_54 = arith.constant 7 : index
    %452 = memref.load %arg4[%c7_54] : memref<225xf32, #tpu.memory_space<smem>>
    %453 = vector.broadcast %452 : f32 to vector<16x16xf32>
    %454 = arith.mulf %451, %453 : vector<16x16xf32>
    %455 = arith.addf %442, %454 : vector<16x16xf32>
    %c82 = arith.constant 82 : index
    %456 = memref.load %arg4[%c82] : memref<225xf32, #tpu.memory_space<smem>>
    %457 = vector.broadcast %456 : f32 to vector<16x16xf32>
    %458 = arith.mulf %451, %457 : vector<16x16xf32>
    %459 = arith.addf %446, %458 : vector<16x16xf32>
    %c157 = arith.constant 157 : index
    %460 = memref.load %arg4[%c157] : memref<225xf32, #tpu.memory_space<smem>>
    %461 = vector.broadcast %460 : f32 to vector<16x16xf32>
    %462 = arith.mulf %451, %461 : vector<16x16xf32>
    %463 = arith.addf %450, %462 : vector<16x16xf32>
    %464 = vector.extract_strided_slice %424 {offsets = [0, 3], sizes = [16, 16], strides = [1, 1]} : vector<16x20xf32> to vector<16x16xf32>
    %c8_55 = arith.constant 8 : index
    %465 = memref.load %arg4[%c8_55] : memref<225xf32, #tpu.memory_space<smem>>
    %466 = vector.broadcast %465 : f32 to vector<16x16xf32>
    %467 = arith.mulf %464, %466 : vector<16x16xf32>
    %468 = arith.addf %455, %467 : vector<16x16xf32>
    %c83 = arith.constant 83 : index
    %469 = memref.load %arg4[%c83] : memref<225xf32, #tpu.memory_space<smem>>
    %470 = vector.broadcast %469 : f32 to vector<16x16xf32>
    %471 = arith.mulf %464, %470 : vector<16x16xf32>
    %472 = arith.addf %459, %471 : vector<16x16xf32>
    %c158 = arith.constant 158 : index
    %473 = memref.load %arg4[%c158] : memref<225xf32, #tpu.memory_space<smem>>
    %474 = vector.broadcast %473 : f32 to vector<16x16xf32>
    %475 = arith.mulf %464, %474 : vector<16x16xf32>
    %476 = arith.addf %463, %475 : vector<16x16xf32>
    %477 = vector.extract_strided_slice %424 {offsets = [0, 4], sizes = [16, 16], strides = [1, 1]} : vector<16x20xf32> to vector<16x16xf32>
    %c9_56 = arith.constant 9 : index
    %478 = memref.load %arg4[%c9_56] : memref<225xf32, #tpu.memory_space<smem>>
    %479 = vector.broadcast %478 : f32 to vector<16x16xf32>
    %480 = arith.mulf %477, %479 : vector<16x16xf32>
    %481 = arith.addf %468, %480 : vector<16x16xf32>
    %c84 = arith.constant 84 : index
    %482 = memref.load %arg4[%c84] : memref<225xf32, #tpu.memory_space<smem>>
    %483 = vector.broadcast %482 : f32 to vector<16x16xf32>
    %484 = arith.mulf %477, %483 : vector<16x16xf32>
    %485 = arith.addf %472, %484 : vector<16x16xf32>
    %c159 = arith.constant 159 : index
    %486 = memref.load %arg4[%c159] : memref<225xf32, #tpu.memory_space<smem>>
    %487 = vector.broadcast %486 : f32 to vector<16x16xf32>
    %488 = arith.mulf %477, %487 : vector<16x16xf32>
    %489 = arith.addf %476, %488 : vector<16x16xf32>
    %c0_57 = arith.constant 0 : index
    %c2_58 = arith.constant 2 : index
    %c0_59 = arith.constant 0 : index
    %490 = vector.load %arg10[%c0_57, %c2_58, %c0_59] : memref<3x20x20xf32, #tpu.memory_space<vmem>>, vector<1x16x20xf32>
    %491 = vector.shape_cast %490 : vector<1x16x20xf32> to vector<16x20xf32>
    %492 = vector.extract_strided_slice %491 {offsets = [0, 0], sizes = [16, 16], strides = [1, 1]} : vector<16x20xf32> to vector<16x16xf32>
    %c10_60 = arith.constant 10 : index
    %493 = memref.load %arg4[%c10_60] : memref<225xf32, #tpu.memory_space<smem>>
    %494 = vector.broadcast %493 : f32 to vector<16x16xf32>
    %495 = arith.mulf %492, %494 : vector<16x16xf32>
    %496 = arith.addf %481, %495 : vector<16x16xf32>
    %c85 = arith.constant 85 : index
    %497 = memref.load %arg4[%c85] : memref<225xf32, #tpu.memory_space<smem>>
    %498 = vector.broadcast %497 : f32 to vector<16x16xf32>
    %499 = arith.mulf %492, %498 : vector<16x16xf32>
    %500 = arith.addf %485, %499 : vector<16x16xf32>
    %c160 = arith.constant 160 : index
    %501 = memref.load %arg4[%c160] : memref<225xf32, #tpu.memory_space<smem>>
    %502 = vector.broadcast %501 : f32 to vector<16x16xf32>
    %503 = arith.mulf %492, %502 : vector<16x16xf32>
    %504 = arith.addf %489, %503 : vector<16x16xf32>
    %505 = vector.extract_strided_slice %491 {offsets = [0, 1], sizes = [16, 16], strides = [1, 1]} : vector<16x20xf32> to vector<16x16xf32>
    %c11_61 = arith.constant 11 : index
    %506 = memref.load %arg4[%c11_61] : memref<225xf32, #tpu.memory_space<smem>>
    %507 = vector.broadcast %506 : f32 to vector<16x16xf32>
    %508 = arith.mulf %505, %507 : vector<16x16xf32>
    %509 = arith.addf %496, %508 : vector<16x16xf32>
    %c86 = arith.constant 86 : index
    %510 = memref.load %arg4[%c86] : memref<225xf32, #tpu.memory_space<smem>>
    %511 = vector.broadcast %510 : f32 to vector<16x16xf32>
    %512 = arith.mulf %505, %511 : vector<16x16xf32>
    %513 = arith.addf %500, %512 : vector<16x16xf32>
    %c161 = arith.constant 161 : index
    %514 = memref.load %arg4[%c161] : memref<225xf32, #tpu.memory_space<smem>>
    %515 = vector.broadcast %514 : f32 to vector<16x16xf32>
    %516 = arith.mulf %505, %515 : vector<16x16xf32>
    %517 = arith.addf %504, %516 : vector<16x16xf32>
    %518 = vector.extract_strided_slice %491 {offsets = [0, 2], sizes = [16, 16], strides = [1, 1]} : vector<16x20xf32> to vector<16x16xf32>
    %c12_62 = arith.constant 12 : index
    %519 = memref.load %arg4[%c12_62] : memref<225xf32, #tpu.memory_space<smem>>
    %520 = vector.broadcast %519 : f32 to vector<16x16xf32>
    %521 = arith.mulf %518, %520 : vector<16x16xf32>
    %522 = arith.addf %509, %521 : vector<16x16xf32>
    %c87 = arith.constant 87 : index
    %523 = memref.load %arg4[%c87] : memref<225xf32, #tpu.memory_space<smem>>
    %524 = vector.broadcast %523 : f32 to vector<16x16xf32>
    %525 = arith.mulf %518, %524 : vector<16x16xf32>
    %526 = arith.addf %513, %525 : vector<16x16xf32>
    %c162 = arith.constant 162 : index
    %527 = memref.load %arg4[%c162] : memref<225xf32, #tpu.memory_space<smem>>
    %528 = vector.broadcast %527 : f32 to vector<16x16xf32>
    %529 = arith.mulf %518, %528 : vector<16x16xf32>
    %530 = arith.addf %517, %529 : vector<16x16xf32>
    %531 = vector.extract_strided_slice %491 {offsets = [0, 3], sizes = [16, 16], strides = [1, 1]} : vector<16x20xf32> to vector<16x16xf32>
    %c13_63 = arith.constant 13 : index
    %532 = memref.load %arg4[%c13_63] : memref<225xf32, #tpu.memory_space<smem>>
    %533 = vector.broadcast %532 : f32 to vector<16x16xf32>
    %534 = arith.mulf %531, %533 : vector<16x16xf32>
    %535 = arith.addf %522, %534 : vector<16x16xf32>
    %c88 = arith.constant 88 : index
    %536 = memref.load %arg4[%c88] : memref<225xf32, #tpu.memory_space<smem>>
    %537 = vector.broadcast %536 : f32 to vector<16x16xf32>
    %538 = arith.mulf %531, %537 : vector<16x16xf32>
    %539 = arith.addf %526, %538 : vector<16x16xf32>
    %c163 = arith.constant 163 : index
    %540 = memref.load %arg4[%c163] : memref<225xf32, #tpu.memory_space<smem>>
    %541 = vector.broadcast %540 : f32 to vector<16x16xf32>
    %542 = arith.mulf %531, %541 : vector<16x16xf32>
    %543 = arith.addf %530, %542 : vector<16x16xf32>
    %544 = vector.extract_strided_slice %491 {offsets = [0, 4], sizes = [16, 16], strides = [1, 1]} : vector<16x20xf32> to vector<16x16xf32>
    %c14_64 = arith.constant 14 : index
    %545 = memref.load %arg4[%c14_64] : memref<225xf32, #tpu.memory_space<smem>>
    %546 = vector.broadcast %545 : f32 to vector<16x16xf32>
    %547 = arith.mulf %544, %546 : vector<16x16xf32>
    %548 = arith.addf %535, %547 : vector<16x16xf32>
    %c89 = arith.constant 89 : index
    %549 = memref.load %arg4[%c89] : memref<225xf32, #tpu.memory_space<smem>>
    %550 = vector.broadcast %549 : f32 to vector<16x16xf32>
    %551 = arith.mulf %544, %550 : vector<16x16xf32>
    %552 = arith.addf %539, %551 : vector<16x16xf32>
    %c164 = arith.constant 164 : index
    %553 = memref.load %arg4[%c164] : memref<225xf32, #tpu.memory_space<smem>>
    %554 = vector.broadcast %553 : f32 to vector<16x16xf32>
    %555 = arith.mulf %544, %554 : vector<16x16xf32>
    %556 = arith.addf %543, %555 : vector<16x16xf32>
    %c0_65 = arith.constant 0 : index
    %c3_66 = arith.constant 3 : index
    %c0_67 = arith.constant 0 : index
    %557 = vector.load %arg10[%c0_65, %c3_66, %c0_67] : memref<3x20x20xf32, #tpu.memory_space<vmem>>, vector<1x16x20xf32>
    %558 = vector.shape_cast %557 : vector<1x16x20xf32> to vector<16x20xf32>
    %559 = vector.extract_strided_slice %558 {offsets = [0, 0], sizes = [16, 16], strides = [1, 1]} : vector<16x20xf32> to vector<16x16xf32>
    %c15_68 = arith.constant 15 : index
    %560 = memref.load %arg4[%c15_68] : memref<225xf32, #tpu.memory_space<smem>>
    %561 = vector.broadcast %560 : f32 to vector<16x16xf32>
    %562 = arith.mulf %559, %561 : vector<16x16xf32>
    %563 = arith.addf %548, %562 : vector<16x16xf32>
    %c90 = arith.constant 90 : index
    %564 = memref.load %arg4[%c90] : memref<225xf32, #tpu.memory_space<smem>>
    %565 = vector.broadcast %564 : f32 to vector<16x16xf32>
    %566 = arith.mulf %559, %565 : vector<16x16xf32>
    %567 = arith.addf %552, %566 : vector<16x16xf32>
    %c165 = arith.constant 165 : index
    %568 = memref.load %arg4[%c165] : memref<225xf32, #tpu.memory_space<smem>>
    %569 = vector.broadcast %568 : f32 to vector<16x16xf32>
    %570 = arith.mulf %559, %569 : vector<16x16xf32>
    %571 = arith.addf %556, %570 : vector<16x16xf32>
    %572 = vector.extract_strided_slice %558 {offsets = [0, 1], sizes = [16, 16], strides = [1, 1]} : vector<16x20xf32> to vector<16x16xf32>
    %c16_69 = arith.constant 16 : index
    %573 = memref.load %arg4[%c16_69] : memref<225xf32, #tpu.memory_space<smem>>
    %574 = vector.broadcast %573 : f32 to vector<16x16xf32>
    %575 = arith.mulf %572, %574 : vector<16x16xf32>
    %576 = arith.addf %563, %575 : vector<16x16xf32>
    %c91 = arith.constant 91 : index
    %577 = memref.load %arg4[%c91] : memref<225xf32, #tpu.memory_space<smem>>
    %578 = vector.broadcast %577 : f32 to vector<16x16xf32>
    %579 = arith.mulf %572, %578 : vector<16x16xf32>
    %580 = arith.addf %567, %579 : vector<16x16xf32>
    %c166 = arith.constant 166 : index
    %581 = memref.load %arg4[%c166] : memref<225xf32, #tpu.memory_space<smem>>
    %582 = vector.broadcast %581 : f32 to vector<16x16xf32>
    %583 = arith.mulf %572, %582 : vector<16x16xf32>
    %584 = arith.addf %571, %583 : vector<16x16xf32>
    %585 = vector.extract_strided_slice %558 {offsets = [0, 2], sizes = [16, 16], strides = [1, 1]} : vector<16x20xf32> to vector<16x16xf32>
    %c17_70 = arith.constant 17 : index
    %586 = memref.load %arg4[%c17_70] : memref<225xf32, #tpu.memory_space<smem>>
    %587 = vector.broadcast %586 : f32 to vector<16x16xf32>
    %588 = arith.mulf %585, %587 : vector<16x16xf32>
    %589 = arith.addf %576, %588 : vector<16x16xf32>
    %c92 = arith.constant 92 : index
    %590 = memref.load %arg4[%c92] : memref<225xf32, #tpu.memory_space<smem>>
    %591 = vector.broadcast %590 : f32 to vector<16x16xf32>
    %592 = arith.mulf %585, %591 : vector<16x16xf32>
    %593 = arith.addf %580, %592 : vector<16x16xf32>
    %c167 = arith.constant 167 : index
    %594 = memref.load %arg4[%c167] : memref<225xf32, #tpu.memory_space<smem>>
    %595 = vector.broadcast %594 : f32 to vector<16x16xf32>
    %596 = arith.mulf %585, %595 : vector<16x16xf32>
    %597 = arith.addf %584, %596 : vector<16x16xf32>
    %598 = vector.extract_strided_slice %558 {offsets = [0, 3], sizes = [16, 16], strides = [1, 1]} : vector<16x20xf32> to vector<16x16xf32>
    %c18_71 = arith.constant 18 : index
    %599 = memref.load %arg4[%c18_71] : memref<225xf32, #tpu.memory_space<smem>>
    %600 = vector.broadcast %599 : f32 to vector<16x16xf32>
    %601 = arith.mulf %598, %600 : vector<16x16xf32>
    %602 = arith.addf %589, %601 : vector<16x16xf32>
    %c93 = arith.constant 93 : index
    %603 = memref.load %arg4[%c93] : memref<225xf32, #tpu.memory_space<smem>>
    %604 = vector.broadcast %603 : f32 to vector<16x16xf32>
    %605 = arith.mulf %598, %604 : vector<16x16xf32>
    %606 = arith.addf %593, %605 : vector<16x16xf32>
    %c168 = arith.constant 168 : index
    %607 = memref.load %arg4[%c168] : memref<225xf32, #tpu.memory_space<smem>>
    %608 = vector.broadcast %607 : f32 to vector<16x16xf32>
    %609 = arith.mulf %598, %608 : vector<16x16xf32>
    %610 = arith.addf %597, %609 : vector<16x16xf32>
    %611 = vector.extract_strided_slice %558 {offsets = [0, 4], sizes = [16, 16], strides = [1, 1]} : vector<16x20xf32> to vector<16x16xf32>
    %c19_72 = arith.constant 19 : index
    %612 = memref.load %arg4[%c19_72] : memref<225xf32, #tpu.memory_space<smem>>
    %613 = vector.broadcast %612 : f32 to vector<16x16xf32>
    %614 = arith.mulf %611, %613 : vector<16x16xf32>
    %615 = arith.addf %602, %614 : vector<16x16xf32>
    %c94 = arith.constant 94 : index
    %616 = memref.load %arg4[%c94] : memref<225xf32, #tpu.memory_space<smem>>
    %617 = vector.broadcast %616 : f32 to vector<16x16xf32>
    %618 = arith.mulf %611, %617 : vector<16x16xf32>
    %619 = arith.addf %606, %618 : vector<16x16xf32>
    %c169 = arith.constant 169 : index
    %620 = memref.load %arg4[%c169] : memref<225xf32, #tpu.memory_space<smem>>
    %621 = vector.broadcast %620 : f32 to vector<16x16xf32>
    %622 = arith.mulf %611, %621 : vector<16x16xf32>
    %623 = arith.addf %610, %622 : vector<16x16xf32>
    %c0_73 = arith.constant 0 : index
    %c4_74 = arith.constant 4 : index
    %c0_75 = arith.constant 0 : index
    %624 = vector.load %arg10[%c0_73, %c4_74, %c0_75] : memref<3x20x20xf32, #tpu.memory_space<vmem>>, vector<1x16x20xf32>
    %625 = vector.shape_cast %624 : vector<1x16x20xf32> to vector<16x20xf32>
    %626 = vector.extract_strided_slice %625 {offsets = [0, 0], sizes = [16, 16], strides = [1, 1]} : vector<16x20xf32> to vector<16x16xf32>
    %c20_76 = arith.constant 20 : index
    %627 = memref.load %arg4[%c20_76] : memref<225xf32, #tpu.memory_space<smem>>
    %628 = vector.broadcast %627 : f32 to vector<16x16xf32>
    %629 = arith.mulf %626, %628 : vector<16x16xf32>
    %630 = arith.addf %615, %629 : vector<16x16xf32>
    %c95 = arith.constant 95 : index
    %631 = memref.load %arg4[%c95] : memref<225xf32, #tpu.memory_space<smem>>
    %632 = vector.broadcast %631 : f32 to vector<16x16xf32>
    %633 = arith.mulf %626, %632 : vector<16x16xf32>
    %634 = arith.addf %619, %633 : vector<16x16xf32>
    %c170 = arith.constant 170 : index
    %635 = memref.load %arg4[%c170] : memref<225xf32, #tpu.memory_space<smem>>
    %636 = vector.broadcast %635 : f32 to vector<16x16xf32>
    %637 = arith.mulf %626, %636 : vector<16x16xf32>
    %638 = arith.addf %623, %637 : vector<16x16xf32>
    %639 = vector.extract_strided_slice %625 {offsets = [0, 1], sizes = [16, 16], strides = [1, 1]} : vector<16x20xf32> to vector<16x16xf32>
    %c21_77 = arith.constant 21 : index
    %640 = memref.load %arg4[%c21_77] : memref<225xf32, #tpu.memory_space<smem>>
    %641 = vector.broadcast %640 : f32 to vector<16x16xf32>
    %642 = arith.mulf %639, %641 : vector<16x16xf32>
    %643 = arith.addf %630, %642 : vector<16x16xf32>
    %c96 = arith.constant 96 : index
    %644 = memref.load %arg4[%c96] : memref<225xf32, #tpu.memory_space<smem>>
    %645 = vector.broadcast %644 : f32 to vector<16x16xf32>
    %646 = arith.mulf %639, %645 : vector<16x16xf32>
    %647 = arith.addf %634, %646 : vector<16x16xf32>
    %c171 = arith.constant 171 : index
    %648 = memref.load %arg4[%c171] : memref<225xf32, #tpu.memory_space<smem>>
    %649 = vector.broadcast %648 : f32 to vector<16x16xf32>
    %650 = arith.mulf %639, %649 : vector<16x16xf32>
    %651 = arith.addf %638, %650 : vector<16x16xf32>
    %652 = vector.extract_strided_slice %625 {offsets = [0, 2], sizes = [16, 16], strides = [1, 1]} : vector<16x20xf32> to vector<16x16xf32>
    %c22_78 = arith.constant 22 : index
    %653 = memref.load %arg4[%c22_78] : memref<225xf32, #tpu.memory_space<smem>>
    %654 = vector.broadcast %653 : f32 to vector<16x16xf32>
    %655 = arith.mulf %652, %654 : vector<16x16xf32>
    %656 = arith.addf %643, %655 : vector<16x16xf32>
    %c97 = arith.constant 97 : index
    %657 = memref.load %arg4[%c97] : memref<225xf32, #tpu.memory_space<smem>>
    %658 = vector.broadcast %657 : f32 to vector<16x16xf32>
    %659 = arith.mulf %652, %658 : vector<16x16xf32>
    %660 = arith.addf %647, %659 : vector<16x16xf32>
    %c172 = arith.constant 172 : index
    %661 = memref.load %arg4[%c172] : memref<225xf32, #tpu.memory_space<smem>>
    %662 = vector.broadcast %661 : f32 to vector<16x16xf32>
    %663 = arith.mulf %652, %662 : vector<16x16xf32>
    %664 = arith.addf %651, %663 : vector<16x16xf32>
    %665 = vector.extract_strided_slice %625 {offsets = [0, 3], sizes = [16, 16], strides = [1, 1]} : vector<16x20xf32> to vector<16x16xf32>
    %c23_79 = arith.constant 23 : index
    %666 = memref.load %arg4[%c23_79] : memref<225xf32, #tpu.memory_space<smem>>
    %667 = vector.broadcast %666 : f32 to vector<16x16xf32>
    %668 = arith.mulf %665, %667 : vector<16x16xf32>
    %669 = arith.addf %656, %668 : vector<16x16xf32>
    %c98 = arith.constant 98 : index
    %670 = memref.load %arg4[%c98] : memref<225xf32, #tpu.memory_space<smem>>
    %671 = vector.broadcast %670 : f32 to vector<16x16xf32>
    %672 = arith.mulf %665, %671 : vector<16x16xf32>
    %673 = arith.addf %660, %672 : vector<16x16xf32>
    %c173 = arith.constant 173 : index
    %674 = memref.load %arg4[%c173] : memref<225xf32, #tpu.memory_space<smem>>
    %675 = vector.broadcast %674 : f32 to vector<16x16xf32>
    %676 = arith.mulf %665, %675 : vector<16x16xf32>
    %677 = arith.addf %664, %676 : vector<16x16xf32>
    %678 = vector.extract_strided_slice %625 {offsets = [0, 4], sizes = [16, 16], strides = [1, 1]} : vector<16x20xf32> to vector<16x16xf32>
    %c24_80 = arith.constant 24 : index
    %679 = memref.load %arg4[%c24_80] : memref<225xf32, #tpu.memory_space<smem>>
    %680 = vector.broadcast %679 : f32 to vector<16x16xf32>
    %681 = arith.mulf %678, %680 : vector<16x16xf32>
    %682 = arith.addf %669, %681 : vector<16x16xf32>
    %c99 = arith.constant 99 : index
    %683 = memref.load %arg4[%c99] : memref<225xf32, #tpu.memory_space<smem>>
    %684 = vector.broadcast %683 : f32 to vector<16x16xf32>
    %685 = arith.mulf %678, %684 : vector<16x16xf32>
    %686 = arith.addf %673, %685 : vector<16x16xf32>
    %c174 = arith.constant 174 : index
    %687 = memref.load %arg4[%c174] : memref<225xf32, #tpu.memory_space<smem>>
    %688 = vector.broadcast %687 : f32 to vector<16x16xf32>
    %689 = arith.mulf %678, %688 : vector<16x16xf32>
    %690 = arith.addf %677, %689 : vector<16x16xf32>
    %c1_81 = arith.constant 1 : index
    %c0_82 = arith.constant 0 : index
    %c0_83 = arith.constant 0 : index
    %691 = vector.load %arg10[%c1_81, %c0_82, %c0_83] : memref<3x20x20xf32, #tpu.memory_space<vmem>>, vector<1x16x20xf32>
    %692 = vector.shape_cast %691 : vector<1x16x20xf32> to vector<16x20xf32>
    %693 = vector.extract_strided_slice %692 {offsets = [0, 0], sizes = [16, 16], strides = [1, 1]} : vector<16x20xf32> to vector<16x16xf32>
    %c25_84 = arith.constant 25 : index
    %694 = memref.load %arg4[%c25_84] : memref<225xf32, #tpu.memory_space<smem>>
    %695 = vector.broadcast %694 : f32 to vector<16x16xf32>
    %696 = arith.mulf %693, %695 : vector<16x16xf32>
    %697 = arith.addf %682, %696 : vector<16x16xf32>
    %c100 = arith.constant 100 : index
    %698 = memref.load %arg4[%c100] : memref<225xf32, #tpu.memory_space<smem>>
    %699 = vector.broadcast %698 : f32 to vector<16x16xf32>
    %700 = arith.mulf %693, %699 : vector<16x16xf32>
    %701 = arith.addf %686, %700 : vector<16x16xf32>
    %c175 = arith.constant 175 : index
    %702 = memref.load %arg4[%c175] : memref<225xf32, #tpu.memory_space<smem>>
    %703 = vector.broadcast %702 : f32 to vector<16x16xf32>
    %704 = arith.mulf %693, %703 : vector<16x16xf32>
    %705 = arith.addf %690, %704 : vector<16x16xf32>
    %706 = vector.extract_strided_slice %692 {offsets = [0, 1], sizes = [16, 16], strides = [1, 1]} : vector<16x20xf32> to vector<16x16xf32>
    %c26_85 = arith.constant 26 : index
    %707 = memref.load %arg4[%c26_85] : memref<225xf32, #tpu.memory_space<smem>>
    %708 = vector.broadcast %707 : f32 to vector<16x16xf32>
    %709 = arith.mulf %706, %708 : vector<16x16xf32>
    %710 = arith.addf %697, %709 : vector<16x16xf32>
    %c101 = arith.constant 101 : index
    %711 = memref.load %arg4[%c101] : memref<225xf32, #tpu.memory_space<smem>>
    %712 = vector.broadcast %711 : f32 to vector<16x16xf32>
    %713 = arith.mulf %706, %712 : vector<16x16xf32>
    %714 = arith.addf %701, %713 : vector<16x16xf32>
    %c176 = arith.constant 176 : index
    %715 = memref.load %arg4[%c176] : memref<225xf32, #tpu.memory_space<smem>>
    %716 = vector.broadcast %715 : f32 to vector<16x16xf32>
    %717 = arith.mulf %706, %716 : vector<16x16xf32>
    %718 = arith.addf %705, %717 : vector<16x16xf32>
    %719 = vector.extract_strided_slice %692 {offsets = [0, 2], sizes = [16, 16], strides = [1, 1]} : vector<16x20xf32> to vector<16x16xf32>
    %c27_86 = arith.constant 27 : index
    %720 = memref.load %arg4[%c27_86] : memref<225xf32, #tpu.memory_space<smem>>
    %721 = vector.broadcast %720 : f32 to vector<16x16xf32>
    %722 = arith.mulf %719, %721 : vector<16x16xf32>
    %723 = arith.addf %710, %722 : vector<16x16xf32>
    %c102 = arith.constant 102 : index
    %724 = memref.load %arg4[%c102] : memref<225xf32, #tpu.memory_space<smem>>
    %725 = vector.broadcast %724 : f32 to vector<16x16xf32>
    %726 = arith.mulf %719, %725 : vector<16x16xf32>
    %727 = arith.addf %714, %726 : vector<16x16xf32>
    %c177 = arith.constant 177 : index
    %728 = memref.load %arg4[%c177] : memref<225xf32, #tpu.memory_space<smem>>
    %729 = vector.broadcast %728 : f32 to vector<16x16xf32>
    %730 = arith.mulf %719, %729 : vector<16x16xf32>
    %731 = arith.addf %718, %730 : vector<16x16xf32>
    %732 = vector.extract_strided_slice %692 {offsets = [0, 3], sizes = [16, 16], strides = [1, 1]} : vector<16x20xf32> to vector<16x16xf32>
    %c28_87 = arith.constant 28 : index
    %733 = memref.load %arg4[%c28_87] : memref<225xf32, #tpu.memory_space<smem>>
    %734 = vector.broadcast %733 : f32 to vector<16x16xf32>
    %735 = arith.mulf %732, %734 : vector<16x16xf32>
    %736 = arith.addf %723, %735 : vector<16x16xf32>
    %c103 = arith.constant 103 : index
    %737 = memref.load %arg4[%c103] : memref<225xf32, #tpu.memory_space<smem>>
    %738 = vector.broadcast %737 : f32 to vector<16x16xf32>
    %739 = arith.mulf %732, %738 : vector<16x16xf32>
    %740 = arith.addf %727, %739 : vector<16x16xf32>
    %c178 = arith.constant 178 : index
    %741 = memref.load %arg4[%c178] : memref<225xf32, #tpu.memory_space<smem>>
    %742 = vector.broadcast %741 : f32 to vector<16x16xf32>
    %743 = arith.mulf %732, %742 : vector<16x16xf32>
    %744 = arith.addf %731, %743 : vector<16x16xf32>
    %745 = vector.extract_strided_slice %692 {offsets = [0, 4], sizes = [16, 16], strides = [1, 1]} : vector<16x20xf32> to vector<16x16xf32>
    %c29_88 = arith.constant 29 : index
    %746 = memref.load %arg4[%c29_88] : memref<225xf32, #tpu.memory_space<smem>>
    %747 = vector.broadcast %746 : f32 to vector<16x16xf32>
    %748 = arith.mulf %745, %747 : vector<16x16xf32>
    %749 = arith.addf %736, %748 : vector<16x16xf32>
    %c104 = arith.constant 104 : index
    %750 = memref.load %arg4[%c104] : memref<225xf32, #tpu.memory_space<smem>>
    %751 = vector.broadcast %750 : f32 to vector<16x16xf32>
    %752 = arith.mulf %745, %751 : vector<16x16xf32>
    %753 = arith.addf %740, %752 : vector<16x16xf32>
    %c179 = arith.constant 179 : index
    %754 = memref.load %arg4[%c179] : memref<225xf32, #tpu.memory_space<smem>>
    %755 = vector.broadcast %754 : f32 to vector<16x16xf32>
    %756 = arith.mulf %745, %755 : vector<16x16xf32>
    %757 = arith.addf %744, %756 : vector<16x16xf32>
    %c1_89 = arith.constant 1 : index
    %c1_90 = arith.constant 1 : index
    %c0_91 = arith.constant 0 : index
    %758 = vector.load %arg10[%c1_89, %c1_90, %c0_91] : memref<3x20x20xf32, #tpu.memory_space<vmem>>, vector<1x16x20xf32>
    %759 = vector.shape_cast %758 : vector<1x16x20xf32> to vector<16x20xf32>
    %760 = vector.extract_strided_slice %759 {offsets = [0, 0], sizes = [16, 16], strides = [1, 1]} : vector<16x20xf32> to vector<16x16xf32>
    %c30_92 = arith.constant 30 : index
    %761 = memref.load %arg4[%c30_92] : memref<225xf32, #tpu.memory_space<smem>>
    %762 = vector.broadcast %761 : f32 to vector<16x16xf32>
    %763 = arith.mulf %760, %762 : vector<16x16xf32>
    %764 = arith.addf %749, %763 : vector<16x16xf32>
    %c105 = arith.constant 105 : index
    %765 = memref.load %arg4[%c105] : memref<225xf32, #tpu.memory_space<smem>>
    %766 = vector.broadcast %765 : f32 to vector<16x16xf32>
    %767 = arith.mulf %760, %766 : vector<16x16xf32>
    %768 = arith.addf %753, %767 : vector<16x16xf32>
    %c180 = arith.constant 180 : index
    %769 = memref.load %arg4[%c180] : memref<225xf32, #tpu.memory_space<smem>>
    %770 = vector.broadcast %769 : f32 to vector<16x16xf32>
    %771 = arith.mulf %760, %770 : vector<16x16xf32>
    %772 = arith.addf %757, %771 : vector<16x16xf32>
    %773 = vector.extract_strided_slice %759 {offsets = [0, 1], sizes = [16, 16], strides = [1, 1]} : vector<16x20xf32> to vector<16x16xf32>
    %c31_93 = arith.constant 31 : index
    %774 = memref.load %arg4[%c31_93] : memref<225xf32, #tpu.memory_space<smem>>
    %775 = vector.broadcast %774 : f32 to vector<16x16xf32>
    %776 = arith.mulf %773, %775 : vector<16x16xf32>
    %777 = arith.addf %764, %776 : vector<16x16xf32>
    %c106 = arith.constant 106 : index
    %778 = memref.load %arg4[%c106] : memref<225xf32, #tpu.memory_space<smem>>
    %779 = vector.broadcast %778 : f32 to vector<16x16xf32>
    %780 = arith.mulf %773, %779 : vector<16x16xf32>
    %781 = arith.addf %768, %780 : vector<16x16xf32>
    %c181 = arith.constant 181 : index
    %782 = memref.load %arg4[%c181] : memref<225xf32, #tpu.memory_space<smem>>
    %783 = vector.broadcast %782 : f32 to vector<16x16xf32>
    %784 = arith.mulf %773, %783 : vector<16x16xf32>
    %785 = arith.addf %772, %784 : vector<16x16xf32>
    %786 = vector.extract_strided_slice %759 {offsets = [0, 2], sizes = [16, 16], strides = [1, 1]} : vector<16x20xf32> to vector<16x16xf32>
    %c32_94 = arith.constant 32 : index
    %787 = memref.load %arg4[%c32_94] : memref<225xf32, #tpu.memory_space<smem>>
    %788 = vector.broadcast %787 : f32 to vector<16x16xf32>
    %789 = arith.mulf %786, %788 : vector<16x16xf32>
    %790 = arith.addf %777, %789 : vector<16x16xf32>
    %c107 = arith.constant 107 : index
    %791 = memref.load %arg4[%c107] : memref<225xf32, #tpu.memory_space<smem>>
    %792 = vector.broadcast %791 : f32 to vector<16x16xf32>
    %793 = arith.mulf %786, %792 : vector<16x16xf32>
    %794 = arith.addf %781, %793 : vector<16x16xf32>
    %c182 = arith.constant 182 : index
    %795 = memref.load %arg4[%c182] : memref<225xf32, #tpu.memory_space<smem>>
    %796 = vector.broadcast %795 : f32 to vector<16x16xf32>
    %797 = arith.mulf %786, %796 : vector<16x16xf32>
    %798 = arith.addf %785, %797 : vector<16x16xf32>
    %799 = vector.extract_strided_slice %759 {offsets = [0, 3], sizes = [16, 16], strides = [1, 1]} : vector<16x20xf32> to vector<16x16xf32>
    %c33_95 = arith.constant 33 : index
    %800 = memref.load %arg4[%c33_95] : memref<225xf32, #tpu.memory_space<smem>>
    %801 = vector.broadcast %800 : f32 to vector<16x16xf32>
    %802 = arith.mulf %799, %801 : vector<16x16xf32>
    %803 = arith.addf %790, %802 : vector<16x16xf32>
    %c108 = arith.constant 108 : index
    %804 = memref.load %arg4[%c108] : memref<225xf32, #tpu.memory_space<smem>>
    %805 = vector.broadcast %804 : f32 to vector<16x16xf32>
    %806 = arith.mulf %799, %805 : vector<16x16xf32>
    %807 = arith.addf %794, %806 : vector<16x16xf32>
    %c183 = arith.constant 183 : index
    %808 = memref.load %arg4[%c183] : memref<225xf32, #tpu.memory_space<smem>>
    %809 = vector.broadcast %808 : f32 to vector<16x16xf32>
    %810 = arith.mulf %799, %809 : vector<16x16xf32>
    %811 = arith.addf %798, %810 : vector<16x16xf32>
    %812 = vector.extract_strided_slice %759 {offsets = [0, 4], sizes = [16, 16], strides = [1, 1]} : vector<16x20xf32> to vector<16x16xf32>
    %c34_96 = arith.constant 34 : index
    %813 = memref.load %arg4[%c34_96] : memref<225xf32, #tpu.memory_space<smem>>
    %814 = vector.broadcast %813 : f32 to vector<16x16xf32>
    %815 = arith.mulf %812, %814 : vector<16x16xf32>
    %816 = arith.addf %803, %815 : vector<16x16xf32>
    %c109 = arith.constant 109 : index
    %817 = memref.load %arg4[%c109] : memref<225xf32, #tpu.memory_space<smem>>
    %818 = vector.broadcast %817 : f32 to vector<16x16xf32>
    %819 = arith.mulf %812, %818 : vector<16x16xf32>
    %820 = arith.addf %807, %819 : vector<16x16xf32>
    %c184 = arith.constant 184 : index
    %821 = memref.load %arg4[%c184] : memref<225xf32, #tpu.memory_space<smem>>
    %822 = vector.broadcast %821 : f32 to vector<16x16xf32>
    %823 = arith.mulf %812, %822 : vector<16x16xf32>
    %824 = arith.addf %811, %823 : vector<16x16xf32>
    %c1_97 = arith.constant 1 : index
    %c2_98 = arith.constant 2 : index
    %c0_99 = arith.constant 0 : index
    %825 = vector.load %arg10[%c1_97, %c2_98, %c0_99] : memref<3x20x20xf32, #tpu.memory_space<vmem>>, vector<1x16x20xf32>
    %826 = vector.shape_cast %825 : vector<1x16x20xf32> to vector<16x20xf32>
    %827 = vector.extract_strided_slice %826 {offsets = [0, 0], sizes = [16, 16], strides = [1, 1]} : vector<16x20xf32> to vector<16x16xf32>
    %c35_100 = arith.constant 35 : index
    %828 = memref.load %arg4[%c35_100] : memref<225xf32, #tpu.memory_space<smem>>
    %829 = vector.broadcast %828 : f32 to vector<16x16xf32>
    %830 = arith.mulf %827, %829 : vector<16x16xf32>
    %831 = arith.addf %816, %830 : vector<16x16xf32>
    %c110 = arith.constant 110 : index
    %832 = memref.load %arg4[%c110] : memref<225xf32, #tpu.memory_space<smem>>
    %833 = vector.broadcast %832 : f32 to vector<16x16xf32>
    %834 = arith.mulf %827, %833 : vector<16x16xf32>
    %835 = arith.addf %820, %834 : vector<16x16xf32>
    %c185 = arith.constant 185 : index
    %836 = memref.load %arg4[%c185] : memref<225xf32, #tpu.memory_space<smem>>
    %837 = vector.broadcast %836 : f32 to vector<16x16xf32>
    %838 = arith.mulf %827, %837 : vector<16x16xf32>
    %839 = arith.addf %824, %838 : vector<16x16xf32>
    %840 = vector.extract_strided_slice %826 {offsets = [0, 1], sizes = [16, 16], strides = [1, 1]} : vector<16x20xf32> to vector<16x16xf32>
    %c36_101 = arith.constant 36 : index
    %841 = memref.load %arg4[%c36_101] : memref<225xf32, #tpu.memory_space<smem>>
    %842 = vector.broadcast %841 : f32 to vector<16x16xf32>
    %843 = arith.mulf %840, %842 : vector<16x16xf32>
    %844 = arith.addf %831, %843 : vector<16x16xf32>
    %c111 = arith.constant 111 : index
    %845 = memref.load %arg4[%c111] : memref<225xf32, #tpu.memory_space<smem>>
    %846 = vector.broadcast %845 : f32 to vector<16x16xf32>
    %847 = arith.mulf %840, %846 : vector<16x16xf32>
    %848 = arith.addf %835, %847 : vector<16x16xf32>
    %c186 = arith.constant 186 : index
    %849 = memref.load %arg4[%c186] : memref<225xf32, #tpu.memory_space<smem>>
    %850 = vector.broadcast %849 : f32 to vector<16x16xf32>
    %851 = arith.mulf %840, %850 : vector<16x16xf32>
    %852 = arith.addf %839, %851 : vector<16x16xf32>
    %853 = vector.extract_strided_slice %826 {offsets = [0, 2], sizes = [16, 16], strides = [1, 1]} : vector<16x20xf32> to vector<16x16xf32>
    %c37_102 = arith.constant 37 : index
    %854 = memref.load %arg4[%c37_102] : memref<225xf32, #tpu.memory_space<smem>>
    %855 = vector.broadcast %854 : f32 to vector<16x16xf32>
    %856 = arith.mulf %853, %855 : vector<16x16xf32>
    %857 = arith.addf %844, %856 : vector<16x16xf32>
    %c112 = arith.constant 112 : index
    %858 = memref.load %arg4[%c112] : memref<225xf32, #tpu.memory_space<smem>>
    %859 = vector.broadcast %858 : f32 to vector<16x16xf32>
    %860 = arith.mulf %853, %859 : vector<16x16xf32>
    %861 = arith.addf %848, %860 : vector<16x16xf32>
    %c187 = arith.constant 187 : index
    %862 = memref.load %arg4[%c187] : memref<225xf32, #tpu.memory_space<smem>>
    %863 = vector.broadcast %862 : f32 to vector<16x16xf32>
    %864 = arith.mulf %853, %863 : vector<16x16xf32>
    %865 = arith.addf %852, %864 : vector<16x16xf32>
    %866 = vector.extract_strided_slice %826 {offsets = [0, 3], sizes = [16, 16], strides = [1, 1]} : vector<16x20xf32> to vector<16x16xf32>
    %c38_103 = arith.constant 38 : index
    %867 = memref.load %arg4[%c38_103] : memref<225xf32, #tpu.memory_space<smem>>
    %868 = vector.broadcast %867 : f32 to vector<16x16xf32>
    %869 = arith.mulf %866, %868 : vector<16x16xf32>
    %870 = arith.addf %857, %869 : vector<16x16xf32>
    %c113 = arith.constant 113 : index
    %871 = memref.load %arg4[%c113] : memref<225xf32, #tpu.memory_space<smem>>
    %872 = vector.broadcast %871 : f32 to vector<16x16xf32>
    %873 = arith.mulf %866, %872 : vector<16x16xf32>
    %874 = arith.addf %861, %873 : vector<16x16xf32>
    %c188 = arith.constant 188 : index
    %875 = memref.load %arg4[%c188] : memref<225xf32, #tpu.memory_space<smem>>
    %876 = vector.broadcast %875 : f32 to vector<16x16xf32>
    %877 = arith.mulf %866, %876 : vector<16x16xf32>
    %878 = arith.addf %865, %877 : vector<16x16xf32>
    %879 = vector.extract_strided_slice %826 {offsets = [0, 4], sizes = [16, 16], strides = [1, 1]} : vector<16x20xf32> to vector<16x16xf32>
    %c39_104 = arith.constant 39 : index
    %880 = memref.load %arg4[%c39_104] : memref<225xf32, #tpu.memory_space<smem>>
    %881 = vector.broadcast %880 : f32 to vector<16x16xf32>
    %882 = arith.mulf %879, %881 : vector<16x16xf32>
    %883 = arith.addf %870, %882 : vector<16x16xf32>
    %c114 = arith.constant 114 : index
    %884 = memref.load %arg4[%c114] : memref<225xf32, #tpu.memory_space<smem>>
    %885 = vector.broadcast %884 : f32 to vector<16x16xf32>
    %886 = arith.mulf %879, %885 : vector<16x16xf32>
    %887 = arith.addf %874, %886 : vector<16x16xf32>
    %c189 = arith.constant 189 : index
    %888 = memref.load %arg4[%c189] : memref<225xf32, #tpu.memory_space<smem>>
    %889 = vector.broadcast %888 : f32 to vector<16x16xf32>
    %890 = arith.mulf %879, %889 : vector<16x16xf32>
    %891 = arith.addf %878, %890 : vector<16x16xf32>
    %c1_105 = arith.constant 1 : index
    %c3_106 = arith.constant 3 : index
    %c0_107 = arith.constant 0 : index
    %892 = vector.load %arg10[%c1_105, %c3_106, %c0_107] : memref<3x20x20xf32, #tpu.memory_space<vmem>>, vector<1x16x20xf32>
    %893 = vector.shape_cast %892 : vector<1x16x20xf32> to vector<16x20xf32>
    %894 = vector.extract_strided_slice %893 {offsets = [0, 0], sizes = [16, 16], strides = [1, 1]} : vector<16x20xf32> to vector<16x16xf32>
    %c40_108 = arith.constant 40 : index
    %895 = memref.load %arg4[%c40_108] : memref<225xf32, #tpu.memory_space<smem>>
    %896 = vector.broadcast %895 : f32 to vector<16x16xf32>
    %897 = arith.mulf %894, %896 : vector<16x16xf32>
    %898 = arith.addf %883, %897 : vector<16x16xf32>
    %c115 = arith.constant 115 : index
    %899 = memref.load %arg4[%c115] : memref<225xf32, #tpu.memory_space<smem>>
    %900 = vector.broadcast %899 : f32 to vector<16x16xf32>
    %901 = arith.mulf %894, %900 : vector<16x16xf32>
    %902 = arith.addf %887, %901 : vector<16x16xf32>
    %c190 = arith.constant 190 : index
    %903 = memref.load %arg4[%c190] : memref<225xf32, #tpu.memory_space<smem>>
    %904 = vector.broadcast %903 : f32 to vector<16x16xf32>
    %905 = arith.mulf %894, %904 : vector<16x16xf32>
    %906 = arith.addf %891, %905 : vector<16x16xf32>
    %907 = vector.extract_strided_slice %893 {offsets = [0, 1], sizes = [16, 16], strides = [1, 1]} : vector<16x20xf32> to vector<16x16xf32>
    %c41_109 = arith.constant 41 : index
    %908 = memref.load %arg4[%c41_109] : memref<225xf32, #tpu.memory_space<smem>>
    %909 = vector.broadcast %908 : f32 to vector<16x16xf32>
    %910 = arith.mulf %907, %909 : vector<16x16xf32>
    %911 = arith.addf %898, %910 : vector<16x16xf32>
    %c116 = arith.constant 116 : index
    %912 = memref.load %arg4[%c116] : memref<225xf32, #tpu.memory_space<smem>>
    %913 = vector.broadcast %912 : f32 to vector<16x16xf32>
    %914 = arith.mulf %907, %913 : vector<16x16xf32>
    %915 = arith.addf %902, %914 : vector<16x16xf32>
    %c191 = arith.constant 191 : index
    %916 = memref.load %arg4[%c191] : memref<225xf32, #tpu.memory_space<smem>>
    %917 = vector.broadcast %916 : f32 to vector<16x16xf32>
    %918 = arith.mulf %907, %917 : vector<16x16xf32>
    %919 = arith.addf %906, %918 : vector<16x16xf32>
    %920 = vector.extract_strided_slice %893 {offsets = [0, 2], sizes = [16, 16], strides = [1, 1]} : vector<16x20xf32> to vector<16x16xf32>
    %c42_110 = arith.constant 42 : index
    %921 = memref.load %arg4[%c42_110] : memref<225xf32, #tpu.memory_space<smem>>
    %922 = vector.broadcast %921 : f32 to vector<16x16xf32>
    %923 = arith.mulf %920, %922 : vector<16x16xf32>
    %924 = arith.addf %911, %923 : vector<16x16xf32>
    %c117 = arith.constant 117 : index
    %925 = memref.load %arg4[%c117] : memref<225xf32, #tpu.memory_space<smem>>
    %926 = vector.broadcast %925 : f32 to vector<16x16xf32>
    %927 = arith.mulf %920, %926 : vector<16x16xf32>
    %928 = arith.addf %915, %927 : vector<16x16xf32>
    %c192 = arith.constant 192 : index
    %929 = memref.load %arg4[%c192] : memref<225xf32, #tpu.memory_space<smem>>
    %930 = vector.broadcast %929 : f32 to vector<16x16xf32>
    %931 = arith.mulf %920, %930 : vector<16x16xf32>
    %932 = arith.addf %919, %931 : vector<16x16xf32>
    %933 = vector.extract_strided_slice %893 {offsets = [0, 3], sizes = [16, 16], strides = [1, 1]} : vector<16x20xf32> to vector<16x16xf32>
    %c43_111 = arith.constant 43 : index
    %934 = memref.load %arg4[%c43_111] : memref<225xf32, #tpu.memory_space<smem>>
    %935 = vector.broadcast %934 : f32 to vector<16x16xf32>
    %936 = arith.mulf %933, %935 : vector<16x16xf32>
    %937 = arith.addf %924, %936 : vector<16x16xf32>
    %c118 = arith.constant 118 : index
    %938 = memref.load %arg4[%c118] : memref<225xf32, #tpu.memory_space<smem>>
    %939 = vector.broadcast %938 : f32 to vector<16x16xf32>
    %940 = arith.mulf %933, %939 : vector<16x16xf32>
    %941 = arith.addf %928, %940 : vector<16x16xf32>
    %c193 = arith.constant 193 : index
    %942 = memref.load %arg4[%c193] : memref<225xf32, #tpu.memory_space<smem>>
    %943 = vector.broadcast %942 : f32 to vector<16x16xf32>
    %944 = arith.mulf %933, %943 : vector<16x16xf32>
    %945 = arith.addf %932, %944 : vector<16x16xf32>
    %946 = vector.extract_strided_slice %893 {offsets = [0, 4], sizes = [16, 16], strides = [1, 1]} : vector<16x20xf32> to vector<16x16xf32>
    %c44_112 = arith.constant 44 : index
    %947 = memref.load %arg4[%c44_112] : memref<225xf32, #tpu.memory_space<smem>>
    %948 = vector.broadcast %947 : f32 to vector<16x16xf32>
    %949 = arith.mulf %946, %948 : vector<16x16xf32>
    %950 = arith.addf %937, %949 : vector<16x16xf32>
    %c119 = arith.constant 119 : index
    %951 = memref.load %arg4[%c119] : memref<225xf32, #tpu.memory_space<smem>>
    %952 = vector.broadcast %951 : f32 to vector<16x16xf32>
    %953 = arith.mulf %946, %952 : vector<16x16xf32>
    %954 = arith.addf %941, %953 : vector<16x16xf32>
    %c194 = arith.constant 194 : index
    %955 = memref.load %arg4[%c194] : memref<225xf32, #tpu.memory_space<smem>>
    %956 = vector.broadcast %955 : f32 to vector<16x16xf32>
    %957 = arith.mulf %946, %956 : vector<16x16xf32>
    %958 = arith.addf %945, %957 : vector<16x16xf32>
    %c1_113 = arith.constant 1 : index
    %c4_114 = arith.constant 4 : index
    %c0_115 = arith.constant 0 : index
    %959 = vector.load %arg10[%c1_113, %c4_114, %c0_115] : memref<3x20x20xf32, #tpu.memory_space<vmem>>, vector<1x16x20xf32>
    %960 = vector.shape_cast %959 : vector<1x16x20xf32> to vector<16x20xf32>
    %961 = vector.extract_strided_slice %960 {offsets = [0, 0], sizes = [16, 16], strides = [1, 1]} : vector<16x20xf32> to vector<16x16xf32>
    %c45_116 = arith.constant 45 : index
    %962 = memref.load %arg4[%c45_116] : memref<225xf32, #tpu.memory_space<smem>>
    %963 = vector.broadcast %962 : f32 to vector<16x16xf32>
    %964 = arith.mulf %961, %963 : vector<16x16xf32>
    %965 = arith.addf %950, %964 : vector<16x16xf32>
    %c120 = arith.constant 120 : index
    %966 = memref.load %arg4[%c120] : memref<225xf32, #tpu.memory_space<smem>>
    %967 = vector.broadcast %966 : f32 to vector<16x16xf32>
    %968 = arith.mulf %961, %967 : vector<16x16xf32>
    %969 = arith.addf %954, %968 : vector<16x16xf32>
    %c195 = arith.constant 195 : index
    %970 = memref.load %arg4[%c195] : memref<225xf32, #tpu.memory_space<smem>>
    %971 = vector.broadcast %970 : f32 to vector<16x16xf32>
    %972 = arith.mulf %961, %971 : vector<16x16xf32>
    %973 = arith.addf %958, %972 : vector<16x16xf32>
    %974 = vector.extract_strided_slice %960 {offsets = [0, 1], sizes = [16, 16], strides = [1, 1]} : vector<16x20xf32> to vector<16x16xf32>
    %c46_117 = arith.constant 46 : index
    %975 = memref.load %arg4[%c46_117] : memref<225xf32, #tpu.memory_space<smem>>
    %976 = vector.broadcast %975 : f32 to vector<16x16xf32>
    %977 = arith.mulf %974, %976 : vector<16x16xf32>
    %978 = arith.addf %965, %977 : vector<16x16xf32>
    %c121 = arith.constant 121 : index
    %979 = memref.load %arg4[%c121] : memref<225xf32, #tpu.memory_space<smem>>
    %980 = vector.broadcast %979 : f32 to vector<16x16xf32>
    %981 = arith.mulf %974, %980 : vector<16x16xf32>
    %982 = arith.addf %969, %981 : vector<16x16xf32>
    %c196 = arith.constant 196 : index
    %983 = memref.load %arg4[%c196] : memref<225xf32, #tpu.memory_space<smem>>
    %984 = vector.broadcast %983 : f32 to vector<16x16xf32>
    %985 = arith.mulf %974, %984 : vector<16x16xf32>
    %986 = arith.addf %973, %985 : vector<16x16xf32>
    %987 = vector.extract_strided_slice %960 {offsets = [0, 2], sizes = [16, 16], strides = [1, 1]} : vector<16x20xf32> to vector<16x16xf32>
    %c47_118 = arith.constant 47 : index
    %988 = memref.load %arg4[%c47_118] : memref<225xf32, #tpu.memory_space<smem>>
    %989 = vector.broadcast %988 : f32 to vector<16x16xf32>
    %990 = arith.mulf %987, %989 : vector<16x16xf32>
    %991 = arith.addf %978, %990 : vector<16x16xf32>
    %c122 = arith.constant 122 : index
    %992 = memref.load %arg4[%c122] : memref<225xf32, #tpu.memory_space<smem>>
    %993 = vector.broadcast %992 : f32 to vector<16x16xf32>
    %994 = arith.mulf %987, %993 : vector<16x16xf32>
    %995 = arith.addf %982, %994 : vector<16x16xf32>
    %c197 = arith.constant 197 : index
    %996 = memref.load %arg4[%c197] : memref<225xf32, #tpu.memory_space<smem>>
    %997 = vector.broadcast %996 : f32 to vector<16x16xf32>
    %998 = arith.mulf %987, %997 : vector<16x16xf32>
    %999 = arith.addf %986, %998 : vector<16x16xf32>
    %1000 = vector.extract_strided_slice %960 {offsets = [0, 3], sizes = [16, 16], strides = [1, 1]} : vector<16x20xf32> to vector<16x16xf32>
    %c48_119 = arith.constant 48 : index
    %1001 = memref.load %arg4[%c48_119] : memref<225xf32, #tpu.memory_space<smem>>
    %1002 = vector.broadcast %1001 : f32 to vector<16x16xf32>
    %1003 = arith.mulf %1000, %1002 : vector<16x16xf32>
    %1004 = arith.addf %991, %1003 : vector<16x16xf32>
    %c123 = arith.constant 123 : index
    %1005 = memref.load %arg4[%c123] : memref<225xf32, #tpu.memory_space<smem>>
    %1006 = vector.broadcast %1005 : f32 to vector<16x16xf32>
    %1007 = arith.mulf %1000, %1006 : vector<16x16xf32>
    %1008 = arith.addf %995, %1007 : vector<16x16xf32>
    %c198 = arith.constant 198 : index
    %1009 = memref.load %arg4[%c198] : memref<225xf32, #tpu.memory_space<smem>>
    %1010 = vector.broadcast %1009 : f32 to vector<16x16xf32>
    %1011 = arith.mulf %1000, %1010 : vector<16x16xf32>
    %1012 = arith.addf %999, %1011 : vector<16x16xf32>
    %1013 = vector.extract_strided_slice %960 {offsets = [0, 4], sizes = [16, 16], strides = [1, 1]} : vector<16x20xf32> to vector<16x16xf32>
    %c49_120 = arith.constant 49 : index
    %1014 = memref.load %arg4[%c49_120] : memref<225xf32, #tpu.memory_space<smem>>
    %1015 = vector.broadcast %1014 : f32 to vector<16x16xf32>
    %1016 = arith.mulf %1013, %1015 : vector<16x16xf32>
    %1017 = arith.addf %1004, %1016 : vector<16x16xf32>
    %c124 = arith.constant 124 : index
    %1018 = memref.load %arg4[%c124] : memref<225xf32, #tpu.memory_space<smem>>
    %1019 = vector.broadcast %1018 : f32 to vector<16x16xf32>
    %1020 = arith.mulf %1013, %1019 : vector<16x16xf32>
    %1021 = arith.addf %1008, %1020 : vector<16x16xf32>
    %c199 = arith.constant 199 : index
    %1022 = memref.load %arg4[%c199] : memref<225xf32, #tpu.memory_space<smem>>
    %1023 = vector.broadcast %1022 : f32 to vector<16x16xf32>
    %1024 = arith.mulf %1013, %1023 : vector<16x16xf32>
    %1025 = arith.addf %1012, %1024 : vector<16x16xf32>
    %c2_121 = arith.constant 2 : index
    %c0_122 = arith.constant 0 : index
    %c0_123 = arith.constant 0 : index
    %1026 = vector.load %arg10[%c2_121, %c0_122, %c0_123] : memref<3x20x20xf32, #tpu.memory_space<vmem>>, vector<1x16x20xf32>
    %1027 = vector.shape_cast %1026 : vector<1x16x20xf32> to vector<16x20xf32>
    %1028 = vector.extract_strided_slice %1027 {offsets = [0, 0], sizes = [16, 16], strides = [1, 1]} : vector<16x20xf32> to vector<16x16xf32>
    %c50_124 = arith.constant 50 : index
    %1029 = memref.load %arg4[%c50_124] : memref<225xf32, #tpu.memory_space<smem>>
    %1030 = vector.broadcast %1029 : f32 to vector<16x16xf32>
    %1031 = arith.mulf %1028, %1030 : vector<16x16xf32>
    %1032 = arith.addf %1017, %1031 : vector<16x16xf32>
    %c125 = arith.constant 125 : index
    %1033 = memref.load %arg4[%c125] : memref<225xf32, #tpu.memory_space<smem>>
    %1034 = vector.broadcast %1033 : f32 to vector<16x16xf32>
    %1035 = arith.mulf %1028, %1034 : vector<16x16xf32>
    %1036 = arith.addf %1021, %1035 : vector<16x16xf32>
    %c200 = arith.constant 200 : index
    %1037 = memref.load %arg4[%c200] : memref<225xf32, #tpu.memory_space<smem>>
    %1038 = vector.broadcast %1037 : f32 to vector<16x16xf32>
    %1039 = arith.mulf %1028, %1038 : vector<16x16xf32>
    %1040 = arith.addf %1025, %1039 : vector<16x16xf32>
    %1041 = vector.extract_strided_slice %1027 {offsets = [0, 1], sizes = [16, 16], strides = [1, 1]} : vector<16x20xf32> to vector<16x16xf32>
    %c51_125 = arith.constant 51 : index
    %1042 = memref.load %arg4[%c51_125] : memref<225xf32, #tpu.memory_space<smem>>
    %1043 = vector.broadcast %1042 : f32 to vector<16x16xf32>
    %1044 = arith.mulf %1041, %1043 : vector<16x16xf32>
    %1045 = arith.addf %1032, %1044 : vector<16x16xf32>
    %c126 = arith.constant 126 : index
    %1046 = memref.load %arg4[%c126] : memref<225xf32, #tpu.memory_space<smem>>
    %1047 = vector.broadcast %1046 : f32 to vector<16x16xf32>
    %1048 = arith.mulf %1041, %1047 : vector<16x16xf32>
    %1049 = arith.addf %1036, %1048 : vector<16x16xf32>
    %c201 = arith.constant 201 : index
    %1050 = memref.load %arg4[%c201] : memref<225xf32, #tpu.memory_space<smem>>
    %1051 = vector.broadcast %1050 : f32 to vector<16x16xf32>
    %1052 = arith.mulf %1041, %1051 : vector<16x16xf32>
    %1053 = arith.addf %1040, %1052 : vector<16x16xf32>
    %1054 = vector.extract_strided_slice %1027 {offsets = [0, 2], sizes = [16, 16], strides = [1, 1]} : vector<16x20xf32> to vector<16x16xf32>
    %c52_126 = arith.constant 52 : index
    %1055 = memref.load %arg4[%c52_126] : memref<225xf32, #tpu.memory_space<smem>>
    %1056 = vector.broadcast %1055 : f32 to vector<16x16xf32>
    %1057 = arith.mulf %1054, %1056 : vector<16x16xf32>
    %1058 = arith.addf %1045, %1057 : vector<16x16xf32>
    %c127 = arith.constant 127 : index
    %1059 = memref.load %arg4[%c127] : memref<225xf32, #tpu.memory_space<smem>>
    %1060 = vector.broadcast %1059 : f32 to vector<16x16xf32>
    %1061 = arith.mulf %1054, %1060 : vector<16x16xf32>
    %1062 = arith.addf %1049, %1061 : vector<16x16xf32>
    %c202 = arith.constant 202 : index
    %1063 = memref.load %arg4[%c202] : memref<225xf32, #tpu.memory_space<smem>>
    %1064 = vector.broadcast %1063 : f32 to vector<16x16xf32>
    %1065 = arith.mulf %1054, %1064 : vector<16x16xf32>
    %1066 = arith.addf %1053, %1065 : vector<16x16xf32>
    %1067 = vector.extract_strided_slice %1027 {offsets = [0, 3], sizes = [16, 16], strides = [1, 1]} : vector<16x20xf32> to vector<16x16xf32>
    %c53_127 = arith.constant 53 : index
    %1068 = memref.load %arg4[%c53_127] : memref<225xf32, #tpu.memory_space<smem>>
    %1069 = vector.broadcast %1068 : f32 to vector<16x16xf32>
    %1070 = arith.mulf %1067, %1069 : vector<16x16xf32>
    %1071 = arith.addf %1058, %1070 : vector<16x16xf32>
    %c128 = arith.constant 128 : index
    %1072 = memref.load %arg4[%c128] : memref<225xf32, #tpu.memory_space<smem>>
    %1073 = vector.broadcast %1072 : f32 to vector<16x16xf32>
    %1074 = arith.mulf %1067, %1073 : vector<16x16xf32>
    %1075 = arith.addf %1062, %1074 : vector<16x16xf32>
    %c203 = arith.constant 203 : index
    %1076 = memref.load %arg4[%c203] : memref<225xf32, #tpu.memory_space<smem>>
    %1077 = vector.broadcast %1076 : f32 to vector<16x16xf32>
    %1078 = arith.mulf %1067, %1077 : vector<16x16xf32>
    %1079 = arith.addf %1066, %1078 : vector<16x16xf32>
    %1080 = vector.extract_strided_slice %1027 {offsets = [0, 4], sizes = [16, 16], strides = [1, 1]} : vector<16x20xf32> to vector<16x16xf32>
    %c54_128 = arith.constant 54 : index
    %1081 = memref.load %arg4[%c54_128] : memref<225xf32, #tpu.memory_space<smem>>
    %1082 = vector.broadcast %1081 : f32 to vector<16x16xf32>
    %1083 = arith.mulf %1080, %1082 : vector<16x16xf32>
    %1084 = arith.addf %1071, %1083 : vector<16x16xf32>
    %c129 = arith.constant 129 : index
    %1085 = memref.load %arg4[%c129] : memref<225xf32, #tpu.memory_space<smem>>
    %1086 = vector.broadcast %1085 : f32 to vector<16x16xf32>
    %1087 = arith.mulf %1080, %1086 : vector<16x16xf32>
    %1088 = arith.addf %1075, %1087 : vector<16x16xf32>
    %c204 = arith.constant 204 : index
    %1089 = memref.load %arg4[%c204] : memref<225xf32, #tpu.memory_space<smem>>
    %1090 = vector.broadcast %1089 : f32 to vector<16x16xf32>
    %1091 = arith.mulf %1080, %1090 : vector<16x16xf32>
    %1092 = arith.addf %1079, %1091 : vector<16x16xf32>
    %c2_129 = arith.constant 2 : index
    %c1_130 = arith.constant 1 : index
    %c0_131 = arith.constant 0 : index
    %1093 = vector.load %arg10[%c2_129, %c1_130, %c0_131] : memref<3x20x20xf32, #tpu.memory_space<vmem>>, vector<1x16x20xf32>
    %1094 = vector.shape_cast %1093 : vector<1x16x20xf32> to vector<16x20xf32>
    %1095 = vector.extract_strided_slice %1094 {offsets = [0, 0], sizes = [16, 16], strides = [1, 1]} : vector<16x20xf32> to vector<16x16xf32>
    %c55_132 = arith.constant 55 : index
    %1096 = memref.load %arg4[%c55_132] : memref<225xf32, #tpu.memory_space<smem>>
    %1097 = vector.broadcast %1096 : f32 to vector<16x16xf32>
    %1098 = arith.mulf %1095, %1097 : vector<16x16xf32>
    %1099 = arith.addf %1084, %1098 : vector<16x16xf32>
    %c130 = arith.constant 130 : index
    %1100 = memref.load %arg4[%c130] : memref<225xf32, #tpu.memory_space<smem>>
    %1101 = vector.broadcast %1100 : f32 to vector<16x16xf32>
    %1102 = arith.mulf %1095, %1101 : vector<16x16xf32>
    %1103 = arith.addf %1088, %1102 : vector<16x16xf32>
    %c205 = arith.constant 205 : index
    %1104 = memref.load %arg4[%c205] : memref<225xf32, #tpu.memory_space<smem>>
    %1105 = vector.broadcast %1104 : f32 to vector<16x16xf32>
    %1106 = arith.mulf %1095, %1105 : vector<16x16xf32>
    %1107 = arith.addf %1092, %1106 : vector<16x16xf32>
    %1108 = vector.extract_strided_slice %1094 {offsets = [0, 1], sizes = [16, 16], strides = [1, 1]} : vector<16x20xf32> to vector<16x16xf32>
    %c56_133 = arith.constant 56 : index
    %1109 = memref.load %arg4[%c56_133] : memref<225xf32, #tpu.memory_space<smem>>
    %1110 = vector.broadcast %1109 : f32 to vector<16x16xf32>
    %1111 = arith.mulf %1108, %1110 : vector<16x16xf32>
    %1112 = arith.addf %1099, %1111 : vector<16x16xf32>
    %c131 = arith.constant 131 : index
    %1113 = memref.load %arg4[%c131] : memref<225xf32, #tpu.memory_space<smem>>
    %1114 = vector.broadcast %1113 : f32 to vector<16x16xf32>
    %1115 = arith.mulf %1108, %1114 : vector<16x16xf32>
    %1116 = arith.addf %1103, %1115 : vector<16x16xf32>
    %c206 = arith.constant 206 : index
    %1117 = memref.load %arg4[%c206] : memref<225xf32, #tpu.memory_space<smem>>
    %1118 = vector.broadcast %1117 : f32 to vector<16x16xf32>
    %1119 = arith.mulf %1108, %1118 : vector<16x16xf32>
    %1120 = arith.addf %1107, %1119 : vector<16x16xf32>
    %1121 = vector.extract_strided_slice %1094 {offsets = [0, 2], sizes = [16, 16], strides = [1, 1]} : vector<16x20xf32> to vector<16x16xf32>
    %c57_134 = arith.constant 57 : index
    %1122 = memref.load %arg4[%c57_134] : memref<225xf32, #tpu.memory_space<smem>>
    %1123 = vector.broadcast %1122 : f32 to vector<16x16xf32>
    %1124 = arith.mulf %1121, %1123 : vector<16x16xf32>
    %1125 = arith.addf %1112, %1124 : vector<16x16xf32>
    %c132 = arith.constant 132 : index
    %1126 = memref.load %arg4[%c132] : memref<225xf32, #tpu.memory_space<smem>>
    %1127 = vector.broadcast %1126 : f32 to vector<16x16xf32>
    %1128 = arith.mulf %1121, %1127 : vector<16x16xf32>
    %1129 = arith.addf %1116, %1128 : vector<16x16xf32>
    %c207 = arith.constant 207 : index
    %1130 = memref.load %arg4[%c207] : memref<225xf32, #tpu.memory_space<smem>>
    %1131 = vector.broadcast %1130 : f32 to vector<16x16xf32>
    %1132 = arith.mulf %1121, %1131 : vector<16x16xf32>
    %1133 = arith.addf %1120, %1132 : vector<16x16xf32>
    %1134 = vector.extract_strided_slice %1094 {offsets = [0, 3], sizes = [16, 16], strides = [1, 1]} : vector<16x20xf32> to vector<16x16xf32>
    %c58_135 = arith.constant 58 : index
    %1135 = memref.load %arg4[%c58_135] : memref<225xf32, #tpu.memory_space<smem>>
    %1136 = vector.broadcast %1135 : f32 to vector<16x16xf32>
    %1137 = arith.mulf %1134, %1136 : vector<16x16xf32>
    %1138 = arith.addf %1125, %1137 : vector<16x16xf32>
    %c133 = arith.constant 133 : index
    %1139 = memref.load %arg4[%c133] : memref<225xf32, #tpu.memory_space<smem>>
    %1140 = vector.broadcast %1139 : f32 to vector<16x16xf32>
    %1141 = arith.mulf %1134, %1140 : vector<16x16xf32>
    %1142 = arith.addf %1129, %1141 : vector<16x16xf32>
    %c208 = arith.constant 208 : index
    %1143 = memref.load %arg4[%c208] : memref<225xf32, #tpu.memory_space<smem>>
    %1144 = vector.broadcast %1143 : f32 to vector<16x16xf32>
    %1145 = arith.mulf %1134, %1144 : vector<16x16xf32>
    %1146 = arith.addf %1133, %1145 : vector<16x16xf32>
    %1147 = vector.extract_strided_slice %1094 {offsets = [0, 4], sizes = [16, 16], strides = [1, 1]} : vector<16x20xf32> to vector<16x16xf32>
    %c59_136 = arith.constant 59 : index
    %1148 = memref.load %arg4[%c59_136] : memref<225xf32, #tpu.memory_space<smem>>
    %1149 = vector.broadcast %1148 : f32 to vector<16x16xf32>
    %1150 = arith.mulf %1147, %1149 : vector<16x16xf32>
    %1151 = arith.addf %1138, %1150 : vector<16x16xf32>
    %c134 = arith.constant 134 : index
    %1152 = memref.load %arg4[%c134] : memref<225xf32, #tpu.memory_space<smem>>
    %1153 = vector.broadcast %1152 : f32 to vector<16x16xf32>
    %1154 = arith.mulf %1147, %1153 : vector<16x16xf32>
    %1155 = arith.addf %1142, %1154 : vector<16x16xf32>
    %c209 = arith.constant 209 : index
    %1156 = memref.load %arg4[%c209] : memref<225xf32, #tpu.memory_space<smem>>
    %1157 = vector.broadcast %1156 : f32 to vector<16x16xf32>
    %1158 = arith.mulf %1147, %1157 : vector<16x16xf32>
    %1159 = arith.addf %1146, %1158 : vector<16x16xf32>
    %c2_137 = arith.constant 2 : index
    %c2_138 = arith.constant 2 : index
    %c0_139 = arith.constant 0 : index
    %1160 = vector.load %arg10[%c2_137, %c2_138, %c0_139] : memref<3x20x20xf32, #tpu.memory_space<vmem>>, vector<1x16x20xf32>
    %1161 = vector.shape_cast %1160 : vector<1x16x20xf32> to vector<16x20xf32>
    %1162 = vector.extract_strided_slice %1161 {offsets = [0, 0], sizes = [16, 16], strides = [1, 1]} : vector<16x20xf32> to vector<16x16xf32>
    %c60_140 = arith.constant 60 : index
    %1163 = memref.load %arg4[%c60_140] : memref<225xf32, #tpu.memory_space<smem>>
    %1164 = vector.broadcast %1163 : f32 to vector<16x16xf32>
    %1165 = arith.mulf %1162, %1164 : vector<16x16xf32>
    %1166 = arith.addf %1151, %1165 : vector<16x16xf32>
    %c135 = arith.constant 135 : index
    %1167 = memref.load %arg4[%c135] : memref<225xf32, #tpu.memory_space<smem>>
    %1168 = vector.broadcast %1167 : f32 to vector<16x16xf32>
    %1169 = arith.mulf %1162, %1168 : vector<16x16xf32>
    %1170 = arith.addf %1155, %1169 : vector<16x16xf32>
    %c210 = arith.constant 210 : index
    %1171 = memref.load %arg4[%c210] : memref<225xf32, #tpu.memory_space<smem>>
    %1172 = vector.broadcast %1171 : f32 to vector<16x16xf32>
    %1173 = arith.mulf %1162, %1172 : vector<16x16xf32>
    %1174 = arith.addf %1159, %1173 : vector<16x16xf32>
    %1175 = vector.extract_strided_slice %1161 {offsets = [0, 1], sizes = [16, 16], strides = [1, 1]} : vector<16x20xf32> to vector<16x16xf32>
    %c61_141 = arith.constant 61 : index
    %1176 = memref.load %arg4[%c61_141] : memref<225xf32, #tpu.memory_space<smem>>
    %1177 = vector.broadcast %1176 : f32 to vector<16x16xf32>
    %1178 = arith.mulf %1175, %1177 : vector<16x16xf32>
    %1179 = arith.addf %1166, %1178 : vector<16x16xf32>
    %c136 = arith.constant 136 : index
    %1180 = memref.load %arg4[%c136] : memref<225xf32, #tpu.memory_space<smem>>
    %1181 = vector.broadcast %1180 : f32 to vector<16x16xf32>
    %1182 = arith.mulf %1175, %1181 : vector<16x16xf32>
    %1183 = arith.addf %1170, %1182 : vector<16x16xf32>
    %c211 = arith.constant 211 : index
    %1184 = memref.load %arg4[%c211] : memref<225xf32, #tpu.memory_space<smem>>
    %1185 = vector.broadcast %1184 : f32 to vector<16x16xf32>
    %1186 = arith.mulf %1175, %1185 : vector<16x16xf32>
    %1187 = arith.addf %1174, %1186 : vector<16x16xf32>
    %1188 = vector.extract_strided_slice %1161 {offsets = [0, 2], sizes = [16, 16], strides = [1, 1]} : vector<16x20xf32> to vector<16x16xf32>
    %c62_142 = arith.constant 62 : index
    %1189 = memref.load %arg4[%c62_142] : memref<225xf32, #tpu.memory_space<smem>>
    %1190 = vector.broadcast %1189 : f32 to vector<16x16xf32>
    %1191 = arith.mulf %1188, %1190 : vector<16x16xf32>
    %1192 = arith.addf %1179, %1191 : vector<16x16xf32>
    %c137 = arith.constant 137 : index
    %1193 = memref.load %arg4[%c137] : memref<225xf32, #tpu.memory_space<smem>>
    %1194 = vector.broadcast %1193 : f32 to vector<16x16xf32>
    %1195 = arith.mulf %1188, %1194 : vector<16x16xf32>
    %1196 = arith.addf %1183, %1195 : vector<16x16xf32>
    %c212 = arith.constant 212 : index
    %1197 = memref.load %arg4[%c212] : memref<225xf32, #tpu.memory_space<smem>>
    %1198 = vector.broadcast %1197 : f32 to vector<16x16xf32>
    %1199 = arith.mulf %1188, %1198 : vector<16x16xf32>
    %1200 = arith.addf %1187, %1199 : vector<16x16xf32>
    %1201 = vector.extract_strided_slice %1161 {offsets = [0, 3], sizes = [16, 16], strides = [1, 1]} : vector<16x20xf32> to vector<16x16xf32>
    %c63_143 = arith.constant 63 : index
    %1202 = memref.load %arg4[%c63_143] : memref<225xf32, #tpu.memory_space<smem>>
    %1203 = vector.broadcast %1202 : f32 to vector<16x16xf32>
    %1204 = arith.mulf %1201, %1203 : vector<16x16xf32>
    %1205 = arith.addf %1192, %1204 : vector<16x16xf32>
    %c138 = arith.constant 138 : index
    %1206 = memref.load %arg4[%c138] : memref<225xf32, #tpu.memory_space<smem>>
    %1207 = vector.broadcast %1206 : f32 to vector<16x16xf32>
    %1208 = arith.mulf %1201, %1207 : vector<16x16xf32>
    %1209 = arith.addf %1196, %1208 : vector<16x16xf32>
    %c213 = arith.constant 213 : index
    %1210 = memref.load %arg4[%c213] : memref<225xf32, #tpu.memory_space<smem>>
    %1211 = vector.broadcast %1210 : f32 to vector<16x16xf32>
    %1212 = arith.mulf %1201, %1211 : vector<16x16xf32>
    %1213 = arith.addf %1200, %1212 : vector<16x16xf32>
    %1214 = vector.extract_strided_slice %1161 {offsets = [0, 4], sizes = [16, 16], strides = [1, 1]} : vector<16x20xf32> to vector<16x16xf32>
    %c64_144 = arith.constant 64 : index
    %1215 = memref.load %arg4[%c64_144] : memref<225xf32, #tpu.memory_space<smem>>
    %1216 = vector.broadcast %1215 : f32 to vector<16x16xf32>
    %1217 = arith.mulf %1214, %1216 : vector<16x16xf32>
    %1218 = arith.addf %1205, %1217 : vector<16x16xf32>
    %c139 = arith.constant 139 : index
    %1219 = memref.load %arg4[%c139] : memref<225xf32, #tpu.memory_space<smem>>
    %1220 = vector.broadcast %1219 : f32 to vector<16x16xf32>
    %1221 = arith.mulf %1214, %1220 : vector<16x16xf32>
    %1222 = arith.addf %1209, %1221 : vector<16x16xf32>
    %c214 = arith.constant 214 : index
    %1223 = memref.load %arg4[%c214] : memref<225xf32, #tpu.memory_space<smem>>
    %1224 = vector.broadcast %1223 : f32 to vector<16x16xf32>
    %1225 = arith.mulf %1214, %1224 : vector<16x16xf32>
    %1226 = arith.addf %1213, %1225 : vector<16x16xf32>
    %c2_145 = arith.constant 2 : index
    %c3_146 = arith.constant 3 : index
    %c0_147 = arith.constant 0 : index
    %1227 = vector.load %arg10[%c2_145, %c3_146, %c0_147] : memref<3x20x20xf32, #tpu.memory_space<vmem>>, vector<1x16x20xf32>
    %1228 = vector.shape_cast %1227 : vector<1x16x20xf32> to vector<16x20xf32>
    %1229 = vector.extract_strided_slice %1228 {offsets = [0, 0], sizes = [16, 16], strides = [1, 1]} : vector<16x20xf32> to vector<16x16xf32>
    %c65_148 = arith.constant 65 : index
    %1230 = memref.load %arg4[%c65_148] : memref<225xf32, #tpu.memory_space<smem>>
    %1231 = vector.broadcast %1230 : f32 to vector<16x16xf32>
    %1232 = arith.mulf %1229, %1231 : vector<16x16xf32>
    %1233 = arith.addf %1218, %1232 : vector<16x16xf32>
    %c140 = arith.constant 140 : index
    %1234 = memref.load %arg4[%c140] : memref<225xf32, #tpu.memory_space<smem>>
    %1235 = vector.broadcast %1234 : f32 to vector<16x16xf32>
    %1236 = arith.mulf %1229, %1235 : vector<16x16xf32>
    %1237 = arith.addf %1222, %1236 : vector<16x16xf32>
    %c215 = arith.constant 215 : index
    %1238 = memref.load %arg4[%c215] : memref<225xf32, #tpu.memory_space<smem>>
    %1239 = vector.broadcast %1238 : f32 to vector<16x16xf32>
    %1240 = arith.mulf %1229, %1239 : vector<16x16xf32>
    %1241 = arith.addf %1226, %1240 : vector<16x16xf32>
    %1242 = vector.extract_strided_slice %1228 {offsets = [0, 1], sizes = [16, 16], strides = [1, 1]} : vector<16x20xf32> to vector<16x16xf32>
    %c66_149 = arith.constant 66 : index
    %1243 = memref.load %arg4[%c66_149] : memref<225xf32, #tpu.memory_space<smem>>
    %1244 = vector.broadcast %1243 : f32 to vector<16x16xf32>
    %1245 = arith.mulf %1242, %1244 : vector<16x16xf32>
    %1246 = arith.addf %1233, %1245 : vector<16x16xf32>
    %c141 = arith.constant 141 : index
    %1247 = memref.load %arg4[%c141] : memref<225xf32, #tpu.memory_space<smem>>
    %1248 = vector.broadcast %1247 : f32 to vector<16x16xf32>
    %1249 = arith.mulf %1242, %1248 : vector<16x16xf32>
    %1250 = arith.addf %1237, %1249 : vector<16x16xf32>
    %c216 = arith.constant 216 : index
    %1251 = memref.load %arg4[%c216] : memref<225xf32, #tpu.memory_space<smem>>
    %1252 = vector.broadcast %1251 : f32 to vector<16x16xf32>
    %1253 = arith.mulf %1242, %1252 : vector<16x16xf32>
    %1254 = arith.addf %1241, %1253 : vector<16x16xf32>
    %1255 = vector.extract_strided_slice %1228 {offsets = [0, 2], sizes = [16, 16], strides = [1, 1]} : vector<16x20xf32> to vector<16x16xf32>
    %c67_150 = arith.constant 67 : index
    %1256 = memref.load %arg4[%c67_150] : memref<225xf32, #tpu.memory_space<smem>>
    %1257 = vector.broadcast %1256 : f32 to vector<16x16xf32>
    %1258 = arith.mulf %1255, %1257 : vector<16x16xf32>
    %1259 = arith.addf %1246, %1258 : vector<16x16xf32>
    %c142 = arith.constant 142 : index
    %1260 = memref.load %arg4[%c142] : memref<225xf32, #tpu.memory_space<smem>>
    %1261 = vector.broadcast %1260 : f32 to vector<16x16xf32>
    %1262 = arith.mulf %1255, %1261 : vector<16x16xf32>
    %1263 = arith.addf %1250, %1262 : vector<16x16xf32>
    %c217 = arith.constant 217 : index
    %1264 = memref.load %arg4[%c217] : memref<225xf32, #tpu.memory_space<smem>>
    %1265 = vector.broadcast %1264 : f32 to vector<16x16xf32>
    %1266 = arith.mulf %1255, %1265 : vector<16x16xf32>
    %1267 = arith.addf %1254, %1266 : vector<16x16xf32>
    %1268 = vector.extract_strided_slice %1228 {offsets = [0, 3], sizes = [16, 16], strides = [1, 1]} : vector<16x20xf32> to vector<16x16xf32>
    %c68_151 = arith.constant 68 : index
    %1269 = memref.load %arg4[%c68_151] : memref<225xf32, #tpu.memory_space<smem>>
    %1270 = vector.broadcast %1269 : f32 to vector<16x16xf32>
    %1271 = arith.mulf %1268, %1270 : vector<16x16xf32>
    %1272 = arith.addf %1259, %1271 : vector<16x16xf32>
    %c143 = arith.constant 143 : index
    %1273 = memref.load %arg4[%c143] : memref<225xf32, #tpu.memory_space<smem>>
    %1274 = vector.broadcast %1273 : f32 to vector<16x16xf32>
    %1275 = arith.mulf %1268, %1274 : vector<16x16xf32>
    %1276 = arith.addf %1263, %1275 : vector<16x16xf32>
    %c218 = arith.constant 218 : index
    %1277 = memref.load %arg4[%c218] : memref<225xf32, #tpu.memory_space<smem>>
    %1278 = vector.broadcast %1277 : f32 to vector<16x16xf32>
    %1279 = arith.mulf %1268, %1278 : vector<16x16xf32>
    %1280 = arith.addf %1267, %1279 : vector<16x16xf32>
    %1281 = vector.extract_strided_slice %1228 {offsets = [0, 4], sizes = [16, 16], strides = [1, 1]} : vector<16x20xf32> to vector<16x16xf32>
    %c69_152 = arith.constant 69 : index
    %1282 = memref.load %arg4[%c69_152] : memref<225xf32, #tpu.memory_space<smem>>
    %1283 = vector.broadcast %1282 : f32 to vector<16x16xf32>
    %1284 = arith.mulf %1281, %1283 : vector<16x16xf32>
    %1285 = arith.addf %1272, %1284 : vector<16x16xf32>
    %c144 = arith.constant 144 : index
    %1286 = memref.load %arg4[%c144] : memref<225xf32, #tpu.memory_space<smem>>
    %1287 = vector.broadcast %1286 : f32 to vector<16x16xf32>
    %1288 = arith.mulf %1281, %1287 : vector<16x16xf32>
    %1289 = arith.addf %1276, %1288 : vector<16x16xf32>
    %c219 = arith.constant 219 : index
    %1290 = memref.load %arg4[%c219] : memref<225xf32, #tpu.memory_space<smem>>
    %1291 = vector.broadcast %1290 : f32 to vector<16x16xf32>
    %1292 = arith.mulf %1281, %1291 : vector<16x16xf32>
    %1293 = arith.addf %1280, %1292 : vector<16x16xf32>
    %c2_153 = arith.constant 2 : index
    %c4_154 = arith.constant 4 : index
    %c0_155 = arith.constant 0 : index
    %1294 = vector.load %arg10[%c2_153, %c4_154, %c0_155] : memref<3x20x20xf32, #tpu.memory_space<vmem>>, vector<1x16x20xf32>
    %1295 = vector.shape_cast %1294 : vector<1x16x20xf32> to vector<16x20xf32>
    %1296 = vector.extract_strided_slice %1295 {offsets = [0, 0], sizes = [16, 16], strides = [1, 1]} : vector<16x20xf32> to vector<16x16xf32>
    %c70_156 = arith.constant 70 : index
    %1297 = memref.load %arg4[%c70_156] : memref<225xf32, #tpu.memory_space<smem>>
    %1298 = vector.broadcast %1297 : f32 to vector<16x16xf32>
    %1299 = arith.mulf %1296, %1298 : vector<16x16xf32>
    %1300 = arith.addf %1285, %1299 : vector<16x16xf32>
    %c145 = arith.constant 145 : index
    %1301 = memref.load %arg4[%c145] : memref<225xf32, #tpu.memory_space<smem>>
    %1302 = vector.broadcast %1301 : f32 to vector<16x16xf32>
    %1303 = arith.mulf %1296, %1302 : vector<16x16xf32>
    %1304 = arith.addf %1289, %1303 : vector<16x16xf32>
    %c220 = arith.constant 220 : index
    %1305 = memref.load %arg4[%c220] : memref<225xf32, #tpu.memory_space<smem>>
    %1306 = vector.broadcast %1305 : f32 to vector<16x16xf32>
    %1307 = arith.mulf %1296, %1306 : vector<16x16xf32>
    %1308 = arith.addf %1293, %1307 : vector<16x16xf32>
    %1309 = vector.extract_strided_slice %1295 {offsets = [0, 1], sizes = [16, 16], strides = [1, 1]} : vector<16x20xf32> to vector<16x16xf32>
    %c71_157 = arith.constant 71 : index
    %1310 = memref.load %arg4[%c71_157] : memref<225xf32, #tpu.memory_space<smem>>
    %1311 = vector.broadcast %1310 : f32 to vector<16x16xf32>
    %1312 = arith.mulf %1309, %1311 : vector<16x16xf32>
    %1313 = arith.addf %1300, %1312 : vector<16x16xf32>
    %c146 = arith.constant 146 : index
    %1314 = memref.load %arg4[%c146] : memref<225xf32, #tpu.memory_space<smem>>
    %1315 = vector.broadcast %1314 : f32 to vector<16x16xf32>
    %1316 = arith.mulf %1309, %1315 : vector<16x16xf32>
    %1317 = arith.addf %1304, %1316 : vector<16x16xf32>
    %c221 = arith.constant 221 : index
    %1318 = memref.load %arg4[%c221] : memref<225xf32, #tpu.memory_space<smem>>
    %1319 = vector.broadcast %1318 : f32 to vector<16x16xf32>
    %1320 = arith.mulf %1309, %1319 : vector<16x16xf32>
    %1321 = arith.addf %1308, %1320 : vector<16x16xf32>
    %1322 = vector.extract_strided_slice %1295 {offsets = [0, 2], sizes = [16, 16], strides = [1, 1]} : vector<16x20xf32> to vector<16x16xf32>
    %c72_158 = arith.constant 72 : index
    %1323 = memref.load %arg4[%c72_158] : memref<225xf32, #tpu.memory_space<smem>>
    %1324 = vector.broadcast %1323 : f32 to vector<16x16xf32>
    %1325 = arith.mulf %1322, %1324 : vector<16x16xf32>
    %1326 = arith.addf %1313, %1325 : vector<16x16xf32>
    %c147 = arith.constant 147 : index
    %1327 = memref.load %arg4[%c147] : memref<225xf32, #tpu.memory_space<smem>>
    %1328 = vector.broadcast %1327 : f32 to vector<16x16xf32>
    %1329 = arith.mulf %1322, %1328 : vector<16x16xf32>
    %1330 = arith.addf %1317, %1329 : vector<16x16xf32>
    %c222 = arith.constant 222 : index
    %1331 = memref.load %arg4[%c222] : memref<225xf32, #tpu.memory_space<smem>>
    %1332 = vector.broadcast %1331 : f32 to vector<16x16xf32>
    %1333 = arith.mulf %1322, %1332 : vector<16x16xf32>
    %1334 = arith.addf %1321, %1333 : vector<16x16xf32>
    %1335 = vector.extract_strided_slice %1295 {offsets = [0, 3], sizes = [16, 16], strides = [1, 1]} : vector<16x20xf32> to vector<16x16xf32>
    %c73_159 = arith.constant 73 : index
    %1336 = memref.load %arg4[%c73_159] : memref<225xf32, #tpu.memory_space<smem>>
    %1337 = vector.broadcast %1336 : f32 to vector<16x16xf32>
    %1338 = arith.mulf %1335, %1337 : vector<16x16xf32>
    %1339 = arith.addf %1326, %1338 : vector<16x16xf32>
    %c148 = arith.constant 148 : index
    %1340 = memref.load %arg4[%c148] : memref<225xf32, #tpu.memory_space<smem>>
    %1341 = vector.broadcast %1340 : f32 to vector<16x16xf32>
    %1342 = arith.mulf %1335, %1341 : vector<16x16xf32>
    %1343 = arith.addf %1330, %1342 : vector<16x16xf32>
    %c223 = arith.constant 223 : index
    %1344 = memref.load %arg4[%c223] : memref<225xf32, #tpu.memory_space<smem>>
    %1345 = vector.broadcast %1344 : f32 to vector<16x16xf32>
    %1346 = arith.mulf %1335, %1345 : vector<16x16xf32>
    %1347 = arith.addf %1334, %1346 : vector<16x16xf32>
    %1348 = vector.extract_strided_slice %1295 {offsets = [0, 4], sizes = [16, 16], strides = [1, 1]} : vector<16x20xf32> to vector<16x16xf32>
    %c74_160 = arith.constant 74 : index
    %1349 = memref.load %arg4[%c74_160] : memref<225xf32, #tpu.memory_space<smem>>
    %1350 = vector.broadcast %1349 : f32 to vector<16x16xf32>
    %1351 = arith.mulf %1348, %1350 : vector<16x16xf32>
    %1352 = arith.addf %1339, %1351 : vector<16x16xf32>
    %c149 = arith.constant 149 : index
    %1353 = memref.load %arg4[%c149] : memref<225xf32, #tpu.memory_space<smem>>
    %1354 = vector.broadcast %1353 : f32 to vector<16x16xf32>
    %1355 = arith.mulf %1348, %1354 : vector<16x16xf32>
    %1356 = arith.addf %1343, %1355 : vector<16x16xf32>
    %c224 = arith.constant 224 : index
    %1357 = memref.load %arg4[%c224] : memref<225xf32, #tpu.memory_space<smem>>
    %1358 = vector.broadcast %1357 : f32 to vector<16x16xf32>
    %1359 = arith.mulf %1348, %1358 : vector<16x16xf32>
    %1360 = arith.addf %1347, %1359 : vector<16x16xf32>
    %c0_161 = arith.constant 0 : index
    %1361 = memref.load %arg5[%c0_161] : memref<3xf32, #tpu.memory_space<smem>>
    %1362 = vector.broadcast %1361 : f32 to vector<16x16xf32>
    %1363 = arith.addf %1352, %1362 : vector<16x16xf32>
    %c1_162 = arith.constant 1 : index
    %1364 = memref.load %arg5[%c1_162] : memref<3xf32, #tpu.memory_space<smem>>
    %1365 = vector.broadcast %1364 : f32 to vector<16x16xf32>
    %1366 = arith.addf %1356, %1365 : vector<16x16xf32>
    %c2_163 = arith.constant 2 : index
    %1367 = memref.load %arg5[%c2_163] : memref<3xf32, #tpu.memory_space<smem>>
    %1368 = vector.broadcast %1367 : f32 to vector<16x16xf32>
    %1369 = arith.addf %1360, %1368 : vector<16x16xf32>
    %c0_164 = arith.constant 0 : index
    %c2_165 = arith.constant 2 : index
    %c2_166 = arith.constant 2 : index
    %1370 = vector.load %arg9[%c0_164, %c2_165, %c2_166] : memref<3x20x20xf32, #tpu.memory_space<vmem>>, vector<1x16x16xf32>
    %1371 = vector.shape_cast %1370 : vector<1x16x16xf32> to vector<16x16xf32>
    %1372 = vector.shape_cast %1363 : vector<16x16xf32> to vector<1x16x16xf32>
    tpu.vector_store %arg9[%c0_164, %c2_165, %c2_166], %1372 {strides = array<i32>} : memref<3x20x20xf32, #tpu.memory_space<vmem>>, vector<1x16x16xf32>,
    %c1_167 = arith.constant 1 : index
    %c2_168 = arith.constant 2 : index
    %c2_169 = arith.constant 2 : index
    %1373 = vector.load %arg9[%c1_167, %c2_168, %c2_169] : memref<3x20x20xf32, #tpu.memory_space<vmem>>, vector<1x16x16xf32>
    %1374 = vector.shape_cast %1373 : vector<1x16x16xf32> to vector<16x16xf32>
    %1375 = vector.shape_cast %1366 : vector<16x16xf32> to vector<1x16x16xf32>
    tpu.vector_store %arg9[%c1_167, %c2_168, %c2_169], %1375 {strides = array<i32>} : memref<3x20x20xf32, #tpu.memory_space<vmem>>, vector<1x16x16xf32>,
    %c2_170 = arith.constant 2 : index
    %c2_171 = arith.constant 2 : index
    %c2_172 = arith.constant 2 : index
    %1376 = vector.load %arg9[%c2_170, %c2_171, %c2_172] : memref<3x20x20xf32, #tpu.memory_space<vmem>>, vector<1x16x16xf32>
    %1377 = vector.shape_cast %1376 : vector<1x16x16xf32> to vector<16x16xf32>
    %1378 = vector.shape_cast %1369 : vector<16x16xf32> to vector<1x16x16xf32>
    tpu.vector_store %arg9[%c2_170, %c2_171, %c2_172], %1378 {strides = array<i32>} : memref<3x20x20xf32, #tpu.memory_space<vmem>>, vector<1x16x16xf32>,
    %c0_173 = arith.constant 0 : index
    %c0_174 = arith.constant 0 : index
    %c0_175 = arith.constant 0 : index
    %1379 = vector.load %arg9[%c0_173, %c0_174, %c0_175] : memref<3x20x20xf32, #tpu.memory_space<vmem>>, vector<1x16x20xf32>
    %1380 = vector.shape_cast %1379 : vector<1x16x20xf32> to vector<16x20xf32>
    %1381 = vector.extract_strided_slice %1380 {offsets = [0, 0], sizes = [16, 16], strides = [1, 1]} : vector<16x20xf32> to vector<16x16xf32>
    %c0_176 = arith.constant 0 : index
    %1382 = memref.load %arg6[%c0_176] : memref<225xf32, #tpu.memory_space<smem>>
    %1383 = vector.broadcast %1382 : f32 to vector<16x16xf32>
    %1384 = arith.mulf %1381, %1383 : vector<16x16xf32>
    %c75_177 = arith.constant 75 : index
    %1385 = memref.load %arg6[%c75_177] : memref<225xf32, #tpu.memory_space<smem>>
    %1386 = vector.broadcast %1385 : f32 to vector<16x16xf32>
    %1387 = arith.mulf %1381, %1386 : vector<16x16xf32>
    %c150_178 = arith.constant 150 : index
    %1388 = memref.load %arg6[%c150_178] : memref<225xf32, #tpu.memory_space<smem>>
    %1389 = vector.broadcast %1388 : f32 to vector<16x16xf32>
    %1390 = arith.mulf %1381, %1389 : vector<16x16xf32>
    %1391 = vector.extract_strided_slice %1380 {offsets = [0, 1], sizes = [16, 16], strides = [1, 1]} : vector<16x20xf32> to vector<16x16xf32>
    %c1_179 = arith.constant 1 : index
    %1392 = memref.load %arg6[%c1_179] : memref<225xf32, #tpu.memory_space<smem>>
    %1393 = vector.broadcast %1392 : f32 to vector<16x16xf32>
    %1394 = arith.mulf %1391, %1393 : vector<16x16xf32>
    %1395 = arith.addf %1384, %1394 : vector<16x16xf32>
    %c76_180 = arith.constant 76 : index
    %1396 = memref.load %arg6[%c76_180] : memref<225xf32, #tpu.memory_space<smem>>
    %1397 = vector.broadcast %1396 : f32 to vector<16x16xf32>
    %1398 = arith.mulf %1391, %1397 : vector<16x16xf32>
    %1399 = arith.addf %1387, %1398 : vector<16x16xf32>
    %c151_181 = arith.constant 151 : index
    %1400 = memref.load %arg6[%c151_181] : memref<225xf32, #tpu.memory_space<smem>>
    %1401 = vector.broadcast %1400 : f32 to vector<16x16xf32>
    %1402 = arith.mulf %1391, %1401 : vector<16x16xf32>
    %1403 = arith.addf %1390, %1402 : vector<16x16xf32>
    %1404 = vector.extract_strided_slice %1380 {offsets = [0, 2], sizes = [16, 16], strides = [1, 1]} : vector<16x20xf32> to vector<16x16xf32>
    %c2_182 = arith.constant 2 : index
    %1405 = memref.load %arg6[%c2_182] : memref<225xf32, #tpu.memory_space<smem>>
    %1406 = vector.broadcast %1405 : f32 to vector<16x16xf32>
    %1407 = arith.mulf %1404, %1406 : vector<16x16xf32>
    %1408 = arith.addf %1395, %1407 : vector<16x16xf32>
    %c77_183 = arith.constant 77 : index
    %1409 = memref.load %arg6[%c77_183] : memref<225xf32, #tpu.memory_space<smem>>
    %1410 = vector.broadcast %1409 : f32 to vector<16x16xf32>
    %1411 = arith.mulf %1404, %1410 : vector<16x16xf32>
    %1412 = arith.addf %1399, %1411 : vector<16x16xf32>
    %c152_184 = arith.constant 152 : index
    %1413 = memref.load %arg6[%c152_184] : memref<225xf32, #tpu.memory_space<smem>>
    %1414 = vector.broadcast %1413 : f32 to vector<16x16xf32>
    %1415 = arith.mulf %1404, %1414 : vector<16x16xf32>
    %1416 = arith.addf %1403, %1415 : vector<16x16xf32>
    %1417 = vector.extract_strided_slice %1380 {offsets = [0, 3], sizes = [16, 16], strides = [1, 1]} : vector<16x20xf32> to vector<16x16xf32>
    %c3_185 = arith.constant 3 : index
    %1418 = memref.load %arg6[%c3_185] : memref<225xf32, #tpu.memory_space<smem>>
    %1419 = vector.broadcast %1418 : f32 to vector<16x16xf32>
    %1420 = arith.mulf %1417, %1419 : vector<16x16xf32>
    %1421 = arith.addf %1408, %1420 : vector<16x16xf32>
    %c78_186 = arith.constant 78 : index
    %1422 = memref.load %arg6[%c78_186] : memref<225xf32, #tpu.memory_space<smem>>
    %1423 = vector.broadcast %1422 : f32 to vector<16x16xf32>
    %1424 = arith.mulf %1417, %1423 : vector<16x16xf32>
    %1425 = arith.addf %1412, %1424 : vector<16x16xf32>
    %c153_187 = arith.constant 153 : index
    %1426 = memref.load %arg6[%c153_187] : memref<225xf32, #tpu.memory_space<smem>>
    %1427 = vector.broadcast %1426 : f32 to vector<16x16xf32>
    %1428 = arith.mulf %1417, %1427 : vector<16x16xf32>
    %1429 = arith.addf %1416, %1428 : vector<16x16xf32>
    %1430 = vector.extract_strided_slice %1380 {offsets = [0, 4], sizes = [16, 16], strides = [1, 1]} : vector<16x20xf32> to vector<16x16xf32>
    %c4_188 = arith.constant 4 : index
    %1431 = memref.load %arg6[%c4_188] : memref<225xf32, #tpu.memory_space<smem>>
    %1432 = vector.broadcast %1431 : f32 to vector<16x16xf32>
    %1433 = arith.mulf %1430, %1432 : vector<16x16xf32>
    %1434 = arith.addf %1421, %1433 : vector<16x16xf32>
    %c79_189 = arith.constant 79 : index
    %1435 = memref.load %arg6[%c79_189] : memref<225xf32, #tpu.memory_space<smem>>
    %1436 = vector.broadcast %1435 : f32 to vector<16x16xf32>
    %1437 = arith.mulf %1430, %1436 : vector<16x16xf32>
    %1438 = arith.addf %1425, %1437 : vector<16x16xf32>
    %c154_190 = arith.constant 154 : index
    %1439 = memref.load %arg6[%c154_190] : memref<225xf32, #tpu.memory_space<smem>>
    %1440 = vector.broadcast %1439 : f32 to vector<16x16xf32>
    %1441 = arith.mulf %1430, %1440 : vector<16x16xf32>
    %1442 = arith.addf %1429, %1441 : vector<16x16xf32>
    %c0_191 = arith.constant 0 : index
    %c1_192 = arith.constant 1 : index
    %c0_193 = arith.constant 0 : index
    %1443 = vector.load %arg9[%c0_191, %c1_192, %c0_193] : memref<3x20x20xf32, #tpu.memory_space<vmem>>, vector<1x16x20xf32>
    %1444 = vector.shape_cast %1443 : vector<1x16x20xf32> to vector<16x20xf32>
    %1445 = vector.extract_strided_slice %1444 {offsets = [0, 0], sizes = [16, 16], strides = [1, 1]} : vector<16x20xf32> to vector<16x16xf32>
    %c5_194 = arith.constant 5 : index
    %1446 = memref.load %arg6[%c5_194] : memref<225xf32, #tpu.memory_space<smem>>
    %1447 = vector.broadcast %1446 : f32 to vector<16x16xf32>
    %1448 = arith.mulf %1445, %1447 : vector<16x16xf32>
    %1449 = arith.addf %1434, %1448 : vector<16x16xf32>
    %c80_195 = arith.constant 80 : index
    %1450 = memref.load %arg6[%c80_195] : memref<225xf32, #tpu.memory_space<smem>>
    %1451 = vector.broadcast %1450 : f32 to vector<16x16xf32>
    %1452 = arith.mulf %1445, %1451 : vector<16x16xf32>
    %1453 = arith.addf %1438, %1452 : vector<16x16xf32>
    %c155_196 = arith.constant 155 : index
    %1454 = memref.load %arg6[%c155_196] : memref<225xf32, #tpu.memory_space<smem>>
    %1455 = vector.broadcast %1454 : f32 to vector<16x16xf32>
    %1456 = arith.mulf %1445, %1455 : vector<16x16xf32>
    %1457 = arith.addf %1442, %1456 : vector<16x16xf32>
    %1458 = vector.extract_strided_slice %1444 {offsets = [0, 1], sizes = [16, 16], strides = [1, 1]} : vector<16x20xf32> to vector<16x16xf32>
    %c6_197 = arith.constant 6 : index
    %1459 = memref.load %arg6[%c6_197] : memref<225xf32, #tpu.memory_space<smem>>
    %1460 = vector.broadcast %1459 : f32 to vector<16x16xf32>
    %1461 = arith.mulf %1458, %1460 : vector<16x16xf32>
    %1462 = arith.addf %1449, %1461 : vector<16x16xf32>
    %c81_198 = arith.constant 81 : index
    %1463 = memref.load %arg6[%c81_198] : memref<225xf32, #tpu.memory_space<smem>>
    %1464 = vector.broadcast %1463 : f32 to vector<16x16xf32>
    %1465 = arith.mulf %1458, %1464 : vector<16x16xf32>
    %1466 = arith.addf %1453, %1465 : vector<16x16xf32>
    %c156_199 = arith.constant 156 : index
    %1467 = memref.load %arg6[%c156_199] : memref<225xf32, #tpu.memory_space<smem>>
    %1468 = vector.broadcast %1467 : f32 to vector<16x16xf32>
    %1469 = arith.mulf %1458, %1468 : vector<16x16xf32>
    %1470 = arith.addf %1457, %1469 : vector<16x16xf32>
    %1471 = vector.extract_strided_slice %1444 {offsets = [0, 2], sizes = [16, 16], strides = [1, 1]} : vector<16x20xf32> to vector<16x16xf32>
    %c7_200 = arith.constant 7 : index
    %1472 = memref.load %arg6[%c7_200] : memref<225xf32, #tpu.memory_space<smem>>
    %1473 = vector.broadcast %1472 : f32 to vector<16x16xf32>
    %1474 = arith.mulf %1471, %1473 : vector<16x16xf32>
    %1475 = arith.addf %1462, %1474 : vector<16x16xf32>
    %c82_201 = arith.constant 82 : index
    %1476 = memref.load %arg6[%c82_201] : memref<225xf32, #tpu.memory_space<smem>>
    %1477 = vector.broadcast %1476 : f32 to vector<16x16xf32>
    %1478 = arith.mulf %1471, %1477 : vector<16x16xf32>
    %1479 = arith.addf %1466, %1478 : vector<16x16xf32>
    %c157_202 = arith.constant 157 : index
    %1480 = memref.load %arg6[%c157_202] : memref<225xf32, #tpu.memory_space<smem>>
    %1481 = vector.broadcast %1480 : f32 to vector<16x16xf32>
    %1482 = arith.mulf %1471, %1481 : vector<16x16xf32>
    %1483 = arith.addf %1470, %1482 : vector<16x16xf32>
    %1484 = vector.extract_strided_slice %1444 {offsets = [0, 3], sizes = [16, 16], strides = [1, 1]} : vector<16x20xf32> to vector<16x16xf32>
    %c8_203 = arith.constant 8 : index
    %1485 = memref.load %arg6[%c8_203] : memref<225xf32, #tpu.memory_space<smem>>
    %1486 = vector.broadcast %1485 : f32 to vector<16x16xf32>
    %1487 = arith.mulf %1484, %1486 : vector<16x16xf32>
    %1488 = arith.addf %1475, %1487 : vector<16x16xf32>
    %c83_204 = arith.constant 83 : index
    %1489 = memref.load %arg6[%c83_204] : memref<225xf32, #tpu.memory_space<smem>>
    %1490 = vector.broadcast %1489 : f32 to vector<16x16xf32>
    %1491 = arith.mulf %1484, %1490 : vector<16x16xf32>
    %1492 = arith.addf %1479, %1491 : vector<16x16xf32>
    %c158_205 = arith.constant 158 : index
    %1493 = memref.load %arg6[%c158_205] : memref<225xf32, #tpu.memory_space<smem>>
    %1494 = vector.broadcast %1493 : f32 to vector<16x16xf32>
    %1495 = arith.mulf %1484, %1494 : vector<16x16xf32>
    %1496 = arith.addf %1483, %1495 : vector<16x16xf32>
    %1497 = vector.extract_strided_slice %1444 {offsets = [0, 4], sizes = [16, 16], strides = [1, 1]} : vector<16x20xf32> to vector<16x16xf32>
    %c9_206 = arith.constant 9 : index
    %1498 = memref.load %arg6[%c9_206] : memref<225xf32, #tpu.memory_space<smem>>
    %1499 = vector.broadcast %1498 : f32 to vector<16x16xf32>
    %1500 = arith.mulf %1497, %1499 : vector<16x16xf32>
    %1501 = arith.addf %1488, %1500 : vector<16x16xf32>
    %c84_207 = arith.constant 84 : index
    %1502 = memref.load %arg6[%c84_207] : memref<225xf32, #tpu.memory_space<smem>>
    %1503 = vector.broadcast %1502 : f32 to vector<16x16xf32>
    %1504 = arith.mulf %1497, %1503 : vector<16x16xf32>
    %1505 = arith.addf %1492, %1504 : vector<16x16xf32>
    %c159_208 = arith.constant 159 : index
    %1506 = memref.load %arg6[%c159_208] : memref<225xf32, #tpu.memory_space<smem>>
    %1507 = vector.broadcast %1506 : f32 to vector<16x16xf32>
    %1508 = arith.mulf %1497, %1507 : vector<16x16xf32>
    %1509 = arith.addf %1496, %1508 : vector<16x16xf32>
    %c0_209 = arith.constant 0 : index
    %c2_210 = arith.constant 2 : index
    %c0_211 = arith.constant 0 : index
    %1510 = vector.load %arg9[%c0_209, %c2_210, %c0_211] : memref<3x20x20xf32, #tpu.memory_space<vmem>>, vector<1x16x20xf32>
    %1511 = vector.shape_cast %1510 : vector<1x16x20xf32> to vector<16x20xf32>
    %1512 = vector.extract_strided_slice %1511 {offsets = [0, 0], sizes = [16, 16], strides = [1, 1]} : vector<16x20xf32> to vector<16x16xf32>
    %c10_212 = arith.constant 10 : index
    %1513 = memref.load %arg6[%c10_212] : memref<225xf32, #tpu.memory_space<smem>>
    %1514 = vector.broadcast %1513 : f32 to vector<16x16xf32>
    %1515 = arith.mulf %1512, %1514 : vector<16x16xf32>
    %1516 = arith.addf %1501, %1515 : vector<16x16xf32>
    %c85_213 = arith.constant 85 : index
    %1517 = memref.load %arg6[%c85_213] : memref<225xf32, #tpu.memory_space<smem>>
    %1518 = vector.broadcast %1517 : f32 to vector<16x16xf32>
    %1519 = arith.mulf %1512, %1518 : vector<16x16xf32>
    %1520 = arith.addf %1505, %1519 : vector<16x16xf32>
    %c160_214 = arith.constant 160 : index
    %1521 = memref.load %arg6[%c160_214] : memref<225xf32, #tpu.memory_space<smem>>
    %1522 = vector.broadcast %1521 : f32 to vector<16x16xf32>
    %1523 = arith.mulf %1512, %1522 : vector<16x16xf32>
    %1524 = arith.addf %1509, %1523 : vector<16x16xf32>
    %1525 = vector.extract_strided_slice %1511 {offsets = [0, 1], sizes = [16, 16], strides = [1, 1]} : vector<16x20xf32> to vector<16x16xf32>
    %c11_215 = arith.constant 11 : index
    %1526 = memref.load %arg6[%c11_215] : memref<225xf32, #tpu.memory_space<smem>>
    %1527 = vector.broadcast %1526 : f32 to vector<16x16xf32>
    %1528 = arith.mulf %1525, %1527 : vector<16x16xf32>
    %1529 = arith.addf %1516, %1528 : vector<16x16xf32>
    %c86_216 = arith.constant 86 : index
    %1530 = memref.load %arg6[%c86_216] : memref<225xf32, #tpu.memory_space<smem>>
    %1531 = vector.broadcast %1530 : f32 to vector<16x16xf32>
    %1532 = arith.mulf %1525, %1531 : vector<16x16xf32>
    %1533 = arith.addf %1520, %1532 : vector<16x16xf32>
    %c161_217 = arith.constant 161 : index
    %1534 = memref.load %arg6[%c161_217] : memref<225xf32, #tpu.memory_space<smem>>
    %1535 = vector.broadcast %1534 : f32 to vector<16x16xf32>
    %1536 = arith.mulf %1525, %1535 : vector<16x16xf32>
    %1537 = arith.addf %1524, %1536 : vector<16x16xf32>
    %1538 = vector.extract_strided_slice %1511 {offsets = [0, 2], sizes = [16, 16], strides = [1, 1]} : vector<16x20xf32> to vector<16x16xf32>
    %c12_218 = arith.constant 12 : index
    %1539 = memref.load %arg6[%c12_218] : memref<225xf32, #tpu.memory_space<smem>>
    %1540 = vector.broadcast %1539 : f32 to vector<16x16xf32>
    %1541 = arith.mulf %1538, %1540 : vector<16x16xf32>
    %1542 = arith.addf %1529, %1541 : vector<16x16xf32>
    %c87_219 = arith.constant 87 : index
    %1543 = memref.load %arg6[%c87_219] : memref<225xf32, #tpu.memory_space<smem>>
    %1544 = vector.broadcast %1543 : f32 to vector<16x16xf32>
    %1545 = arith.mulf %1538, %1544 : vector<16x16xf32>
    %1546 = arith.addf %1533, %1545 : vector<16x16xf32>
    %c162_220 = arith.constant 162 : index
    %1547 = memref.load %arg6[%c162_220] : memref<225xf32, #tpu.memory_space<smem>>
    %1548 = vector.broadcast %1547 : f32 to vector<16x16xf32>
    %1549 = arith.mulf %1538, %1548 : vector<16x16xf32>
    %1550 = arith.addf %1537, %1549 : vector<16x16xf32>
    %1551 = vector.extract_strided_slice %1511 {offsets = [0, 3], sizes = [16, 16], strides = [1, 1]} : vector<16x20xf32> to vector<16x16xf32>
    %c13_221 = arith.constant 13 : index
    %1552 = memref.load %arg6[%c13_221] : memref<225xf32, #tpu.memory_space<smem>>
    %1553 = vector.broadcast %1552 : f32 to vector<16x16xf32>
    %1554 = arith.mulf %1551, %1553 : vector<16x16xf32>
    %1555 = arith.addf %1542, %1554 : vector<16x16xf32>
    %c88_222 = arith.constant 88 : index
    %1556 = memref.load %arg6[%c88_222] : memref<225xf32, #tpu.memory_space<smem>>
    %1557 = vector.broadcast %1556 : f32 to vector<16x16xf32>
    %1558 = arith.mulf %1551, %1557 : vector<16x16xf32>
    %1559 = arith.addf %1546, %1558 : vector<16x16xf32>
    %c163_223 = arith.constant 163 : index
    %1560 = memref.load %arg6[%c163_223] : memref<225xf32, #tpu.memory_space<smem>>
    %1561 = vector.broadcast %1560 : f32 to vector<16x16xf32>
    %1562 = arith.mulf %1551, %1561 : vector<16x16xf32>
    %1563 = arith.addf %1550, %1562 : vector<16x16xf32>
    %1564 = vector.extract_strided_slice %1511 {offsets = [0, 4], sizes = [16, 16], strides = [1, 1]} : vector<16x20xf32> to vector<16x16xf32>
    %c14_224 = arith.constant 14 : index
    %1565 = memref.load %arg6[%c14_224] : memref<225xf32, #tpu.memory_space<smem>>
    %1566 = vector.broadcast %1565 : f32 to vector<16x16xf32>
    %1567 = arith.mulf %1564, %1566 : vector<16x16xf32>
    %1568 = arith.addf %1555, %1567 : vector<16x16xf32>
    %c89_225 = arith.constant 89 : index
    %1569 = memref.load %arg6[%c89_225] : memref<225xf32, #tpu.memory_space<smem>>
    %1570 = vector.broadcast %1569 : f32 to vector<16x16xf32>
    %1571 = arith.mulf %1564, %1570 : vector<16x16xf32>
    %1572 = arith.addf %1559, %1571 : vector<16x16xf32>
    %c164_226 = arith.constant 164 : index
    %1573 = memref.load %arg6[%c164_226] : memref<225xf32, #tpu.memory_space<smem>>
    %1574 = vector.broadcast %1573 : f32 to vector<16x16xf32>
    %1575 = arith.mulf %1564, %1574 : vector<16x16xf32>
    %1576 = arith.addf %1563, %1575 : vector<16x16xf32>
    %c0_227 = arith.constant 0 : index
    %c3_228 = arith.constant 3 : index
    %c0_229 = arith.constant 0 : index
    %1577 = vector.load %arg9[%c0_227, %c3_228, %c0_229] : memref<3x20x20xf32, #tpu.memory_space<vmem>>, vector<1x16x20xf32>
    %1578 = vector.shape_cast %1577 : vector<1x16x20xf32> to vector<16x20xf32>
    %1579 = vector.extract_strided_slice %1578 {offsets = [0, 0], sizes = [16, 16], strides = [1, 1]} : vector<16x20xf32> to vector<16x16xf32>
    %c15_230 = arith.constant 15 : index
    %1580 = memref.load %arg6[%c15_230] : memref<225xf32, #tpu.memory_space<smem>>
    %1581 = vector.broadcast %1580 : f32 to vector<16x16xf32>
    %1582 = arith.mulf %1579, %1581 : vector<16x16xf32>
    %1583 = arith.addf %1568, %1582 : vector<16x16xf32>
    %c90_231 = arith.constant 90 : index
    %1584 = memref.load %arg6[%c90_231] : memref<225xf32, #tpu.memory_space<smem>>
    %1585 = vector.broadcast %1584 : f32 to vector<16x16xf32>
    %1586 = arith.mulf %1579, %1585 : vector<16x16xf32>
    %1587 = arith.addf %1572, %1586 : vector<16x16xf32>
    %c165_232 = arith.constant 165 : index
    %1588 = memref.load %arg6[%c165_232] : memref<225xf32, #tpu.memory_space<smem>>
    %1589 = vector.broadcast %1588 : f32 to vector<16x16xf32>
    %1590 = arith.mulf %1579, %1589 : vector<16x16xf32>
    %1591 = arith.addf %1576, %1590 : vector<16x16xf32>
    %1592 = vector.extract_strided_slice %1578 {offsets = [0, 1], sizes = [16, 16], strides = [1, 1]} : vector<16x20xf32> to vector<16x16xf32>
    %c16_233 = arith.constant 16 : index
    %1593 = memref.load %arg6[%c16_233] : memref<225xf32, #tpu.memory_space<smem>>
    %1594 = vector.broadcast %1593 : f32 to vector<16x16xf32>
    %1595 = arith.mulf %1592, %1594 : vector<16x16xf32>
    %1596 = arith.addf %1583, %1595 : vector<16x16xf32>
    %c91_234 = arith.constant 91 : index
    %1597 = memref.load %arg6[%c91_234] : memref<225xf32, #tpu.memory_space<smem>>
    %1598 = vector.broadcast %1597 : f32 to vector<16x16xf32>
    %1599 = arith.mulf %1592, %1598 : vector<16x16xf32>
    %1600 = arith.addf %1587, %1599 : vector<16x16xf32>
    %c166_235 = arith.constant 166 : index
    %1601 = memref.load %arg6[%c166_235] : memref<225xf32, #tpu.memory_space<smem>>
    %1602 = vector.broadcast %1601 : f32 to vector<16x16xf32>
    %1603 = arith.mulf %1592, %1602 : vector<16x16xf32>
    %1604 = arith.addf %1591, %1603 : vector<16x16xf32>
    %1605 = vector.extract_strided_slice %1578 {offsets = [0, 2], sizes = [16, 16], strides = [1, 1]} : vector<16x20xf32> to vector<16x16xf32>
    %c17_236 = arith.constant 17 : index
    %1606 = memref.load %arg6[%c17_236] : memref<225xf32, #tpu.memory_space<smem>>
    %1607 = vector.broadcast %1606 : f32 to vector<16x16xf32>
    %1608 = arith.mulf %1605, %1607 : vector<16x16xf32>
    %1609 = arith.addf %1596, %1608 : vector<16x16xf32>
    %c92_237 = arith.constant 92 : index
    %1610 = memref.load %arg6[%c92_237] : memref<225xf32, #tpu.memory_space<smem>>
    %1611 = vector.broadcast %1610 : f32 to vector<16x16xf32>
    %1612 = arith.mulf %1605, %1611 : vector<16x16xf32>
    %1613 = arith.addf %1600, %1612 : vector<16x16xf32>
    %c167_238 = arith.constant 167 : index
    %1614 = memref.load %arg6[%c167_238] : memref<225xf32, #tpu.memory_space<smem>>
    %1615 = vector.broadcast %1614 : f32 to vector<16x16xf32>
    %1616 = arith.mulf %1605, %1615 : vector<16x16xf32>
    %1617 = arith.addf %1604, %1616 : vector<16x16xf32>
    %1618 = vector.extract_strided_slice %1578 {offsets = [0, 3], sizes = [16, 16], strides = [1, 1]} : vector<16x20xf32> to vector<16x16xf32>
    %c18_239 = arith.constant 18 : index
    %1619 = memref.load %arg6[%c18_239] : memref<225xf32, #tpu.memory_space<smem>>
    %1620 = vector.broadcast %1619 : f32 to vector<16x16xf32>
    %1621 = arith.mulf %1618, %1620 : vector<16x16xf32>
    %1622 = arith.addf %1609, %1621 : vector<16x16xf32>
    %c93_240 = arith.constant 93 : index
    %1623 = memref.load %arg6[%c93_240] : memref<225xf32, #tpu.memory_space<smem>>
    %1624 = vector.broadcast %1623 : f32 to vector<16x16xf32>
    %1625 = arith.mulf %1618, %1624 : vector<16x16xf32>
    %1626 = arith.addf %1613, %1625 : vector<16x16xf32>
    %c168_241 = arith.constant 168 : index
    %1627 = memref.load %arg6[%c168_241] : memref<225xf32, #tpu.memory_space<smem>>
    %1628 = vector.broadcast %1627 : f32 to vector<16x16xf32>
    %1629 = arith.mulf %1618, %1628 : vector<16x16xf32>
    %1630 = arith.addf %1617, %1629 : vector<16x16xf32>
    %1631 = vector.extract_strided_slice %1578 {offsets = [0, 4], sizes = [16, 16], strides = [1, 1]} : vector<16x20xf32> to vector<16x16xf32>
    %c19_242 = arith.constant 19 : index
    %1632 = memref.load %arg6[%c19_242] : memref<225xf32, #tpu.memory_space<smem>>
    %1633 = vector.broadcast %1632 : f32 to vector<16x16xf32>
    %1634 = arith.mulf %1631, %1633 : vector<16x16xf32>
    %1635 = arith.addf %1622, %1634 : vector<16x16xf32>
    %c94_243 = arith.constant 94 : index
    %1636 = memref.load %arg6[%c94_243] : memref<225xf32, #tpu.memory_space<smem>>
    %1637 = vector.broadcast %1636 : f32 to vector<16x16xf32>
    %1638 = arith.mulf %1631, %1637 : vector<16x16xf32>
    %1639 = arith.addf %1626, %1638 : vector<16x16xf32>
    %c169_244 = arith.constant 169 : index
    %1640 = memref.load %arg6[%c169_244] : memref<225xf32, #tpu.memory_space<smem>>
    %1641 = vector.broadcast %1640 : f32 to vector<16x16xf32>
    %1642 = arith.mulf %1631, %1641 : vector<16x16xf32>
    %1643 = arith.addf %1630, %1642 : vector<16x16xf32>
    %c0_245 = arith.constant 0 : index
    %c4_246 = arith.constant 4 : index
    %c0_247 = arith.constant 0 : index
    %1644 = vector.load %arg9[%c0_245, %c4_246, %c0_247] : memref<3x20x20xf32, #tpu.memory_space<vmem>>, vector<1x16x20xf32>
    %1645 = vector.shape_cast %1644 : vector<1x16x20xf32> to vector<16x20xf32>
    %1646 = vector.extract_strided_slice %1645 {offsets = [0, 0], sizes = [16, 16], strides = [1, 1]} : vector<16x20xf32> to vector<16x16xf32>
    %c20_248 = arith.constant 20 : index
    %1647 = memref.load %arg6[%c20_248] : memref<225xf32, #tpu.memory_space<smem>>
    %1648 = vector.broadcast %1647 : f32 to vector<16x16xf32>
    %1649 = arith.mulf %1646, %1648 : vector<16x16xf32>
    %1650 = arith.addf %1635, %1649 : vector<16x16xf32>
    %c95_249 = arith.constant 95 : index
    %1651 = memref.load %arg6[%c95_249] : memref<225xf32, #tpu.memory_space<smem>>
    %1652 = vector.broadcast %1651 : f32 to vector<16x16xf32>
    %1653 = arith.mulf %1646, %1652 : vector<16x16xf32>
    %1654 = arith.addf %1639, %1653 : vector<16x16xf32>
    %c170_250 = arith.constant 170 : index
    %1655 = memref.load %arg6[%c170_250] : memref<225xf32, #tpu.memory_space<smem>>
    %1656 = vector.broadcast %1655 : f32 to vector<16x16xf32>
    %1657 = arith.mulf %1646, %1656 : vector<16x16xf32>
    %1658 = arith.addf %1643, %1657 : vector<16x16xf32>
    %1659 = vector.extract_strided_slice %1645 {offsets = [0, 1], sizes = [16, 16], strides = [1, 1]} : vector<16x20xf32> to vector<16x16xf32>
    %c21_251 = arith.constant 21 : index
    %1660 = memref.load %arg6[%c21_251] : memref<225xf32, #tpu.memory_space<smem>>
    %1661 = vector.broadcast %1660 : f32 to vector<16x16xf32>
    %1662 = arith.mulf %1659, %1661 : vector<16x16xf32>
    %1663 = arith.addf %1650, %1662 : vector<16x16xf32>
    %c96_252 = arith.constant 96 : index
    %1664 = memref.load %arg6[%c96_252] : memref<225xf32, #tpu.memory_space<smem>>
    %1665 = vector.broadcast %1664 : f32 to vector<16x16xf32>
    %1666 = arith.mulf %1659, %1665 : vector<16x16xf32>
    %1667 = arith.addf %1654, %1666 : vector<16x16xf32>
    %c171_253 = arith.constant 171 : index
    %1668 = memref.load %arg6[%c171_253] : memref<225xf32, #tpu.memory_space<smem>>
    %1669 = vector.broadcast %1668 : f32 to vector<16x16xf32>
    %1670 = arith.mulf %1659, %1669 : vector<16x16xf32>
    %1671 = arith.addf %1658, %1670 : vector<16x16xf32>
    %1672 = vector.extract_strided_slice %1645 {offsets = [0, 2], sizes = [16, 16], strides = [1, 1]} : vector<16x20xf32> to vector<16x16xf32>
    %c22_254 = arith.constant 22 : index
    %1673 = memref.load %arg6[%c22_254] : memref<225xf32, #tpu.memory_space<smem>>
    %1674 = vector.broadcast %1673 : f32 to vector<16x16xf32>
    %1675 = arith.mulf %1672, %1674 : vector<16x16xf32>
    %1676 = arith.addf %1663, %1675 : vector<16x16xf32>
    %c97_255 = arith.constant 97 : index
    %1677 = memref.load %arg6[%c97_255] : memref<225xf32, #tpu.memory_space<smem>>
    %1678 = vector.broadcast %1677 : f32 to vector<16x16xf32>
    %1679 = arith.mulf %1672, %1678 : vector<16x16xf32>
    %1680 = arith.addf %1667, %1679 : vector<16x16xf32>
    %c172_256 = arith.constant 172 : index
    %1681 = memref.load %arg6[%c172_256] : memref<225xf32, #tpu.memory_space<smem>>
    %1682 = vector.broadcast %1681 : f32 to vector<16x16xf32>
    %1683 = arith.mulf %1672, %1682 : vector<16x16xf32>
    %1684 = arith.addf %1671, %1683 : vector<16x16xf32>
    %1685 = vector.extract_strided_slice %1645 {offsets = [0, 3], sizes = [16, 16], strides = [1, 1]} : vector<16x20xf32> to vector<16x16xf32>
    %c23_257 = arith.constant 23 : index
    %1686 = memref.load %arg6[%c23_257] : memref<225xf32, #tpu.memory_space<smem>>
    %1687 = vector.broadcast %1686 : f32 to vector<16x16xf32>
    %1688 = arith.mulf %1685, %1687 : vector<16x16xf32>
    %1689 = arith.addf %1676, %1688 : vector<16x16xf32>
    %c98_258 = arith.constant 98 : index
    %1690 = memref.load %arg6[%c98_258] : memref<225xf32, #tpu.memory_space<smem>>
    %1691 = vector.broadcast %1690 : f32 to vector<16x16xf32>
    %1692 = arith.mulf %1685, %1691 : vector<16x16xf32>
    %1693 = arith.addf %1680, %1692 : vector<16x16xf32>
    %c173_259 = arith.constant 173 : index
    %1694 = memref.load %arg6[%c173_259] : memref<225xf32, #tpu.memory_space<smem>>
    %1695 = vector.broadcast %1694 : f32 to vector<16x16xf32>
    %1696 = arith.mulf %1685, %1695 : vector<16x16xf32>
    %1697 = arith.addf %1684, %1696 : vector<16x16xf32>
    %1698 = vector.extract_strided_slice %1645 {offsets = [0, 4], sizes = [16, 16], strides = [1, 1]} : vector<16x20xf32> to vector<16x16xf32>
    %c24_260 = arith.constant 24 : index
    %1699 = memref.load %arg6[%c24_260] : memref<225xf32, #tpu.memory_space<smem>>
    %1700 = vector.broadcast %1699 : f32 to vector<16x16xf32>
    %1701 = arith.mulf %1698, %1700 : vector<16x16xf32>
    %1702 = arith.addf %1689, %1701 : vector<16x16xf32>
    %c99_261 = arith.constant 99 : index
    %1703 = memref.load %arg6[%c99_261] : memref<225xf32, #tpu.memory_space<smem>>
    %1704 = vector.broadcast %1703 : f32 to vector<16x16xf32>
    %1705 = arith.mulf %1698, %1704 : vector<16x16xf32>
    %1706 = arith.addf %1693, %1705 : vector<16x16xf32>
    %c174_262 = arith.constant 174 : index
    %1707 = memref.load %arg6[%c174_262] : memref<225xf32, #tpu.memory_space<smem>>
    %1708 = vector.broadcast %1707 : f32 to vector<16x16xf32>
    %1709 = arith.mulf %1698, %1708 : vector<16x16xf32>
    %1710 = arith.addf %1697, %1709 : vector<16x16xf32>
    %c1_263 = arith.constant 1 : index
    %c0_264 = arith.constant 0 : index
    %c0_265 = arith.constant 0 : index
    %1711 = vector.load %arg9[%c1_263, %c0_264, %c0_265] : memref<3x20x20xf32, #tpu.memory_space<vmem>>, vector<1x16x20xf32>
    %1712 = vector.shape_cast %1711 : vector<1x16x20xf32> to vector<16x20xf32>
    %1713 = vector.extract_strided_slice %1712 {offsets = [0, 0], sizes = [16, 16], strides = [1, 1]} : vector<16x20xf32> to vector<16x16xf32>
    %c25_266 = arith.constant 25 : index
    %1714 = memref.load %arg6[%c25_266] : memref<225xf32, #tpu.memory_space<smem>>
    %1715 = vector.broadcast %1714 : f32 to vector<16x16xf32>
    %1716 = arith.mulf %1713, %1715 : vector<16x16xf32>
    %1717 = arith.addf %1702, %1716 : vector<16x16xf32>
    %c100_267 = arith.constant 100 : index
    %1718 = memref.load %arg6[%c100_267] : memref<225xf32, #tpu.memory_space<smem>>
    %1719 = vector.broadcast %1718 : f32 to vector<16x16xf32>
    %1720 = arith.mulf %1713, %1719 : vector<16x16xf32>
    %1721 = arith.addf %1706, %1720 : vector<16x16xf32>
    %c175_268 = arith.constant 175 : index
    %1722 = memref.load %arg6[%c175_268] : memref<225xf32, #tpu.memory_space<smem>>
    %1723 = vector.broadcast %1722 : f32 to vector<16x16xf32>
    %1724 = arith.mulf %1713, %1723 : vector<16x16xf32>
    %1725 = arith.addf %1710, %1724 : vector<16x16xf32>
    %1726 = vector.extract_strided_slice %1712 {offsets = [0, 1], sizes = [16, 16], strides = [1, 1]} : vector<16x20xf32> to vector<16x16xf32>
    %c26_269 = arith.constant 26 : index
    %1727 = memref.load %arg6[%c26_269] : memref<225xf32, #tpu.memory_space<smem>>
    %1728 = vector.broadcast %1727 : f32 to vector<16x16xf32>
    %1729 = arith.mulf %1726, %1728 : vector<16x16xf32>
    %1730 = arith.addf %1717, %1729 : vector<16x16xf32>
    %c101_270 = arith.constant 101 : index
    %1731 = memref.load %arg6[%c101_270] : memref<225xf32, #tpu.memory_space<smem>>
    %1732 = vector.broadcast %1731 : f32 to vector<16x16xf32>
    %1733 = arith.mulf %1726, %1732 : vector<16x16xf32>
    %1734 = arith.addf %1721, %1733 : vector<16x16xf32>
    %c176_271 = arith.constant 176 : index
    %1735 = memref.load %arg6[%c176_271] : memref<225xf32, #tpu.memory_space<smem>>
    %1736 = vector.broadcast %1735 : f32 to vector<16x16xf32>
    %1737 = arith.mulf %1726, %1736 : vector<16x16xf32>
    %1738 = arith.addf %1725, %1737 : vector<16x16xf32>
    %1739 = vector.extract_strided_slice %1712 {offsets = [0, 2], sizes = [16, 16], strides = [1, 1]} : vector<16x20xf32> to vector<16x16xf32>
    %c27_272 = arith.constant 27 : index
    %1740 = memref.load %arg6[%c27_272] : memref<225xf32, #tpu.memory_space<smem>>
    %1741 = vector.broadcast %1740 : f32 to vector<16x16xf32>
    %1742 = arith.mulf %1739, %1741 : vector<16x16xf32>
    %1743 = arith.addf %1730, %1742 : vector<16x16xf32>
    %c102_273 = arith.constant 102 : index
    %1744 = memref.load %arg6[%c102_273] : memref<225xf32, #tpu.memory_space<smem>>
    %1745 = vector.broadcast %1744 : f32 to vector<16x16xf32>
    %1746 = arith.mulf %1739, %1745 : vector<16x16xf32>
    %1747 = arith.addf %1734, %1746 : vector<16x16xf32>
    %c177_274 = arith.constant 177 : index
    %1748 = memref.load %arg6[%c177_274] : memref<225xf32, #tpu.memory_space<smem>>
    %1749 = vector.broadcast %1748 : f32 to vector<16x16xf32>
    %1750 = arith.mulf %1739, %1749 : vector<16x16xf32>
    %1751 = arith.addf %1738, %1750 : vector<16x16xf32>
    %1752 = vector.extract_strided_slice %1712 {offsets = [0, 3], sizes = [16, 16], strides = [1, 1]} : vector<16x20xf32> to vector<16x16xf32>
    %c28_275 = arith.constant 28 : index
    %1753 = memref.load %arg6[%c28_275] : memref<225xf32, #tpu.memory_space<smem>>
    %1754 = vector.broadcast %1753 : f32 to vector<16x16xf32>
    %1755 = arith.mulf %1752, %1754 : vector<16x16xf32>
    %1756 = arith.addf %1743, %1755 : vector<16x16xf32>
    %c103_276 = arith.constant 103 : index
    %1757 = memref.load %arg6[%c103_276] : memref<225xf32, #tpu.memory_space<smem>>
    %1758 = vector.broadcast %1757 : f32 to vector<16x16xf32>
    %1759 = arith.mulf %1752, %1758 : vector<16x16xf32>
    %1760 = arith.addf %1747, %1759 : vector<16x16xf32>
    %c178_277 = arith.constant 178 : index
    %1761 = memref.load %arg6[%c178_277] : memref<225xf32, #tpu.memory_space<smem>>
    %1762 = vector.broadcast %1761 : f32 to vector<16x16xf32>
    %1763 = arith.mulf %1752, %1762 : vector<16x16xf32>
    %1764 = arith.addf %1751, %1763 : vector<16x16xf32>
    %1765 = vector.extract_strided_slice %1712 {offsets = [0, 4], sizes = [16, 16], strides = [1, 1]} : vector<16x20xf32> to vector<16x16xf32>
    %c29_278 = arith.constant 29 : index
    %1766 = memref.load %arg6[%c29_278] : memref<225xf32, #tpu.memory_space<smem>>
    %1767 = vector.broadcast %1766 : f32 to vector<16x16xf32>
    %1768 = arith.mulf %1765, %1767 : vector<16x16xf32>
    %1769 = arith.addf %1756, %1768 : vector<16x16xf32>
    %c104_279 = arith.constant 104 : index
    %1770 = memref.load %arg6[%c104_279] : memref<225xf32, #tpu.memory_space<smem>>
    %1771 = vector.broadcast %1770 : f32 to vector<16x16xf32>
    %1772 = arith.mulf %1765, %1771 : vector<16x16xf32>
    %1773 = arith.addf %1760, %1772 : vector<16x16xf32>
    %c179_280 = arith.constant 179 : index
    %1774 = memref.load %arg6[%c179_280] : memref<225xf32, #tpu.memory_space<smem>>
    %1775 = vector.broadcast %1774 : f32 to vector<16x16xf32>
    %1776 = arith.mulf %1765, %1775 : vector<16x16xf32>
    %1777 = arith.addf %1764, %1776 : vector<16x16xf32>
    %c1_281 = arith.constant 1 : index
    %c1_282 = arith.constant 1 : index
    %c0_283 = arith.constant 0 : index
    %1778 = vector.load %arg9[%c1_281, %c1_282, %c0_283] : memref<3x20x20xf32, #tpu.memory_space<vmem>>, vector<1x16x20xf32>
    %1779 = vector.shape_cast %1778 : vector<1x16x20xf32> to vector<16x20xf32>
    %1780 = vector.extract_strided_slice %1779 {offsets = [0, 0], sizes = [16, 16], strides = [1, 1]} : vector<16x20xf32> to vector<16x16xf32>
    %c30_284 = arith.constant 30 : index
    %1781 = memref.load %arg6[%c30_284] : memref<225xf32, #tpu.memory_space<smem>>
    %1782 = vector.broadcast %1781 : f32 to vector<16x16xf32>
    %1783 = arith.mulf %1780, %1782 : vector<16x16xf32>
    %1784 = arith.addf %1769, %1783 : vector<16x16xf32>
    %c105_285 = arith.constant 105 : index
    %1785 = memref.load %arg6[%c105_285] : memref<225xf32, #tpu.memory_space<smem>>
    %1786 = vector.broadcast %1785 : f32 to vector<16x16xf32>
    %1787 = arith.mulf %1780, %1786 : vector<16x16xf32>
    %1788 = arith.addf %1773, %1787 : vector<16x16xf32>
    %c180_286 = arith.constant 180 : index
    %1789 = memref.load %arg6[%c180_286] : memref<225xf32, #tpu.memory_space<smem>>
    %1790 = vector.broadcast %1789 : f32 to vector<16x16xf32>
    %1791 = arith.mulf %1780, %1790 : vector<16x16xf32>
    %1792 = arith.addf %1777, %1791 : vector<16x16xf32>
    %1793 = vector.extract_strided_slice %1779 {offsets = [0, 1], sizes = [16, 16], strides = [1, 1]} : vector<16x20xf32> to vector<16x16xf32>
    %c31_287 = arith.constant 31 : index
    %1794 = memref.load %arg6[%c31_287] : memref<225xf32, #tpu.memory_space<smem>>
    %1795 = vector.broadcast %1794 : f32 to vector<16x16xf32>
    %1796 = arith.mulf %1793, %1795 : vector<16x16xf32>
    %1797 = arith.addf %1784, %1796 : vector<16x16xf32>
    %c106_288 = arith.constant 106 : index
    %1798 = memref.load %arg6[%c106_288] : memref<225xf32, #tpu.memory_space<smem>>
    %1799 = vector.broadcast %1798 : f32 to vector<16x16xf32>
    %1800 = arith.mulf %1793, %1799 : vector<16x16xf32>
    %1801 = arith.addf %1788, %1800 : vector<16x16xf32>
    %c181_289 = arith.constant 181 : index
    %1802 = memref.load %arg6[%c181_289] : memref<225xf32, #tpu.memory_space<smem>>
    %1803 = vector.broadcast %1802 : f32 to vector<16x16xf32>
    %1804 = arith.mulf %1793, %1803 : vector<16x16xf32>
    %1805 = arith.addf %1792, %1804 : vector<16x16xf32>
    %1806 = vector.extract_strided_slice %1779 {offsets = [0, 2], sizes = [16, 16], strides = [1, 1]} : vector<16x20xf32> to vector<16x16xf32>
    %c32_290 = arith.constant 32 : index
    %1807 = memref.load %arg6[%c32_290] : memref<225xf32, #tpu.memory_space<smem>>
    %1808 = vector.broadcast %1807 : f32 to vector<16x16xf32>
    %1809 = arith.mulf %1806, %1808 : vector<16x16xf32>
    %1810 = arith.addf %1797, %1809 : vector<16x16xf32>
    %c107_291 = arith.constant 107 : index
    %1811 = memref.load %arg6[%c107_291] : memref<225xf32, #tpu.memory_space<smem>>
    %1812 = vector.broadcast %1811 : f32 to vector<16x16xf32>
    %1813 = arith.mulf %1806, %1812 : vector<16x16xf32>
    %1814 = arith.addf %1801, %1813 : vector<16x16xf32>
    %c182_292 = arith.constant 182 : index
    %1815 = memref.load %arg6[%c182_292] : memref<225xf32, #tpu.memory_space<smem>>
    %1816 = vector.broadcast %1815 : f32 to vector<16x16xf32>
    %1817 = arith.mulf %1806, %1816 : vector<16x16xf32>
    %1818 = arith.addf %1805, %1817 : vector<16x16xf32>
    %1819 = vector.extract_strided_slice %1779 {offsets = [0, 3], sizes = [16, 16], strides = [1, 1]} : vector<16x20xf32> to vector<16x16xf32>
    %c33_293 = arith.constant 33 : index
    %1820 = memref.load %arg6[%c33_293] : memref<225xf32, #tpu.memory_space<smem>>
    %1821 = vector.broadcast %1820 : f32 to vector<16x16xf32>
    %1822 = arith.mulf %1819, %1821 : vector<16x16xf32>
    %1823 = arith.addf %1810, %1822 : vector<16x16xf32>
    %c108_294 = arith.constant 108 : index
    %1824 = memref.load %arg6[%c108_294] : memref<225xf32, #tpu.memory_space<smem>>
    %1825 = vector.broadcast %1824 : f32 to vector<16x16xf32>
    %1826 = arith.mulf %1819, %1825 : vector<16x16xf32>
    %1827 = arith.addf %1814, %1826 : vector<16x16xf32>
    %c183_295 = arith.constant 183 : index
    %1828 = memref.load %arg6[%c183_295] : memref<225xf32, #tpu.memory_space<smem>>
    %1829 = vector.broadcast %1828 : f32 to vector<16x16xf32>
    %1830 = arith.mulf %1819, %1829 : vector<16x16xf32>
    %1831 = arith.addf %1818, %1830 : vector<16x16xf32>
    %1832 = vector.extract_strided_slice %1779 {offsets = [0, 4], sizes = [16, 16], strides = [1, 1]} : vector<16x20xf32> to vector<16x16xf32>
    %c34_296 = arith.constant 34 : index
    %1833 = memref.load %arg6[%c34_296] : memref<225xf32, #tpu.memory_space<smem>>
    %1834 = vector.broadcast %1833 : f32 to vector<16x16xf32>
    %1835 = arith.mulf %1832, %1834 : vector<16x16xf32>
    %1836 = arith.addf %1823, %1835 : vector<16x16xf32>
    %c109_297 = arith.constant 109 : index
    %1837 = memref.load %arg6[%c109_297] : memref<225xf32, #tpu.memory_space<smem>>
    %1838 = vector.broadcast %1837 : f32 to vector<16x16xf32>
    %1839 = arith.mulf %1832, %1838 : vector<16x16xf32>
    %1840 = arith.addf %1827, %1839 : vector<16x16xf32>
    %c184_298 = arith.constant 184 : index
    %1841 = memref.load %arg6[%c184_298] : memref<225xf32, #tpu.memory_space<smem>>
    %1842 = vector.broadcast %1841 : f32 to vector<16x16xf32>
    %1843 = arith.mulf %1832, %1842 : vector<16x16xf32>
    %1844 = arith.addf %1831, %1843 : vector<16x16xf32>
    %c1_299 = arith.constant 1 : index
    %c2_300 = arith.constant 2 : index
    %c0_301 = arith.constant 0 : index
    %1845 = vector.load %arg9[%c1_299, %c2_300, %c0_301] : memref<3x20x20xf32, #tpu.memory_space<vmem>>, vector<1x16x20xf32>
    %1846 = vector.shape_cast %1845 : vector<1x16x20xf32> to vector<16x20xf32>
    %1847 = vector.extract_strided_slice %1846 {offsets = [0, 0], sizes = [16, 16], strides = [1, 1]} : vector<16x20xf32> to vector<16x16xf32>
    %c35_302 = arith.constant 35 : index
    %1848 = memref.load %arg6[%c35_302] : memref<225xf32, #tpu.memory_space<smem>>
    %1849 = vector.broadcast %1848 : f32 to vector<16x16xf32>
    %1850 = arith.mulf %1847, %1849 : vector<16x16xf32>
    %1851 = arith.addf %1836, %1850 : vector<16x16xf32>
    %c110_303 = arith.constant 110 : index
    %1852 = memref.load %arg6[%c110_303] : memref<225xf32, #tpu.memory_space<smem>>
    %1853 = vector.broadcast %1852 : f32 to vector<16x16xf32>
    %1854 = arith.mulf %1847, %1853 : vector<16x16xf32>
    %1855 = arith.addf %1840, %1854 : vector<16x16xf32>
    %c185_304 = arith.constant 185 : index
    %1856 = memref.load %arg6[%c185_304] : memref<225xf32, #tpu.memory_space<smem>>
    %1857 = vector.broadcast %1856 : f32 to vector<16x16xf32>
    %1858 = arith.mulf %1847, %1857 : vector<16x16xf32>
    %1859 = arith.addf %1844, %1858 : vector<16x16xf32>
    %1860 = vector.extract_strided_slice %1846 {offsets = [0, 1], sizes = [16, 16], strides = [1, 1]} : vector<16x20xf32> to vector<16x16xf32>
    %c36_305 = arith.constant 36 : index
    %1861 = memref.load %arg6[%c36_305] : memref<225xf32, #tpu.memory_space<smem>>
    %1862 = vector.broadcast %1861 : f32 to vector<16x16xf32>
    %1863 = arith.mulf %1860, %1862 : vector<16x16xf32>
    %1864 = arith.addf %1851, %1863 : vector<16x16xf32>
    %c111_306 = arith.constant 111 : index
    %1865 = memref.load %arg6[%c111_306] : memref<225xf32, #tpu.memory_space<smem>>
    %1866 = vector.broadcast %1865 : f32 to vector<16x16xf32>
    %1867 = arith.mulf %1860, %1866 : vector<16x16xf32>
    %1868 = arith.addf %1855, %1867 : vector<16x16xf32>
    %c186_307 = arith.constant 186 : index
    %1869 = memref.load %arg6[%c186_307] : memref<225xf32, #tpu.memory_space<smem>>
    %1870 = vector.broadcast %1869 : f32 to vector<16x16xf32>
    %1871 = arith.mulf %1860, %1870 : vector<16x16xf32>
    %1872 = arith.addf %1859, %1871 : vector<16x16xf32>
    %1873 = vector.extract_strided_slice %1846 {offsets = [0, 2], sizes = [16, 16], strides = [1, 1]} : vector<16x20xf32> to vector<16x16xf32>
    %c37_308 = arith.constant 37 : index
    %1874 = memref.load %arg6[%c37_308] : memref<225xf32, #tpu.memory_space<smem>>
    %1875 = vector.broadcast %1874 : f32 to vector<16x16xf32>
    %1876 = arith.mulf %1873, %1875 : vector<16x16xf32>
    %1877 = arith.addf %1864, %1876 : vector<16x16xf32>
    %c112_309 = arith.constant 112 : index
    %1878 = memref.load %arg6[%c112_309] : memref<225xf32, #tpu.memory_space<smem>>
    %1879 = vector.broadcast %1878 : f32 to vector<16x16xf32>
    %1880 = arith.mulf %1873, %1879 : vector<16x16xf32>
    %1881 = arith.addf %1868, %1880 : vector<16x16xf32>
    %c187_310 = arith.constant 187 : index
    %1882 = memref.load %arg6[%c187_310] : memref<225xf32, #tpu.memory_space<smem>>
    %1883 = vector.broadcast %1882 : f32 to vector<16x16xf32>
    %1884 = arith.mulf %1873, %1883 : vector<16x16xf32>
    %1885 = arith.addf %1872, %1884 : vector<16x16xf32>
    %1886 = vector.extract_strided_slice %1846 {offsets = [0, 3], sizes = [16, 16], strides = [1, 1]} : vector<16x20xf32> to vector<16x16xf32>
    %c38_311 = arith.constant 38 : index
    %1887 = memref.load %arg6[%c38_311] : memref<225xf32, #tpu.memory_space<smem>>
    %1888 = vector.broadcast %1887 : f32 to vector<16x16xf32>
    %1889 = arith.mulf %1886, %1888 : vector<16x16xf32>
    %1890 = arith.addf %1877, %1889 : vector<16x16xf32>
    %c113_312 = arith.constant 113 : index
    %1891 = memref.load %arg6[%c113_312] : memref<225xf32, #tpu.memory_space<smem>>
    %1892 = vector.broadcast %1891 : f32 to vector<16x16xf32>
    %1893 = arith.mulf %1886, %1892 : vector<16x16xf32>
    %1894 = arith.addf %1881, %1893 : vector<16x16xf32>
    %c188_313 = arith.constant 188 : index
    %1895 = memref.load %arg6[%c188_313] : memref<225xf32, #tpu.memory_space<smem>>
    %1896 = vector.broadcast %1895 : f32 to vector<16x16xf32>
    %1897 = arith.mulf %1886, %1896 : vector<16x16xf32>
    %1898 = arith.addf %1885, %1897 : vector<16x16xf32>
    %1899 = vector.extract_strided_slice %1846 {offsets = [0, 4], sizes = [16, 16], strides = [1, 1]} : vector<16x20xf32> to vector<16x16xf32>
    %c39_314 = arith.constant 39 : index
    %1900 = memref.load %arg6[%c39_314] : memref<225xf32, #tpu.memory_space<smem>>
    %1901 = vector.broadcast %1900 : f32 to vector<16x16xf32>
    %1902 = arith.mulf %1899, %1901 : vector<16x16xf32>
    %1903 = arith.addf %1890, %1902 : vector<16x16xf32>
    %c114_315 = arith.constant 114 : index
    %1904 = memref.load %arg6[%c114_315] : memref<225xf32, #tpu.memory_space<smem>>
    %1905 = vector.broadcast %1904 : f32 to vector<16x16xf32>
    %1906 = arith.mulf %1899, %1905 : vector<16x16xf32>
    %1907 = arith.addf %1894, %1906 : vector<16x16xf32>
    %c189_316 = arith.constant 189 : index
    %1908 = memref.load %arg6[%c189_316] : memref<225xf32, #tpu.memory_space<smem>>
    %1909 = vector.broadcast %1908 : f32 to vector<16x16xf32>
    %1910 = arith.mulf %1899, %1909 : vector<16x16xf32>
    %1911 = arith.addf %1898, %1910 : vector<16x16xf32>
    %c1_317 = arith.constant 1 : index
    %c3_318 = arith.constant 3 : index
    %c0_319 = arith.constant 0 : index
    %1912 = vector.load %arg9[%c1_317, %c3_318, %c0_319] : memref<3x20x20xf32, #tpu.memory_space<vmem>>, vector<1x16x20xf32>
    %1913 = vector.shape_cast %1912 : vector<1x16x20xf32> to vector<16x20xf32>
    %1914 = vector.extract_strided_slice %1913 {offsets = [0, 0], sizes = [16, 16], strides = [1, 1]} : vector<16x20xf32> to vector<16x16xf32>
    %c40_320 = arith.constant 40 : index
    %1915 = memref.load %arg6[%c40_320] : memref<225xf32, #tpu.memory_space<smem>>
    %1916 = vector.broadcast %1915 : f32 to vector<16x16xf32>
    %1917 = arith.mulf %1914, %1916 : vector<16x16xf32>
    %1918 = arith.addf %1903, %1917 : vector<16x16xf32>
    %c115_321 = arith.constant 115 : index
    %1919 = memref.load %arg6[%c115_321] : memref<225xf32, #tpu.memory_space<smem>>
    %1920 = vector.broadcast %1919 : f32 to vector<16x16xf32>
    %1921 = arith.mulf %1914, %1920 : vector<16x16xf32>
    %1922 = arith.addf %1907, %1921 : vector<16x16xf32>
    %c190_322 = arith.constant 190 : index
    %1923 = memref.load %arg6[%c190_322] : memref<225xf32, #tpu.memory_space<smem>>
    %1924 = vector.broadcast %1923 : f32 to vector<16x16xf32>
    %1925 = arith.mulf %1914, %1924 : vector<16x16xf32>
    %1926 = arith.addf %1911, %1925 : vector<16x16xf32>
    %1927 = vector.extract_strided_slice %1913 {offsets = [0, 1], sizes = [16, 16], strides = [1, 1]} : vector<16x20xf32> to vector<16x16xf32>
    %c41_323 = arith.constant 41 : index
    %1928 = memref.load %arg6[%c41_323] : memref<225xf32, #tpu.memory_space<smem>>
    %1929 = vector.broadcast %1928 : f32 to vector<16x16xf32>
    %1930 = arith.mulf %1927, %1929 : vector<16x16xf32>
    %1931 = arith.addf %1918, %1930 : vector<16x16xf32>
    %c116_324 = arith.constant 116 : index
    %1932 = memref.load %arg6[%c116_324] : memref<225xf32, #tpu.memory_space<smem>>
    %1933 = vector.broadcast %1932 : f32 to vector<16x16xf32>
    %1934 = arith.mulf %1927, %1933 : vector<16x16xf32>
    %1935 = arith.addf %1922, %1934 : vector<16x16xf32>
    %c191_325 = arith.constant 191 : index
    %1936 = memref.load %arg6[%c191_325] : memref<225xf32, #tpu.memory_space<smem>>
    %1937 = vector.broadcast %1936 : f32 to vector<16x16xf32>
    %1938 = arith.mulf %1927, %1937 : vector<16x16xf32>
    %1939 = arith.addf %1926, %1938 : vector<16x16xf32>
    %1940 = vector.extract_strided_slice %1913 {offsets = [0, 2], sizes = [16, 16], strides = [1, 1]} : vector<16x20xf32> to vector<16x16xf32>
    %c42_326 = arith.constant 42 : index
    %1941 = memref.load %arg6[%c42_326] : memref<225xf32, #tpu.memory_space<smem>>
    %1942 = vector.broadcast %1941 : f32 to vector<16x16xf32>
    %1943 = arith.mulf %1940, %1942 : vector<16x16xf32>
    %1944 = arith.addf %1931, %1943 : vector<16x16xf32>
    %c117_327 = arith.constant 117 : index
    %1945 = memref.load %arg6[%c117_327] : memref<225xf32, #tpu.memory_space<smem>>
    %1946 = vector.broadcast %1945 : f32 to vector<16x16xf32>
    %1947 = arith.mulf %1940, %1946 : vector<16x16xf32>
    %1948 = arith.addf %1935, %1947 : vector<16x16xf32>
    %c192_328 = arith.constant 192 : index
    %1949 = memref.load %arg6[%c192_328] : memref<225xf32, #tpu.memory_space<smem>>
    %1950 = vector.broadcast %1949 : f32 to vector<16x16xf32>
    %1951 = arith.mulf %1940, %1950 : vector<16x16xf32>
    %1952 = arith.addf %1939, %1951 : vector<16x16xf32>
    %1953 = vector.extract_strided_slice %1913 {offsets = [0, 3], sizes = [16, 16], strides = [1, 1]} : vector<16x20xf32> to vector<16x16xf32>
    %c43_329 = arith.constant 43 : index
    %1954 = memref.load %arg6[%c43_329] : memref<225xf32, #tpu.memory_space<smem>>
    %1955 = vector.broadcast %1954 : f32 to vector<16x16xf32>
    %1956 = arith.mulf %1953, %1955 : vector<16x16xf32>
    %1957 = arith.addf %1944, %1956 : vector<16x16xf32>
    %c118_330 = arith.constant 118 : index
    %1958 = memref.load %arg6[%c118_330] : memref<225xf32, #tpu.memory_space<smem>>
    %1959 = vector.broadcast %1958 : f32 to vector<16x16xf32>
    %1960 = arith.mulf %1953, %1959 : vector<16x16xf32>
    %1961 = arith.addf %1948, %1960 : vector<16x16xf32>
    %c193_331 = arith.constant 193 : index
    %1962 = memref.load %arg6[%c193_331] : memref<225xf32, #tpu.memory_space<smem>>
    %1963 = vector.broadcast %1962 : f32 to vector<16x16xf32>
    %1964 = arith.mulf %1953, %1963 : vector<16x16xf32>
    %1965 = arith.addf %1952, %1964 : vector<16x16xf32>
    %1966 = vector.extract_strided_slice %1913 {offsets = [0, 4], sizes = [16, 16], strides = [1, 1]} : vector<16x20xf32> to vector<16x16xf32>
    %c44_332 = arith.constant 44 : index
    %1967 = memref.load %arg6[%c44_332] : memref<225xf32, #tpu.memory_space<smem>>
    %1968 = vector.broadcast %1967 : f32 to vector<16x16xf32>
    %1969 = arith.mulf %1966, %1968 : vector<16x16xf32>
    %1970 = arith.addf %1957, %1969 : vector<16x16xf32>
    %c119_333 = arith.constant 119 : index
    %1971 = memref.load %arg6[%c119_333] : memref<225xf32, #tpu.memory_space<smem>>
    %1972 = vector.broadcast %1971 : f32 to vector<16x16xf32>
    %1973 = arith.mulf %1966, %1972 : vector<16x16xf32>
    %1974 = arith.addf %1961, %1973 : vector<16x16xf32>
    %c194_334 = arith.constant 194 : index
    %1975 = memref.load %arg6[%c194_334] : memref<225xf32, #tpu.memory_space<smem>>
    %1976 = vector.broadcast %1975 : f32 to vector<16x16xf32>
    %1977 = arith.mulf %1966, %1976 : vector<16x16xf32>
    %1978 = arith.addf %1965, %1977 : vector<16x16xf32>
    %c1_335 = arith.constant 1 : index
    %c4_336 = arith.constant 4 : index
    %c0_337 = arith.constant 0 : index
    %1979 = vector.load %arg9[%c1_335, %c4_336, %c0_337] : memref<3x20x20xf32, #tpu.memory_space<vmem>>, vector<1x16x20xf32>
    %1980 = vector.shape_cast %1979 : vector<1x16x20xf32> to vector<16x20xf32>
    %1981 = vector.extract_strided_slice %1980 {offsets = [0, 0], sizes = [16, 16], strides = [1, 1]} : vector<16x20xf32> to vector<16x16xf32>
    %c45_338 = arith.constant 45 : index
    %1982 = memref.load %arg6[%c45_338] : memref<225xf32, #tpu.memory_space<smem>>
    %1983 = vector.broadcast %1982 : f32 to vector<16x16xf32>
    %1984 = arith.mulf %1981, %1983 : vector<16x16xf32>
    %1985 = arith.addf %1970, %1984 : vector<16x16xf32>
    %c120_339 = arith.constant 120 : index
    %1986 = memref.load %arg6[%c120_339] : memref<225xf32, #tpu.memory_space<smem>>
    %1987 = vector.broadcast %1986 : f32 to vector<16x16xf32>
    %1988 = arith.mulf %1981, %1987 : vector<16x16xf32>
    %1989 = arith.addf %1974, %1988 : vector<16x16xf32>
    %c195_340 = arith.constant 195 : index
    %1990 = memref.load %arg6[%c195_340] : memref<225xf32, #tpu.memory_space<smem>>
    %1991 = vector.broadcast %1990 : f32 to vector<16x16xf32>
    %1992 = arith.mulf %1981, %1991 : vector<16x16xf32>
    %1993 = arith.addf %1978, %1992 : vector<16x16xf32>
    %1994 = vector.extract_strided_slice %1980 {offsets = [0, 1], sizes = [16, 16], strides = [1, 1]} : vector<16x20xf32> to vector<16x16xf32>
    %c46_341 = arith.constant 46 : index
    %1995 = memref.load %arg6[%c46_341] : memref<225xf32, #tpu.memory_space<smem>>
    %1996 = vector.broadcast %1995 : f32 to vector<16x16xf32>
    %1997 = arith.mulf %1994, %1996 : vector<16x16xf32>
    %1998 = arith.addf %1985, %1997 : vector<16x16xf32>
    %c121_342 = arith.constant 121 : index
    %1999 = memref.load %arg6[%c121_342] : memref<225xf32, #tpu.memory_space<smem>>
    %2000 = vector.broadcast %1999 : f32 to vector<16x16xf32>
    %2001 = arith.mulf %1994, %2000 : vector<16x16xf32>
    %2002 = arith.addf %1989, %2001 : vector<16x16xf32>
    %c196_343 = arith.constant 196 : index
    %2003 = memref.load %arg6[%c196_343] : memref<225xf32, #tpu.memory_space<smem>>
    %2004 = vector.broadcast %2003 : f32 to vector<16x16xf32>
    %2005 = arith.mulf %1994, %2004 : vector<16x16xf32>
    %2006 = arith.addf %1993, %2005 : vector<16x16xf32>
    %2007 = vector.extract_strided_slice %1980 {offsets = [0, 2], sizes = [16, 16], strides = [1, 1]} : vector<16x20xf32> to vector<16x16xf32>
    %c47_344 = arith.constant 47 : index
    %2008 = memref.load %arg6[%c47_344] : memref<225xf32, #tpu.memory_space<smem>>
    %2009 = vector.broadcast %2008 : f32 to vector<16x16xf32>
    %2010 = arith.mulf %2007, %2009 : vector<16x16xf32>
    %2011 = arith.addf %1998, %2010 : vector<16x16xf32>
    %c122_345 = arith.constant 122 : index
    %2012 = memref.load %arg6[%c122_345] : memref<225xf32, #tpu.memory_space<smem>>
    %2013 = vector.broadcast %2012 : f32 to vector<16x16xf32>
    %2014 = arith.mulf %2007, %2013 : vector<16x16xf32>
    %2015 = arith.addf %2002, %2014 : vector<16x16xf32>
    %c197_346 = arith.constant 197 : index
    %2016 = memref.load %arg6[%c197_346] : memref<225xf32, #tpu.memory_space<smem>>
    %2017 = vector.broadcast %2016 : f32 to vector<16x16xf32>
    %2018 = arith.mulf %2007, %2017 : vector<16x16xf32>
    %2019 = arith.addf %2006, %2018 : vector<16x16xf32>
    %2020 = vector.extract_strided_slice %1980 {offsets = [0, 3], sizes = [16, 16], strides = [1, 1]} : vector<16x20xf32> to vector<16x16xf32>
    %c48_347 = arith.constant 48 : index
    %2021 = memref.load %arg6[%c48_347] : memref<225xf32, #tpu.memory_space<smem>>
    %2022 = vector.broadcast %2021 : f32 to vector<16x16xf32>
    %2023 = arith.mulf %2020, %2022 : vector<16x16xf32>
    %2024 = arith.addf %2011, %2023 : vector<16x16xf32>
    %c123_348 = arith.constant 123 : index
    %2025 = memref.load %arg6[%c123_348] : memref<225xf32, #tpu.memory_space<smem>>
    %2026 = vector.broadcast %2025 : f32 to vector<16x16xf32>
    %2027 = arith.mulf %2020, %2026 : vector<16x16xf32>
    %2028 = arith.addf %2015, %2027 : vector<16x16xf32>
    %c198_349 = arith.constant 198 : index
    %2029 = memref.load %arg6[%c198_349] : memref<225xf32, #tpu.memory_space<smem>>
    %2030 = vector.broadcast %2029 : f32 to vector<16x16xf32>
    %2031 = arith.mulf %2020, %2030 : vector<16x16xf32>
    %2032 = arith.addf %2019, %2031 : vector<16x16xf32>
    %2033 = vector.extract_strided_slice %1980 {offsets = [0, 4], sizes = [16, 16], strides = [1, 1]} : vector<16x20xf32> to vector<16x16xf32>
    %c49_350 = arith.constant 49 : index
    %2034 = memref.load %arg6[%c49_350] : memref<225xf32, #tpu.memory_space<smem>>
    %2035 = vector.broadcast %2034 : f32 to vector<16x16xf32>
    %2036 = arith.mulf %2033, %2035 : vector<16x16xf32>
    %2037 = arith.addf %2024, %2036 : vector<16x16xf32>
    %c124_351 = arith.constant 124 : index
    %2038 = memref.load %arg6[%c124_351] : memref<225xf32, #tpu.memory_space<smem>>
    %2039 = vector.broadcast %2038 : f32 to vector<16x16xf32>
    %2040 = arith.mulf %2033, %2039 : vector<16x16xf32>
    %2041 = arith.addf %2028, %2040 : vector<16x16xf32>
    %c199_352 = arith.constant 199 : index
    %2042 = memref.load %arg6[%c199_352] : memref<225xf32, #tpu.memory_space<smem>>
    %2043 = vector.broadcast %2042 : f32 to vector<16x16xf32>
    %2044 = arith.mulf %2033, %2043 : vector<16x16xf32>
    %2045 = arith.addf %2032, %2044 : vector<16x16xf32>
    %c2_353 = arith.constant 2 : index
    %c0_354 = arith.constant 0 : index
    %c0_355 = arith.constant 0 : index
    %2046 = vector.load %arg9[%c2_353, %c0_354, %c0_355] : memref<3x20x20xf32, #tpu.memory_space<vmem>>, vector<1x16x20xf32>
    %2047 = vector.shape_cast %2046 : vector<1x16x20xf32> to vector<16x20xf32>
    %2048 = vector.extract_strided_slice %2047 {offsets = [0, 0], sizes = [16, 16], strides = [1, 1]} : vector<16x20xf32> to vector<16x16xf32>
    %c50_356 = arith.constant 50 : index
    %2049 = memref.load %arg6[%c50_356] : memref<225xf32, #tpu.memory_space<smem>>
    %2050 = vector.broadcast %2049 : f32 to vector<16x16xf32>
    %2051 = arith.mulf %2048, %2050 : vector<16x16xf32>
    %2052 = arith.addf %2037, %2051 : vector<16x16xf32>
    %c125_357 = arith.constant 125 : index
    %2053 = memref.load %arg6[%c125_357] : memref<225xf32, #tpu.memory_space<smem>>
    %2054 = vector.broadcast %2053 : f32 to vector<16x16xf32>
    %2055 = arith.mulf %2048, %2054 : vector<16x16xf32>
    %2056 = arith.addf %2041, %2055 : vector<16x16xf32>
    %c200_358 = arith.constant 200 : index
    %2057 = memref.load %arg6[%c200_358] : memref<225xf32, #tpu.memory_space<smem>>
    %2058 = vector.broadcast %2057 : f32 to vector<16x16xf32>
    %2059 = arith.mulf %2048, %2058 : vector<16x16xf32>
    %2060 = arith.addf %2045, %2059 : vector<16x16xf32>
    %2061 = vector.extract_strided_slice %2047 {offsets = [0, 1], sizes = [16, 16], strides = [1, 1]} : vector<16x20xf32> to vector<16x16xf32>
    %c51_359 = arith.constant 51 : index
    %2062 = memref.load %arg6[%c51_359] : memref<225xf32, #tpu.memory_space<smem>>
    %2063 = vector.broadcast %2062 : f32 to vector<16x16xf32>
    %2064 = arith.mulf %2061, %2063 : vector<16x16xf32>
    %2065 = arith.addf %2052, %2064 : vector<16x16xf32>
    %c126_360 = arith.constant 126 : index
    %2066 = memref.load %arg6[%c126_360] : memref<225xf32, #tpu.memory_space<smem>>
    %2067 = vector.broadcast %2066 : f32 to vector<16x16xf32>
    %2068 = arith.mulf %2061, %2067 : vector<16x16xf32>
    %2069 = arith.addf %2056, %2068 : vector<16x16xf32>
    %c201_361 = arith.constant 201 : index
    %2070 = memref.load %arg6[%c201_361] : memref<225xf32, #tpu.memory_space<smem>>
    %2071 = vector.broadcast %2070 : f32 to vector<16x16xf32>
    %2072 = arith.mulf %2061, %2071 : vector<16x16xf32>
    %2073 = arith.addf %2060, %2072 : vector<16x16xf32>
    %2074 = vector.extract_strided_slice %2047 {offsets = [0, 2], sizes = [16, 16], strides = [1, 1]} : vector<16x20xf32> to vector<16x16xf32>
    %c52_362 = arith.constant 52 : index
    %2075 = memref.load %arg6[%c52_362] : memref<225xf32, #tpu.memory_space<smem>>
    %2076 = vector.broadcast %2075 : f32 to vector<16x16xf32>
    %2077 = arith.mulf %2074, %2076 : vector<16x16xf32>
    %2078 = arith.addf %2065, %2077 : vector<16x16xf32>
    %c127_363 = arith.constant 127 : index
    %2079 = memref.load %arg6[%c127_363] : memref<225xf32, #tpu.memory_space<smem>>
    %2080 = vector.broadcast %2079 : f32 to vector<16x16xf32>
    %2081 = arith.mulf %2074, %2080 : vector<16x16xf32>
    %2082 = arith.addf %2069, %2081 : vector<16x16xf32>
    %c202_364 = arith.constant 202 : index
    %2083 = memref.load %arg6[%c202_364] : memref<225xf32, #tpu.memory_space<smem>>
    %2084 = vector.broadcast %2083 : f32 to vector<16x16xf32>
    %2085 = arith.mulf %2074, %2084 : vector<16x16xf32>
    %2086 = arith.addf %2073, %2085 : vector<16x16xf32>
    %2087 = vector.extract_strided_slice %2047 {offsets = [0, 3], sizes = [16, 16], strides = [1, 1]} : vector<16x20xf32> to vector<16x16xf32>
    %c53_365 = arith.constant 53 : index
    %2088 = memref.load %arg6[%c53_365] : memref<225xf32, #tpu.memory_space<smem>>
    %2089 = vector.broadcast %2088 : f32 to vector<16x16xf32>
    %2090 = arith.mulf %2087, %2089 : vector<16x16xf32>
    %2091 = arith.addf %2078, %2090 : vector<16x16xf32>
    %c128_366 = arith.constant 128 : index
    %2092 = memref.load %arg6[%c128_366] : memref<225xf32, #tpu.memory_space<smem>>
    %2093 = vector.broadcast %2092 : f32 to vector<16x16xf32>
    %2094 = arith.mulf %2087, %2093 : vector<16x16xf32>
    %2095 = arith.addf %2082, %2094 : vector<16x16xf32>
    %c203_367 = arith.constant 203 : index
    %2096 = memref.load %arg6[%c203_367] : memref<225xf32, #tpu.memory_space<smem>>
    %2097 = vector.broadcast %2096 : f32 to vector<16x16xf32>
    %2098 = arith.mulf %2087, %2097 : vector<16x16xf32>
    %2099 = arith.addf %2086, %2098 : vector<16x16xf32>
    %2100 = vector.extract_strided_slice %2047 {offsets = [0, 4], sizes = [16, 16], strides = [1, 1]} : vector<16x20xf32> to vector<16x16xf32>
    %c54_368 = arith.constant 54 : index
    %2101 = memref.load %arg6[%c54_368] : memref<225xf32, #tpu.memory_space<smem>>
    %2102 = vector.broadcast %2101 : f32 to vector<16x16xf32>
    %2103 = arith.mulf %2100, %2102 : vector<16x16xf32>
    %2104 = arith.addf %2091, %2103 : vector<16x16xf32>
    %c129_369 = arith.constant 129 : index
    %2105 = memref.load %arg6[%c129_369] : memref<225xf32, #tpu.memory_space<smem>>
    %2106 = vector.broadcast %2105 : f32 to vector<16x16xf32>
    %2107 = arith.mulf %2100, %2106 : vector<16x16xf32>
    %2108 = arith.addf %2095, %2107 : vector<16x16xf32>
    %c204_370 = arith.constant 204 : index
    %2109 = memref.load %arg6[%c204_370] : memref<225xf32, #tpu.memory_space<smem>>
    %2110 = vector.broadcast %2109 : f32 to vector<16x16xf32>
    %2111 = arith.mulf %2100, %2110 : vector<16x16xf32>
    %2112 = arith.addf %2099, %2111 : vector<16x16xf32>
    %c2_371 = arith.constant 2 : index
    %c1_372 = arith.constant 1 : index
    %c0_373 = arith.constant 0 : index
    %2113 = vector.load %arg9[%c2_371, %c1_372, %c0_373] : memref<3x20x20xf32, #tpu.memory_space<vmem>>, vector<1x16x20xf32>
    %2114 = vector.shape_cast %2113 : vector<1x16x20xf32> to vector<16x20xf32>
    %2115 = vector.extract_strided_slice %2114 {offsets = [0, 0], sizes = [16, 16], strides = [1, 1]} : vector<16x20xf32> to vector<16x16xf32>
    %c55_374 = arith.constant 55 : index
    %2116 = memref.load %arg6[%c55_374] : memref<225xf32, #tpu.memory_space<smem>>
    %2117 = vector.broadcast %2116 : f32 to vector<16x16xf32>
    %2118 = arith.mulf %2115, %2117 : vector<16x16xf32>
    %2119 = arith.addf %2104, %2118 : vector<16x16xf32>
    %c130_375 = arith.constant 130 : index
    %2120 = memref.load %arg6[%c130_375] : memref<225xf32, #tpu.memory_space<smem>>
    %2121 = vector.broadcast %2120 : f32 to vector<16x16xf32>
    %2122 = arith.mulf %2115, %2121 : vector<16x16xf32>
    %2123 = arith.addf %2108, %2122 : vector<16x16xf32>
    %c205_376 = arith.constant 205 : index
    %2124 = memref.load %arg6[%c205_376] : memref<225xf32, #tpu.memory_space<smem>>
    %2125 = vector.broadcast %2124 : f32 to vector<16x16xf32>
    %2126 = arith.mulf %2115, %2125 : vector<16x16xf32>
    %2127 = arith.addf %2112, %2126 : vector<16x16xf32>
    %2128 = vector.extract_strided_slice %2114 {offsets = [0, 1], sizes = [16, 16], strides = [1, 1]} : vector<16x20xf32> to vector<16x16xf32>
    %c56_377 = arith.constant 56 : index
    %2129 = memref.load %arg6[%c56_377] : memref<225xf32, #tpu.memory_space<smem>>
    %2130 = vector.broadcast %2129 : f32 to vector<16x16xf32>
    %2131 = arith.mulf %2128, %2130 : vector<16x16xf32>
    %2132 = arith.addf %2119, %2131 : vector<16x16xf32>
    %c131_378 = arith.constant 131 : index
    %2133 = memref.load %arg6[%c131_378] : memref<225xf32, #tpu.memory_space<smem>>
    %2134 = vector.broadcast %2133 : f32 to vector<16x16xf32>
    %2135 = arith.mulf %2128, %2134 : vector<16x16xf32>
    %2136 = arith.addf %2123, %2135 : vector<16x16xf32>
    %c206_379 = arith.constant 206 : index
    %2137 = memref.load %arg6[%c206_379] : memref<225xf32, #tpu.memory_space<smem>>
    %2138 = vector.broadcast %2137 : f32 to vector<16x16xf32>
    %2139 = arith.mulf %2128, %2138 : vector<16x16xf32>
    %2140 = arith.addf %2127, %2139 : vector<16x16xf32>
    %2141 = vector.extract_strided_slice %2114 {offsets = [0, 2], sizes = [16, 16], strides = [1, 1]} : vector<16x20xf32> to vector<16x16xf32>
    %c57_380 = arith.constant 57 : index
    %2142 = memref.load %arg6[%c57_380] : memref<225xf32, #tpu.memory_space<smem>>
    %2143 = vector.broadcast %2142 : f32 to vector<16x16xf32>
    %2144 = arith.mulf %2141, %2143 : vector<16x16xf32>
    %2145 = arith.addf %2132, %2144 : vector<16x16xf32>
    %c132_381 = arith.constant 132 : index
    %2146 = memref.load %arg6[%c132_381] : memref<225xf32, #tpu.memory_space<smem>>
    %2147 = vector.broadcast %2146 : f32 to vector<16x16xf32>
    %2148 = arith.mulf %2141, %2147 : vector<16x16xf32>
    %2149 = arith.addf %2136, %2148 : vector<16x16xf32>
    %c207_382 = arith.constant 207 : index
    %2150 = memref.load %arg6[%c207_382] : memref<225xf32, #tpu.memory_space<smem>>
    %2151 = vector.broadcast %2150 : f32 to vector<16x16xf32>
    %2152 = arith.mulf %2141, %2151 : vector<16x16xf32>
    %2153 = arith.addf %2140, %2152 : vector<16x16xf32>
    %2154 = vector.extract_strided_slice %2114 {offsets = [0, 3], sizes = [16, 16], strides = [1, 1]} : vector<16x20xf32> to vector<16x16xf32>
    %c58_383 = arith.constant 58 : index
    %2155 = memref.load %arg6[%c58_383] : memref<225xf32, #tpu.memory_space<smem>>
    %2156 = vector.broadcast %2155 : f32 to vector<16x16xf32>
    %2157 = arith.mulf %2154, %2156 : vector<16x16xf32>
    %2158 = arith.addf %2145, %2157 : vector<16x16xf32>
    %c133_384 = arith.constant 133 : index
    %2159 = memref.load %arg6[%c133_384] : memref<225xf32, #tpu.memory_space<smem>>
    %2160 = vector.broadcast %2159 : f32 to vector<16x16xf32>
    %2161 = arith.mulf %2154, %2160 : vector<16x16xf32>
    %2162 = arith.addf %2149, %2161 : vector<16x16xf32>
    %c208_385 = arith.constant 208 : index
    %2163 = memref.load %arg6[%c208_385] : memref<225xf32, #tpu.memory_space<smem>>
    %2164 = vector.broadcast %2163 : f32 to vector<16x16xf32>
    %2165 = arith.mulf %2154, %2164 : vector<16x16xf32>
    %2166 = arith.addf %2153, %2165 : vector<16x16xf32>
    %2167 = vector.extract_strided_slice %2114 {offsets = [0, 4], sizes = [16, 16], strides = [1, 1]} : vector<16x20xf32> to vector<16x16xf32>
    %c59_386 = arith.constant 59 : index
    %2168 = memref.load %arg6[%c59_386] : memref<225xf32, #tpu.memory_space<smem>>
    %2169 = vector.broadcast %2168 : f32 to vector<16x16xf32>
    %2170 = arith.mulf %2167, %2169 : vector<16x16xf32>
    %2171 = arith.addf %2158, %2170 : vector<16x16xf32>
    %c134_387 = arith.constant 134 : index
    %2172 = memref.load %arg6[%c134_387] : memref<225xf32, #tpu.memory_space<smem>>
    %2173 = vector.broadcast %2172 : f32 to vector<16x16xf32>
    %2174 = arith.mulf %2167, %2173 : vector<16x16xf32>
    %2175 = arith.addf %2162, %2174 : vector<16x16xf32>
    %c209_388 = arith.constant 209 : index
    %2176 = memref.load %arg6[%c209_388] : memref<225xf32, #tpu.memory_space<smem>>
    %2177 = vector.broadcast %2176 : f32 to vector<16x16xf32>
    %2178 = arith.mulf %2167, %2177 : vector<16x16xf32>
    %2179 = arith.addf %2166, %2178 : vector<16x16xf32>
    %c2_389 = arith.constant 2 : index
    %c2_390 = arith.constant 2 : index
    %c0_391 = arith.constant 0 : index
    %2180 = vector.load %arg9[%c2_389, %c2_390, %c0_391] : memref<3x20x20xf32, #tpu.memory_space<vmem>>, vector<1x16x20xf32>
    %2181 = vector.shape_cast %2180 : vector<1x16x20xf32> to vector<16x20xf32>
    %2182 = vector.extract_strided_slice %2181 {offsets = [0, 0], sizes = [16, 16], strides = [1, 1]} : vector<16x20xf32> to vector<16x16xf32>
    %c60_392 = arith.constant 60 : index
    %2183 = memref.load %arg6[%c60_392] : memref<225xf32, #tpu.memory_space<smem>>
    %2184 = vector.broadcast %2183 : f32 to vector<16x16xf32>
    %2185 = arith.mulf %2182, %2184 : vector<16x16xf32>
    %2186 = arith.addf %2171, %2185 : vector<16x16xf32>
    %c135_393 = arith.constant 135 : index
    %2187 = memref.load %arg6[%c135_393] : memref<225xf32, #tpu.memory_space<smem>>
    %2188 = vector.broadcast %2187 : f32 to vector<16x16xf32>
    %2189 = arith.mulf %2182, %2188 : vector<16x16xf32>
    %2190 = arith.addf %2175, %2189 : vector<16x16xf32>
    %c210_394 = arith.constant 210 : index
    %2191 = memref.load %arg6[%c210_394] : memref<225xf32, #tpu.memory_space<smem>>
    %2192 = vector.broadcast %2191 : f32 to vector<16x16xf32>
    %2193 = arith.mulf %2182, %2192 : vector<16x16xf32>
    %2194 = arith.addf %2179, %2193 : vector<16x16xf32>
    %2195 = vector.extract_strided_slice %2181 {offsets = [0, 1], sizes = [16, 16], strides = [1, 1]} : vector<16x20xf32> to vector<16x16xf32>
    %c61_395 = arith.constant 61 : index
    %2196 = memref.load %arg6[%c61_395] : memref<225xf32, #tpu.memory_space<smem>>
    %2197 = vector.broadcast %2196 : f32 to vector<16x16xf32>
    %2198 = arith.mulf %2195, %2197 : vector<16x16xf32>
    %2199 = arith.addf %2186, %2198 : vector<16x16xf32>
    %c136_396 = arith.constant 136 : index
    %2200 = memref.load %arg6[%c136_396] : memref<225xf32, #tpu.memory_space<smem>>
    %2201 = vector.broadcast %2200 : f32 to vector<16x16xf32>
    %2202 = arith.mulf %2195, %2201 : vector<16x16xf32>
    %2203 = arith.addf %2190, %2202 : vector<16x16xf32>
    %c211_397 = arith.constant 211 : index
    %2204 = memref.load %arg6[%c211_397] : memref<225xf32, #tpu.memory_space<smem>>
    %2205 = vector.broadcast %2204 : f32 to vector<16x16xf32>
    %2206 = arith.mulf %2195, %2205 : vector<16x16xf32>
    %2207 = arith.addf %2194, %2206 : vector<16x16xf32>
    %2208 = vector.extract_strided_slice %2181 {offsets = [0, 2], sizes = [16, 16], strides = [1, 1]} : vector<16x20xf32> to vector<16x16xf32>
    %c62_398 = arith.constant 62 : index
    %2209 = memref.load %arg6[%c62_398] : memref<225xf32, #tpu.memory_space<smem>>
    %2210 = vector.broadcast %2209 : f32 to vector<16x16xf32>
    %2211 = arith.mulf %2208, %2210 : vector<16x16xf32>
    %2212 = arith.addf %2199, %2211 : vector<16x16xf32>
    %c137_399 = arith.constant 137 : index
    %2213 = memref.load %arg6[%c137_399] : memref<225xf32, #tpu.memory_space<smem>>
    %2214 = vector.broadcast %2213 : f32 to vector<16x16xf32>
    %2215 = arith.mulf %2208, %2214 : vector<16x16xf32>
    %2216 = arith.addf %2203, %2215 : vector<16x16xf32>
    %c212_400 = arith.constant 212 : index
    %2217 = memref.load %arg6[%c212_400] : memref<225xf32, #tpu.memory_space<smem>>
    %2218 = vector.broadcast %2217 : f32 to vector<16x16xf32>
    %2219 = arith.mulf %2208, %2218 : vector<16x16xf32>
    %2220 = arith.addf %2207, %2219 : vector<16x16xf32>
    %2221 = vector.extract_strided_slice %2181 {offsets = [0, 3], sizes = [16, 16], strides = [1, 1]} : vector<16x20xf32> to vector<16x16xf32>
    %c63_401 = arith.constant 63 : index
    %2222 = memref.load %arg6[%c63_401] : memref<225xf32, #tpu.memory_space<smem>>
    %2223 = vector.broadcast %2222 : f32 to vector<16x16xf32>
    %2224 = arith.mulf %2221, %2223 : vector<16x16xf32>
    %2225 = arith.addf %2212, %2224 : vector<16x16xf32>
    %c138_402 = arith.constant 138 : index
    %2226 = memref.load %arg6[%c138_402] : memref<225xf32, #tpu.memory_space<smem>>
    %2227 = vector.broadcast %2226 : f32 to vector<16x16xf32>
    %2228 = arith.mulf %2221, %2227 : vector<16x16xf32>
    %2229 = arith.addf %2216, %2228 : vector<16x16xf32>
    %c213_403 = arith.constant 213 : index
    %2230 = memref.load %arg6[%c213_403] : memref<225xf32, #tpu.memory_space<smem>>
    %2231 = vector.broadcast %2230 : f32 to vector<16x16xf32>
    %2232 = arith.mulf %2221, %2231 : vector<16x16xf32>
    %2233 = arith.addf %2220, %2232 : vector<16x16xf32>
    %2234 = vector.extract_strided_slice %2181 {offsets = [0, 4], sizes = [16, 16], strides = [1, 1]} : vector<16x20xf32> to vector<16x16xf32>
    %c64_404 = arith.constant 64 : index
    %2235 = memref.load %arg6[%c64_404] : memref<225xf32, #tpu.memory_space<smem>>
    %2236 = vector.broadcast %2235 : f32 to vector<16x16xf32>
    %2237 = arith.mulf %2234, %2236 : vector<16x16xf32>
    %2238 = arith.addf %2225, %2237 : vector<16x16xf32>
    %c139_405 = arith.constant 139 : index
    %2239 = memref.load %arg6[%c139_405] : memref<225xf32, #tpu.memory_space<smem>>
    %2240 = vector.broadcast %2239 : f32 to vector<16x16xf32>
    %2241 = arith.mulf %2234, %2240 : vector<16x16xf32>
    %2242 = arith.addf %2229, %2241 : vector<16x16xf32>
    %c214_406 = arith.constant 214 : index
    %2243 = memref.load %arg6[%c214_406] : memref<225xf32, #tpu.memory_space<smem>>
    %2244 = vector.broadcast %2243 : f32 to vector<16x16xf32>
    %2245 = arith.mulf %2234, %2244 : vector<16x16xf32>
    %2246 = arith.addf %2233, %2245 : vector<16x16xf32>
    %c2_407 = arith.constant 2 : index
    %c3_408 = arith.constant 3 : index
    %c0_409 = arith.constant 0 : index
    %2247 = vector.load %arg9[%c2_407, %c3_408, %c0_409] : memref<3x20x20xf32, #tpu.memory_space<vmem>>, vector<1x16x20xf32>
    %2248 = vector.shape_cast %2247 : vector<1x16x20xf32> to vector<16x20xf32>
    %2249 = vector.extract_strided_slice %2248 {offsets = [0, 0], sizes = [16, 16], strides = [1, 1]} : vector<16x20xf32> to vector<16x16xf32>
    %c65_410 = arith.constant 65 : index
    %2250 = memref.load %arg6[%c65_410] : memref<225xf32, #tpu.memory_space<smem>>
    %2251 = vector.broadcast %2250 : f32 to vector<16x16xf32>
    %2252 = arith.mulf %2249, %2251 : vector<16x16xf32>
    %2253 = arith.addf %2238, %2252 : vector<16x16xf32>
    %c140_411 = arith.constant 140 : index
    %2254 = memref.load %arg6[%c140_411] : memref<225xf32, #tpu.memory_space<smem>>
    %2255 = vector.broadcast %2254 : f32 to vector<16x16xf32>
    %2256 = arith.mulf %2249, %2255 : vector<16x16xf32>
    %2257 = arith.addf %2242, %2256 : vector<16x16xf32>
    %c215_412 = arith.constant 215 : index
    %2258 = memref.load %arg6[%c215_412] : memref<225xf32, #tpu.memory_space<smem>>
    %2259 = vector.broadcast %2258 : f32 to vector<16x16xf32>
    %2260 = arith.mulf %2249, %2259 : vector<16x16xf32>
    %2261 = arith.addf %2246, %2260 : vector<16x16xf32>
    %2262 = vector.extract_strided_slice %2248 {offsets = [0, 1], sizes = [16, 16], strides = [1, 1]} : vector<16x20xf32> to vector<16x16xf32>
    %c66_413 = arith.constant 66 : index
    %2263 = memref.load %arg6[%c66_413] : memref<225xf32, #tpu.memory_space<smem>>
    %2264 = vector.broadcast %2263 : f32 to vector<16x16xf32>
    %2265 = arith.mulf %2262, %2264 : vector<16x16xf32>
    %2266 = arith.addf %2253, %2265 : vector<16x16xf32>
    %c141_414 = arith.constant 141 : index
    %2267 = memref.load %arg6[%c141_414] : memref<225xf32, #tpu.memory_space<smem>>
    %2268 = vector.broadcast %2267 : f32 to vector<16x16xf32>
    %2269 = arith.mulf %2262, %2268 : vector<16x16xf32>
    %2270 = arith.addf %2257, %2269 : vector<16x16xf32>
    %c216_415 = arith.constant 216 : index
    %2271 = memref.load %arg6[%c216_415] : memref<225xf32, #tpu.memory_space<smem>>
    %2272 = vector.broadcast %2271 : f32 to vector<16x16xf32>
    %2273 = arith.mulf %2262, %2272 : vector<16x16xf32>
    %2274 = arith.addf %2261, %2273 : vector<16x16xf32>
    %2275 = vector.extract_strided_slice %2248 {offsets = [0, 2], sizes = [16, 16], strides = [1, 1]} : vector<16x20xf32> to vector<16x16xf32>
    %c67_416 = arith.constant 67 : index
    %2276 = memref.load %arg6[%c67_416] : memref<225xf32, #tpu.memory_space<smem>>
    %2277 = vector.broadcast %2276 : f32 to vector<16x16xf32>
    %2278 = arith.mulf %2275, %2277 : vector<16x16xf32>
    %2279 = arith.addf %2266, %2278 : vector<16x16xf32>
    %c142_417 = arith.constant 142 : index
    %2280 = memref.load %arg6[%c142_417] : memref<225xf32, #tpu.memory_space<smem>>
    %2281 = vector.broadcast %2280 : f32 to vector<16x16xf32>
    %2282 = arith.mulf %2275, %2281 : vector<16x16xf32>
    %2283 = arith.addf %2270, %2282 : vector<16x16xf32>
    %c217_418 = arith.constant 217 : index
    %2284 = memref.load %arg6[%c217_418] : memref<225xf32, #tpu.memory_space<smem>>
    %2285 = vector.broadcast %2284 : f32 to vector<16x16xf32>
    %2286 = arith.mulf %2275, %2285 : vector<16x16xf32>
    %2287 = arith.addf %2274, %2286 : vector<16x16xf32>
    %2288 = vector.extract_strided_slice %2248 {offsets = [0, 3], sizes = [16, 16], strides = [1, 1]} : vector<16x20xf32> to vector<16x16xf32>
    %c68_419 = arith.constant 68 : index
    %2289 = memref.load %arg6[%c68_419] : memref<225xf32, #tpu.memory_space<smem>>
    %2290 = vector.broadcast %2289 : f32 to vector<16x16xf32>
    %2291 = arith.mulf %2288, %2290 : vector<16x16xf32>
    %2292 = arith.addf %2279, %2291 : vector<16x16xf32>
    %c143_420 = arith.constant 143 : index
    %2293 = memref.load %arg6[%c143_420] : memref<225xf32, #tpu.memory_space<smem>>
    %2294 = vector.broadcast %2293 : f32 to vector<16x16xf32>
    %2295 = arith.mulf %2288, %2294 : vector<16x16xf32>
    %2296 = arith.addf %2283, %2295 : vector<16x16xf32>
    %c218_421 = arith.constant 218 : index
    %2297 = memref.load %arg6[%c218_421] : memref<225xf32, #tpu.memory_space<smem>>
    %2298 = vector.broadcast %2297 : f32 to vector<16x16xf32>
    %2299 = arith.mulf %2288, %2298 : vector<16x16xf32>
    %2300 = arith.addf %2287, %2299 : vector<16x16xf32>
    %2301 = vector.extract_strided_slice %2248 {offsets = [0, 4], sizes = [16, 16], strides = [1, 1]} : vector<16x20xf32> to vector<16x16xf32>
    %c69_422 = arith.constant 69 : index
    %2302 = memref.load %arg6[%c69_422] : memref<225xf32, #tpu.memory_space<smem>>
    %2303 = vector.broadcast %2302 : f32 to vector<16x16xf32>
    %2304 = arith.mulf %2301, %2303 : vector<16x16xf32>
    %2305 = arith.addf %2292, %2304 : vector<16x16xf32>
    %c144_423 = arith.constant 144 : index
    %2306 = memref.load %arg6[%c144_423] : memref<225xf32, #tpu.memory_space<smem>>
    %2307 = vector.broadcast %2306 : f32 to vector<16x16xf32>
    %2308 = arith.mulf %2301, %2307 : vector<16x16xf32>
    %2309 = arith.addf %2296, %2308 : vector<16x16xf32>
    %c219_424 = arith.constant 219 : index
    %2310 = memref.load %arg6[%c219_424] : memref<225xf32, #tpu.memory_space<smem>>
    %2311 = vector.broadcast %2310 : f32 to vector<16x16xf32>
    %2312 = arith.mulf %2301, %2311 : vector<16x16xf32>
    %2313 = arith.addf %2300, %2312 : vector<16x16xf32>
    %c2_425 = arith.constant 2 : index
    %c4_426 = arith.constant 4 : index
    %c0_427 = arith.constant 0 : index
    %2314 = vector.load %arg9[%c2_425, %c4_426, %c0_427] : memref<3x20x20xf32, #tpu.memory_space<vmem>>, vector<1x16x20xf32>
    %2315 = vector.shape_cast %2314 : vector<1x16x20xf32> to vector<16x20xf32>
    %2316 = vector.extract_strided_slice %2315 {offsets = [0, 0], sizes = [16, 16], strides = [1, 1]} : vector<16x20xf32> to vector<16x16xf32>
    %c70_428 = arith.constant 70 : index
    %2317 = memref.load %arg6[%c70_428] : memref<225xf32, #tpu.memory_space<smem>>
    %2318 = vector.broadcast %2317 : f32 to vector<16x16xf32>
    %2319 = arith.mulf %2316, %2318 : vector<16x16xf32>
    %2320 = arith.addf %2305, %2319 : vector<16x16xf32>
    %c145_429 = arith.constant 145 : index
    %2321 = memref.load %arg6[%c145_429] : memref<225xf32, #tpu.memory_space<smem>>
    %2322 = vector.broadcast %2321 : f32 to vector<16x16xf32>
    %2323 = arith.mulf %2316, %2322 : vector<16x16xf32>
    %2324 = arith.addf %2309, %2323 : vector<16x16xf32>
    %c220_430 = arith.constant 220 : index
    %2325 = memref.load %arg6[%c220_430] : memref<225xf32, #tpu.memory_space<smem>>
    %2326 = vector.broadcast %2325 : f32 to vector<16x16xf32>
    %2327 = arith.mulf %2316, %2326 : vector<16x16xf32>
    %2328 = arith.addf %2313, %2327 : vector<16x16xf32>
    %2329 = vector.extract_strided_slice %2315 {offsets = [0, 1], sizes = [16, 16], strides = [1, 1]} : vector<16x20xf32> to vector<16x16xf32>
    %c71_431 = arith.constant 71 : index
    %2330 = memref.load %arg6[%c71_431] : memref<225xf32, #tpu.memory_space<smem>>
    %2331 = vector.broadcast %2330 : f32 to vector<16x16xf32>
    %2332 = arith.mulf %2329, %2331 : vector<16x16xf32>
    %2333 = arith.addf %2320, %2332 : vector<16x16xf32>
    %c146_432 = arith.constant 146 : index
    %2334 = memref.load %arg6[%c146_432] : memref<225xf32, #tpu.memory_space<smem>>
    %2335 = vector.broadcast %2334 : f32 to vector<16x16xf32>
    %2336 = arith.mulf %2329, %2335 : vector<16x16xf32>
    %2337 = arith.addf %2324, %2336 : vector<16x16xf32>
    %c221_433 = arith.constant 221 : index
    %2338 = memref.load %arg6[%c221_433] : memref<225xf32, #tpu.memory_space<smem>>
    %2339 = vector.broadcast %2338 : f32 to vector<16x16xf32>
    %2340 = arith.mulf %2329, %2339 : vector<16x16xf32>
    %2341 = arith.addf %2328, %2340 : vector<16x16xf32>
    %2342 = vector.extract_strided_slice %2315 {offsets = [0, 2], sizes = [16, 16], strides = [1, 1]} : vector<16x20xf32> to vector<16x16xf32>
    %c72_434 = arith.constant 72 : index
    %2343 = memref.load %arg6[%c72_434] : memref<225xf32, #tpu.memory_space<smem>>
    %2344 = vector.broadcast %2343 : f32 to vector<16x16xf32>
    %2345 = arith.mulf %2342, %2344 : vector<16x16xf32>
    %2346 = arith.addf %2333, %2345 : vector<16x16xf32>
    %c147_435 = arith.constant 147 : index
    %2347 = memref.load %arg6[%c147_435] : memref<225xf32, #tpu.memory_space<smem>>
    %2348 = vector.broadcast %2347 : f32 to vector<16x16xf32>
    %2349 = arith.mulf %2342, %2348 : vector<16x16xf32>
    %2350 = arith.addf %2337, %2349 : vector<16x16xf32>
    %c222_436 = arith.constant 222 : index
    %2351 = memref.load %arg6[%c222_436] : memref<225xf32, #tpu.memory_space<smem>>
    %2352 = vector.broadcast %2351 : f32 to vector<16x16xf32>
    %2353 = arith.mulf %2342, %2352 : vector<16x16xf32>
    %2354 = arith.addf %2341, %2353 : vector<16x16xf32>
    %2355 = vector.extract_strided_slice %2315 {offsets = [0, 3], sizes = [16, 16], strides = [1, 1]} : vector<16x20xf32> to vector<16x16xf32>
    %c73_437 = arith.constant 73 : index
    %2356 = memref.load %arg6[%c73_437] : memref<225xf32, #tpu.memory_space<smem>>
    %2357 = vector.broadcast %2356 : f32 to vector<16x16xf32>
    %2358 = arith.mulf %2355, %2357 : vector<16x16xf32>
    %2359 = arith.addf %2346, %2358 : vector<16x16xf32>
    %c148_438 = arith.constant 148 : index
    %2360 = memref.load %arg6[%c148_438] : memref<225xf32, #tpu.memory_space<smem>>
    %2361 = vector.broadcast %2360 : f32 to vector<16x16xf32>
    %2362 = arith.mulf %2355, %2361 : vector<16x16xf32>
    %2363 = arith.addf %2350, %2362 : vector<16x16xf32>
    %c223_439 = arith.constant 223 : index
    %2364 = memref.load %arg6[%c223_439] : memref<225xf32, #tpu.memory_space<smem>>
    %2365 = vector.broadcast %2364 : f32 to vector<16x16xf32>
    %2366 = arith.mulf %2355, %2365 : vector<16x16xf32>
    %2367 = arith.addf %2354, %2366 : vector<16x16xf32>
    %2368 = vector.extract_strided_slice %2315 {offsets = [0, 4], sizes = [16, 16], strides = [1, 1]} : vector<16x20xf32> to vector<16x16xf32>
    %c74_440 = arith.constant 74 : index
    %2369 = memref.load %arg6[%c74_440] : memref<225xf32, #tpu.memory_space<smem>>
    %2370 = vector.broadcast %2369 : f32 to vector<16x16xf32>
    %2371 = arith.mulf %2368, %2370 : vector<16x16xf32>
    %2372 = arith.addf %2359, %2371 : vector<16x16xf32>
    %c149_441 = arith.constant 149 : index
    %2373 = memref.load %arg6[%c149_441] : memref<225xf32, #tpu.memory_space<smem>>
    %2374 = vector.broadcast %2373 : f32 to vector<16x16xf32>
    %2375 = arith.mulf %2368, %2374 : vector<16x16xf32>
    %2376 = arith.addf %2363, %2375 : vector<16x16xf32>
    %c224_442 = arith.constant 224 : index
    %2377 = memref.load %arg6[%c224_442] : memref<225xf32, #tpu.memory_space<smem>>
    %2378 = vector.broadcast %2377 : f32 to vector<16x16xf32>
    %2379 = arith.mulf %2368, %2378 : vector<16x16xf32>
    %2380 = arith.addf %2367, %2379 : vector<16x16xf32>
    %c0_443 = arith.constant 0 : index
    %2381 = memref.load %arg7[%c0_443] : memref<3xf32, #tpu.memory_space<smem>>
    %2382 = vector.broadcast %2381 : f32 to vector<16x16xf32>
    %2383 = arith.addf %2372, %2382 : vector<16x16xf32>
    %c1_444 = arith.constant 1 : index
    %2384 = memref.load %arg7[%c1_444] : memref<3xf32, #tpu.memory_space<smem>>
    %2385 = vector.broadcast %2384 : f32 to vector<16x16xf32>
    %2386 = arith.addf %2376, %2385 : vector<16x16xf32>
    %c2_445 = arith.constant 2 : index
    %2387 = memref.load %arg7[%c2_445] : memref<3xf32, #tpu.memory_space<smem>>
    %2388 = vector.broadcast %2387 : f32 to vector<16x16xf32>
    %2389 = arith.addf %2380, %2388 : vector<16x16xf32>
    %2390 = arith.addf %2383, %1 : vector<16x16xf32>
    %c0_446 = arith.constant 0 : index
    %c0_447 = arith.constant 0 : index
    %c0_448 = arith.constant 0 : index
    %c0_449 = arith.constant 0 : index
    %2391 = vector.load %arg8[%c0_446, %c0_447, %c0_448, %c0_449] : memref<1x3x16x16xf32, #tpu.memory_space<vmem>>, vector<1x1x16x16xf32>
    %2392 = vector.shape_cast %2391 : vector<1x1x16x16xf32> to vector<16x16xf32>
    %2393 = vector.shape_cast %2390 : vector<16x16xf32> to vector<1x1x16x16xf32>
    tpu.vector_store %arg8[%c0_446, %c0_447, %c0_448, %c0_449], %2393 {strides = array<i32>} : memref<1x3x16x16xf32, #tpu.memory_space<vmem>>, vector<1x1x16x16xf32>,
    %2394 = arith.addf %2386, %1 : vector<16x16xf32>
    %c0_450 = arith.constant 0 : index
    %c1_451 = arith.constant 1 : index
    %c0_452 = arith.constant 0 : index
    %c0_453 = arith.constant 0 : index
    %2395 = vector.load %arg8[%c0_450, %c1_451, %c0_452, %c0_453] : memref<1x3x16x16xf32, #tpu.memory_space<vmem>>, vector<1x1x16x16xf32>
    %2396 = vector.shape_cast %2395 : vector<1x1x16x16xf32> to vector<16x16xf32>
    %2397 = vector.shape_cast %2394 : vector<16x16xf32> to vector<1x1x16x16xf32>
    tpu.vector_store %arg8[%c0_450, %c1_451, %c0_452, %c0_453], %2397 {strides = array<i32>} : memref<1x3x16x16xf32, #tpu.memory_space<vmem>>, vector<1x1x16x16xf32>,
    %2398 = arith.addf %2389, %1 : vector<16x16xf32>
    %c0_454 = arith.constant 0 : index
    %c2_455 = arith.constant 2 : index
    %c0_456 = arith.constant 0 : index
    %c0_457 = arith.constant 0 : index
    %2399 = vector.load %arg8[%c0_454, %c2_455, %c0_456, %c0_457] : memref<1x3x16x16xf32, #tpu.memory_space<vmem>>, vector<1x1x16x16xf32>
    %2400 = vector.shape_cast %2399 : vector<1x1x16x16xf32> to vector<16x16xf32>
    %2401 = vector.shape_cast %2398 : vector<16x16xf32> to vector<1x1x16x16xf32>
    tpu.vector_store %arg8[%c0_454, %c2_455, %c0_456, %c0_457], %2401 {strides = array<i32>} : memref<1x3x16x16xf32, #tpu.memory_space<vmem>>, vector<1x1x16x16xf32>,
    return
  }
  func.func @transform_0(%arg0: i32) -> (i32, i32, i32, i32) {
    %c0_i32 = arith.constant 0 : i32
    %c0_i32_0 = arith.constant 0 : i32
    %c0_i32_1 = arith.constant 0 : i32
    %c0_i32_2 = arith.constant 0 : i32
    return %arg0, %c0_i32, %c0_i32_0, %c0_i32_1 : i32, i32, i32, i32
  }
  func.func @transform_1(%arg0: i32) -> i32 {
    %c0_i32 = arith.constant 0 : i32
    %c0_i32_0 = arith.constant 0 : i32
    return %c0_i32 : i32
  }
  func.func @transform_2(%arg0: i32) -> i32 {
    %c0_i32 = arith.constant 0 : i32
    %c0_i32_0 = arith.constant 0 : i32
    return %c0_i32 : i32
  }
  func.func @transform_3(%arg0: i32) -> i32 {
    %c0_i32 = arith.constant 0 : i32
    %c0_i32_0 = arith.constant 0 : i32
    return %c0_i32 : i32
  }
  func.func @transform_4(%arg0: i32) -> i32 {
    %c0_i32 = arith.constant 0 : i32
    %c0_i32_0 = arith.constant 0 : i32
    return %c0_i32 : i32
  }
  func.func @transform_5(%arg0: i32) -> i32 {
    %c0_i32 = arith.constant 0 : i32
    %c0_i32_0 = arith.constant 0 : i32
    return %c0_i32 : i32
  }
  func.func @transform_6(%arg0: i32) -> i32 {
    %c0_i32 = arith.constant 0 : i32
    %c0_i32_0 = arith.constant 0 : i32
    return %c0_i32 : i32
  }
  func.func @transform_7(%arg0: i32) -> (i32, i32, i32, i32) {
    %c0_i32 = arith.constant 0 : i32
    %c0_i32_0 = arith.constant 0 : i32
    %c0_i32_1 = arith.constant 0 : i32
    %c0_i32_2 = arith.constant 0 : i32
    return %arg0, %c0_i32, %c0_i32_0, %c0_i32_1 : i32, i32, i32, i32
  }
}

</mosaic_0001>

<llo_original>
// kernel: colorizer_forward.1
$region0: #{colorizer_forward.1}
  #allocation0 [shape = 'u32[]', space=smem, size = 0x4, offset = 0x4, fixed_abs, tag = 'smem constant byte address 0x4 - core index']
  #allocation1 [shape = 'u32[144,128]{1,0:T(1,128)}', space=vmem, size = 0x12000, scoped, tag = 'internal scratch']
  #allocation2 [shape = 'f32[3,20,20]{2,1,0:T(8,128)}', space=vmem, size = 0x9000, scoped, tag = 'scratch operand']
  #allocation3 [shape = 'f32[3,20,20]{2,1,0:T(8,128)}', space=vmem, size = 0x9000, scoped, tag = 'scratch operand']
  %s0 = inlined_call_operand.vmem [shape: f32[2,1,16,16], index: 0, kind: input, shape index: {}]
  %s1 = inlined_call_operand.vmem [shape: f32[75], index: 1, kind: input, shape index: {}]
  %s2 = inlined_call_operand.vmem [shape: f32[3], index: 2, kind: input, shape index: {}]
  %s3 = inlined_call_operand.vmem [shape: f32[225], index: 3, kind: input, shape index: {}]
  %s4 = inlined_call_operand.vmem [shape: f32[3], index: 4, kind: input, shape index: {}]
  %s5 = inlined_call_operand.vmem [shape: f32[225], index: 5, kind: input, shape index: {}]
  %s6 = inlined_call_operand.vmem [shape: f32[3], index: 6, kind: input, shape index: {}]
  %s7 = inlined_call_operand.hbm [shape: f32[2,3,16,16], index: 7, kind: output, shape index: {}]
  %s8 = sld [smem:[#allocation0]]
  $region85: #{colorizer_forward.1} parent=0
    _
  %s10 = ssub.s32 1, %s8
  %s11 = scalar_select 0, %s10, %s8
  $region1: #{colorizer_forward.1} parent=0
    #allocation4 [shape = 'u8[512]{0}', space=smem, size = 0x200, scoped, tag = 'input window, operand 1, single buffered']
    #allocation5 [shape = 's32[2]{0}', space=sflag, size = 0x8, scoped, tag = 'scoped memory for colorizer_forward.1']
    #allocation6 [shape = 's32[2]{0}', space=sflag, size = 0x8, scoped, tag = 'scoped memory for colorizer_forward.1']
    #allocation7 [shape = 'u8[512]{0}', space=smem, size = 0x200, scoped, tag = 'input window, operand 2, single buffered']
    #allocation8 [shape = 's32[1]{0}', space=sflag, size = 0x4, scoped, tag = 'scoped memory for colorizer_forward.1']
    #allocation9 [shape = 'u8[1024]{0}', space=smem, size = 0x400, scoped, tag = 'input window, operand 3, single buffered']
    #allocation10 [shape = 'u8[512]{0}', space=smem, size = 0x200, scoped, tag = 'input window, operand 4, single buffered']
    #allocation11 [shape = 's32[1]{0}', space=sflag, size = 0x4, scoped, tag = 'scoped memory for colorizer_forward.1']
    #allocation12 [shape = 'u8[1024]{0}', space=smem, size = 0x400, scoped, tag = 'input window, operand 5, single buffered']
    #allocation13 [shape = 'u8[512]{0}', space=smem, size = 0x200, scoped, tag = 'input window, operand 6, single buffered']
    #allocation14 [shape = 's32[1]{0}', space=sflag, size = 0x4, scoped, tag = 'scoped memory for colorizer_forward.1']
    #allocation15 [shape = 'u8[49152]{0}', space=vmem, size = 0xc000, scoped, tag = 'output window, operand 0']
    %12 = vsyncpa [#allocation6], 0
    %13 = vsyncpa [#allocation8], 0
    %14 = vsyncpa [#allocation11], 0
    %15 = vsyncpa [#allocation14], 0
    %16 = vsyncpa [#allocation5], 0
    %s17 = scalar_lea.sflag [#allocation5], 1
    %18 = vsyncpa %s17, 0
    loop: start=0, step=1, limit=4
    $region2: #{colorizer_forward.1} parent=1 // loop_pre_header
      _
    $region3: #{colorizer_forward.1} parent=1 // loop_header
      %s20 = sphi 0, %s24
      %p21 = scmp.ge.s32.totalorder %s20, 4
      %s30 = sphi 0, %s32
      %s33 = sphi 0, %s30
      %s34 = sphi 0, %s33
      %s50 = sphi 0, %s34
      %s54 = sphi 0, %s54
      %s56 = sphi 0, %s54
      %s57 = sphi 0, %s56
      %s71 = sphi 0, %s57
      %s75 = sphi 0, %s75
      %s77 = sphi 0, %s75
      %s78 = sphi 0, %s77
      %s92 = sphi 0, %s78
      %s96 = sphi 0, %s96
      %s98 = sphi 0, %s96
      %s99 = sphi 0, %s98
      %s113 = sphi 0, %s99
      %s117 = sphi 0, %s117
      %s119 = sphi 0, %s117
      %s120 = sphi 0, %s119
      %s134 = sphi 0, %s120
      %s138 = sphi 0, %s138
      %s140 = sphi 0, %s138
      %s141 = sphi 0, %s140
      %s155 = sphi 0, %s141
      %s159 = sphi 0, %s159
      %s161 = sphi 0, %s159
      %s162 = sphi 0, %s161
      %s176 = sphi 0, %s162
      %s182 = sphi 0, %s184
      %s185 = sphi 0, %s182
      %s186 = sphi 0, %s185
      %s202 = sphi 0, %s186
    $region4: #{colorizer_forward.1} parent=1 // loop_header_branch
      %23 = sbr.rel (%p21) target = $region8
    $region5: #{colorizer_forward.1} parent=1 // loop_body
      %s25 = ssub.s32 %s20, 1
      %s26 = ssub.s32 %s20, 2
      %s27 = sadd.s32 %s20, 1
      %s28 = ssub.s32 %s20, %s27
      %p29 = scmp.eq.s32.totalorder %s28, 0
      %s31 = sadd.s32 %s30, 1
      %s32 = scalar_select %p29, %s30, %s31
      %p35 = pneg %p29
      %p36 = scmp.eq.s32.totalorder %s20, 1
      %p37 = por %p35, %p36
      %p38 = scmp.ne.s32.totalorder %s30, %s33
      %p39 = scmp.eq.s32.totalorder %s20, 0
      %p40 = por %p38, %p39
      %p41 = scmp.ne.s32.totalorder %s30, %s33
      %p42 = scmp.eq.s32.totalorder %s25, 1
      %p43 = por %p41, %p42
      %p44 = scmp.ne.s32.totalorder %s33, %s34
      %p45 = scmp.eq.s32.totalorder %s25, 0
      %p46 = por %p44, %p45
      %p47 = scmp.ne.s32.totalorder %s33, %s34
      %p48 = scmp.eq.s32.totalorder %s26, 1
      %p49 = por %p47, %p48
      %p51 = scmp.ne.s32.totalorder %s34, %s50
      %p52 = scmp.eq.s32.totalorder %s26, 0
      %p53 = por %p51, %p52
      %s55 = sadd.s32 %s54, 1
      %p58 = scmp.eq.s32.totalorder %s20, 1
      %p59 = scmp.ne.s32.totalorder %s54, %s56
      %p60 = scmp.eq.s32.totalorder %s20, 0
      %p61 = por %p59, %p60
      %p62 = scmp.ne.s32.totalorder %s54, %s56
      %p63 = scmp.eq.s32.totalorder %s25, 1
      %p64 = por %p62, %p63
      %p65 = scmp.ne.s32.totalorder %s56, %s57
      %p66 = scmp.eq.s32.totalorder %s25, 0
      %p67 = por %p65, %p66
      %p68 = scmp.ne.s32.totalorder %s56, %s57
      %p69 = scmp.eq.s32.totalorder %s26, 1
      %p70 = por %p68, %p69
      %p72 = scmp.ne.s32.totalorder %s57, %s71
      %p73 = scmp.eq.s32.totalorder %s26, 0
      %p74 = por %p72, %p73
      %s76 = sadd.s32 %s75, 1
      %p79 = scmp.eq.s32.totalorder %s20, 1
      %p80 = scmp.ne.s32.totalorder %s75, %s77
      %p81 = scmp.eq.s32.totalorder %s20, 0
      %p82 = por %p80, %p81
      %p83 = scmp.ne.s32.totalorder %s75, %s77
      %p84 = scmp.eq.s32.totalorder %s25, 1
      %p85 = por %p83, %p84
      %p86 = scmp.ne.s32.totalorder %s77, %s78
      %p87 = scmp.eq.s32.totalorder %s25, 0
      %p88 = por %p86, %p87
      %p89 = scmp.ne.s32.totalorder %s77, %s78
      %p90 = scmp.eq.s32.totalorder %s26, 1
      %p91 = por %p89, %p90
      %p93 = scmp.ne.s32.totalorder %s78, %s92
      %p94 = scmp.eq.s32.totalorder %s26, 0
      %p95 = por %p93, %p94
      %s97 = sadd.s32 %s96, 1
      %p100 = scmp.eq.s32.totalorder %s20, 1
      %p101 = scmp.ne.s32.totalorder %s96, %s98
      %p102 = scmp.eq.s32.totalorder %s20, 0
      %p103 = por %p101, %p102
      %p104 = scmp.ne.s32.totalorder %s96, %s98
      %p105 = scmp.eq.s32.totalorder %s25, 1
      %p106 = por %p104, %p105
      %p107 = scmp.ne.s32.totalorder %s98, %s99
      %p108 = scmp.eq.s32.totalorder %s25, 0
      %p109 = por %p107, %p108
      %p110 = scmp.ne.s32.totalorder %s98, %s99
      %p111 = scmp.eq.s32.totalorder %s26, 1
      %p112 = por %p110, %p111
      %p114 = scmp.ne.s32.totalorder %s99, %s113
      %p115 = scmp.eq.s32.totalorder %s26, 0
      %p116 = por %p114, %p115
      %s118 = sadd.s32 %s117, 1
      %p121 = scmp.eq.s32.totalorder %s20, 1
      %p122 = scmp.ne.s32.totalorder %s117, %s119
      %p123 = scmp.eq.s32.totalorder %s20, 0
      %p124 = por %p122, %p123
      %p125 = scmp.ne.s32.totalorder %s117, %s119
      %p126 = scmp.eq.s32.totalorder %s25, 1
      %p127 = por %p125, %p126
      %p128 = scmp.ne.s32.totalorder %s119, %s120
      %p129 = scmp.eq.s32.totalorder %s25, 0
      %p130 = por %p128, %p129
      %p131 = scmp.ne.s32.totalorder %s119, %s120
      %p132 = scmp.eq.s32.totalorder %s26, 1
      %p133 = por %p131, %p132
      %p135 = scmp.ne.s32.totalorder %s120, %s134
      %p136 = scmp.eq.s32.totalorder %s26, 0
      %p137 = por %p135, %p136
      %s139 = sadd.s32 %s138, 1
      %p142 = scmp.eq.s32.totalorder %s20, 1
      %p143 = scmp.ne.s32.totalorder %s138, %s140
      %p144 = scmp.eq.s32.totalorder %s20, 0
      %p145 = por %p143, %p144
      %p146 = scmp.ne.s32.totalorder %s138, %s140
      %p147 = scmp.eq.s32.totalorder %s25, 1
      %p148 = por %p146, %p147
      %p149 = scmp.ne.s32.totalorder %s140, %s141
      %p150 = scmp.eq.s32.totalorder %s25, 0
      %p151 = por %p149, %p150
      %p152 = scmp.ne.s32.totalorder %s140, %s141
      %p153 = scmp.eq.s32.totalorder %s26, 1
      %p154 = por %p152, %p153
      %p156 = scmp.ne.s32.totalorder %s141, %s155
      %p157 = scmp.eq.s32.totalorder %s26, 0
      %p158 = por %p156, %p157
      %s160 = sadd.s32 %s159, 1
      %p163 = scmp.eq.s32.totalorder %s20, 1
      %p164 = scmp.ne.s32.totalorder %s159, %s161
      %p165 = scmp.eq.s32.totalorder %s20, 0
      %p166 = por %p164, %p165
      %p167 = scmp.ne.s32.totalorder %s159, %s161
      %p168 = scmp.eq.s32.totalorder %s25, 1
      %p169 = por %p167, %p168
      %p170 = scmp.ne.s32.totalorder %s161, %s162
      %p171 = scmp.eq.s32.totalorder %s25, 0
      %p172 = por %p170, %p171
      %p173 = scmp.ne.s32.totalorder %s161, %s162
      %p174 = scmp.eq.s32.totalorder %s26, 1
      %p175 = por %p173, %p174
      %p177 = scmp.ne.s32.totalorder %s162, %s176
      %p178 = scmp.eq.s32.totalorder %s26, 0
      %p179 = por %p177, %p178
      %s180 = ssub.s32 %s20, %s27
      %p181 = scmp.eq.s32.totalorder %s180, 0
      %s183 = sadd.s32 %s182, 1
      %s184 = scalar_select %p181, %s182, %s183
      %p187 = pneg %p181
      %p188 = scmp.eq.s32.totalorder %s20, 1
      %p189 = por %p187, %p188
      %p190 = scmp.ne.s32.totalorder %s182, %s185
      %p191 = scmp.eq.s32.totalorder %s20, 0
      %p192 = por %p190, %p191
      %p193 = scmp.ne.s32.totalorder %s182, %s185
      %p194 = scmp.eq.s32.totalorder %s25, 1
      %p195 = por %p193, %p194
      %p196 = scmp.ne.s32.totalorder %s185, %s186
      %p197 = scmp.eq.s32.totalorder %s25, 0
      %p198 = por %p196, %p197
      %p199 = scmp.ne.s32.totalorder %s185, %s186
      %p200 = scmp.eq.s32.totalorder %s26, 1
      %p201 = por %p199, %p200
      %p203 = scmp.ne.s32.totalorder %s186, %s202
      %p204 = scmp.eq.s32.totalorder %s26, 0
      %p205 = por %p203, %p204
      %p206 = scmp.le.s32.totalorder 1, %s20
      %p207 = scmp.lt.s32.totalorder %s20, 3
      %p208 = pnand %p206, %p207
      %p209 = pneg %p208
      // Predicated region
      $region9: #{colorizer_forward.1} parent=5 // pred_check
        _
      $region10: #{colorizer_forward.1} parent=5 // pred_check_branch
        %211 = sbr.rel (%p208) target = $region12
      $region11: #{colorizer_forward.1} parent=5 // pred_region
        %s212 = ssub.s32 %s20, 1
        // Predicated region
        $region13: #{colorizer_forward.1} parent=11 // pred_check
          %p213 = pneg %p67
        $region14: #{colorizer_forward.1} parent=11 // pred_check_branch
          %215 = sbr.rel (%p213) target = $region16
        $region15: #{colorizer_forward.1} parent=11 // pred_region
          %s217 = ssub.s32 16, 16
          %218 = vsyncadd [#allocation6], %s217
          %s220 = sshll.u32 %s1, 4
          %s221 = int_to_ptr.vmem [resolvable:$true] %s220
          %223 = dma.vmem_to_smem %s221, 16, [#allocation4], [#allocation6]
        $region16: #{colorizer_forward.1} parent=11 // pred_fallthru
          _
        // Predicated region
        $region17: #{colorizer_forward.1} parent=11 // pred_check
          %p224 = pneg %p88
        $region18: #{colorizer_forward.1} parent=11 // pred_check_branch
          %226 = sbr.rel (%p224) target = $region20
        $region19: #{colorizer_forward.1} parent=11 // pred_region
          %s228 = ssub.s32 16, 16
          %229 = vsyncadd [#allocation8], %s228
          %s231 = sshll.u32 %s2, 4
          %s232 = int_to_ptr.vmem [resolvable:$true] %s231
          %234 = dma.vmem_to_smem %s232, 16, [#allocation7], [#allocation8]
        $region20: #{colorizer_forward.1} parent=11 // pred_fallthru
          _
        // Predicated region
        $region21: #{colorizer_forward.1} parent=11 // pred_check
          %p235 = pneg %p109
        $region22: #{colorizer_forward.1} parent=11 // pred_check_branch
          %237 = sbr.rel (%p235) target = $region24
        $region23: #{colorizer_forward.1} parent=11 // pred_region
          %s239 = ssub.s32 32, 32
          %240 = vsyncadd [#allocation8], %s239
          %s242 = sshll.u32 %s3, 4
          %s243 = int_to_ptr.vmem [resolvable:$true] %s242
          %245 = dma.vmem_to_smem %s243, 32, [#allocation9], [#allocation8]
        $region24: #{colorizer_forward.1} parent=11 // pred_fallthru
          _
        // Predicated region
        $region25: #{colorizer_forward.1} parent=11 // pred_check
          %p246 = pneg %p130
        $region26: #{colorizer_forward.1} parent=11 // pred_check_branch
          %248 = sbr.rel (%p246) target = $region28
        $region27: #{colorizer_forward.1} parent=11 // pred_region
          %s250 = ssub.s32 16, 16
          %251 = vsyncadd [#allocation11], %s250
          %s253 = sshll.u32 %s4, 4
          %s254 = int_to_ptr.vmem [resolvable:$true] %s253
          %256 = dma.vmem_to_smem %s254, 16, [#allocation10], [#allocation11]
        $region28: #{colorizer_forward.1} parent=11 // pred_fallthru
          _
        // Predicated region
        $region29: #{colorizer_forward.1} parent=11 // pred_check
          %p257 = pneg %p151
        $region30: #{colorizer_forward.1} parent=11 // pred_check_branch
          %259 = sbr.rel (%p257) target = $region32
        $region31: #{colorizer_forward.1} parent=11 // pred_region
          %s261 = ssub.s32 32, 32
          %262 = vsyncadd [#allocation11], %s261
          %s264 = sshll.u32 %s5, 4
          %s265 = int_to_ptr.vmem [resolvable:$true] %s264
          %267 = dma.vmem_to_smem %s265, 32, [#allocation12], [#allocation11]
        $region32: #{colorizer_forward.1} parent=11 // pred_fallthru
          _
        // Predicated region
        $region33: #{colorizer_forward.1} parent=11 // pred_check
          %p268 = pneg %p172
        $region34: #{colorizer_forward.1} parent=11 // pred_check_branch
          %270 = sbr.rel (%p268) target = $region36
        $region35: #{colorizer_forward.1} parent=11 // pred_region
          %s272 = ssub.s32 16, 16
          %273 = vsyncadd [#allocation14], %s272
          %s275 = sshll.u32 %s6, 4
          %s276 = int_to_ptr.vmem [resolvable:$true] %s275
          %278 = dma.vmem_to_smem %s276, 16, [#allocation13], [#allocation14]
        $region36: #{colorizer_forward.1} parent=11 // pred_fallthru
          _
      $region12: #{colorizer_forward.1} parent=5 // pred_fallthru
        _
      %p279 = scmp.lt.s32.totalorder %s20, 2
      // Predicated region
      $region37: #{colorizer_forward.1} parent=5 // pred_check
        %p280 = pneg %p279
      $region38: #{colorizer_forward.1} parent=5 // pred_check_branch
        %282 = sbr.rel (%p280) target = $region40
      $region39: #{colorizer_forward.1} parent=5 // pred_region
        // Predicated region
        $region41: #{colorizer_forward.1} parent=39 // pred_check
          %p283 = pneg %p40
        $region42: #{colorizer_forward.1} parent=39 // pred_check_branch
          %285 = sbr.rel (%p283) target = $region44
        $region43: #{colorizer_forward.1} parent=39 // pred_region
          %p286 = scmp.lt.s32.totalorder %s20, 1
          %s287 = scalar_select %p286, %s20, 1
          %s288 = smul.addr %s287, 2
          %s289 = smul.addr %s288, 8
          %s290 = scalar_lea.vmem %s0, %s289
        $region44: #{colorizer_forward.1} parent=39 // pred_fallthru
          _
      $region40: #{colorizer_forward.1} parent=5 // pred_fallthru
        _
      %p291 = scmp.le.s32.totalorder 1, %s20
      %p292 = scmp.lt.s32.totalorder %s20, 3
      %p293 = pnand %p291, %p292
      %p294 = pneg %p293
      // Predicated region
      $region45: #{colorizer_forward.1} parent=5 // pred_check
        _
      $region46: #{colorizer_forward.1} parent=5 // pred_check_branch
        %296 = sbr.rel (%p293) target = $region48
      $region47: #{colorizer_forward.1} parent=5 // pred_region
        %s297 = ssub.s32 %s20, 1
        // Predicated region
        $region49: #{colorizer_forward.1} parent=47 // pred_check
          %p298 = pneg %p67
        $region50: #{colorizer_forward.1} parent=47 // pred_check_branch
          %300 = sbr.rel (%p298) target = $region52
        $region51: #{colorizer_forward.1} parent=47 // pred_region
          %301 = dma.done [#allocation6], 16
        $region52: #{colorizer_forward.1} parent=47 // pred_fallthru
          _
        // Predicated region
        $region53: #{colorizer_forward.1} parent=47 // pred_check
          %p302 = pneg %p88
        $region54: #{colorizer_forward.1} parent=47 // pred_check_branch
          %304 = sbr.rel (%p302) target = $region56
        $region55: #{colorizer_forward.1} parent=47 // pred_region
          %305 = dma.done [#allocation8], 16
        $region56: #{colorizer_forward.1} parent=47 // pred_fallthru
          _
        // Predicated region
        $region57: #{colorizer_forward.1} parent=47 // pred_check
          %p306 = pneg %p109
        $region58: #{colorizer_forward.1} parent=47 // pred_check_branch
          %308 = sbr.rel (%p306) target = $region60
        $region59: #{colorizer_forward.1} parent=47 // pred_region
          %309 = dma.done [#allocation8], 32
        $region60: #{colorizer_forward.1} parent=47 // pred_fallthru
          _
        // Predicated region
        $region61: #{colorizer_forward.1} parent=47 // pred_check
          %p310 = pneg %p130
        $region62: #{colorizer_forward.1} parent=47 // pred_check_branch
          %312 = sbr.rel (%p310) target = $region64
        $region63: #{colorizer_forward.1} parent=47 // pred_region
          %313 = dma.done [#allocation11], 16
        $region64: #{colorizer_forward.1} parent=47 // pred_fallthru
          _
        // Predicated region
        $region65: #{colorizer_forward.1} parent=47 // pred_check
          %p314 = pneg %p151
        $region66: #{colorizer_forward.1} parent=47 // pred_check_branch
          %316 = sbr.rel (%p314) target = $region68
        $region67: #{colorizer_forward.1} parent=47 // pred_region
          %317 = dma.done [#allocation11], 32
        $region68: #{colorizer_forward.1} parent=47 // pred_fallthru
          _
        // Predicated region
        $region69: #{colorizer_forward.1} parent=47 // pred_check
          %p318 = pneg %p172
        $region70: #{colorizer_forward.1} parent=47 // pred_check_branch
          %320 = sbr.rel (%p318) target = $region72
        $region71: #{colorizer_forward.1} parent=47 // pred_region
          %321 = dma.done [#allocation14], 16
        $region72: #{colorizer_forward.1} parent=47 // pred_fallthru
          _
        %322 = sfence
        %p323 = scmp.lt.s32.totalorder %s25, 1
        %s324 = scalar_select %p323, %s25, 1
        %s325 = smul.addr %s324, 2
        %s326 = smul.addr %s325, 8
        %s327 = scalar_lea.vmem %s0, %s326
        %p328 = pneg %p46
        %p329 = pneg %p43
        %p330 = pneg %p67
        %p331 = pneg %p64
        %p332 = pneg %p88
        %p333 = pneg %p85
        %p334 = pneg %p109
        %p335 = pneg %p106
        %p336 = pneg %p130
        %p337 = pneg %p127
        %p338 = pneg %p151
        %p339 = pneg %p148
        %p340 = pneg %p172
        %p341 = pneg %p169
        %p342 = pneg %p198
        %p343 = pneg %p195
        %s344 = sand.u32 %s185, 1
        %s345 = scalar_lea.sflag [#allocation5], %s344
        %s346 = sand.u32 %s185, 1
        %s347 = smul.addr %s346, 48
        %s348 = scalar_lea.vmem [#allocation15], %s347
        %p349 = scmp.lt.s32.totalorder %s25, 1
        %s350 = scalar_select %p349, %s25, 1
        %s351 = smul.addr %s350, 2
        %s352 = smul.addr %s351, 8
        %s353 = scalar_lea.vmem %s0, %s352
        %v354 = vld [vmem:[%s353] sm:$0xff]
        %v355 = vld [vmem:[%s353 + $0x8] sm:$0xff]
        %vm356 = vcmask 162816
        %357 = vst.msk [vmem:[#allocation2] sm:$0xff] %vm356, 0.0
        %358 = vst.msk [vmem:[#allocation2 + $0x8] sm:$0xff] %vm356, 0.0
        %vm359 = vcmask 158720
        %360 = vst.msk [vmem:[#allocation2 + $0x10] sm:$0xf] %vm359, 0.0
        %361 = vst.msk [vmem:[#allocation2 + $0x18] sm:$0xff] %vm356, 0.0
        %362 = vst.msk [vmem:[#allocation2 + $0x20] sm:$0xff] %vm356, 0.0
        %363 = vst.msk [vmem:[#allocation2 + $0x28] sm:$0xf] %vm359, 0.0
        %364 = vst.msk [vmem:[#allocation2 + $0x30] sm:$0xff] %vm356, 0.0
        %365 = vst.msk [vmem:[#allocation2 + $0x38] sm:$0xff] %vm356, 0.0
        %366 = vst.msk [vmem:[#allocation2 + $0x40] sm:$0xf] %vm359, 0.0
        %369 = vrot.lane.b32.xlu0 %v354, 2
        %v370 = vpop.permute.xlu0 %369
        %371 = vrot.lane.b32.xlu0 %v355, 2
        %v372 = vpop.permute.xlu0 %371
        %vm375 = vcmask 146448
        %376 = vst.msk [vmem:[#allocation2 + $0x2] sm:$0xff] %vm375, %v370
        %377 = vst.msk [vmem:[#allocation2 + $0xa] sm:$0xff] %vm375, %v372
        %v378 = vld [vmem:[#allocation2] sm:$0xff]
        %v379 = vld [vmem:[#allocation2 + $0x8] sm:$0xff]
        %s380 = sld [smem:[#allocation4]]
        %v381 = vstv %s380
        %v382 = vmul.f32 %v378, %v381
        %v383 = vmul.f32 %v379, %v381
        %s384 = sld [smem:[#allocation4 + $0x19]]
        %v385 = vstv %s384
        %v386 = vmul.f32 %v378, %v385
        %v387 = vmul.f32 %v379, %v385
        %s388 = sld [smem:[#allocation4 + $0x32]]
        %v389 = vstv %s388
        %v390 = vmul.f32 %v378, %v389
        %v391 = vmul.f32 %v379, %v389
        %s392 = sld [smem:[#allocation4 + $0x1]]
        %v393 = vstv %s392
        %v394 = vmul.f32 %v378, %v393
        %v395 = vmul.f32 %v379, %v393
        %398 = vrot.lane.b32.xlu0 %v394, 127
        %v399 = vpop.permute.xlu0 %398
        %400 = vrot.lane.b32.xlu0 %v395, 127
        %v401 = vpop.permute.xlu0 %400
        %v404 = vadd.f32 %v382, %v399
        %v405 = vadd.f32 %v383, %v401
        %s406 = sld [smem:[#allocation4 + $0x1a]]
        %v407 = vstv %s406
        %v408 = vmul.f32 %v378, %v407
        %v409 = vmul.f32 %v379, %v407
        %412 = vrot.lane.b32.xlu0 %v408, 127
        %v413 = vpop.permute.xlu0 %412
        %414 = vrot.lane.b32.xlu0 %v409, 127
        %v415 = vpop.permute.xlu0 %414
        %v418 = vadd.f32 %v386, %v413
        %v419 = vadd.f32 %v387, %v415
        %s420 = sld [smem:[#allocation4 + $0x33]]
        %v421 = vstv %s420
        %v422 = vmul.f32 %v378, %v421
        %v423 = vmul.f32 %v379, %v421
        %426 = vrot.lane.b32.xlu0 %v422, 127
        %v427 = vpop.permute.xlu0 %426
        %428 = vrot.lane.b32.xlu0 %v423, 127
        %v429 = vpop.permute.xlu0 %428
        %v432 = vadd.f32 %v390, %v427
        %v433 = vadd.f32 %v391, %v429
        %s434 = sld [smem:[#allocation4 + $0x2]]
        %v435 = vstv %s434
        %v436 = vmul.f32 %v378, %v435
        %v437 = vmul.f32 %v379, %v435
        %440 = vrot.lane.b32.xlu0 %v436, 126
        %v441 = vpop.permute.xlu0 %440
        %442 = vrot.lane.b32.xlu0 %v437, 126
        %v443 = vpop.permute.xlu0 %442
        %v446 = vadd.f32 %v404, %v441
        %v447 = vadd.f32 %v405, %v443
        %s448 = sld [smem:[#allocation4 + $0x1b]]
        %v449 = vstv %s448
        %v450 = vmul.f32 %v378, %v449
        %v451 = vmul.f32 %v379, %v449
        %454 = vrot.lane.b32.xlu0 %v450, 126
        %v455 = vpop.permute.xlu0 %454
        %456 = vrot.lane.b32.xlu0 %v451, 126
        %v457 = vpop.permute.xlu0 %456
        %v460 = vadd.f32 %v418, %v455
        %v461 = vadd.f32 %v419, %v457
        %s462 = sld [smem:[#allocation4 + $0x34]]
        %v463 = vstv %s462
        %v464 = vmul.f32 %v378, %v463
        %v465 = vmul.f32 %v379, %v463
        %468 = vrot.lane.b32.xlu0 %v464, 126
        %v469 = vpop.permute.xlu0 %468
        %470 = vrot.lane.b32.xlu0 %v465, 126
        %v471 = vpop.permute.xlu0 %470
        %v474 = vadd.f32 %v432, %v469
        %v475 = vadd.f32 %v433, %v471
        %s476 = sld [smem:[#allocation4 + $0x3]]
        %v477 = vstv %s476
        %v478 = vmul.f32 %v378, %v477
        %v479 = vmul.f32 %v379, %v477
        %482 = vrot.lane.b32.xlu0 %v478, 125
        %v483 = vpop.permute.xlu0 %482
        %484 = vrot.lane.b32.xlu0 %v479, 125
        %v485 = vpop.permute.xlu0 %484
        %v488 = vadd.f32 %v446, %v483
        %v489 = vadd.f32 %v447, %v485
        %s490 = sld [smem:[#allocation4 + $0x1c]]
        %v491 = vstv %s490
        %v492 = vmul.f32 %v378, %v491
        %v493 = vmul.f32 %v379, %v491
        %496 = vrot.lane.b32.xlu0 %v492, 125
        %v497 = vpop.permute.xlu0 %496
        %498 = vrot.lane.b32.xlu0 %v493, 125
        %v499 = vpop.permute.xlu0 %498
        %v502 = vadd.f32 %v460, %v497
        %v503 = vadd.f32 %v461, %v499
        %s504 = sld [smem:[#allocation4 + $0x35]]
        %v505 = vstv %s504
        %v506 = vmul.f32 %v378, %v505
        %v507 = vmul.f32 %v379, %v505
        %510 = vrot.lane.b32.xlu0 %v506, 125
        %v511 = vpop.permute.xlu0 %510
        %512 = vrot.lane.b32.xlu0 %v507, 125
        %v513 = vpop.permute.xlu0 %512
        %v516 = vadd.f32 %v474, %v511
        %v517 = vadd.f32 %v475, %v513
        %s518 = sld [smem:[#allocation4 + $0x4]]
        %v519 = vstv %s518
        %v520 = vmul.f32 %v378, %v519
        %v521 = vmul.f32 %v379, %v519
        %524 = vrot.lane.b32.xlu0 %v520, 124
        %v525 = vpop.permute.xlu0 %524
        %526 = vrot.lane.b32.xlu0 %v521, 124
        %v527 = vpop.permute.xlu0 %526
        %v530 = vadd.f32 %v488, %v525
        %v531 = vadd.f32 %v489, %v527
        %s532 = sld [smem:[#allocation4 + $0x1d]]
        %v533 = vstv %s532
        %v534 = vmul.f32 %v378, %v533
        %v535 = vmul.f32 %v379, %v533
        %538 = vrot.lane.b32.xlu0 %v534, 124
        %v539 = vpop.permute.xlu0 %538
        %540 = vrot.lane.b32.xlu0 %v535, 124
        %v541 = vpop.permute.xlu0 %540
        %v544 = vadd.f32 %v502, %v539
        %v545 = vadd.f32 %v503, %v541
        %s546 = sld [smem:[#allocation4 + $0x36]]
        %v547 = vstv %s546
        %v548 = vmul.f32 %v378, %v547
        %v549 = vmul.f32 %v379, %v547
        %552 = vrot.lane.b32.xlu0 %v548, 124
        %v553 = vpop.permute.xlu0 %552
        %554 = vrot.lane.b32.xlu0 %v549, 124
        %v555 = vpop.permute.xlu0 %554
        %v558 = vadd.f32 %v516, %v553
        %v559 = vadd.f32 %v517, %v555
        %v560 = vld [vmem:[#allocation2 + $0x1] sm:$0xff]
        %v561 = vld [vmem:[#allocation2 + $0x9] sm:$0xff]
        %s562 = sld [smem:[#allocation4 + $0x5]]
        %v563 = vstv %s562
        %v564 = vmul.f32 %v560, %v563
        %v565 = vmul.f32 %v561, %v563
        %v566 = vadd.f32 %v530, %v564
        %v567 = vadd.f32 %v531, %v565
        %s568 = sld [smem:[#allocation4 + $0x1e]]
        %v569 = vstv %s568
        %v570 = vmul.f32 %v560, %v569
        %v571 = vmul.f32 %v561, %v569
        %v572 = vadd.f32 %v544, %v570
        %v573 = vadd.f32 %v545, %v571
        %s574 = sld [smem:[#allocation4 + $0x37]]
        %v575 = vstv %s574
        %v576 = vmul.f32 %v560, %v575
        %v577 = vmul.f32 %v561, %v575
        %v578 = vadd.f32 %v558, %v576
        %v579 = vadd.f32 %v559, %v577
        %s580 = sld [smem:[#allocation4 + $0x6]]
        %v581 = vstv %s580
        %v582 = vmul.f32 %v560, %v581
        %v583 = vmul.f32 %v561, %v581
        %586 = vrot.lane.b32.xlu0 %v582, 127
        %v587 = vpop.permute.xlu0 %586
        %588 = vrot.lane.b32.xlu0 %v583, 127
        %v589 = vpop.permute.xlu0 %588
        %v592 = vadd.f32 %v566, %v587
        %v593 = vadd.f32 %v567, %v589
        %s594 = sld [smem:[#allocation4 + $0x1f]]
        %v595 = vstv %s594
        %v596 = vmul.f32 %v560, %v595
        %v597 = vmul.f32 %v561, %v595
        %600 = vrot.lane.b32.xlu0 %v596, 127
        %v601 = vpop.permute.xlu0 %600
        %602 = vrot.lane.b32.xlu0 %v597, 127
        %v603 = vpop.permute.xlu0 %602
        %v606 = vadd.f32 %v572, %v601
        %v607 = vadd.f32 %v573, %v603
        %s608 = sld [smem:[#allocation4 + $0x38]]
        %v609 = vstv %s608
        %v610 = vmul.f32 %v560, %v609
        %v611 = vmul.f32 %v561, %v609
        %614 = vrot.lane.b32.xlu0 %v610, 127
        %v615 = vpop.permute.xlu0 %614
        %616 = vrot.lane.b32.xlu0 %v611, 127
        %v617 = vpop.permute.xlu0 %616
        %v620 = vadd.f32 %v578, %v615
        %v621 = vadd.f32 %v579, %v617
        %s622 = sld [smem:[#allocation4 + $0x7]]
        %v623 = vstv %s622
        %v624 = vmul.f32 %v560, %v623
        %v625 = vmul.f32 %v561, %v623
        %628 = vrot.lane.b32.xlu0 %v624, 126
        %v629 = vpop.permute.xlu0 %628
        %630 = vrot.lane.b32.xlu0 %v625, 126
        %v631 = vpop.permute.xlu0 %630
        %v634 = vadd.f32 %v592, %v629
        %v635 = vadd.f32 %v593, %v631
        %s636 = sld [smem:[#allocation4 + $0x20]]
        %v637 = vstv %s636
        %v638 = vmul.f32 %v560, %v637
        %v639 = vmul.f32 %v561, %v637
        %642 = vrot.lane.b32.xlu0 %v638, 126
        %v643 = vpop.permute.xlu0 %642
        %644 = vrot.lane.b32.xlu0 %v639, 126
        %v645 = vpop.permute.xlu0 %644
        %v648 = vadd.f32 %v606, %v643
        %v649 = vadd.f32 %v607, %v645
        %s650 = sld [smem:[#allocation4 + $0x39]]
        %v651 = vstv %s650
        %v652 = vmul.f32 %v560, %v651
        %v653 = vmul.f32 %v561, %v651
        %656 = vrot.lane.b32.xlu0 %v652, 126
        %v657 = vpop.permute.xlu0 %656
        %658 = vrot.lane.b32.xlu0 %v653, 126
        %v659 = vpop.permute.xlu0 %658
        %v662 = vadd.f32 %v620, %v657
        %v663 = vadd.f32 %v621, %v659
        %s664 = sld [smem:[#allocation4 + $0x8]]
        %v665 = vstv %s664
        %v666 = vmul.f32 %v560, %v665
        %v667 = vmul.f32 %v561, %v665
        %670 = vrot.lane.b32.xlu0 %v666, 125
        %v671 = vpop.permute.xlu0 %670
        %672 = vrot.lane.b32.xlu0 %v667, 125
        %v673 = vpop.permute.xlu0 %672
        %v676 = vadd.f32 %v634, %v671
        %v677 = vadd.f32 %v635, %v673
        %s678 = sld [smem:[#allocation4 + $0x21]]
        %v679 = vstv %s678
        %v680 = vmul.f32 %v560, %v679
        %v681 = vmul.f32 %v561, %v679
        %684 = vrot.lane.b32.xlu0 %v680, 125
        %v685 = vpop.permute.xlu0 %684
        %686 = vrot.lane.b32.xlu0 %v681, 125
        %v687 = vpop.permute.xlu0 %686
        %v690 = vadd.f32 %v648, %v685
        %v691 = vadd.f32 %v649, %v687
        %s692 = sld [smem:[#allocation4 + $0x3a]]
        %v693 = vstv %s692
        %v694 = vmul.f32 %v560, %v693
        %v695 = vmul.f32 %v561, %v693
        %698 = vrot.lane.b32.xlu0 %v694, 125
        %v699 = vpop.permute.xlu0 %698
        %700 = vrot.lane.b32.xlu0 %v695, 125
        %v701 = vpop.permute.xlu0 %700
        %v704 = vadd.f32 %v662, %v699
        %v705 = vadd.f32 %v663, %v701
        %s706 = sld [smem:[#allocation4 + $0x9]]
        %v707 = vstv %s706
        %v708 = vmul.f32 %v560, %v707
        %v709 = vmul.f32 %v561, %v707
        %712 = vrot.lane.b32.xlu0 %v708, 124
        %v713 = vpop.permute.xlu0 %712
        %714 = vrot.lane.b32.xlu0 %v709, 124
        %v715 = vpop.permute.xlu0 %714
        %v718 = vadd.f32 %v676, %v713
        %v719 = vadd.f32 %v677, %v715
        %s720 = sld [smem:[#allocation4 + $0x22]]
        %v721 = vstv %s720
        %v722 = vmul.f32 %v560, %v721
        %v723 = vmul.f32 %v561, %v721
        %726 = vrot.lane.b32.xlu0 %v722, 124
        %v727 = vpop.permute.xlu0 %726
        %728 = vrot.lane.b32.xlu0 %v723, 124
        %v729 = vpop.permute.xlu0 %728
        %v732 = vadd.f32 %v690, %v727
        %v733 = vadd.f32 %v691, %v729
        %s734 = sld [smem:[#allocation4 + $0x3b]]
        %v735 = vstv %s734
        %v736 = vmul.f32 %v560, %v735
        %v737 = vmul.f32 %v561, %v735
        %740 = vrot.lane.b32.xlu0 %v736, 124
        %v741 = vpop.permute.xlu0 %740
        %742 = vrot.lane.b32.xlu0 %v737, 124
        %v743 = vpop.permute.xlu0 %742
        %v746 = vadd.f32 %v704, %v741
        %v747 = vadd.f32 %v705, %v743
        %v748 = vld [vmem:[#allocation2 + $0x2] sm:$0xff]
        %v749 = vld [vmem:[#allocation2 + $0xa] sm:$0xff]
        %s750 = sld [smem:[#allocation4 + $0xa]]
        %v751 = vstv %s750
        %v752 = vmul.f32 %v748, %v751
        %v753 = vmul.f32 %v749, %v751
        %v754 = vadd.f32 %v718, %v752
        %v755 = vadd.f32 %v719, %v753
        %s756 = sld [smem:[#allocation4 + $0x23]]
        %v757 = vstv %s756
        %v758 = vmul.f32 %v748, %v757
        %v759 = vmul.f32 %v749, %v757
        %v760 = vadd.f32 %v732, %v758
        %v761 = vadd.f32 %v733, %v759
        %s762 = sld [smem:[#allocation4 + $0x3c]]
        %v763 = vstv %s762
        %v764 = vmul.f32 %v748, %v763
        %v765 = vmul.f32 %v749, %v763
        %v766 = vadd.f32 %v746, %v764
        %v767 = vadd.f32 %v747, %v765
        %s768 = sld [smem:[#allocation4 + $0xb]]
        %v769 = vstv %s768
        %v770 = vmul.f32 %v748, %v769
        %v771 = vmul.f32 %v749, %v769
        %774 = vrot.lane.b32.xlu0 %v770, 127
        %v775 = vpop.permute.xlu0 %774
        %776 = vrot.lane.b32.xlu0 %v771, 127
        %v777 = vpop.permute.xlu0 %776
        %v780 = vadd.f32 %v754, %v775
        %v781 = vadd.f32 %v755, %v777
        %s782 = sld [smem:[#allocation4 + $0x24]]
        %v783 = vstv %s782
        %v784 = vmul.f32 %v748, %v783
        %v785 = vmul.f32 %v749, %v783
        %788 = vrot.lane.b32.xlu0 %v784, 127
        %v789 = vpop.permute.xlu0 %788
        %790 = vrot.lane.b32.xlu0 %v785, 127
        %v791 = vpop.permute.xlu0 %790
        %v794 = vadd.f32 %v760, %v789
        %v795 = vadd.f32 %v761, %v791
        %s796 = sld [smem:[#allocation4 + $0x3d]]
        %v797 = vstv %s796
        %v798 = vmul.f32 %v748, %v797
        %v799 = vmul.f32 %v749, %v797
        %802 = vrot.lane.b32.xlu0 %v798, 127
        %v803 = vpop.permute.xlu0 %802
        %804 = vrot.lane.b32.xlu0 %v799, 127
        %v805 = vpop.permute.xlu0 %804
        %v808 = vadd.f32 %v766, %v803
        %v809 = vadd.f32 %v767, %v805
        %s810 = sld [smem:[#allocation4 + $0xc]]
        %v811 = vstv %s810
        %v812 = vmul.f32 %v748, %v811
        %v813 = vmul.f32 %v749, %v811
        %816 = vrot.lane.b32.xlu0 %v812, 126
        %v817 = vpop.permute.xlu0 %816
        %818 = vrot.lane.b32.xlu0 %v813, 126
        %v819 = vpop.permute.xlu0 %818
        %v822 = vadd.f32 %v780, %v817
        %v823 = vadd.f32 %v781, %v819
        %s824 = sld [smem:[#allocation4 + $0x25]]
        %v825 = vstv %s824
        %v826 = vmul.f32 %v748, %v825
        %v827 = vmul.f32 %v749, %v825
        %830 = vrot.lane.b32.xlu0 %v826, 126
        %v831 = vpop.permute.xlu0 %830
        %832 = vrot.lane.b32.xlu0 %v827, 126
        %v833 = vpop.permute.xlu0 %832
        %v836 = vadd.f32 %v794, %v831
        %v837 = vadd.f32 %v795, %v833
        %s838 = sld [smem:[#allocation4 + $0x3e]]
        %v839 = vstv %s838
        %v840 = vmul.f32 %v748, %v839
        %v841 = vmul.f32 %v749, %v839
        %844 = vrot.lane.b32.xlu0 %v840, 126
        %v845 = vpop.permute.xlu0 %844
        %846 = vrot.lane.b32.xlu0 %v841, 126
        %v847 = vpop.permute.xlu0 %846
        %v850 = vadd.f32 %v808, %v845
        %v851 = vadd.f32 %v809, %v847
        %s852 = sld [smem:[#allocation4 + $0xd]]
        %v853 = vstv %s852
        %v854 = vmul.f32 %v748, %v853
        %v855 = vmul.f32 %v749, %v853
        %858 = vrot.lane.b32.xlu0 %v854, 125
        %v859 = vpop.permute.xlu0 %858
        %860 = vrot.lane.b32.xlu0 %v855, 125
        %v861 = vpop.permute.xlu0 %860
        %v864 = vadd.f32 %v822, %v859
        %v865 = vadd.f32 %v823, %v861
        %s866 = sld [smem:[#allocation4 + $0x26]]
        %v867 = vstv %s866
        %v868 = vmul.f32 %v748, %v867
        %v869 = vmul.f32 %v749, %v867
        %872 = vrot.lane.b32.xlu0 %v868, 125
        %v873 = vpop.permute.xlu0 %872
        %874 = vrot.lane.b32.xlu0 %v869, 125
        %v875 = vpop.permute.xlu0 %874
        %v878 = vadd.f32 %v836, %v873
        %v879 = vadd.f32 %v837, %v875
        %s880 = sld [smem:[#allocation4 + $0x3f]]
        %v881 = vstv %s880
        %v882 = vmul.f32 %v748, %v881
        %v883 = vmul.f32 %v749, %v881
        %886 = vrot.lane.b32.xlu0 %v882, 125
        %v887 = vpop.permute.xlu0 %886
        %888 = vrot.lane.b32.xlu0 %v883, 125
        %v889 = vpop.permute.xlu0 %888
        %v892 = vadd.f32 %v850, %v887
        %v893 = vadd.f32 %v851, %v889
        %s894 = sld [smem:[#allocation4 + $0xe]]
        %v895 = vstv %s894
        %v896 = vmul.f32 %v748, %v895
        %v897 = vmul.f32 %v749, %v895
        %900 = vrot.lane.b32.xlu0 %v896, 124
        %v901 = vpop.permute.xlu0 %900
        %902 = vrot.lane.b32.xlu0 %v897, 124
        %v903 = vpop.permute.xlu0 %902
        %v906 = vadd.f32 %v864, %v901
        %v907 = vadd.f32 %v865, %v903
        %s908 = sld [smem:[#allocation4 + $0x27]]
        %v909 = vstv %s908
        %v910 = vmul.f32 %v748, %v909
        %v911 = vmul.f32 %v749, %v909
        %914 = vrot.lane.b32.xlu0 %v910, 124
        %v915 = vpop.permute.xlu0 %914
        %916 = vrot.lane.b32.xlu0 %v911, 124
        %v917 = vpop.permute.xlu0 %916
        %v920 = vadd.f32 %v878, %v915
        %v921 = vadd.f32 %v879, %v917
        %s922 = sld [smem:[#allocation4 + $0x40]]
        %v923 = vstv %s922
        %v924 = vmul.f32 %v748, %v923
        %v925 = vmul.f32 %v749, %v923
        %928 = vrot.lane.b32.xlu0 %v924, 124
        %v929 = vpop.permute.xlu0 %928
        %930 = vrot.lane.b32.xlu0 %v925, 124
        %v931 = vpop.permute.xlu0 %930
        %v934 = vadd.f32 %v892, %v929
        %v935 = vadd.f32 %v893, %v931
        %v936 = vld [vmem:[#allocation2 + $0x3] sm:$0xff]
        %v937 = vld [vmem:[#allocation2 + $0xb] sm:$0xff]
        %s938 = sld [smem:[#allocation4 + $0xf]]
        %v939 = vstv %s938
        %v940 = vmul.f32 %v936, %v939
        %v941 = vmul.f32 %v937, %v939
        %v942 = vadd.f32 %v906, %v940
        %v943 = vadd.f32 %v907, %v941
        %s944 = sld [smem:[#allocation4 + $0x28]]
        %v945 = vstv %s944
        %v946 = vmul.f32 %v936, %v945
        %v947 = vmul.f32 %v937, %v945
        %v948 = vadd.f32 %v920, %v946
        %v949 = vadd.f32 %v921, %v947
        %s950 = sld [smem:[#allocation4 + $0x41]]
        %v951 = vstv %s950
        %v952 = vmul.f32 %v936, %v951
        %v953 = vmul.f32 %v937, %v951
        %v954 = vadd.f32 %v934, %v952
        %v955 = vadd.f32 %v935, %v953
        %s956 = sld [smem:[#allocation4 + $0x10]]
        %v957 = vstv %s956
        %v958 = vmul.f32 %v936, %v957
        %v959 = vmul.f32 %v937, %v957
        %962 = vrot.lane.b32.xlu0 %v958, 127
        %v963 = vpop.permute.xlu0 %962
        %964 = vrot.lane.b32.xlu0 %v959, 127
        %v965 = vpop.permute.xlu0 %964
        %v968 = vadd.f32 %v942, %v963
        %v969 = vadd.f32 %v943, %v965
        %s970 = sld [smem:[#allocation4 + $0x29]]
        %v971 = vstv %s970
        %v972 = vmul.f32 %v936, %v971
        %v973 = vmul.f32 %v937, %v971
        %976 = vrot.lane.b32.xlu0 %v972, 127
        %v977 = vpop.permute.xlu0 %976
        %978 = vrot.lane.b32.xlu0 %v973, 127
        %v979 = vpop.permute.xlu0 %978
        %v982 = vadd.f32 %v948, %v977
        %v983 = vadd.f32 %v949, %v979
        %s984 = sld [smem:[#allocation4 + $0x42]]
        %v985 = vstv %s984
        %v986 = vmul.f32 %v936, %v985
        %v987 = vmul.f32 %v937, %v985
        %990 = vrot.lane.b32.xlu0 %v986, 127
        %v991 = vpop.permute.xlu0 %990
        %992 = vrot.lane.b32.xlu0 %v987, 127
        %v993 = vpop.permute.xlu0 %992
        %v996 = vadd.f32 %v954, %v991
        %v997 = vadd.f32 %v955, %v993
        %s998 = sld [smem:[#allocation4 + $0x11]]
        %v999 = vstv %s998
        %v1000 = vmul.f32 %v936, %v999
        %v1001 = vmul.f32 %v937, %v999
        %1004 = vrot.lane.b32.xlu0 %v1000, 126
        %v1005 = vpop.permute.xlu0 %1004
        %1006 = vrot.lane.b32.xlu0 %v1001, 126
        %v1007 = vpop.permute.xlu0 %1006
        %v1010 = vadd.f32 %v968, %v1005
        %v1011 = vadd.f32 %v969, %v1007
        %s1012 = sld [smem:[#allocation4 + $0x2a]]
        %v1013 = vstv %s1012
        %v1014 = vmul.f32 %v936, %v1013
        %v1015 = vmul.f32 %v937, %v1013
        %1018 = vrot.lane.b32.xlu0 %v1014, 126
        %v1019 = vpop.permute.xlu0 %1018
        %1020 = vrot.lane.b32.xlu0 %v1015, 126
        %v1021 = vpop.permute.xlu0 %1020
        %v1024 = vadd.f32 %v982, %v1019
        %v1025 = vadd.f32 %v983, %v1021
        %s1026 = sld [smem:[#allocation4 + $0x43]]
        %v1027 = vstv %s1026
        %v1028 = vmul.f32 %v936, %v1027
        %v1029 = vmul.f32 %v937, %v1027
        %1032 = vrot.lane.b32.xlu0 %v1028, 126
        %v1033 = vpop.permute.xlu0 %1032
        %1034 = vrot.lane.b32.xlu0 %v1029, 126
        %v1035 = vpop.permute.xlu0 %1034
        %v1038 = vadd.f32 %v996, %v1033
        %v1039 = vadd.f32 %v997, %v1035
        %s1040 = sld [smem:[#allocation4 + $0x12]]
        %v1041 = vstv %s1040
        %v1042 = vmul.f32 %v936, %v1041
        %v1043 = vmul.f32 %v937, %v1041
        %1046 = vrot.lane.b32.xlu0 %v1042, 125
        %v1047 = vpop.permute.xlu0 %1046
        %1048 = vrot.lane.b32.xlu0 %v1043, 125
        %v1049 = vpop.permute.xlu0 %1048
        %v1052 = vadd.f32 %v1010, %v1047
        %v1053 = vadd.f32 %v1011, %v1049
        %s1054 = sld [smem:[#allocation4 + $0x2b]]
        %v1055 = vstv %s1054
        %v1056 = vmul.f32 %v936, %v1055
        %v1057 = vmul.f32 %v937, %v1055
        %1060 = vrot.lane.b32.xlu0 %v1056, 125
        %v1061 = vpop.permute.xlu0 %1060
        %1062 = vrot.lane.b32.xlu0 %v1057, 125
        %v1063 = vpop.permute.xlu0 %1062
        %v1066 = vadd.f32 %v1024, %v1061
        %v1067 = vadd.f32 %v1025, %v1063
        %s1068 = sld [smem:[#allocation4 + $0x44]]
        %v1069 = vstv %s1068
        %v1070 = vmul.f32 %v936, %v1069
        %v1071 = vmul.f32 %v937, %v1069
        %1074 = vrot.lane.b32.xlu0 %v1070, 125
        %v1075 = vpop.permute.xlu0 %1074
        %1076 = vrot.lane.b32.xlu0 %v1071, 125
        %v1077 = vpop.permute.xlu0 %1076
        %v1080 = vadd.f32 %v1038, %v1075
        %v1081 = vadd.f32 %v1039, %v1077
        %s1082 = sld [smem:[#allocation4 + $0x13]]
        %v1083 = vstv %s1082
        %v1084 = vmul.f32 %v936, %v1083
        %v1085 = vmul.f32 %v937, %v1083
        %1088 = vrot.lane.b32.xlu0 %v1084, 124
        %v1089 = vpop.permute.xlu0 %1088
        %1090 = vrot.lane.b32.xlu0 %v1085, 124
        %v1091 = vpop.permute.xlu0 %1090
        %v1094 = vadd.f32 %v1052, %v1089
        %v1095 = vadd.f32 %v1053, %v1091
        %s1096 = sld [smem:[#allocation4 + $0x2c]]
        %v1097 = vstv %s1096
        %v1098 = vmul.f32 %v936, %v1097
        %v1099 = vmul.f32 %v937, %v1097
        %1102 = vrot.lane.b32.xlu0 %v1098, 124
        %v1103 = vpop.permute.xlu0 %1102
        %1104 = vrot.lane.b32.xlu0 %v1099, 124
        %v1105 = vpop.permute.xlu0 %1104
        %v1108 = vadd.f32 %v1066, %v1103
        %v1109 = vadd.f32 %v1067, %v1105
        %s1110 = sld [smem:[#allocation4 + $0x45]]
        %v1111 = vstv %s1110
        %v1112 = vmul.f32 %v936, %v1111
        %v1113 = vmul.f32 %v937, %v1111
        %1116 = vrot.lane.b32.xlu0 %v1112, 124
        %v1117 = vpop.permute.xlu0 %1116
        %1118 = vrot.lane.b32.xlu0 %v1113, 124
        %v1119 = vpop.permute.xlu0 %1118
        %v1122 = vadd.f32 %v1080, %v1117
        %v1123 = vadd.f32 %v1081, %v1119
        %v1124 = vld [vmem:[#allocation2 + $0x4] sm:$0xff]
        %v1125 = vld [vmem:[#allocation2 + $0xc] sm:$0xff]
        %s1126 = sld [smem:[#allocation4 + $0x14]]
        %v1127 = vstv %s1126
        %v1128 = vmul.f32 %v1124, %v1127
        %v1129 = vmul.f32 %v1125, %v1127
        %v1130 = vadd.f32 %v1094, %v1128
        %v1131 = vadd.f32 %v1095, %v1129
        %s1132 = sld [smem:[#allocation4 + $0x2d]]
        %v1133 = vstv %s1132
        %v1134 = vmul.f32 %v1124, %v1133
        %v1135 = vmul.f32 %v1125, %v1133
        %v1136 = vadd.f32 %v1108, %v1134
        %v1137 = vadd.f32 %v1109, %v1135
        %s1138 = sld [smem:[#allocation4 + $0x46]]
        %v1139 = vstv %s1138
        %v1140 = vmul.f32 %v1124, %v1139
        %v1141 = vmul.f32 %v1125, %v1139
        %v1142 = vadd.f32 %v1122, %v1140
        %v1143 = vadd.f32 %v1123, %v1141
        %s1144 = sld [smem:[#allocation4 + $0x15]]
        %v1145 = vstv %s1144
        %v1146 = vmul.f32 %v1124, %v1145
        %v1147 = vmul.f32 %v1125, %v1145
        %1150 = vrot.lane.b32.xlu0 %v1146, 127
        %v1151 = vpop.permute.xlu0 %1150
        %1152 = vrot.lane.b32.xlu0 %v1147, 127
        %v1153 = vpop.permute.xlu0 %1152
        %v1156 = vadd.f32 %v1130, %v1151
        %v1157 = vadd.f32 %v1131, %v1153
        %s1158 = sld [smem:[#allocation4 + $0x2e]]
        %v1159 = vstv %s1158
        %v1160 = vmul.f32 %v1124, %v1159
        %v1161 = vmul.f32 %v1125, %v1159
        %1164 = vrot.lane.b32.xlu0 %v1160, 127
        %v1165 = vpop.permute.xlu0 %1164
        %1166 = vrot.lane.b32.xlu0 %v1161, 127
        %v1167 = vpop.permute.xlu0 %1166
        %v1170 = vadd.f32 %v1136, %v1165
        %v1171 = vadd.f32 %v1137, %v1167
        %s1172 = sld [smem:[#allocation4 + $0x47]]
        %v1173 = vstv %s1172
        %v1174 = vmul.f32 %v1124, %v1173
        %v1175 = vmul.f32 %v1125, %v1173
        %1178 = vrot.lane.b32.xlu0 %v1174, 127
        %v1179 = vpop.permute.xlu0 %1178
        %1180 = vrot.lane.b32.xlu0 %v1175, 127
        %v1181 = vpop.permute.xlu0 %1180
        %v1184 = vadd.f32 %v1142, %v1179
        %v1185 = vadd.f32 %v1143, %v1181
        %s1186 = sld [smem:[#allocation4 + $0x16]]
        %v1187 = vstv %s1186
        %v1188 = vmul.f32 %v1124, %v1187
        %v1189 = vmul.f32 %v1125, %v1187
        %1192 = vrot.lane.b32.xlu0 %v1188, 126
        %v1193 = vpop.permute.xlu0 %1192
        %1194 = vrot.lane.b32.xlu0 %v1189, 126
        %v1195 = vpop.permute.xlu0 %1194
        %v1198 = vadd.f32 %v1156, %v1193
        %v1199 = vadd.f32 %v1157, %v1195
        %s1200 = sld [smem:[#allocation4 + $0x2f]]
        %v1201 = vstv %s1200
        %v1202 = vmul.f32 %v1124, %v1201
        %v1203 = vmul.f32 %v1125, %v1201
        %1206 = vrot.lane.b32.xlu0 %v1202, 126
        %v1207 = vpop.permute.xlu0 %1206
        %1208 = vrot.lane.b32.xlu0 %v1203, 126
        %v1209 = vpop.permute.xlu0 %1208
        %v1212 = vadd.f32 %v1170, %v1207
        %v1213 = vadd.f32 %v1171, %v1209
        %s1214 = sld [smem:[#allocation4 + $0x48]]
        %v1215 = vstv %s1214
        %v1216 = vmul.f32 %v1124, %v1215
        %v1217 = vmul.f32 %v1125, %v1215
        %1220 = vrot.lane.b32.xlu0 %v1216, 126
        %v1221 = vpop.permute.xlu0 %1220
        %1222 = vrot.lane.b32.xlu0 %v1217, 126
        %v1223 = vpop.permute.xlu0 %1222
        %v1226 = vadd.f32 %v1184, %v1221
        %v1227 = vadd.f32 %v1185, %v1223
        %s1228 = sld [smem:[#allocation4 + $0x17]]
        %v1229 = vstv %s1228
        %v1230 = vmul.f32 %v1124, %v1229
        %v1231 = vmul.f32 %v1125, %v1229
        %1234 = vrot.lane.b32.xlu0 %v1230, 125
        %v1235 = vpop.permute.xlu0 %1234
        %1236 = vrot.lane.b32.xlu0 %v1231, 125
        %v1237 = vpop.permute.xlu0 %1236
        %v1240 = vadd.f32 %v1198, %v1235
        %v1241 = vadd.f32 %v1199, %v1237
        %s1242 = sld [smem:[#allocation4 + $0x30]]
        %v1243 = vstv %s1242
        %v1244 = vmul.f32 %v1124, %v1243
        %v1245 = vmul.f32 %v1125, %v1243
        %1248 = vrot.lane.b32.xlu0 %v1244, 125
        %v1249 = vpop.permute.xlu0 %1248
        %1250 = vrot.lane.b32.xlu0 %v1245, 125
        %v1251 = vpop.permute.xlu0 %1250
        %v1254 = vadd.f32 %v1212, %v1249
        %v1255 = vadd.f32 %v1213, %v1251
        %s1256 = sld [smem:[#allocation4 + $0x49]]
        %v1257 = vstv %s1256
        %v1258 = vmul.f32 %v1124, %v1257
        %v1259 = vmul.f32 %v1125, %v1257
        %1262 = vrot.lane.b32.xlu0 %v1258, 125
        %v1263 = vpop.permute.xlu0 %1262
        %1264 = vrot.lane.b32.xlu0 %v1259, 125
        %v1265 = vpop.permute.xlu0 %1264
        %v1268 = vadd.f32 %v1226, %v1263
        %v1269 = vadd.f32 %v1227, %v1265
        %s1270 = sld [smem:[#allocation4 + $0x18]]
        %v1271 = vstv %s1270
        %v1272 = vmul.f32 %v1124, %v1271
        %v1273 = vmul.f32 %v1125, %v1271
        %1276 = vrot.lane.b32.xlu0 %v1272, 124
        %v1277 = vpop.permute.xlu0 %1276
        %1278 = vrot.lane.b32.xlu0 %v1273, 124
        %v1279 = vpop.permute.xlu0 %1278
        %v1282 = vadd.f32 %v1240, %v1277
        %v1283 = vadd.f32 %v1241, %v1279
        %s1284 = sld [smem:[#allocation4 + $0x31]]
        %v1285 = vstv %s1284
        %v1286 = vmul.f32 %v1124, %v1285
        %v1287 = vmul.f32 %v1125, %v1285
        %1290 = vrot.lane.b32.xlu0 %v1286, 124
        %v1291 = vpop.permute.xlu0 %1290
        %1292 = vrot.lane.b32.xlu0 %v1287, 124
        %v1293 = vpop.permute.xlu0 %1292
        %v1296 = vadd.f32 %v1254, %v1291
        %v1297 = vadd.f32 %v1255, %v1293
        %s1298 = sld [smem:[#allocation4 + $0x4a]]
        %v1299 = vstv %s1298
        %v1300 = vmul.f32 %v1124, %v1299
        %v1301 = vmul.f32 %v1125, %v1299
        %1304 = vrot.lane.b32.xlu0 %v1300, 124
        %v1305 = vpop.permute.xlu0 %1304
        %1306 = vrot.lane.b32.xlu0 %v1301, 124
        %v1307 = vpop.permute.xlu0 %1306
        %v1310 = vadd.f32 %v1268, %v1305
        %v1311 = vadd.f32 %v1269, %v1307
        %s1312 = sld [smem:[#allocation7]]
        %v1313 = vstv %s1312
        %v1314 = vadd.f32 %v1282, %v1313
        %v1315 = vadd.f32 %v1283, %v1313
        %s1316 = sld [smem:[#allocation7 + $0x1]]
        %v1317 = vstv %s1316
        %v1318 = vadd.f32 %v1296, %v1317
        %v1319 = vadd.f32 %v1297, %v1317
        %s1320 = sld [smem:[#allocation7 + $0x2]]
        %v1321 = vstv %s1320
        %v1322 = vadd.f32 %v1310, %v1321
        %v1323 = vadd.f32 %v1311, %v1321
        %1324 = vst.msk [vmem:[#allocation3] sm:$0xff] %vm356, 0.0
        %1325 = vst.msk [vmem:[#allocation3 + $0x8] sm:$0xff] %vm356, 0.0
        %1326 = vst.msk [vmem:[#allocation3 + $0x10] sm:$0xf] %vm359, 0.0
        %1327 = vst.msk [vmem:[#allocation3 + $0x18] sm:$0xff] %vm356, 0.0
        %1328 = vst.msk [vmem:[#allocation3 + $0x20] sm:$0xff] %vm356, 0.0
        %1329 = vst.msk [vmem:[#allocation3 + $0x28] sm:$0xf] %vm359, 0.0
        %1330 = vst.msk [vmem:[#allocation3 + $0x30] sm:$0xff] %vm356, 0.0
        %1331 = vst.msk [vmem:[#allocation3 + $0x38] sm:$0xff] %vm356, 0.0
        %1332 = vst.msk [vmem:[#allocation3 + $0x40] sm:$0xf] %vm359, 0.0
        %1335 = vrot.lane.b32.xlu0 %v1314, 2
        %v1336 = vpop.permute.xlu0 %1335
        %1337 = vrot.lane.b32.xlu0 %v1315, 2
        %v1338 = vpop.permute.xlu0 %1337
        %1341 = vst.msk [vmem:[#allocation3 + $0x2] sm:$0xff] %vm375, %v1336
        %1342 = vst.msk [vmem:[#allocation3 + $0xa] sm:$0xff] %vm375, %v1338
        %1345 = vrot.lane.b32.xlu0 %v1318, 2
        %v1346 = vpop.permute.xlu0 %1345
        %1347 = vrot.lane.b32.xlu0 %v1319, 2
        %v1348 = vpop.permute.xlu0 %1347
        %s1351 = scalar_lea.vmem [#allocation3], 24
        %1352 = vst.msk [vmem:[%s1351 + $0x2] sm:$0xff] %vm375, %v1346
        %1353 = vst.msk [vmem:[%s1351 + $0xa] sm:$0xff] %vm375, %v1348
        %1356 = vrot.lane.b32.xlu0 %v1322, 2
        %v1357 = vpop.permute.xlu0 %1356
        %1358 = vrot.lane.b32.xlu0 %v1323, 2
        %v1359 = vpop.permute.xlu0 %1358
        %s1362 = scalar_lea.vmem [#allocation3], 48
        %1363 = vst.msk [vmem:[%s1362 + $0x2] sm:$0xff] %vm375, %v1357
        %1364 = vst.msk [vmem:[%s1362 + $0xa] sm:$0xff] %vm375, %v1359
        %v1365 = vld [vmem:[#allocation3] sm:$0xff]
        %v1366 = vld [vmem:[#allocation3 + $0x8] sm:$0xff]
        %s1367 = sld [smem:[#allocation9]]
        %v1368 = vstv %s1367
        %v1369 = vmul.f32 %v1365, %v1368
        %v1370 = vmul.f32 %v1366, %v1368
        %s1371 = sld [smem:[#allocation9 + $0x4b]]
        %v1372 = vstv %s1371
        %v1373 = vmul.f32 %v1365, %v1372
        %v1374 = vmul.f32 %v1366, %v1372
        %s1375 = sld [smem:[#allocation9 + $0x96]]
        %v1376 = vstv %s1375
        %v1377 = vmul.f32 %v1365, %v1376
        %v1378 = vmul.f32 %v1366, %v1376
        %s1379 = sld [smem:[#allocation9 + $0x1]]
        %v1380 = vstv %s1379
        %v1381 = vmul.f32 %v1365, %v1380
        %v1382 = vmul.f32 %v1366, %v1380
        %1385 = vrot.lane.b32.xlu0 %v1381, 127
        %v1386 = vpop.permute.xlu0 %1385
        %1387 = vrot.lane.b32.xlu0 %v1382, 127
        %v1388 = vpop.permute.xlu0 %1387
        %v1391 = vadd.f32 %v1369, %v1386
        %v1392 = vadd.f32 %v1370, %v1388
        %s1393 = sld [smem:[#allocation9 + $0x4c]]
        %v1394 = vstv %s1393
        %v1395 = vmul.f32 %v1365, %v1394
        %v1396 = vmul.f32 %v1366, %v1394
        %1399 = vrot.lane.b32.xlu0 %v1395, 127
        %v1400 = vpop.permute.xlu0 %1399
        %1401 = vrot.lane.b32.xlu0 %v1396, 127
        %v1402 = vpop.permute.xlu0 %1401
        %v1405 = vadd.f32 %v1373, %v1400
        %v1406 = vadd.f32 %v1374, %v1402
        %s1407 = sld [smem:[#allocation9 + $0x97]]
        %v1408 = vstv %s1407
        %v1409 = vmul.f32 %v1365, %v1408
        %v1410 = vmul.f32 %v1366, %v1408
        %1413 = vrot.lane.b32.xlu0 %v1409, 127
        %v1414 = vpop.permute.xlu0 %1413
        %1415 = vrot.lane.b32.xlu0 %v1410, 127
        %v1416 = vpop.permute.xlu0 %1415
        %v1419 = vadd.f32 %v1377, %v1414
        %v1420 = vadd.f32 %v1378, %v1416
        %s1421 = sld [smem:[#allocation9 + $0x2]]
        %v1422 = vstv %s1421
        %v1423 = vmul.f32 %v1365, %v1422
        %v1424 = vmul.f32 %v1366, %v1422
        %1427 = vrot.lane.b32.xlu0 %v1423, 126
        %v1428 = vpop.permute.xlu0 %1427
        %1429 = vrot.lane.b32.xlu0 %v1424, 126
        %v1430 = vpop.permute.xlu0 %1429
        %v1433 = vadd.f32 %v1391, %v1428
        %v1434 = vadd.f32 %v1392, %v1430
        %s1435 = sld [smem:[#allocation9 + $0x4d]]
        %v1436 = vstv %s1435
        %v1437 = vmul.f32 %v1365, %v1436
        %v1438 = vmul.f32 %v1366, %v1436
        %1441 = vrot.lane.b32.xlu0 %v1437, 126
        %v1442 = vpop.permute.xlu0 %1441
        %1443 = vrot.lane.b32.xlu0 %v1438, 126
        %v1444 = vpop.permute.xlu0 %1443
        %v1447 = vadd.f32 %v1405, %v1442
        %v1448 = vadd.f32 %v1406, %v1444
        %s1449 = sld [smem:[#allocation9 + $0x98]]
        %v1450 = vstv %s1449
        %v1451 = vmul.f32 %v1365, %v1450
        %v1452 = vmul.f32 %v1366, %v1450
        %1455 = vrot.lane.b32.xlu0 %v1451, 126
        %v1456 = vpop.permute.xlu0 %1455
        %1457 = vrot.lane.b32.xlu0 %v1452, 126
        %v1458 = vpop.permute.xlu0 %1457
        %v1461 = vadd.f32 %v1419, %v1456
        %v1462 = vadd.f32 %v1420, %v1458
        %s1463 = sld [smem:[#allocation9 + $0x3]]
        %v1464 = vstv %s1463
        %v1465 = vmul.f32 %v1365, %v1464
        %v1466 = vmul.f32 %v1366, %v1464
        %1469 = vrot.lane.b32.xlu0 %v1465, 125
        %v1470 = vpop.permute.xlu0 %1469
        %1471 = vrot.lane.b32.xlu0 %v1466, 125
        %v1472 = vpop.permute.xlu0 %1471
        %v1475 = vadd.f32 %v1433, %v1470
        %v1476 = vadd.f32 %v1434, %v1472
        %s1477 = sld [smem:[#allocation9 + $0x4e]]
        %v1478 = vstv %s1477
        %v1479 = vmul.f32 %v1365, %v1478
        %v1480 = vmul.f32 %v1366, %v1478
        %1483 = vrot.lane.b32.xlu0 %v1479, 125
        %v1484 = vpop.permute.xlu0 %1483
        %1485 = vrot.lane.b32.xlu0 %v1480, 125
        %v1486 = vpop.permute.xlu0 %1485
        %v1489 = vadd.f32 %v1447, %v1484
        %v1490 = vadd.f32 %v1448, %v1486
        %s1491 = sld [smem:[#allocation9 + $0x99]]
        %v1492 = vstv %s1491
        %v1493 = vmul.f32 %v1365, %v1492
        %v1494 = vmul.f32 %v1366, %v1492
        %1497 = vrot.lane.b32.xlu0 %v1493, 125
        %v1498 = vpop.permute.xlu0 %1497
        %1499 = vrot.lane.b32.xlu0 %v1494, 125
        %v1500 = vpop.permute.xlu0 %1499
        %v1503 = vadd.f32 %v1461, %v1498
        %v1504 = vadd.f32 %v1462, %v1500
        %s1505 = sld [smem:[#allocation9 + $0x4]]
        %v1506 = vstv %s1505
        %v1507 = vmul.f32 %v1365, %v1506
        %v1508 = vmul.f32 %v1366, %v1506
        %1511 = vrot.lane.b32.xlu0 %v1507, 124
        %v1512 = vpop.permute.xlu0 %1511
        %1513 = vrot.lane.b32.xlu0 %v1508, 124
        %v1514 = vpop.permute.xlu0 %1513
        %v1517 = vadd.f32 %v1475, %v1512
        %v1518 = vadd.f32 %v1476, %v1514
        %s1519 = sld [smem:[#allocation9 + $0x4f]]
        %v1520 = vstv %s1519
        %v1521 = vmul.f32 %v1365, %v1520
        %v1522 = vmul.f32 %v1366, %v1520
        %1525 = vrot.lane.b32.xlu0 %v1521, 124
        %v1526 = vpop.permute.xlu0 %1525
        %1527 = vrot.lane.b32.xlu0 %v1522, 124
        %v1528 = vpop.permute.xlu0 %1527
        %v1531 = vadd.f32 %v1489, %v1526
        %v1532 = vadd.f32 %v1490, %v1528
        %s1533 = sld [smem:[#allocation9 + $0x9a]]
        %v1534 = vstv %s1533
        %v1535 = vmul.f32 %v1365, %v1534
        %v1536 = vmul.f32 %v1366, %v1534
        %1539 = vrot.lane.b32.xlu0 %v1535, 124
        %v1540 = vpop.permute.xlu0 %1539
        %1541 = vrot.lane.b32.xlu0 %v1536, 124
        %v1542 = vpop.permute.xlu0 %1541
        %v1545 = vadd.f32 %v1503, %v1540
        %v1546 = vadd.f32 %v1504, %v1542
        %v1547 = vld [vmem:[#allocation3 + $0x1] sm:$0xff]
        %v1548 = vld [vmem:[#allocation3 + $0x9] sm:$0xff]
        %s1549 = sld [smem:[#allocation9 + $0x5]]
        %v1550 = vstv %s1549
        %v1551 = vmul.f32 %v1547, %v1550
        %v1552 = vmul.f32 %v1548, %v1550
        %v1553 = vadd.f32 %v1517, %v1551
        %v1554 = vadd.f32 %v1518, %v1552
        %s1555 = sld [smem:[#allocation9 + $0x50]]
        %v1556 = vstv %s1555
        %v1557 = vmul.f32 %v1547, %v1556
        %v1558 = vmul.f32 %v1548, %v1556
        %v1559 = vadd.f32 %v1531, %v1557
        %v1560 = vadd.f32 %v1532, %v1558
        %s1561 = sld [smem:[#allocation9 + $0x9b]]
        %v1562 = vstv %s1561
        %v1563 = vmul.f32 %v1547, %v1562
        %v1564 = vmul.f32 %v1548, %v1562
        %v1565 = vadd.f32 %v1545, %v1563
        %v1566 = vadd.f32 %v1546, %v1564
        %s1567 = sld [smem:[#allocation9 + $0x6]]
        %v1568 = vstv %s1567
        %v1569 = vmul.f32 %v1547, %v1568
        %v1570 = vmul.f32 %v1548, %v1568
        %1573 = vrot.lane.b32.xlu0 %v1569, 127
        %v1574 = vpop.permute.xlu0 %1573
        %1575 = vrot.lane.b32.xlu0 %v1570, 127
        %v1576 = vpop.permute.xlu0 %1575
        %v1579 = vadd.f32 %v1553, %v1574
        %v1580 = vadd.f32 %v1554, %v1576
        %s1581 = sld [smem:[#allocation9 + $0x51]]
        %v1582 = vstv %s1581
        %v1583 = vmul.f32 %v1547, %v1582
        %v1584 = vmul.f32 %v1548, %v1582
        %1587 = vrot.lane.b32.xlu0 %v1583, 127
        %v1588 = vpop.permute.xlu0 %1587
        %1589 = vrot.lane.b32.xlu0 %v1584, 127
        %v1590 = vpop.permute.xlu0 %1589
        %v1593 = vadd.f32 %v1559, %v1588
        %v1594 = vadd.f32 %v1560, %v1590
        %s1595 = sld [smem:[#allocation9 + $0x9c]]
        %v1596 = vstv %s1595
        %v1597 = vmul.f32 %v1547, %v1596
        %v1598 = vmul.f32 %v1548, %v1596
        %1601 = vrot.lane.b32.xlu0 %v1597, 127
        %v1602 = vpop.permute.xlu0 %1601
        %1603 = vrot.lane.b32.xlu0 %v1598, 127
        %v1604 = vpop.permute.xlu0 %1603
        %v1607 = vadd.f32 %v1565, %v1602
        %v1608 = vadd.f32 %v1566, %v1604
        %s1609 = sld [smem:[#allocation9 + $0x7]]
        %v1610 = vstv %s1609
        %v1611 = vmul.f32 %v1547, %v1610
        %v1612 = vmul.f32 %v1548, %v1610
        %1615 = vrot.lane.b32.xlu0 %v1611, 126
        %v1616 = vpop.permute.xlu0 %1615
        %1617 = vrot.lane.b32.xlu0 %v1612, 126
        %v1618 = vpop.permute.xlu0 %1617
        %v1621 = vadd.f32 %v1579, %v1616
        %v1622 = vadd.f32 %v1580, %v1618
        %s1623 = sld [smem:[#allocation9 + $0x52]]
        %v1624 = vstv %s1623
        %v1625 = vmul.f32 %v1547, %v1624
        %v1626 = vmul.f32 %v1548, %v1624
        %1629 = vrot.lane.b32.xlu0 %v1625, 126
        %v1630 = vpop.permute.xlu0 %1629
        %1631 = vrot.lane.b32.xlu0 %v1626, 126
        %v1632 = vpop.permute.xlu0 %1631
        %v1635 = vadd.f32 %v1593, %v1630
        %v1636 = vadd.f32 %v1594, %v1632
        %s1637 = sld [smem:[#allocation9 + $0x9d]]
        %v1638 = vstv %s1637
        %v1639 = vmul.f32 %v1547, %v1638
        %v1640 = vmul.f32 %v1548, %v1638
        %1643 = vrot.lane.b32.xlu0 %v1639, 126
        %v1644 = vpop.permute.xlu0 %1643
        %1645 = vrot.lane.b32.xlu0 %v1640, 126
        %v1646 = vpop.permute.xlu0 %1645
        %v1649 = vadd.f32 %v1607, %v1644
        %v1650 = vadd.f32 %v1608, %v1646
        %s1651 = sld [smem:[#allocation9 + $0x8]]
        %v1652 = vstv %s1651
        %v1653 = vmul.f32 %v1547, %v1652
        %v1654 = vmul.f32 %v1548, %v1652
        %1657 = vrot.lane.b32.xlu0 %v1653, 125
        %v1658 = vpop.permute.xlu0 %1657
        %1659 = vrot.lane.b32.xlu0 %v1654, 125
        %v1660 = vpop.permute.xlu0 %1659
        %v1663 = vadd.f32 %v1621, %v1658
        %v1664 = vadd.f32 %v1622, %v1660
        %s1665 = sld [smem:[#allocation9 + $0x53]]
        %v1666 = vstv %s1665
        %v1667 = vmul.f32 %v1547, %v1666
        %v1668 = vmul.f32 %v1548, %v1666
        %1671 = vrot.lane.b32.xlu0 %v1667, 125
        %v1672 = vpop.permute.xlu0 %1671
        %1673 = vrot.lane.b32.xlu0 %v1668, 125
        %v1674 = vpop.permute.xlu0 %1673
        %v1677 = vadd.f32 %v1635, %v1672
        %v1678 = vadd.f32 %v1636, %v1674
        %s1679 = sld [smem:[#allocation9 + $0x9e]]
        %v1680 = vstv %s1679
        %v1681 = vmul.f32 %v1547, %v1680
        %v1682 = vmul.f32 %v1548, %v1680
        %1685 = vrot.lane.b32.xlu0 %v1681, 125
        %v1686 = vpop.permute.xlu0 %1685
        %1687 = vrot.lane.b32.xlu0 %v1682, 125
        %v1688 = vpop.permute.xlu0 %1687
        %v1691 = vadd.f32 %v1649, %v1686
        %v1692 = vadd.f32 %v1650, %v1688
        %s1693 = sld [smem:[#allocation9 + $0x9]]
        %v1694 = vstv %s1693
        %v1695 = vmul.f32 %v1547, %v1694
        %v1696 = vmul.f32 %v1548, %v1694
        %1699 = vrot.lane.b32.xlu0 %v1695, 124
        %v1700 = vpop.permute.xlu0 %1699
        %1701 = vrot.lane.b32.xlu0 %v1696, 124
        %v1702 = vpop.permute.xlu0 %1701
        %v1705 = vadd.f32 %v1663, %v1700
        %v1706 = vadd.f32 %v1664, %v1702
        %s1707 = sld [smem:[#allocation9 + $0x54]]
        %v1708 = vstv %s1707
        %v1709 = vmul.f32 %v1547, %v1708
        %v1710 = vmul.f32 %v1548, %v1708
        %1713 = vrot.lane.b32.xlu0 %v1709, 124
        %v1714 = vpop.permute.xlu0 %1713
        %1715 = vrot.lane.b32.xlu0 %v1710, 124
        %v1716 = vpop.permute.xlu0 %1715
        %v1719 = vadd.f32 %v1677, %v1714
        %v1720 = vadd.f32 %v1678, %v1716
        %s1721 = sld [smem:[#allocation9 + $0x9f]]
        %v1722 = vstv %s1721
        %v1723 = vmul.f32 %v1547, %v1722
        %v1724 = vmul.f32 %v1548, %v1722
        %1727 = vrot.lane.b32.xlu0 %v1723, 124
        %v1728 = vpop.permute.xlu0 %1727
        %1729 = vrot.lane.b32.xlu0 %v1724, 124
        %v1730 = vpop.permute.xlu0 %1729
        %v1733 = vadd.f32 %v1691, %v1728
        %v1734 = vadd.f32 %v1692, %v1730
        %v1735 = vld [vmem:[#allocation3 + $0x2] sm:$0xff]
        %v1736 = vld [vmem:[#allocation3 + $0xa] sm:$0xff]
        %s1737 = sld [smem:[#allocation9 + $0xa]]
        %v1738 = vstv %s1737
        %v1739 = vmul.f32 %v1735, %v1738
        %v1740 = vmul.f32 %v1736, %v1738
        %v1741 = vadd.f32 %v1705, %v1739
        %v1742 = vadd.f32 %v1706, %v1740
        %s1743 = sld [smem:[#allocation9 + $0x55]]
        %v1744 = vstv %s1743
        %v1745 = vmul.f32 %v1735, %v1744
        %v1746 = vmul.f32 %v1736, %v1744
        %v1747 = vadd.f32 %v1719, %v1745
        %v1748 = vadd.f32 %v1720, %v1746
        %s1749 = sld [smem:[#allocation9 + $0xa0]]
        %v1750 = vstv %s1749
        %v1751 = vmul.f32 %v1735, %v1750
        %v1752 = vmul.f32 %v1736, %v1750
        %v1753 = vadd.f32 %v1733, %v1751
        %v1754 = vadd.f32 %v1734, %v1752
        %s1755 = sld [smem:[#allocation9 + $0xb]]
        %v1756 = vstv %s1755
        %v1757 = vmul.f32 %v1735, %v1756
        %v1758 = vmul.f32 %v1736, %v1756
        %1761 = vrot.lane.b32.xlu0 %v1757, 127
        %v1762 = vpop.permute.xlu0 %1761
        %1763 = vrot.lane.b32.xlu0 %v1758, 127
        %v1764 = vpop.permute.xlu0 %1763
        %v1767 = vadd.f32 %v1741, %v1762
        %v1768 = vadd.f32 %v1742, %v1764
        %s1769 = sld [smem:[#allocation9 + $0x56]]
        %v1770 = vstv %s1769
        %v1771 = vmul.f32 %v1735, %v1770
        %v1772 = vmul.f32 %v1736, %v1770
        %1775 = vrot.lane.b32.xlu0 %v1771, 127
        %v1776 = vpop.permute.xlu0 %1775
        %1777 = vrot.lane.b32.xlu0 %v1772, 127
        %v1778 = vpop.permute.xlu0 %1777
        %v1781 = vadd.f32 %v1747, %v1776
        %v1782 = vadd.f32 %v1748, %v1778
        %s1783 = sld [smem:[#allocation9 + $0xa1]]
        %v1784 = vstv %s1783
        %v1785 = vmul.f32 %v1735, %v1784
        %v1786 = vmul.f32 %v1736, %v1784
        %1789 = vrot.lane.b32.xlu0 %v1785, 127
        %v1790 = vpop.permute.xlu0 %1789
        %1791 = vrot.lane.b32.xlu0 %v1786, 127
        %v1792 = vpop.permute.xlu0 %1791
        %v1795 = vadd.f32 %v1753, %v1790
        %v1796 = vadd.f32 %v1754, %v1792
        %s1797 = sld [smem:[#allocation9 + $0xc]]
        %v1798 = vstv %s1797
        %v1799 = vmul.f32 %v1735, %v1798
        %v1800 = vmul.f32 %v1736, %v1798
        %1803 = vrot.lane.b32.xlu0 %v1799, 126
        %v1804 = vpop.permute.xlu0 %1803
        %1805 = vrot.lane.b32.xlu0 %v1800, 126
        %v1806 = vpop.permute.xlu0 %1805
        %v1809 = vadd.f32 %v1767, %v1804
        %v1810 = vadd.f32 %v1768, %v1806
        %s1811 = sld [smem:[#allocation9 + $0x57]]
        %v1812 = vstv %s1811
        %v1813 = vmul.f32 %v1735, %v1812
        %v1814 = vmul.f32 %v1736, %v1812
        %1817 = vrot.lane.b32.xlu0 %v1813, 126
        %v1818 = vpop.permute.xlu0 %1817
        %1819 = vrot.lane.b32.xlu0 %v1814, 126
        %v1820 = vpop.permute.xlu0 %1819
        %v1823 = vadd.f32 %v1781, %v1818
        %v1824 = vadd.f32 %v1782, %v1820
        %s1825 = sld [smem:[#allocation9 + $0xa2]]
        %v1826 = vstv %s1825
        %v1827 = vmul.f32 %v1735, %v1826
        %v1828 = vmul.f32 %v1736, %v1826
        %1831 = vrot.lane.b32.xlu0 %v1827, 126
        %v1832 = vpop.permute.xlu0 %1831
        %1833 = vrot.lane.b32.xlu0 %v1828, 126
        %v1834 = vpop.permute.xlu0 %1833
        %v1837 = vadd.f32 %v1795, %v1832
        %v1838 = vadd.f32 %v1796, %v1834
        %s1839 = sld [smem:[#allocation9 + $0xd]]
        %v1840 = vstv %s1839
        %v1841 = vmul.f32 %v1735, %v1840
        %v1842 = vmul.f32 %v1736, %v1840
        %1845 = vrot.lane.b32.xlu0 %v1841, 125
        %v1846 = vpop.permute.xlu0 %1845
        %1847 = vrot.lane.b32.xlu0 %v1842, 125
        %v1848 = vpop.permute.xlu0 %1847
        %v1851 = vadd.f32 %v1809, %v1846
        %v1852 = vadd.f32 %v1810, %v1848
        %s1853 = sld [smem:[#allocation9 + $0x58]]
        %v1854 = vstv %s1853
        %v1855 = vmul.f32 %v1735, %v1854
        %v1856 = vmul.f32 %v1736, %v1854
        %1859 = vrot.lane.b32.xlu0 %v1855, 125
        %v1860 = vpop.permute.xlu0 %1859
        %1861 = vrot.lane.b32.xlu0 %v1856, 125
        %v1862 = vpop.permute.xlu0 %1861
        %v1865 = vadd.f32 %v1823, %v1860
        %v1866 = vadd.f32 %v1824, %v1862
        %s1867 = sld [smem:[#allocation9 + $0xa3]]
        %v1868 = vstv %s1867
        %v1869 = vmul.f32 %v1735, %v1868
        %v1870 = vmul.f32 %v1736, %v1868
        %1873 = vrot.lane.b32.xlu0 %v1869, 125
        %v1874 = vpop.permute.xlu0 %1873
        %1875 = vrot.lane.b32.xlu0 %v1870, 125
        %v1876 = vpop.permute.xlu0 %1875
        %v1879 = vadd.f32 %v1837, %v1874
        %v1880 = vadd.f32 %v1838, %v1876
        %s1881 = sld [smem:[#allocation9 + $0xe]]
        %v1882 = vstv %s1881
        %v1883 = vmul.f32 %v1735, %v1882
        %v1884 = vmul.f32 %v1736, %v1882
        %1887 = vrot.lane.b32.xlu0 %v1883, 124
        %v1888 = vpop.permute.xlu0 %1887
        %1889 = vrot.lane.b32.xlu0 %v1884, 124
        %v1890 = vpop.permute.xlu0 %1889
        %v1893 = vadd.f32 %v1851, %v1888
        %v1894 = vadd.f32 %v1852, %v1890
        %s1895 = sld [smem:[#allocation9 + $0x59]]
        %v1896 = vstv %s1895
        %v1897 = vmul.f32 %v1735, %v1896
        %v1898 = vmul.f32 %v1736, %v1896
        %1901 = vrot.lane.b32.xlu0 %v1897, 124
        %v1902 = vpop.permute.xlu0 %1901
        %1903 = vrot.lane.b32.xlu0 %v1898, 124
        %v1904 = vpop.permute.xlu0 %1903
        %v1907 = vadd.f32 %v1865, %v1902
        %v1908 = vadd.f32 %v1866, %v1904
        %s1909 = sld [smem:[#allocation9 + $0xa4]]
        %v1910 = vstv %s1909
        %v1911 = vmul.f32 %v1735, %v1910
        %v1912 = vmul.f32 %v1736, %v1910
        %1915 = vrot.lane.b32.xlu0 %v1911, 124
        %v1916 = vpop.permute.xlu0 %1915
        %1917 = vrot.lane.b32.xlu0 %v1912, 124
        %v1918 = vpop.permute.xlu0 %1917
        %v1921 = vadd.f32 %v1879, %v1916
        %v1922 = vadd.f32 %v1880, %v1918
        %v1923 = vld [vmem:[#allocation3 + $0x3] sm:$0xff]
        %v1924 = vld [vmem:[#allocation3 + $0xb] sm:$0xff]
        %s1925 = sld [smem:[#allocation9 + $0xf]]
        %v1926 = vstv %s1925
        %v1927 = vmul.f32 %v1923, %v1926
        %v1928 = vmul.f32 %v1924, %v1926
        %v1929 = vadd.f32 %v1893, %v1927
        %v1930 = vadd.f32 %v1894, %v1928
        %s1931 = sld [smem:[#allocation9 + $0x5a]]
        %v1932 = vstv %s1931
        %v1933 = vmul.f32 %v1923, %v1932
        %v1934 = vmul.f32 %v1924, %v1932
        %v1935 = vadd.f32 %v1907, %v1933
        %v1936 = vadd.f32 %v1908, %v1934
        %s1937 = sld [smem:[#allocation9 + $0xa5]]
        %v1938 = vstv %s1937
        %v1939 = vmul.f32 %v1923, %v1938
        %v1940 = vmul.f32 %v1924, %v1938
        %v1941 = vadd.f32 %v1921, %v1939
        %v1942 = vadd.f32 %v1922, %v1940
        %s1943 = sld [smem:[#allocation9 + $0x10]]
        %v1944 = vstv %s1943
        %v1945 = vmul.f32 %v1923, %v1944
        %v1946 = vmul.f32 %v1924, %v1944
        %1949 = vrot.lane.b32.xlu0 %v1945, 127
        %v1950 = vpop.permute.xlu0 %1949
        %1951 = vrot.lane.b32.xlu0 %v1946, 127
        %v1952 = vpop.permute.xlu0 %1951
        %v1955 = vadd.f32 %v1929, %v1950
        %v1956 = vadd.f32 %v1930, %v1952
        %s1957 = sld [smem:[#allocation9 + $0x5b]]
        %v1958 = vstv %s1957
        %v1959 = vmul.f32 %v1923, %v1958
        %v1960 = vmul.f32 %v1924, %v1958
        %1963 = vrot.lane.b32.xlu0 %v1959, 127
        %v1964 = vpop.permute.xlu0 %1963
        %1965 = vrot.lane.b32.xlu0 %v1960, 127
        %v1966 = vpop.permute.xlu0 %1965
        %v1969 = vadd.f32 %v1935, %v1964
        %v1970 = vadd.f32 %v1936, %v1966
        %s1971 = sld [smem:[#allocation9 + $0xa6]]
        %v1972 = vstv %s1971
        %v1973 = vmul.f32 %v1923, %v1972
        %v1974 = vmul.f32 %v1924, %v1972
        %1977 = vrot.lane.b32.xlu0 %v1973, 127
        %v1978 = vpop.permute.xlu0 %1977
        %1979 = vrot.lane.b32.xlu0 %v1974, 127
        %v1980 = vpop.permute.xlu0 %1979
        %v1983 = vadd.f32 %v1941, %v1978
        %v1984 = vadd.f32 %v1942, %v1980
        %s1985 = sld [smem:[#allocation9 + $0x11]]
        %v1986 = vstv %s1985
        %v1987 = vmul.f32 %v1923, %v1986
        %v1988 = vmul.f32 %v1924, %v1986
        %1991 = vrot.lane.b32.xlu0 %v1987, 126
        %v1992 = vpop.permute.xlu0 %1991
        %1993 = vrot.lane.b32.xlu0 %v1988, 126
        %v1994 = vpop.permute.xlu0 %1993
        %v1997 = vadd.f32 %v1955, %v1992
        %v1998 = vadd.f32 %v1956, %v1994
        %s1999 = sld [smem:[#allocation9 + $0x5c]]
        %v2000 = vstv %s1999
        %v2001 = vmul.f32 %v1923, %v2000
        %v2002 = vmul.f32 %v1924, %v2000
        %2005 = vrot.lane.b32.xlu0 %v2001, 126
        %v2006 = vpop.permute.xlu0 %2005
        %2007 = vrot.lane.b32.xlu0 %v2002, 126
        %v2008 = vpop.permute.xlu0 %2007
        %v2011 = vadd.f32 %v1969, %v2006
        %v2012 = vadd.f32 %v1970, %v2008
        %s2013 = sld [smem:[#allocation9 + $0xa7]]
        %v2014 = vstv %s2013
        %v2015 = vmul.f32 %v1923, %v2014
        %v2016 = vmul.f32 %v1924, %v2014
        %2019 = vrot.lane.b32.xlu0 %v2015, 126
        %v2020 = vpop.permute.xlu0 %2019
        %2021 = vrot.lane.b32.xlu0 %v2016, 126
        %v2022 = vpop.permute.xlu0 %2021
        %v2025 = vadd.f32 %v1983, %v2020
        %v2026 = vadd.f32 %v1984, %v2022
        %s2027 = sld [smem:[#allocation9 + $0x12]]
        %v2028 = vstv %s2027
        %v2029 = vmul.f32 %v1923, %v2028
        %v2030 = vmul.f32 %v1924, %v2028
        %2033 = vrot.lane.b32.xlu0 %v2029, 125
        %v2034 = vpop.permute.xlu0 %2033
        %2035 = vrot.lane.b32.xlu0 %v2030, 125
        %v2036 = vpop.permute.xlu0 %2035
        %v2039 = vadd.f32 %v1997, %v2034
        %v2040 = vadd.f32 %v1998, %v2036
        %s2041 = sld [smem:[#allocation9 + $0x5d]]
        %v2042 = vstv %s2041
        %v2043 = vmul.f32 %v1923, %v2042
        %v2044 = vmul.f32 %v1924, %v2042
        %2047 = vrot.lane.b32.xlu0 %v2043, 125
        %v2048 = vpop.permute.xlu0 %2047
        %2049 = vrot.lane.b32.xlu0 %v2044, 125
        %v2050 = vpop.permute.xlu0 %2049
        %v2053 = vadd.f32 %v2011, %v2048
        %v2054 = vadd.f32 %v2012, %v2050
        %s2055 = sld [smem:[#allocation9 + $0xa8]]
        %v2056 = vstv %s2055
        %v2057 = vmul.f32 %v1923, %v2056
        %v2058 = vmul.f32 %v1924, %v2056
        %2061 = vrot.lane.b32.xlu0 %v2057, 125
        %v2062 = vpop.permute.xlu0 %2061
        %2063 = vrot.lane.b32.xlu0 %v2058, 125
        %v2064 = vpop.permute.xlu0 %2063
        %v2067 = vadd.f32 %v2025, %v2062
        %v2068 = vadd.f32 %v2026, %v2064
        %s2069 = sld [smem:[#allocation9 + $0x13]]
        %v2070 = vstv %s2069
        %v2071 = vmul.f32 %v1923, %v2070
        %v2072 = vmul.f32 %v1924, %v2070
        %2075 = vrot.lane.b32.xlu0 %v2071, 124
        %v2076 = vpop.permute.xlu0 %2075
        %2077 = vrot.lane.b32.xlu0 %v2072, 124
        %v2078 = vpop.permute.xlu0 %2077
        %v2081 = vadd.f32 %v2039, %v2076
        %v2082 = vadd.f32 %v2040, %v2078
        %s2083 = sld [smem:[#allocation9 + $0x5e]]
        %v2084 = vstv %s2083
        %v2085 = vmul.f32 %v1923, %v2084
        %v2086 = vmul.f32 %v1924, %v2084
        %2089 = vrot.lane.b32.xlu0 %v2085, 124
        %v2090 = vpop.permute.xlu0 %2089
        %2091 = vrot.lane.b32.xlu0 %v2086, 124
        %v2092 = vpop.permute.xlu0 %2091
        %v2095 = vadd.f32 %v2053, %v2090
        %v2096 = vadd.f32 %v2054, %v2092
        %s2097 = sld [smem:[#allocation9 + $0xa9]]
        %v2098 = vstv %s2097
        %v2099 = vmul.f32 %v1923, %v2098
        %v2100 = vmul.f32 %v1924, %v2098
        %2103 = vrot.lane.b32.xlu0 %v2099, 124
        %v2104 = vpop.permute.xlu0 %2103
        %2105 = vrot.lane.b32.xlu0 %v2100, 124
        %v2106 = vpop.permute.xlu0 %2105
        %v2109 = vadd.f32 %v2067, %v2104
        %v2110 = vadd.f32 %v2068, %v2106
        %v2111 = vld [vmem:[#allocation3 + $0x4] sm:$0xff]
        %v2112 = vld [vmem:[#allocation3 + $0xc] sm:$0xff]
        %s2113 = sld [smem:[#allocation9 + $0x14]]
        %v2114 = vstv %s2113
        %v2115 = vmul.f32 %v2111, %v2114
        %v2116 = vmul.f32 %v2112, %v2114
        %v2117 = vadd.f32 %v2081, %v2115
        %v2118 = vadd.f32 %v2082, %v2116
        %s2119 = sld [smem:[#allocation9 + $0x5f]]
        %v2120 = vstv %s2119
        %v2121 = vmul.f32 %v2111, %v2120
        %v2122 = vmul.f32 %v2112, %v2120
        %v2123 = vadd.f32 %v2095, %v2121
        %v2124 = vadd.f32 %v2096, %v2122
        %s2125 = sld [smem:[#allocation9 + $0xaa]]
        %v2126 = vstv %s2125
        %v2127 = vmul.f32 %v2111, %v2126
        %v2128 = vmul.f32 %v2112, %v2126
        %v2129 = vadd.f32 %v2109, %v2127
        %v2130 = vadd.f32 %v2110, %v2128
        %s2131 = sld [smem:[#allocation9 + $0x15]]
        %v2132 = vstv %s2131
        %v2133 = vmul.f32 %v2111, %v2132
        %v2134 = vmul.f32 %v2112, %v2132
        %2137 = vrot.lane.b32.xlu0 %v2133, 127
        %v2138 = vpop.permute.xlu0 %2137
        %2139 = vrot.lane.b32.xlu0 %v2134, 127
        %v2140 = vpop.permute.xlu0 %2139
        %v2143 = vadd.f32 %v2117, %v2138
        %v2144 = vadd.f32 %v2118, %v2140
        %s2145 = sld [smem:[#allocation9 + $0x60]]
        %v2146 = vstv %s2145
        %v2147 = vmul.f32 %v2111, %v2146
        %v2148 = vmul.f32 %v2112, %v2146
        %2151 = vrot.lane.b32.xlu0 %v2147, 127
        %v2152 = vpop.permute.xlu0 %2151
        %2153 = vrot.lane.b32.xlu0 %v2148, 127
        %v2154 = vpop.permute.xlu0 %2153
        %v2157 = vadd.f32 %v2123, %v2152
        %v2158 = vadd.f32 %v2124, %v2154
        %s2159 = sld [smem:[#allocation9 + $0xab]]
        %v2160 = vstv %s2159
        %v2161 = vmul.f32 %v2111, %v2160
        %v2162 = vmul.f32 %v2112, %v2160
        %2165 = vrot.lane.b32.xlu0 %v2161, 127
        %v2166 = vpop.permute.xlu0 %2165
        %2167 = vrot.lane.b32.xlu0 %v2162, 127
        %v2168 = vpop.permute.xlu0 %2167
        %v2171 = vadd.f32 %v2129, %v2166
        %v2172 = vadd.f32 %v2130, %v2168
        %s2173 = sld [smem:[#allocation9 + $0x16]]
        %v2174 = vstv %s2173
        %v2175 = vmul.f32 %v2111, %v2174
        %v2176 = vmul.f32 %v2112, %v2174
        %2179 = vrot.lane.b32.xlu0 %v2175, 126
        %v2180 = vpop.permute.xlu0 %2179
        %2181 = vrot.lane.b32.xlu0 %v2176, 126
        %v2182 = vpop.permute.xlu0 %2181
        %v2185 = vadd.f32 %v2143, %v2180
        %v2186 = vadd.f32 %v2144, %v2182
        %s2187 = sld [smem:[#allocation9 + $0x61]]
        %v2188 = vstv %s2187
        %v2189 = vmul.f32 %v2111, %v2188
        %v2190 = vmul.f32 %v2112, %v2188
        %2193 = vrot.lane.b32.xlu0 %v2189, 126
        %v2194 = vpop.permute.xlu0 %2193
        %2195 = vrot.lane.b32.xlu0 %v2190, 126
        %v2196 = vpop.permute.xlu0 %2195
        %v2199 = vadd.f32 %v2157, %v2194
        %v2200 = vadd.f32 %v2158, %v2196
        %s2201 = sld [smem:[#allocation9 + $0xac]]
        %v2202 = vstv %s2201
        %v2203 = vmul.f32 %v2111, %v2202
        %v2204 = vmul.f32 %v2112, %v2202
        %2207 = vrot.lane.b32.xlu0 %v2203, 126
        %v2208 = vpop.permute.xlu0 %2207
        %2209 = vrot.lane.b32.xlu0 %v2204, 126
        %v2210 = vpop.permute.xlu0 %2209
        %v2213 = vadd.f32 %v2171, %v2208
        %v2214 = vadd.f32 %v2172, %v2210
        %s2215 = sld [smem:[#allocation9 + $0x17]]
        %v2216 = vstv %s2215
        %v2217 = vmul.f32 %v2111, %v2216
        %v2218 = vmul.f32 %v2112, %v2216
        %2221 = vrot.lane.b32.xlu0 %v2217, 125
        %v2222 = vpop.permute.xlu0 %2221
        %2223 = vrot.lane.b32.xlu0 %v2218, 125
        %v2224 = vpop.permute.xlu0 %2223
        %v2227 = vadd.f32 %v2185, %v2222
        %v2228 = vadd.f32 %v2186, %v2224
        %s2229 = sld [smem:[#allocation9 + $0x62]]
        %v2230 = vstv %s2229
        %v2231 = vmul.f32 %v2111, %v2230
        %v2232 = vmul.f32 %v2112, %v2230
        %2235 = vrot.lane.b32.xlu0 %v2231, 125
        %v2236 = vpop.permute.xlu0 %2235
        %2237 = vrot.lane.b32.xlu0 %v2232, 125
        %v2238 = vpop.permute.xlu0 %2237
        %v2241 = vadd.f32 %v2199, %v2236
        %v2242 = vadd.f32 %v2200, %v2238
        %s2243 = sld [smem:[#allocation9 + $0xad]]
        %v2244 = vstv %s2243
        %v2245 = vmul.f32 %v2111, %v2244
        %v2246 = vmul.f32 %v2112, %v2244
        %2249 = vrot.lane.b32.xlu0 %v2245, 125
        %v2250 = vpop.permute.xlu0 %2249
        %2251 = vrot.lane.b32.xlu0 %v2246, 125
        %v2252 = vpop.permute.xlu0 %2251
        %v2255 = vadd.f32 %v2213, %v2250
        %v2256 = vadd.f32 %v2214, %v2252
        %s2257 = sld [smem:[#allocation9 + $0x18]]
        %v2258 = vstv %s2257
        %v2259 = vmul.f32 %v2111, %v2258
        %v2260 = vmul.f32 %v2112, %v2258
        %2263 = vrot.lane.b32.xlu0 %v2259, 124
        %v2264 = vpop.permute.xlu0 %2263
        %2265 = vrot.lane.b32.xlu0 %v2260, 124
        %v2266 = vpop.permute.xlu0 %2265
        %v2269 = vadd.f32 %v2227, %v2264
        %v2270 = vadd.f32 %v2228, %v2266
        %s2271 = sld [smem:[#allocation9 + $0x63]]
        %v2272 = vstv %s2271
        %v2273 = vmul.f32 %v2111, %v2272
        %v2274 = vmul.f32 %v2112, %v2272
        %2277 = vrot.lane.b32.xlu0 %v2273, 124
        %v2278 = vpop.permute.xlu0 %2277
        %2279 = vrot.lane.b32.xlu0 %v2274, 124
        %v2280 = vpop.permute.xlu0 %2279
        %v2283 = vadd.f32 %v2241, %v2278
        %v2284 = vadd.f32 %v2242, %v2280
        %s2285 = sld [smem:[#allocation9 + $0xae]]
        %v2286 = vstv %s2285
        %v2287 = vmul.f32 %v2111, %v2286
        %v2288 = vmul.f32 %v2112, %v2286
        %2291 = vrot.lane.b32.xlu0 %v2287, 124
        %v2292 = vpop.permute.xlu0 %2291
        %2293 = vrot.lane.b32.xlu0 %v2288, 124
        %v2294 = vpop.permute.xlu0 %2293
        %v2297 = vadd.f32 %v2255, %v2292
        %v2298 = vadd.f32 %v2256, %v2294
        %v2299 = vld [vmem:[%s1351] sm:$0xff]
        %v2300 = vld [vmem:[%s1351 + $0x8] sm:$0xff]
        %s2301 = sld [smem:[#allocation9 + $0x19]]
        %v2302 = vstv %s2301
        %v2303 = vmul.f32 %v2299, %v2302
        %v2304 = vmul.f32 %v2300, %v2302
        %v2305 = vadd.f32 %v2269, %v2303
        %v2306 = vadd.f32 %v2270, %v2304
        %s2307 = sld [smem:[#allocation9 + $0x64]]
        %v2308 = vstv %s2307
        %v2309 = vmul.f32 %v2299, %v2308
        %v2310 = vmul.f32 %v2300, %v2308
        %v2311 = vadd.f32 %v2283, %v2309
        %v2312 = vadd.f32 %v2284, %v2310
        %s2313 = sld [smem:[#allocation9 + $0xaf]]
        %v2314 = vstv %s2313
        %v2315 = vmul.f32 %v2299, %v2314
        %v2316 = vmul.f32 %v2300, %v2314
        %v2317 = vadd.f32 %v2297, %v2315
        %v2318 = vadd.f32 %v2298, %v2316
        %s2319 = sld [smem:[#allocation9 + $0x1a]]
        %v2320 = vstv %s2319
        %v2321 = vmul.f32 %v2299, %v2320
        %v2322 = vmul.f32 %v2300, %v2320
        %2325 = vrot.lane.b32.xlu0 %v2321, 127
        %v2326 = vpop.permute.xlu0 %2325
        %2327 = vrot.lane.b32.xlu0 %v2322, 127
        %v2328 = vpop.permute.xlu0 %2327
        %v2331 = vadd.f32 %v2305, %v2326
        %v2332 = vadd.f32 %v2306, %v2328
        %s2333 = sld [smem:[#allocation9 + $0x65]]
        %v2334 = vstv %s2333
        %v2335 = vmul.f32 %v2299, %v2334
        %v2336 = vmul.f32 %v2300, %v2334
        %2339 = vrot.lane.b32.xlu0 %v2335, 127
        %v2340 = vpop.permute.xlu0 %2339
        %2341 = vrot.lane.b32.xlu0 %v2336, 127
        %v2342 = vpop.permute.xlu0 %2341
        %v2345 = vadd.f32 %v2311, %v2340
        %v2346 = vadd.f32 %v2312, %v2342
        %s2347 = sld [smem:[#allocation9 + $0xb0]]
        %v2348 = vstv %s2347
        %v2349 = vmul.f32 %v2299, %v2348
        %v2350 = vmul.f32 %v2300, %v2348
        %2353 = vrot.lane.b32.xlu0 %v2349, 127
        %v2354 = vpop.permute.xlu0 %2353
        %2355 = vrot.lane.b32.xlu0 %v2350, 127
        %v2356 = vpop.permute.xlu0 %2355
        %v2359 = vadd.f32 %v2317, %v2354
        %v2360 = vadd.f32 %v2318, %v2356
        %s2361 = sld [smem:[#allocation9 + $0x1b]]
        %v2362 = vstv %s2361
        %v2363 = vmul.f32 %v2299, %v2362
        %v2364 = vmul.f32 %v2300, %v2362
        %2367 = vrot.lane.b32.xlu0 %v2363, 126
        %v2368 = vpop.permute.xlu0 %2367
        %2369 = vrot.lane.b32.xlu0 %v2364, 126
        %v2370 = vpop.permute.xlu0 %2369
        %v2373 = vadd.f32 %v2331, %v2368
        %v2374 = vadd.f32 %v2332, %v2370
        %s2375 = sld [smem:[#allocation9 + $0x66]]
        %v2376 = vstv %s2375
        %v2377 = vmul.f32 %v2299, %v2376
        %v2378 = vmul.f32 %v2300, %v2376
        %2381 = vrot.lane.b32.xlu0 %v2377, 126
        %v2382 = vpop.permute.xlu0 %2381
        %2383 = vrot.lane.b32.xlu0 %v2378, 126
        %v2384 = vpop.permute.xlu0 %2383
        %v2387 = vadd.f32 %v2345, %v2382
        %v2388 = vadd.f32 %v2346, %v2384
        %s2389 = sld [smem:[#allocation9 + $0xb1]]
        %v2390 = vstv %s2389
        %v2391 = vmul.f32 %v2299, %v2390
        %v2392 = vmul.f32 %v2300, %v2390
        %2395 = vrot.lane.b32.xlu0 %v2391, 126
        %v2396 = vpop.permute.xlu0 %2395
        %2397 = vrot.lane.b32.xlu0 %v2392, 126
        %v2398 = vpop.permute.xlu0 %2397
        %v2401 = vadd.f32 %v2359, %v2396
        %v2402 = vadd.f32 %v2360, %v2398
        %s2403 = sld [smem:[#allocation9 + $0x1c]]
        %v2404 = vstv %s2403
        %v2405 = vmul.f32 %v2299, %v2404
        %v2406 = vmul.f32 %v2300, %v2404
        %2409 = vrot.lane.b32.xlu0 %v2405, 125
        %v2410 = vpop.permute.xlu0 %2409
        %2411 = vrot.lane.b32.xlu0 %v2406, 125
        %v2412 = vpop.permute.xlu0 %2411
        %v2415 = vadd.f32 %v2373, %v2410
        %v2416 = vadd.f32 %v2374, %v2412
        %s2417 = sld [smem:[#allocation9 + $0x67]]
        %v2418 = vstv %s2417
        %v2419 = vmul.f32 %v2299, %v2418
        %v2420 = vmul.f32 %v2300, %v2418
        %2423 = vrot.lane.b32.xlu0 %v2419, 125
        %v2424 = vpop.permute.xlu0 %2423
        %2425 = vrot.lane.b32.xlu0 %v2420, 125
        %v2426 = vpop.permute.xlu0 %2425
        %v2429 = vadd.f32 %v2387, %v2424
        %v2430 = vadd.f32 %v2388, %v2426
        %s2431 = sld [smem:[#allocation9 + $0xb2]]
        %v2432 = vstv %s2431
        %v2433 = vmul.f32 %v2299, %v2432
        %v2434 = vmul.f32 %v2300, %v2432
        %2437 = vrot.lane.b32.xlu0 %v2433, 125
        %v2438 = vpop.permute.xlu0 %2437
        %2439 = vrot.lane.b32.xlu0 %v2434, 125
        %v2440 = vpop.permute.xlu0 %2439
        %v2443 = vadd.f32 %v2401, %v2438
        %v2444 = vadd.f32 %v2402, %v2440
        %s2445 = sld [smem:[#allocation9 + $0x1d]]
        %v2446 = vstv %s2445
        %v2447 = vmul.f32 %v2299, %v2446
        %v2448 = vmul.f32 %v2300, %v2446
        %2451 = vrot.lane.b32.xlu0 %v2447, 124
        %v2452 = vpop.permute.xlu0 %2451
        %2453 = vrot.lane.b32.xlu0 %v2448, 124
        %v2454 = vpop.permute.xlu0 %2453
        %v2457 = vadd.f32 %v2415, %v2452
        %v2458 = vadd.f32 %v2416, %v2454
        %s2459 = sld [smem:[#allocation9 + $0x68]]
        %v2460 = vstv %s2459
        %v2461 = vmul.f32 %v2299, %v2460
        %v2462 = vmul.f32 %v2300, %v2460
        %2465 = vrot.lane.b32.xlu0 %v2461, 124
        %v2466 = vpop.permute.xlu0 %2465
        %2467 = vrot.lane.b32.xlu0 %v2462, 124
        %v2468 = vpop.permute.xlu0 %2467
        %v2471 = vadd.f32 %v2429, %v2466
        %v2472 = vadd.f32 %v2430, %v2468
        %s2473 = sld [smem:[#allocation9 + $0xb3]]
        %v2474 = vstv %s2473
        %v2475 = vmul.f32 %v2299, %v2474
        %v2476 = vmul.f32 %v2300, %v2474
        %2479 = vrot.lane.b32.xlu0 %v2475, 124
        %v2480 = vpop.permute.xlu0 %2479
        %2481 = vrot.lane.b32.xlu0 %v2476, 124
        %v2482 = vpop.permute.xlu0 %2481
        %v2485 = vadd.f32 %v2443, %v2480
        %v2486 = vadd.f32 %v2444, %v2482
        %v2487 = vld [vmem:[%s1351 + $0x1] sm:$0xff]
        %v2488 = vld [vmem:[%s1351 + $0x9] sm:$0xff]
        %s2489 = sld [smem:[#allocation9 + $0x1e]]
        %v2490 = vstv %s2489
        %v2491 = vmul.f32 %v2487, %v2490
        %v2492 = vmul.f32 %v2488, %v2490
        %v2493 = vadd.f32 %v2457, %v2491
        %v2494 = vadd.f32 %v2458, %v2492
        %s2495 = sld [smem:[#allocation9 + $0x69]]
        %v2496 = vstv %s2495
        %v2497 = vmul.f32 %v2487, %v2496
        %v2498 = vmul.f32 %v2488, %v2496
        %v2499 = vadd.f32 %v2471, %v2497
        %v2500 = vadd.f32 %v2472, %v2498
        %s2501 = sld [smem:[#allocation9 + $0xb4]]
        %v2502 = vstv %s2501
        %v2503 = vmul.f32 %v2487, %v2502
        %v2504 = vmul.f32 %v2488, %v2502
        %v2505 = vadd.f32 %v2485, %v2503
        %v2506 = vadd.f32 %v2486, %v2504
        %s2507 = sld [smem:[#allocation9 + $0x1f]]
        %v2508 = vstv %s2507
        %v2509 = vmul.f32 %v2487, %v2508
        %v2510 = vmul.f32 %v2488, %v2508
        %2513 = vrot.lane.b32.xlu0 %v2509, 127
        %v2514 = vpop.permute.xlu0 %2513
        %2515 = vrot.lane.b32.xlu0 %v2510, 127
        %v2516 = vpop.permute.xlu0 %2515
        %v2519 = vadd.f32 %v2493, %v2514
        %v2520 = vadd.f32 %v2494, %v2516
        %s2521 = sld [smem:[#allocation9 + $0x6a]]
        %v2522 = vstv %s2521
        %v2523 = vmul.f32 %v2487, %v2522
        %v2524 = vmul.f32 %v2488, %v2522
        %2527 = vrot.lane.b32.xlu0 %v2523, 127
        %v2528 = vpop.permute.xlu0 %2527
        %2529 = vrot.lane.b32.xlu0 %v2524, 127
        %v2530 = vpop.permute.xlu0 %2529
        %v2533 = vadd.f32 %v2499, %v2528
        %v2534 = vadd.f32 %v2500, %v2530
        %s2535 = sld [smem:[#allocation9 + $0xb5]]
        %v2536 = vstv %s2535
        %v2537 = vmul.f32 %v2487, %v2536
        %v2538 = vmul.f32 %v2488, %v2536
        %2541 = vrot.lane.b32.xlu0 %v2537, 127
        %v2542 = vpop.permute.xlu0 %2541
        %2543 = vrot.lane.b32.xlu0 %v2538, 127
        %v2544 = vpop.permute.xlu0 %2543
        %v2547 = vadd.f32 %v2505, %v2542
        %v2548 = vadd.f32 %v2506, %v2544
        %s2549 = sld [smem:[#allocation9 + $0x20]]
        %v2550 = vstv %s2549
        %v2551 = vmul.f32 %v2487, %v2550
        %v2552 = vmul.f32 %v2488, %v2550
        %2555 = vrot.lane.b32.xlu0 %v2551, 126
        %v2556 = vpop.permute.xlu0 %2555
        %2557 = vrot.lane.b32.xlu0 %v2552, 126
        %v2558 = vpop.permute.xlu0 %2557
        %v2561 = vadd.f32 %v2519, %v2556
        %v2562 = vadd.f32 %v2520, %v2558
        %s2563 = sld [smem:[#allocation9 + $0x6b]]
        %v2564 = vstv %s2563
        %v2565 = vmul.f32 %v2487, %v2564
        %v2566 = vmul.f32 %v2488, %v2564
        %2569 = vrot.lane.b32.xlu0 %v2565, 126
        %v2570 = vpop.permute.xlu0 %2569
        %2571 = vrot.lane.b32.xlu0 %v2566, 126
        %v2572 = vpop.permute.xlu0 %2571
        %v2575 = vadd.f32 %v2533, %v2570
        %v2576 = vadd.f32 %v2534, %v2572
        %s2577 = sld [smem:[#allocation9 + $0xb6]]
        %v2578 = vstv %s2577
        %v2579 = vmul.f32 %v2487, %v2578
        %v2580 = vmul.f32 %v2488, %v2578
        %2583 = vrot.lane.b32.xlu0 %v2579, 126
        %v2584 = vpop.permute.xlu0 %2583
        %2585 = vrot.lane.b32.xlu0 %v2580, 126
        %v2586 = vpop.permute.xlu0 %2585
        %v2589 = vadd.f32 %v2547, %v2584
        %v2590 = vadd.f32 %v2548, %v2586
        %s2591 = sld [smem:[#allocation9 + $0x21]]
        %v2592 = vstv %s2591
        %v2593 = vmul.f32 %v2487, %v2592
        %v2594 = vmul.f32 %v2488, %v2592
        %2597 = vrot.lane.b32.xlu0 %v2593, 125
        %v2598 = vpop.permute.xlu0 %2597
        %2599 = vrot.lane.b32.xlu0 %v2594, 125
        %v2600 = vpop.permute.xlu0 %2599
        %v2603 = vadd.f32 %v2561, %v2598
        %v2604 = vadd.f32 %v2562, %v2600
        %s2605 = sld [smem:[#allocation9 + $0x6c]]
        %v2606 = vstv %s2605
        %v2607 = vmul.f32 %v2487, %v2606
        %v2608 = vmul.f32 %v2488, %v2606
        %2611 = vrot.lane.b32.xlu0 %v2607, 125
        %v2612 = vpop.permute.xlu0 %2611
        %2613 = vrot.lane.b32.xlu0 %v2608, 125
        %v2614 = vpop.permute.xlu0 %2613
        %v2617 = vadd.f32 %v2575, %v2612
        %v2618 = vadd.f32 %v2576, %v2614
        %s2619 = sld [smem:[#allocation9 + $0xb7]]
        %v2620 = vstv %s2619
        %v2621 = vmul.f32 %v2487, %v2620
        %v2622 = vmul.f32 %v2488, %v2620
        %2625 = vrot.lane.b32.xlu0 %v2621, 125
        %v2626 = vpop.permute.xlu0 %2625
        %2627 = vrot.lane.b32.xlu0 %v2622, 125
        %v2628 = vpop.permute.xlu0 %2627
        %v2631 = vadd.f32 %v2589, %v2626
        %v2632 = vadd.f32 %v2590, %v2628
        %s2633 = sld [smem:[#allocation9 + $0x22]]
        %v2634 = vstv %s2633
        %v2635 = vmul.f32 %v2487, %v2634
        %v2636 = vmul.f32 %v2488, %v2634
        %2639 = vrot.lane.b32.xlu0 %v2635, 124
        %v2640 = vpop.permute.xlu0 %2639
        %2641 = vrot.lane.b32.xlu0 %v2636, 124
        %v2642 = vpop.permute.xlu0 %2641
        %v2645 = vadd.f32 %v2603, %v2640
        %v2646 = vadd.f32 %v2604, %v2642
        %s2647 = sld [smem:[#allocation9 + $0x6d]]
        %v2648 = vstv %s2647
        %v2649 = vmul.f32 %v2487, %v2648
        %v2650 = vmul.f32 %v2488, %v2648
        %2653 = vrot.lane.b32.xlu0 %v2649, 124
        %v2654 = vpop.permute.xlu0 %2653
        %2655 = vrot.lane.b32.xlu0 %v2650, 124
        %v2656 = vpop.permute.xlu0 %2655
        %v2659 = vadd.f32 %v2617, %v2654
        %v2660 = vadd.f32 %v2618, %v2656
        %s2661 = sld [smem:[#allocation9 + $0xb8]]
        %v2662 = vstv %s2661
        %v2663 = vmul.f32 %v2487, %v2662
        %v2664 = vmul.f32 %v2488, %v2662
        %2667 = vrot.lane.b32.xlu0 %v2663, 124
        %v2668 = vpop.permute.xlu0 %2667
        %2669 = vrot.lane.b32.xlu0 %v2664, 124
        %v2670 = vpop.permute.xlu0 %2669
        %v2673 = vadd.f32 %v2631, %v2668
        %v2674 = vadd.f32 %v2632, %v2670
        %v2675 = vld [vmem:[%s1351 + $0x2] sm:$0xff]
        %v2676 = vld [vmem:[%s1351 + $0xa] sm:$0xff]
        %s2677 = sld [smem:[#allocation9 + $0x23]]
        %v2678 = vstv %s2677
        %v2679 = vmul.f32 %v2675, %v2678
        %v2680 = vmul.f32 %v2676, %v2678
        %v2681 = vadd.f32 %v2645, %v2679
        %v2682 = vadd.f32 %v2646, %v2680
        %s2683 = sld [smem:[#allocation9 + $0x6e]]
        %v2684 = vstv %s2683
        %v2685 = vmul.f32 %v2675, %v2684
        %v2686 = vmul.f32 %v2676, %v2684
        %v2687 = vadd.f32 %v2659, %v2685
        %v2688 = vadd.f32 %v2660, %v2686
        %s2689 = sld [smem:[#allocation9 + $0xb9]]
        %v2690 = vstv %s2689
        %v2691 = vmul.f32 %v2675, %v2690
        %v2692 = vmul.f32 %v2676, %v2690
        %v2693 = vadd.f32 %v2673, %v2691
        %v2694 = vadd.f32 %v2674, %v2692
        %s2695 = sld [smem:[#allocation9 + $0x24]]
        %v2696 = vstv %s2695
        %v2697 = vmul.f32 %v2675, %v2696
        %v2698 = vmul.f32 %v2676, %v2696
        %2701 = vrot.lane.b32.xlu0 %v2697, 127
        %v2702 = vpop.permute.xlu0 %2701
        %2703 = vrot.lane.b32.xlu0 %v2698, 127
        %v2704 = vpop.permute.xlu0 %2703
        %v2707 = vadd.f32 %v2681, %v2702
        %v2708 = vadd.f32 %v2682, %v2704
        %s2709 = sld [smem:[#allocation9 + $0x6f]]
        %v2710 = vstv %s2709
        %v2711 = vmul.f32 %v2675, %v2710
        %v2712 = vmul.f32 %v2676, %v2710
        %2715 = vrot.lane.b32.xlu0 %v2711, 127
        %v2716 = vpop.permute.xlu0 %2715
        %2717 = vrot.lane.b32.xlu0 %v2712, 127
        %v2718 = vpop.permute.xlu0 %2717
        %v2721 = vadd.f32 %v2687, %v2716
        %v2722 = vadd.f32 %v2688, %v2718
        %s2723 = sld [smem:[#allocation9 + $0xba]]
        %v2724 = vstv %s2723
        %v2725 = vmul.f32 %v2675, %v2724
        %v2726 = vmul.f32 %v2676, %v2724
        %2729 = vrot.lane.b32.xlu0 %v2725, 127
        %v2730 = vpop.permute.xlu0 %2729
        %2731 = vrot.lane.b32.xlu0 %v2726, 127
        %v2732 = vpop.permute.xlu0 %2731
        %v2735 = vadd.f32 %v2693, %v2730
        %v2736 = vadd.f32 %v2694, %v2732
        %s2737 = sld [smem:[#allocation9 + $0x25]]
        %v2738 = vstv %s2737
        %v2739 = vmul.f32 %v2675, %v2738
        %v2740 = vmul.f32 %v2676, %v2738
        %2743 = vrot.lane.b32.xlu0 %v2739, 126
        %v2744 = vpop.permute.xlu0 %2743
        %2745 = vrot.lane.b32.xlu0 %v2740, 126
        %v2746 = vpop.permute.xlu0 %2745
        %v2749 = vadd.f32 %v2707, %v2744
        %v2750 = vadd.f32 %v2708, %v2746
        %s2751 = sld [smem:[#allocation9 + $0x70]]
        %v2752 = vstv %s2751
        %v2753 = vmul.f32 %v2675, %v2752
        %v2754 = vmul.f32 %v2676, %v2752
        %2757 = vrot.lane.b32.xlu0 %v2753, 126
        %v2758 = vpop.permute.xlu0 %2757
        %2759 = vrot.lane.b32.xlu0 %v2754, 126
        %v2760 = vpop.permute.xlu0 %2759
        %v2763 = vadd.f32 %v2721, %v2758
        %v2764 = vadd.f32 %v2722, %v2760
        %s2765 = sld [smem:[#allocation9 + $0xbb]]
        %v2766 = vstv %s2765
        %v2767 = vmul.f32 %v2675, %v2766
        %v2768 = vmul.f32 %v2676, %v2766
        %2771 = vrot.lane.b32.xlu0 %v2767, 126
        %v2772 = vpop.permute.xlu0 %2771
        %2773 = vrot.lane.b32.xlu0 %v2768, 126
        %v2774 = vpop.permute.xlu0 %2773
        %v2777 = vadd.f32 %v2735, %v2772
        %v2778 = vadd.f32 %v2736, %v2774
        %s2779 = sld [smem:[#allocation9 + $0x26]]
        %v2780 = vstv %s2779
        %v2781 = vmul.f32 %v2675, %v2780
        %v2782 = vmul.f32 %v2676, %v2780
        %2785 = vrot.lane.b32.xlu0 %v2781, 125
        %v2786 = vpop.permute.xlu0 %2785
        %2787 = vrot.lane.b32.xlu0 %v2782, 125
        %v2788 = vpop.permute.xlu0 %2787
        %v2791 = vadd.f32 %v2749, %v2786
        %v2792 = vadd.f32 %v2750, %v2788
        %s2793 = sld [smem:[#allocation9 + $0x71]]
        %v2794 = vstv %s2793
        %v2795 = vmul.f32 %v2675, %v2794
        %v2796 = vmul.f32 %v2676, %v2794
        %2799 = vrot.lane.b32.xlu0 %v2795, 125
        %v2800 = vpop.permute.xlu0 %2799
        %2801 = vrot.lane.b32.xlu0 %v2796, 125
        %v2802 = vpop.permute.xlu0 %2801
        %v2805 = vadd.f32 %v2763, %v2800
        %v2806 = vadd.f32 %v2764, %v2802
        %s2807 = sld [smem:[#allocation9 + $0xbc]]
        %v2808 = vstv %s2807
        %v2809 = vmul.f32 %v2675, %v2808
        %v2810 = vmul.f32 %v2676, %v2808
        %2813 = vrot.lane.b32.xlu0 %v2809, 125
        %v2814 = vpop.permute.xlu0 %2813
        %2815 = vrot.lane.b32.xlu0 %v2810, 125
        %v2816 = vpop.permute.xlu0 %2815
        %v2819 = vadd.f32 %v2777, %v2814
        %v2820 = vadd.f32 %v2778, %v2816
        %s2821 = sld [smem:[#allocation9 + $0x27]]
        %v2822 = vstv %s2821
        %v2823 = vmul.f32 %v2675, %v2822
        %v2824 = vmul.f32 %v2676, %v2822
        %2827 = vrot.lane.b32.xlu0 %v2823, 124
        %v2828 = vpop.permute.xlu0 %2827
        %2829 = vrot.lane.b32.xlu0 %v2824, 124
        %v2830 = vpop.permute.xlu0 %2829
        %v2833 = vadd.f32 %v2791, %v2828
        %v2834 = vadd.f32 %v2792, %v2830
        %s2835 = sld [smem:[#allocation9 + $0x72]]
        %v2836 = vstv %s2835
        %v2837 = vmul.f32 %v2675, %v2836
        %v2838 = vmul.f32 %v2676, %v2836
        %2841 = vrot.lane.b32.xlu0 %v2837, 124
        %v2842 = vpop.permute.xlu0 %2841
        %2843 = vrot.lane.b32.xlu0 %v2838, 124
        %v2844 = vpop.permute.xlu0 %2843
        %v2847 = vadd.f32 %v2805, %v2842
        %v2848 = vadd.f32 %v2806, %v2844
        %s2849 = sld [smem:[#allocation9 + $0xbd]]
        %v2850 = vstv %s2849
        %v2851 = vmul.f32 %v2675, %v2850
        %v2852 = vmul.f32 %v2676, %v2850
        %2855 = vrot.lane.b32.xlu0 %v2851, 124
        %v2856 = vpop.permute.xlu0 %2855
        %2857 = vrot.lane.b32.xlu0 %v2852, 124
        %v2858 = vpop.permute.xlu0 %2857
        %v2861 = vadd.f32 %v2819, %v2856
        %v2862 = vadd.f32 %v2820, %v2858
        %v2863 = vld [vmem:[%s1351 + $0x3] sm:$0xff]
        %v2864 = vld [vmem:[%s1351 + $0xb] sm:$0xff]
        %s2865 = sld [smem:[#allocation9 + $0x28]]
        %v2866 = vstv %s2865
        %v2867 = vmul.f32 %v2863, %v2866
        %v2868 = vmul.f32 %v2864, %v2866
        %v2869 = vadd.f32 %v2833, %v2867
        %v2870 = vadd.f32 %v2834, %v2868
        %s2871 = sld [smem:[#allocation9 + $0x73]]
        %v2872 = vstv %s2871
        %v2873 = vmul.f32 %v2863, %v2872
        %v2874 = vmul.f32 %v2864, %v2872
        %v2875 = vadd.f32 %v2847, %v2873
        %v2876 = vadd.f32 %v2848, %v2874
        %s2877 = sld [smem:[#allocation9 + $0xbe]]
        %v2878 = vstv %s2877
        %v2879 = vmul.f32 %v2863, %v2878
        %v2880 = vmul.f32 %v2864, %v2878
        %v2881 = vadd.f32 %v2861, %v2879
        %v2882 = vadd.f32 %v2862, %v2880
        %s2883 = sld [smem:[#allocation9 + $0x29]]
        %v2884 = vstv %s2883
        %v2885 = vmul.f32 %v2863, %v2884
        %v2886 = vmul.f32 %v2864, %v2884
        %2889 = vrot.lane.b32.xlu0 %v2885, 127
        %v2890 = vpop.permute.xlu0 %2889
        %2891 = vrot.lane.b32.xlu0 %v2886, 127
        %v2892 = vpop.permute.xlu0 %2891
        %v2895 = vadd.f32 %v2869, %v2890
        %v2896 = vadd.f32 %v2870, %v2892
        %s2897 = sld [smem:[#allocation9 + $0x74]]
        %v2898 = vstv %s2897
        %v2899 = vmul.f32 %v2863, %v2898
        %v2900 = vmul.f32 %v2864, %v2898
        %2903 = vrot.lane.b32.xlu0 %v2899, 127
        %v2904 = vpop.permute.xlu0 %2903
        %2905 = vrot.lane.b32.xlu0 %v2900, 127
        %v2906 = vpop.permute.xlu0 %2905
        %v2909 = vadd.f32 %v2875, %v2904
        %v2910 = vadd.f32 %v2876, %v2906
        %s2911 = sld [smem:[#allocation9 + $0xbf]]
        %v2912 = vstv %s2911
        %v2913 = vmul.f32 %v2863, %v2912
        %v2914 = vmul.f32 %v2864, %v2912
        %2917 = vrot.lane.b32.xlu0 %v2913, 127
        %v2918 = vpop.permute.xlu0 %2917
        %2919 = vrot.lane.b32.xlu0 %v2914, 127
        %v2920 = vpop.permute.xlu0 %2919
        %v2923 = vadd.f32 %v2881, %v2918
        %v2924 = vadd.f32 %v2882, %v2920
        %s2925 = sld [smem:[#allocation9 + $0x2a]]
        %v2926 = vstv %s2925
        %v2927 = vmul.f32 %v2863, %v2926
        %v2928 = vmul.f32 %v2864, %v2926
        %2931 = vrot.lane.b32.xlu0 %v2927, 126
        %v2932 = vpop.permute.xlu0 %2931
        %2933 = vrot.lane.b32.xlu0 %v2928, 126
        %v2934 = vpop.permute.xlu0 %2933
        %v2937 = vadd.f32 %v2895, %v2932
        %v2938 = vadd.f32 %v2896, %v2934
        %s2939 = sld [smem:[#allocation9 + $0x75]]
        %v2940 = vstv %s2939
        %v2941 = vmul.f32 %v2863, %v2940
        %v2942 = vmul.f32 %v2864, %v2940
        %2945 = vrot.lane.b32.xlu0 %v2941, 126
        %v2946 = vpop.permute.xlu0 %2945
        %2947 = vrot.lane.b32.xlu0 %v2942, 126
        %v2948 = vpop.permute.xlu0 %2947
        %v2951 = vadd.f32 %v2909, %v2946
        %v2952 = vadd.f32 %v2910, %v2948
        %s2953 = sld [smem:[#allocation9 + $0xc0]]
        %v2954 = vstv %s2953
        %v2955 = vmul.f32 %v2863, %v2954
        %v2956 = vmul.f32 %v2864, %v2954
        %2959 = vrot.lane.b32.xlu0 %v2955, 126
        %v2960 = vpop.permute.xlu0 %2959
        %2961 = vrot.lane.b32.xlu0 %v2956, 126
        %v2962 = vpop.permute.xlu0 %2961
        %v2965 = vadd.f32 %v2923, %v2960
        %v2966 = vadd.f32 %v2924, %v2962
        %s2967 = sld [smem:[#allocation9 + $0x2b]]
        %v2968 = vstv %s2967
        %v2969 = vmul.f32 %v2863, %v2968
        %v2970 = vmul.f32 %v2864, %v2968
        %2973 = vrot.lane.b32.xlu0 %v2969, 125
        %v2974 = vpop.permute.xlu0 %2973
        %2975 = vrot.lane.b32.xlu0 %v2970, 125
        %v2976 = vpop.permute.xlu0 %2975
        %v2979 = vadd.f32 %v2937, %v2974
        %v2980 = vadd.f32 %v2938, %v2976
        %s2981 = sld [smem:[#allocation9 + $0x76]]
        %v2982 = vstv %s2981
        %v2983 = vmul.f32 %v2863, %v2982
        %v2984 = vmul.f32 %v2864, %v2982
        %2987 = vrot.lane.b32.xlu0 %v2983, 125
        %v2988 = vpop.permute.xlu0 %2987
        %2989 = vrot.lane.b32.xlu0 %v2984, 125
        %v2990 = vpop.permute.xlu0 %2989
        %v2993 = vadd.f32 %v2951, %v2988
        %v2994 = vadd.f32 %v2952, %v2990
        %s2995 = sld [smem:[#allocation9 + $0xc1]]
        %v2996 = vstv %s2995
        %v2997 = vmul.f32 %v2863, %v2996
        %v2998 = vmul.f32 %v2864, %v2996
        %3001 = vrot.lane.b32.xlu0 %v2997, 125
        %v3002 = vpop.permute.xlu0 %3001
        %3003 = vrot.lane.b32.xlu0 %v2998, 125
        %v3004 = vpop.permute.xlu0 %3003
        %v3007 = vadd.f32 %v2965, %v3002
        %v3008 = vadd.f32 %v2966, %v3004
        %s3009 = sld [smem:[#allocation9 + $0x2c]]
        %v3010 = vstv %s3009
        %v3011 = vmul.f32 %v2863, %v3010
        %v3012 = vmul.f32 %v2864, %v3010
        %3015 = vrot.lane.b32.xlu0 %v3011, 124
        %v3016 = vpop.permute.xlu0 %3015
        %3017 = vrot.lane.b32.xlu0 %v3012, 124
        %v3018 = vpop.permute.xlu0 %3017
        %v3021 = vadd.f32 %v2979, %v3016
        %v3022 = vadd.f32 %v2980, %v3018
        %s3023 = sld [smem:[#allocation9 + $0x77]]
        %v3024 = vstv %s3023
        %v3025 = vmul.f32 %v2863, %v3024
        %v3026 = vmul.f32 %v2864, %v3024
        %3029 = vrot.lane.b32.xlu0 %v3025, 124
        %v3030 = vpop.permute.xlu0 %3029
        %3031 = vrot.lane.b32.xlu0 %v3026, 124
        %v3032 = vpop.permute.xlu0 %3031
        %v3035 = vadd.f32 %v2993, %v3030
        %v3036 = vadd.f32 %v2994, %v3032
        %s3037 = sld [smem:[#allocation9 + $0xc2]]
        %v3038 = vstv %s3037
        %v3039 = vmul.f32 %v2863, %v3038
        %v3040 = vmul.f32 %v2864, %v3038
        %3043 = vrot.lane.b32.xlu0 %v3039, 124
        %v3044 = vpop.permute.xlu0 %3043
        %3045 = vrot.lane.b32.xlu0 %v3040, 124
        %v3046 = vpop.permute.xlu0 %3045
        %v3049 = vadd.f32 %v3007, %v3044
        %v3050 = vadd.f32 %v3008, %v3046
        %v3051 = vld [vmem:[%s1351 + $0x4] sm:$0xff]
        %v3052 = vld [vmem:[%s1351 + $0xc] sm:$0xff]
        %s3053 = sld [smem:[#allocation9 + $0x2d]]
        %v3054 = vstv %s3053
        %v3055 = vmul.f32 %v3051, %v3054
        %v3056 = vmul.f32 %v3052, %v3054
        %v3057 = vadd.f32 %v3021, %v3055
        %v3058 = vadd.f32 %v3022, %v3056
        %s3059 = sld [smem:[#allocation9 + $0x78]]
        %v3060 = vstv %s3059
        %v3061 = vmul.f32 %v3051, %v3060
        %v3062 = vmul.f32 %v3052, %v3060
        %v3063 = vadd.f32 %v3035, %v3061
        %v3064 = vadd.f32 %v3036, %v3062
        %s3065 = sld [smem:[#allocation9 + $0xc3]]
        %v3066 = vstv %s3065
        %v3067 = vmul.f32 %v3051, %v3066
        %v3068 = vmul.f32 %v3052, %v3066
        %v3069 = vadd.f32 %v3049, %v3067
        %v3070 = vadd.f32 %v3050, %v3068
        %s3071 = sld [smem:[#allocation9 + $0x2e]]
        %v3072 = vstv %s3071
        %v3073 = vmul.f32 %v3051, %v3072
        %v3074 = vmul.f32 %v3052, %v3072
        %3077 = vrot.lane.b32.xlu0 %v3073, 127
        %v3078 = vpop.permute.xlu0 %3077
        %3079 = vrot.lane.b32.xlu0 %v3074, 127
        %v3080 = vpop.permute.xlu0 %3079
        %v3083 = vadd.f32 %v3057, %v3078
        %v3084 = vadd.f32 %v3058, %v3080
        %s3085 = sld [smem:[#allocation9 + $0x79]]
        %v3086 = vstv %s3085
        %v3087 = vmul.f32 %v3051, %v3086
        %v3088 = vmul.f32 %v3052, %v3086
        %3091 = vrot.lane.b32.xlu0 %v3087, 127
        %v3092 = vpop.permute.xlu0 %3091
        %3093 = vrot.lane.b32.xlu0 %v3088, 127
        %v3094 = vpop.permute.xlu0 %3093
        %v3097 = vadd.f32 %v3063, %v3092
        %v3098 = vadd.f32 %v3064, %v3094
        %s3099 = sld [smem:[#allocation9 + $0xc4]]
        %v3100 = vstv %s3099
        %v3101 = vmul.f32 %v3051, %v3100
        %v3102 = vmul.f32 %v3052, %v3100
        %3105 = vrot.lane.b32.xlu0 %v3101, 127
        %v3106 = vpop.permute.xlu0 %3105
        %3107 = vrot.lane.b32.xlu0 %v3102, 127
        %v3108 = vpop.permute.xlu0 %3107
        %v3111 = vadd.f32 %v3069, %v3106
        %v3112 = vadd.f32 %v3070, %v3108
        %s3113 = sld [smem:[#allocation9 + $0x2f]]
        %v3114 = vstv %s3113
        %v3115 = vmul.f32 %v3051, %v3114
        %v3116 = vmul.f32 %v3052, %v3114
        %3119 = vrot.lane.b32.xlu0 %v3115, 126
        %v3120 = vpop.permute.xlu0 %3119
        %3121 = vrot.lane.b32.xlu0 %v3116, 126
        %v3122 = vpop.permute.xlu0 %3121
        %v3125 = vadd.f32 %v3083, %v3120
        %v3126 = vadd.f32 %v3084, %v3122
        %s3127 = sld [smem:[#allocation9 + $0x7a]]
        %v3128 = vstv %s3127
        %v3129 = vmul.f32 %v3051, %v3128
        %v3130 = vmul.f32 %v3052, %v3128
        %3133 = vrot.lane.b32.xlu0 %v3129, 126
        %v3134 = vpop.permute.xlu0 %3133
        %3135 = vrot.lane.b32.xlu0 %v3130, 126
        %v3136 = vpop.permute.xlu0 %3135
        %v3139 = vadd.f32 %v3097, %v3134
        %v3140 = vadd.f32 %v3098, %v3136
        %s3141 = sld [smem:[#allocation9 + $0xc5]]
        %v3142 = vstv %s3141
        %v3143 = vmul.f32 %v3051, %v3142
        %v3144 = vmul.f32 %v3052, %v3142
        %3147 = vrot.lane.b32.xlu0 %v3143, 126
        %v3148 = vpop.permute.xlu0 %3147
        %3149 = vrot.lane.b32.xlu0 %v3144, 126
        %v3150 = vpop.permute.xlu0 %3149
        %v3153 = vadd.f32 %v3111, %v3148
        %v3154 = vadd.f32 %v3112, %v3150
        %s3155 = sld [smem:[#allocation9 + $0x30]]
        %v3156 = vstv %s3155
        %v3157 = vmul.f32 %v3051, %v3156
        %v3158 = vmul.f32 %v3052, %v3156
        %3161 = vrot.lane.b32.xlu0 %v3157, 125
        %v3162 = vpop.permute.xlu0 %3161
        %3163 = vrot.lane.b32.xlu0 %v3158, 125
        %v3164 = vpop.permute.xlu0 %3163
        %v3167 = vadd.f32 %v3125, %v3162
        %v3168 = vadd.f32 %v3126, %v3164
        %s3169 = sld [smem:[#allocation9 + $0x7b]]
        %v3170 = vstv %s3169
        %v3171 = vmul.f32 %v3051, %v3170
        %v3172 = vmul.f32 %v3052, %v3170
        %3175 = vrot.lane.b32.xlu0 %v3171, 125
        %v3176 = vpop.permute.xlu0 %3175
        %3177 = vrot.lane.b32.xlu0 %v3172, 125
        %v3178 = vpop.permute.xlu0 %3177
        %v3181 = vadd.f32 %v3139, %v3176
        %v3182 = vadd.f32 %v3140, %v3178
        %s3183 = sld [smem:[#allocation9 + $0xc6]]
        %v3184 = vstv %s3183
        %v3185 = vmul.f32 %v3051, %v3184
        %v3186 = vmul.f32 %v3052, %v3184
        %3189 = vrot.lane.b32.xlu0 %v3185, 125
        %v3190 = vpop.permute.xlu0 %3189
        %3191 = vrot.lane.b32.xlu0 %v3186, 125
        %v3192 = vpop.permute.xlu0 %3191
        %v3195 = vadd.f32 %v3153, %v3190
        %v3196 = vadd.f32 %v3154, %v3192
        %s3197 = sld [smem:[#allocation9 + $0x31]]
        %v3198 = vstv %s3197
        %v3199 = vmul.f32 %v3051, %v3198
        %v3200 = vmul.f32 %v3052, %v3198
        %3203 = vrot.lane.b32.xlu0 %v3199, 124
        %v3204 = vpop.permute.xlu0 %3203
        %3205 = vrot.lane.b32.xlu0 %v3200, 124
        %v3206 = vpop.permute.xlu0 %3205
        %v3209 = vadd.f32 %v3167, %v3204
        %v3210 = vadd.f32 %v3168, %v3206
        %s3211 = sld [smem:[#allocation9 + $0x7c]]
        %v3212 = vstv %s3211
        %v3213 = vmul.f32 %v3051, %v3212
        %v3214 = vmul.f32 %v3052, %v3212
        %3217 = vrot.lane.b32.xlu0 %v3213, 124
        %v3218 = vpop.permute.xlu0 %3217
        %3219 = vrot.lane.b32.xlu0 %v3214, 124
        %v3220 = vpop.permute.xlu0 %3219
        %v3223 = vadd.f32 %v3181, %v3218
        %v3224 = vadd.f32 %v3182, %v3220
        %s3225 = sld [smem:[#allocation9 + $0xc7]]
        %v3226 = vstv %s3225
        %v3227 = vmul.f32 %v3051, %v3226
        %v3228 = vmul.f32 %v3052, %v3226
        %3231 = vrot.lane.b32.xlu0 %v3227, 124
        %v3232 = vpop.permute.xlu0 %3231
        %3233 = vrot.lane.b32.xlu0 %v3228, 124
        %v3234 = vpop.permute.xlu0 %3233
        %v3237 = vadd.f32 %v3195, %v3232
        %v3238 = vadd.f32 %v3196, %v3234
        %v3239 = vld [vmem:[%s1362] sm:$0xff]
        %v3240 = vld [vmem:[%s1362 + $0x8] sm:$0xff]
        %s3241 = sld [smem:[#allocation9 + $0x32]]
        %v3242 = vstv %s3241
        %v3243 = vmul.f32 %v3239, %v3242
        %v3244 = vmul.f32 %v3240, %v3242
        %v3245 = vadd.f32 %v3209, %v3243
        %v3246 = vadd.f32 %v3210, %v3244
        %s3247 = sld [smem:[#allocation9 + $0x7d]]
        %v3248 = vstv %s3247
        %v3249 = vmul.f32 %v3239, %v3248
        %v3250 = vmul.f32 %v3240, %v3248
        %v3251 = vadd.f32 %v3223, %v3249
        %v3252 = vadd.f32 %v3224, %v3250
        %s3253 = sld [smem:[#allocation9 + $0xc8]]
        %v3254 = vstv %s3253
        %v3255 = vmul.f32 %v3239, %v3254
        %v3256 = vmul.f32 %v3240, %v3254
        %v3257 = vadd.f32 %v3237, %v3255
        %v3258 = vadd.f32 %v3238, %v3256
        %s3259 = sld [smem:[#allocation9 + $0x33]]
        %v3260 = vstv %s3259
        %v3261 = vmul.f32 %v3239, %v3260
        %v3262 = vmul.f32 %v3240, %v3260
        %3265 = vrot.lane.b32.xlu0 %v3261, 127
        %v3266 = vpop.permute.xlu0 %3265
        %3267 = vrot.lane.b32.xlu0 %v3262, 127
        %v3268 = vpop.permute.xlu0 %3267
        %v3271 = vadd.f32 %v3245, %v3266
        %v3272 = vadd.f32 %v3246, %v3268
        %s3273 = sld [smem:[#allocation9 + $0x7e]]
        %v3274 = vstv %s3273
        %v3275 = vmul.f32 %v3239, %v3274
        %v3276 = vmul.f32 %v3240, %v3274
        %3279 = vrot.lane.b32.xlu0 %v3275, 127
        %v3280 = vpop.permute.xlu0 %3279
        %3281 = vrot.lane.b32.xlu0 %v3276, 127
        %v3282 = vpop.permute.xlu0 %3281
        %v3285 = vadd.f32 %v3251, %v3280
        %v3286 = vadd.f32 %v3252, %v3282
        %s3287 = sld [smem:[#allocation9 + $0xc9]]
        %v3288 = vstv %s3287
        %v3289 = vmul.f32 %v3239, %v3288
        %v3290 = vmul.f32 %v3240, %v3288
        %3293 = vrot.lane.b32.xlu0 %v3289, 127
        %v3294 = vpop.permute.xlu0 %3293
        %3295 = vrot.lane.b32.xlu0 %v3290, 127
        %v3296 = vpop.permute.xlu0 %3295
        %v3299 = vadd.f32 %v3257, %v3294
        %v3300 = vadd.f32 %v3258, %v3296
        %s3301 = sld [smem:[#allocation9 + $0x34]]
        %v3302 = vstv %s3301
        %v3303 = vmul.f32 %v3239, %v3302
        %v3304 = vmul.f32 %v3240, %v3302
        %3307 = vrot.lane.b32.xlu0 %v3303, 126
        %v3308 = vpop.permute.xlu0 %3307
        %3309 = vrot.lane.b32.xlu0 %v3304, 126
        %v3310 = vpop.permute.xlu0 %3309
        %v3313 = vadd.f32 %v3271, %v3308
        %v3314 = vadd.f32 %v3272, %v3310
        %s3315 = sld [smem:[#allocation9 + $0x7f]]
        %v3316 = vstv %s3315
        %v3317 = vmul.f32 %v3239, %v3316
        %v3318 = vmul.f32 %v3240, %v3316
        %3321 = vrot.lane.b32.xlu0 %v3317, 126
        %v3322 = vpop.permute.xlu0 %3321
        %3323 = vrot.lane.b32.xlu0 %v3318, 126
        %v3324 = vpop.permute.xlu0 %3323
        %v3327 = vadd.f32 %v3285, %v3322
        %v3328 = vadd.f32 %v3286, %v3324
        %s3329 = sld [smem:[#allocation9 + $0xca]]
        %v3330 = vstv %s3329
        %v3331 = vmul.f32 %v3239, %v3330
        %v3332 = vmul.f32 %v3240, %v3330
        %3335 = vrot.lane.b32.xlu0 %v3331, 126
        %v3336 = vpop.permute.xlu0 %3335
        %3337 = vrot.lane.b32.xlu0 %v3332, 126
        %v3338 = vpop.permute.xlu0 %3337
        %v3341 = vadd.f32 %v3299, %v3336
        %v3342 = vadd.f32 %v3300, %v3338
        %s3343 = sld [smem:[#allocation9 + $0x35]]
        %v3344 = vstv %s3343
        %v3345 = vmul.f32 %v3239, %v3344
        %v3346 = vmul.f32 %v3240, %v3344
        %3349 = vrot.lane.b32.xlu0 %v3345, 125
        %v3350 = vpop.permute.xlu0 %3349
        %3351 = vrot.lane.b32.xlu0 %v3346, 125
        %v3352 = vpop.permute.xlu0 %3351
        %v3355 = vadd.f32 %v3313, %v3350
        %v3356 = vadd.f32 %v3314, %v3352
        %s3357 = sld [smem:[#allocation9 + $0x80]]
        %v3358 = vstv %s3357
        %v3359 = vmul.f32 %v3239, %v3358
        %v3360 = vmul.f32 %v3240, %v3358
        %3363 = vrot.lane.b32.xlu0 %v3359, 125
        %v3364 = vpop.permute.xlu0 %3363
        %3365 = vrot.lane.b32.xlu0 %v3360, 125
        %v3366 = vpop.permute.xlu0 %3365
        %v3369 = vadd.f32 %v3327, %v3364
        %v3370 = vadd.f32 %v3328, %v3366
        %s3371 = sld [smem:[#allocation9 + $0xcb]]
        %v3372 = vstv %s3371
        %v3373 = vmul.f32 %v3239, %v3372
        %v3374 = vmul.f32 %v3240, %v3372
        %3377 = vrot.lane.b32.xlu0 %v3373, 125
        %v3378 = vpop.permute.xlu0 %3377
        %3379 = vrot.lane.b32.xlu0 %v3374, 125
        %v3380 = vpop.permute.xlu0 %3379
        %v3383 = vadd.f32 %v3341, %v3378
        %v3384 = vadd.f32 %v3342, %v3380
        %s3385 = sld [smem:[#allocation9 + $0x36]]
        %v3386 = vstv %s3385
        %v3387 = vmul.f32 %v3239, %v3386
        %v3388 = vmul.f32 %v3240, %v3386
        %3391 = vrot.lane.b32.xlu0 %v3387, 124
        %v3392 = vpop.permute.xlu0 %3391
        %3393 = vrot.lane.b32.xlu0 %v3388, 124
        %v3394 = vpop.permute.xlu0 %3393
        %v3397 = vadd.f32 %v3355, %v3392
        %v3398 = vadd.f32 %v3356, %v3394
        %s3399 = sld [smem:[#allocation9 + $0x81]]
        %v3400 = vstv %s3399
        %v3401 = vmul.f32 %v3239, %v3400
        %v3402 = vmul.f32 %v3240, %v3400
        %3405 = vrot.lane.b32.xlu0 %v3401, 124
        %v3406 = vpop.permute.xlu0 %3405
        %3407 = vrot.lane.b32.xlu0 %v3402, 124
        %v3408 = vpop.permute.xlu0 %3407
        %v3411 = vadd.f32 %v3369, %v3406
        %v3412 = vadd.f32 %v3370, %v3408
        %s3413 = sld [smem:[#allocation9 + $0xcc]]
        %v3414 = vstv %s3413
        %v3415 = vmul.f32 %v3239, %v3414
        %v3416 = vmul.f32 %v3240, %v3414
        %3419 = vrot.lane.b32.xlu0 %v3415, 124
        %v3420 = vpop.permute.xlu0 %3419
        %3421 = vrot.lane.b32.xlu0 %v3416, 124
        %v3422 = vpop.permute.xlu0 %3421
        %v3425 = vadd.f32 %v3383, %v3420
        %v3426 = vadd.f32 %v3384, %v3422
        %v3427 = vld [vmem:[%s1362 + $0x1] sm:$0xff]
        %v3428 = vld [vmem:[%s1362 + $0x9] sm:$0xff]
        %s3429 = sld [smem:[#allocation9 + $0x37]]
        %v3430 = vstv %s3429
        %v3431 = vmul.f32 %v3427, %v3430
        %v3432 = vmul.f32 %v3428, %v3430
        %v3433 = vadd.f32 %v3397, %v3431
        %v3434 = vadd.f32 %v3398, %v3432
        %s3435 = sld [smem:[#allocation9 + $0x82]]
        %v3436 = vstv %s3435
        %v3437 = vmul.f32 %v3427, %v3436
        %v3438 = vmul.f32 %v3428, %v3436
        %v3439 = vadd.f32 %v3411, %v3437
        %v3440 = vadd.f32 %v3412, %v3438
        %s3441 = sld [smem:[#allocation9 + $0xcd]]
        %v3442 = vstv %s3441
        %v3443 = vmul.f32 %v3427, %v3442
        %v3444 = vmul.f32 %v3428, %v3442
        %v3445 = vadd.f32 %v3425, %v3443
        %v3446 = vadd.f32 %v3426, %v3444
        %s3447 = sld [smem:[#allocation9 + $0x38]]
        %v3448 = vstv %s3447
        %v3449 = vmul.f32 %v3427, %v3448
        %v3450 = vmul.f32 %v3428, %v3448
        %3453 = vrot.lane.b32.xlu0 %v3449, 127
        %v3454 = vpop.permute.xlu0 %3453
        %3455 = vrot.lane.b32.xlu0 %v3450, 127
        %v3456 = vpop.permute.xlu0 %3455
        %v3459 = vadd.f32 %v3433, %v3454
        %v3460 = vadd.f32 %v3434, %v3456
        %s3461 = sld [smem:[#allocation9 + $0x83]]
        %v3462 = vstv %s3461
        %v3463 = vmul.f32 %v3427, %v3462
        %v3464 = vmul.f32 %v3428, %v3462
        %3467 = vrot.lane.b32.xlu0 %v3463, 127
        %v3468 = vpop.permute.xlu0 %3467
        %3469 = vrot.lane.b32.xlu0 %v3464, 127
        %v3470 = vpop.permute.xlu0 %3469
        %v3473 = vadd.f32 %v3439, %v3468
        %v3474 = vadd.f32 %v3440, %v3470
        %s3475 = sld [smem:[#allocation9 + $0xce]]
        %v3476 = vstv %s3475
        %v3477 = vmul.f32 %v3427, %v3476
        %v3478 = vmul.f32 %v3428, %v3476
        %3481 = vrot.lane.b32.xlu0 %v3477, 127
        %v3482 = vpop.permute.xlu0 %3481
        %3483 = vrot.lane.b32.xlu0 %v3478, 127
        %v3484 = vpop.permute.xlu0 %3483
        %v3487 = vadd.f32 %v3445, %v3482
        %v3488 = vadd.f32 %v3446, %v3484
        %s3489 = sld [smem:[#allocation9 + $0x39]]
        %v3490 = vstv %s3489
        %v3491 = vmul.f32 %v3427, %v3490
        %v3492 = vmul.f32 %v3428, %v3490
        %3495 = vrot.lane.b32.xlu0 %v3491, 126
        %v3496 = vpop.permute.xlu0 %3495
        %3497 = vrot.lane.b32.xlu0 %v3492, 126
        %v3498 = vpop.permute.xlu0 %3497
        %v3501 = vadd.f32 %v3459, %v3496
        %v3502 = vadd.f32 %v3460, %v3498
        %s3503 = sld [smem:[#allocation9 + $0x84]]
        %v3504 = vstv %s3503
        %v3505 = vmul.f32 %v3427, %v3504
        %v3506 = vmul.f32 %v3428, %v3504
        %3509 = vrot.lane.b32.xlu0 %v3505, 126
        %v3510 = vpop.permute.xlu0 %3509
        %3511 = vrot.lane.b32.xlu0 %v3506, 126
        %v3512 = vpop.permute.xlu0 %3511
        %v3515 = vadd.f32 %v3473, %v3510
        %v3516 = vadd.f32 %v3474, %v3512
        %s3517 = sld [smem:[#allocation9 + $0xcf]]
        %v3518 = vstv %s3517
        %v3519 = vmul.f32 %v3427, %v3518
        %v3520 = vmul.f32 %v3428, %v3518
        %3523 = vrot.lane.b32.xlu0 %v3519, 126
        %v3524 = vpop.permute.xlu0 %3523
        %3525 = vrot.lane.b32.xlu0 %v3520, 126
        %v3526 = vpop.permute.xlu0 %3525
        %v3529 = vadd.f32 %v3487, %v3524
        %v3530 = vadd.f32 %v3488, %v3526
        %s3531 = sld [smem:[#allocation9 + $0x3a]]
        %v3532 = vstv %s3531
        %v3533 = vmul.f32 %v3427, %v3532
        %v3534 = vmul.f32 %v3428, %v3532
        %3537 = vrot.lane.b32.xlu0 %v3533, 125
        %v3538 = vpop.permute.xlu0 %3537
        %3539 = vrot.lane.b32.xlu0 %v3534, 125
        %v3540 = vpop.permute.xlu0 %3539
        %v3543 = vadd.f32 %v3501, %v3538
        %v3544 = vadd.f32 %v3502, %v3540
        %s3545 = sld [smem:[#allocation9 + $0x85]]
        %v3546 = vstv %s3545
        %v3547 = vmul.f32 %v3427, %v3546
        %v3548 = vmul.f32 %v3428, %v3546
        %3551 = vrot.lane.b32.xlu0 %v3547, 125
        %v3552 = vpop.permute.xlu0 %3551
        %3553 = vrot.lane.b32.xlu0 %v3548, 125
        %v3554 = vpop.permute.xlu0 %3553
        %v3557 = vadd.f32 %v3515, %v3552
        %v3558 = vadd.f32 %v3516, %v3554
        %s3559 = sld [smem:[#allocation9 + $0xd0]]
        %v3560 = vstv %s3559
        %v3561 = vmul.f32 %v3427, %v3560
        %v3562 = vmul.f32 %v3428, %v3560
        %3565 = vrot.lane.b32.xlu0 %v3561, 125
        %v3566 = vpop.permute.xlu0 %3565
        %3567 = vrot.lane.b32.xlu0 %v3562, 125
        %v3568 = vpop.permute.xlu0 %3567
        %v3571 = vadd.f32 %v3529, %v3566
        %v3572 = vadd.f32 %v3530, %v3568
        %s3573 = sld [smem:[#allocation9 + $0x3b]]
        %v3574 = vstv %s3573
        %v3575 = vmul.f32 %v3427, %v3574
        %v3576 = vmul.f32 %v3428, %v3574
        %3579 = vrot.lane.b32.xlu0 %v3575, 124
        %v3580 = vpop.permute.xlu0 %3579
        %3581 = vrot.lane.b32.xlu0 %v3576, 124
        %v3582 = vpop.permute.xlu0 %3581
        %v3585 = vadd.f32 %v3543, %v3580
        %v3586 = vadd.f32 %v3544, %v3582
        %s3587 = sld [smem:[#allocation9 + $0x86]]
        %v3588 = vstv %s3587
        %v3589 = vmul.f32 %v3427, %v3588
        %v3590 = vmul.f32 %v3428, %v3588
        %3593 = vrot.lane.b32.xlu0 %v3589, 124
        %v3594 = vpop.permute.xlu0 %3593
        %3595 = vrot.lane.b32.xlu0 %v3590, 124
        %v3596 = vpop.permute.xlu0 %3595
        %v3599 = vadd.f32 %v3557, %v3594
        %v3600 = vadd.f32 %v3558, %v3596
        %s3601 = sld [smem:[#allocation9 + $0xd1]]
        %v3602 = vstv %s3601
        %v3603 = vmul.f32 %v3427, %v3602
        %v3604 = vmul.f32 %v3428, %v3602
        %3607 = vrot.lane.b32.xlu0 %v3603, 124
        %v3608 = vpop.permute.xlu0 %3607
        %3609 = vrot.lane.b32.xlu0 %v3604, 124
        %v3610 = vpop.permute.xlu0 %3609
        %v3613 = vadd.f32 %v3571, %v3608
        %v3614 = vadd.f32 %v3572, %v3610
        %v3615 = vld [vmem:[%s1362 + $0x2] sm:$0xff]
        %v3616 = vld [vmem:[%s1362 + $0xa] sm:$0xff]
        %s3617 = sld [smem:[#allocation9 + $0x3c]]
        %v3618 = vstv %s3617
        %v3619 = vmul.f32 %v3615, %v3618
        %v3620 = vmul.f32 %v3616, %v3618
        %v3621 = vadd.f32 %v3585, %v3619
        %v3622 = vadd.f32 %v3586, %v3620
        %s3623 = sld [smem:[#allocation9 + $0x87]]
        %v3624 = vstv %s3623
        %v3625 = vmul.f32 %v3615, %v3624
        %v3626 = vmul.f32 %v3616, %v3624
        %v3627 = vadd.f32 %v3599, %v3625
        %v3628 = vadd.f32 %v3600, %v3626
        %s3629 = sld [smem:[#allocation9 + $0xd2]]
        %v3630 = vstv %s3629
        %v3631 = vmul.f32 %v3615, %v3630
        %v3632 = vmul.f32 %v3616, %v3630
        %v3633 = vadd.f32 %v3613, %v3631
        %v3634 = vadd.f32 %v3614, %v3632
        %s3635 = sld [smem:[#allocation9 + $0x3d]]
        %v3636 = vstv %s3635
        %v3637 = vmul.f32 %v3615, %v3636
        %v3638 = vmul.f32 %v3616, %v3636
        %3641 = vrot.lane.b32.xlu0 %v3637, 127
        %v3642 = vpop.permute.xlu0 %3641
        %3643 = vrot.lane.b32.xlu0 %v3638, 127
        %v3644 = vpop.permute.xlu0 %3643
        %v3647 = vadd.f32 %v3621, %v3642
        %v3648 = vadd.f32 %v3622, %v3644
        %s3649 = sld [smem:[#allocation9 + $0x88]]
        %v3650 = vstv %s3649
        %v3651 = vmul.f32 %v3615, %v3650
        %v3652 = vmul.f32 %v3616, %v3650
        %3655 = vrot.lane.b32.xlu0 %v3651, 127
        %v3656 = vpop.permute.xlu0 %3655
        %3657 = vrot.lane.b32.xlu0 %v3652, 127
        %v3658 = vpop.permute.xlu0 %3657
        %v3661 = vadd.f32 %v3627, %v3656
        %v3662 = vadd.f32 %v3628, %v3658
        %s3663 = sld [smem:[#allocation9 + $0xd3]]
        %v3664 = vstv %s3663
        %v3665 = vmul.f32 %v3615, %v3664
        %v3666 = vmul.f32 %v3616, %v3664
        %3669 = vrot.lane.b32.xlu0 %v3665, 127
        %v3670 = vpop.permute.xlu0 %3669
        %3671 = vrot.lane.b32.xlu0 %v3666, 127
        %v3672 = vpop.permute.xlu0 %3671
        %v3675 = vadd.f32 %v3633, %v3670
        %v3676 = vadd.f32 %v3634, %v3672
        %s3677 = sld [smem:[#allocation9 + $0x3e]]
        %v3678 = vstv %s3677
        %v3679 = vmul.f32 %v3615, %v3678
        %v3680 = vmul.f32 %v3616, %v3678
        %3683 = vrot.lane.b32.xlu0 %v3679, 126
        %v3684 = vpop.permute.xlu0 %3683
        %3685 = vrot.lane.b32.xlu0 %v3680, 126
        %v3686 = vpop.permute.xlu0 %3685
        %v3689 = vadd.f32 %v3647, %v3684
        %v3690 = vadd.f32 %v3648, %v3686
        %s3691 = sld [smem:[#allocation9 + $0x89]]
        %v3692 = vstv %s3691
        %v3693 = vmul.f32 %v3615, %v3692
        %v3694 = vmul.f32 %v3616, %v3692
        %3697 = vrot.lane.b32.xlu0 %v3693, 126
        %v3698 = vpop.permute.xlu0 %3697
        %3699 = vrot.lane.b32.xlu0 %v3694, 126
        %v3700 = vpop.permute.xlu0 %3699
        %v3703 = vadd.f32 %v3661, %v3698
        %v3704 = vadd.f32 %v3662, %v3700
        %s3705 = sld [smem:[#allocation9 + $0xd4]]
        %v3706 = vstv %s3705
        %v3707 = vmul.f32 %v3615, %v3706
        %v3708 = vmul.f32 %v3616, %v3706
        %3711 = vrot.lane.b32.xlu0 %v3707, 126
        %v3712 = vpop.permute.xlu0 %3711
        %3713 = vrot.lane.b32.xlu0 %v3708, 126
        %v3714 = vpop.permute.xlu0 %3713
        %v3717 = vadd.f32 %v3675, %v3712
        %v3718 = vadd.f32 %v3676, %v3714
        %s3719 = sld [smem:[#allocation9 + $0x3f]]
        %v3720 = vstv %s3719
        %v3721 = vmul.f32 %v3615, %v3720
        %v3722 = vmul.f32 %v3616, %v3720
        %3725 = vrot.lane.b32.xlu0 %v3721, 125
        %v3726 = vpop.permute.xlu0 %3725
        %3727 = vrot.lane.b32.xlu0 %v3722, 125
        %v3728 = vpop.permute.xlu0 %3727
        %v3731 = vadd.f32 %v3689, %v3726
        %v3732 = vadd.f32 %v3690, %v3728
        %s3733 = sld [smem:[#allocation9 + $0x8a]]
        %v3734 = vstv %s3733
        %v3735 = vmul.f32 %v3615, %v3734
        %v3736 = vmul.f32 %v3616, %v3734
        %3739 = vrot.lane.b32.xlu0 %v3735, 125
        %v3740 = vpop.permute.xlu0 %3739
        %3741 = vrot.lane.b32.xlu0 %v3736, 125
        %v3742 = vpop.permute.xlu0 %3741
        %v3745 = vadd.f32 %v3703, %v3740
        %v3746 = vadd.f32 %v3704, %v3742
        %s3747 = sld [smem:[#allocation9 + $0xd5]]
        %v3748 = vstv %s3747
        %v3749 = vmul.f32 %v3615, %v3748
        %v3750 = vmul.f32 %v3616, %v3748
        %3753 = vrot.lane.b32.xlu0 %v3749, 125
        %v3754 = vpop.permute.xlu0 %3753
        %3755 = vrot.lane.b32.xlu0 %v3750, 125
        %v3756 = vpop.permute.xlu0 %3755
        %v3759 = vadd.f32 %v3717, %v3754
        %v3760 = vadd.f32 %v3718, %v3756
        %s3761 = sld [smem:[#allocation9 + $0x40]]
        %v3762 = vstv %s3761
        %v3763 = vmul.f32 %v3615, %v3762
        %v3764 = vmul.f32 %v3616, %v3762
        %3767 = vrot.lane.b32.xlu0 %v3763, 124
        %v3768 = vpop.permute.xlu0 %3767
        %3769 = vrot.lane.b32.xlu0 %v3764, 124
        %v3770 = vpop.permute.xlu0 %3769
        %v3773 = vadd.f32 %v3731, %v3768
        %v3774 = vadd.f32 %v3732, %v3770
        %s3775 = sld [smem:[#allocation9 + $0x8b]]
        %v3776 = vstv %s3775
        %v3777 = vmul.f32 %v3615, %v3776
        %v3778 = vmul.f32 %v3616, %v3776
        %3781 = vrot.lane.b32.xlu0 %v3777, 124
        %v3782 = vpop.permute.xlu0 %3781
        %3783 = vrot.lane.b32.xlu0 %v3778, 124
        %v3784 = vpop.permute.xlu0 %3783
        %v3787 = vadd.f32 %v3745, %v3782
        %v3788 = vadd.f32 %v3746, %v3784
        %s3789 = sld [smem:[#allocation9 + $0xd6]]
        %v3790 = vstv %s3789
        %v3791 = vmul.f32 %v3615, %v3790
        %v3792 = vmul.f32 %v3616, %v3790
        %3795 = vrot.lane.b32.xlu0 %v3791, 124
        %v3796 = vpop.permute.xlu0 %3795
        %3797 = vrot.lane.b32.xlu0 %v3792, 124
        %v3798 = vpop.permute.xlu0 %3797
        %v3801 = vadd.f32 %v3759, %v3796
        %v3802 = vadd.f32 %v3760, %v3798
        %v3803 = vld [vmem:[%s1362 + $0x3] sm:$0xff]
        %v3804 = vld [vmem:[%s1362 + $0xb] sm:$0xff]
        %s3805 = sld [smem:[#allocation9 + $0x41]]
        %v3806 = vstv %s3805
        %v3807 = vmul.f32 %v3803, %v3806
        %v3808 = vmul.f32 %v3804, %v3806
        %v3809 = vadd.f32 %v3773, %v3807
        %v3810 = vadd.f32 %v3774, %v3808
        %s3811 = sld [smem:[#allocation9 + $0x8c]]
        %v3812 = vstv %s3811
        %v3813 = vmul.f32 %v3803, %v3812
        %v3814 = vmul.f32 %v3804, %v3812
        %v3815 = vadd.f32 %v3787, %v3813
        %v3816 = vadd.f32 %v3788, %v3814
        %s3817 = sld [smem:[#allocation9 + $0xd7]]
        %v3818 = vstv %s3817
        %v3819 = vmul.f32 %v3803, %v3818
        %v3820 = vmul.f32 %v3804, %v3818
        %v3821 = vadd.f32 %v3801, %v3819
        %v3822 = vadd.f32 %v3802, %v3820
        %s3823 = sld [smem:[#allocation9 + $0x42]]
        %v3824 = vstv %s3823
        %v3825 = vmul.f32 %v3803, %v3824
        %v3826 = vmul.f32 %v3804, %v3824
        %3829 = vrot.lane.b32.xlu0 %v3825, 127
        %v3830 = vpop.permute.xlu0 %3829
        %3831 = vrot.lane.b32.xlu0 %v3826, 127
        %v3832 = vpop.permute.xlu0 %3831
        %v3835 = vadd.f32 %v3809, %v3830
        %v3836 = vadd.f32 %v3810, %v3832
        %s3837 = sld [smem:[#allocation9 + $0x8d]]
        %v3838 = vstv %s3837
        %v3839 = vmul.f32 %v3803, %v3838
        %v3840 = vmul.f32 %v3804, %v3838
        %3843 = vrot.lane.b32.xlu0 %v3839, 127
        %v3844 = vpop.permute.xlu0 %3843
        %3845 = vrot.lane.b32.xlu0 %v3840, 127
        %v3846 = vpop.permute.xlu0 %3845
        %v3849 = vadd.f32 %v3815, %v3844
        %v3850 = vadd.f32 %v3816, %v3846
        %s3851 = sld [smem:[#allocation9 + $0xd8]]
        %v3852 = vstv %s3851
        %v3853 = vmul.f32 %v3803, %v3852
        %v3854 = vmul.f32 %v3804, %v3852
        %3857 = vrot.lane.b32.xlu0 %v3853, 127
        %v3858 = vpop.permute.xlu0 %3857
        %3859 = vrot.lane.b32.xlu0 %v3854, 127
        %v3860 = vpop.permute.xlu0 %3859
        %v3863 = vadd.f32 %v3821, %v3858
        %v3864 = vadd.f32 %v3822, %v3860
        %s3865 = sld [smem:[#allocation9 + $0x43]]
        %v3866 = vstv %s3865
        %v3867 = vmul.f32 %v3803, %v3866
        %v3868 = vmul.f32 %v3804, %v3866
        %3871 = vrot.lane.b32.xlu0 %v3867, 126
        %v3872 = vpop.permute.xlu0 %3871
        %3873 = vrot.lane.b32.xlu0 %v3868, 126
        %v3874 = vpop.permute.xlu0 %3873
        %v3877 = vadd.f32 %v3835, %v3872
        %v3878 = vadd.f32 %v3836, %v3874
        %s3879 = sld [smem:[#allocation9 + $0x8e]]
        %v3880 = vstv %s3879
        %v3881 = vmul.f32 %v3803, %v3880
        %v3882 = vmul.f32 %v3804, %v3880
        %3885 = vrot.lane.b32.xlu0 %v3881, 126
        %v3886 = vpop.permute.xlu0 %3885
        %3887 = vrot.lane.b32.xlu0 %v3882, 126
        %v3888 = vpop.permute.xlu0 %3887
        %v3891 = vadd.f32 %v3849, %v3886
        %v3892 = vadd.f32 %v3850, %v3888
        %s3893 = sld [smem:[#allocation9 + $0xd9]]
        %v3894 = vstv %s3893
        %v3895 = vmul.f32 %v3803, %v3894
        %v3896 = vmul.f32 %v3804, %v3894
        %3899 = vrot.lane.b32.xlu0 %v3895, 126
        %v3900 = vpop.permute.xlu0 %3899
        %3901 = vrot.lane.b32.xlu0 %v3896, 126
        %v3902 = vpop.permute.xlu0 %3901
        %v3905 = vadd.f32 %v3863, %v3900
        %v3906 = vadd.f32 %v3864, %v3902
        %s3907 = sld [smem:[#allocation9 + $0x44]]
        %v3908 = vstv %s3907
        %v3909 = vmul.f32 %v3803, %v3908
        %v3910 = vmul.f32 %v3804, %v3908
        %3913 = vrot.lane.b32.xlu0 %v3909, 125
        %v3914 = vpop.permute.xlu0 %3913
        %3915 = vrot.lane.b32.xlu0 %v3910, 125
        %v3916 = vpop.permute.xlu0 %3915
        %v3919 = vadd.f32 %v3877, %v3914
        %v3920 = vadd.f32 %v3878, %v3916
        %s3921 = sld [smem:[#allocation9 + $0x8f]]
        %v3922 = vstv %s3921
        %v3923 = vmul.f32 %v3803, %v3922
        %v3924 = vmul.f32 %v3804, %v3922
        %3927 = vrot.lane.b32.xlu0 %v3923, 125
        %v3928 = vpop.permute.xlu0 %3927
        %3929 = vrot.lane.b32.xlu0 %v3924, 125
        %v3930 = vpop.permute.xlu0 %3929
        %v3933 = vadd.f32 %v3891, %v3928
        %v3934 = vadd.f32 %v3892, %v3930
        %s3935 = sld [smem:[#allocation9 + $0xda]]
        %v3936 = vstv %s3935
        %v3937 = vmul.f32 %v3803, %v3936
        %v3938 = vmul.f32 %v3804, %v3936
        %3941 = vrot.lane.b32.xlu0 %v3937, 125
        %v3942 = vpop.permute.xlu0 %3941
        %3943 = vrot.lane.b32.xlu0 %v3938, 125
        %v3944 = vpop.permute.xlu0 %3943
        %v3947 = vadd.f32 %v3905, %v3942
        %v3948 = vadd.f32 %v3906, %v3944
        %s3949 = sld [smem:[#allocation9 + $0x45]]
        %v3950 = vstv %s3949
        %v3951 = vmul.f32 %v3803, %v3950
        %v3952 = vmul.f32 %v3804, %v3950
        %3955 = vrot.lane.b32.xlu0 %v3951, 124
        %v3956 = vpop.permute.xlu0 %3955
        %3957 = vrot.lane.b32.xlu0 %v3952, 124
        %v3958 = vpop.permute.xlu0 %3957
        %v3961 = vadd.f32 %v3919, %v3956
        %v3962 = vadd.f32 %v3920, %v3958
        %s3963 = sld [smem:[#allocation9 + $0x90]]
        %v3964 = vstv %s3963
        %v3965 = vmul.f32 %v3803, %v3964
        %v3966 = vmul.f32 %v3804, %v3964
        %3969 = vrot.lane.b32.xlu0 %v3965, 124
        %v3970 = vpop.permute.xlu0 %3969
        %3971 = vrot.lane.b32.xlu0 %v3966, 124
        %v3972 = vpop.permute.xlu0 %3971
        %v3975 = vadd.f32 %v3933, %v3970
        %v3976 = vadd.f32 %v3934, %v3972
        %s3977 = sld [smem:[#allocation9 + $0xdb]]
        %v3978 = vstv %s3977
        %v3979 = vmul.f32 %v3803, %v3978
        %v3980 = vmul.f32 %v3804, %v3978
        %3983 = vrot.lane.b32.xlu0 %v3979, 124
        %v3984 = vpop.permute.xlu0 %3983
        %3985 = vrot.lane.b32.xlu0 %v3980, 124
        %v3986 = vpop.permute.xlu0 %3985
        %v3989 = vadd.f32 %v3947, %v3984
        %v3990 = vadd.f32 %v3948, %v3986
        %v3991 = vld [vmem:[%s1362 + $0x4] sm:$0xff]
        %v3992 = vld [vmem:[%s1362 + $0xc] sm:$0xff]
        %s3993 = sld [smem:[#allocation9 + $0x46]]
        %v3994 = vstv %s3993
        %v3995 = vmul.f32 %v3991, %v3994
        %v3996 = vmul.f32 %v3992, %v3994
        %v3997 = vadd.f32 %v3961, %v3995
        %v3998 = vadd.f32 %v3962, %v3996
        %s3999 = sld [smem:[#allocation9 + $0x91]]
        %v4000 = vstv %s3999
        %v4001 = vmul.f32 %v3991, %v4000
        %v4002 = vmul.f32 %v3992, %v4000
        %v4003 = vadd.f32 %v3975, %v4001
        %v4004 = vadd.f32 %v3976, %v4002
        %s4005 = sld [smem:[#allocation9 + $0xdc]]
        %v4006 = vstv %s4005
        %v4007 = vmul.f32 %v3991, %v4006
        %v4008 = vmul.f32 %v3992, %v4006
        %v4009 = vadd.f32 %v3989, %v4007
        %v4010 = vadd.f32 %v3990, %v4008
        %s4011 = sld [smem:[#allocation9 + $0x47]]
        %v4012 = vstv %s4011
        %v4013 = vmul.f32 %v3991, %v4012
        %v4014 = vmul.f32 %v3992, %v4012
        %4017 = vrot.lane.b32.xlu0 %v4013, 127
        %v4018 = vpop.permute.xlu0 %4017
        %4019 = vrot.lane.b32.xlu0 %v4014, 127
        %v4020 = vpop.permute.xlu0 %4019
        %v4023 = vadd.f32 %v3997, %v4018
        %v4024 = vadd.f32 %v3998, %v4020
        %s4025 = sld [smem:[#allocation9 + $0x92]]
        %v4026 = vstv %s4025
        %v4027 = vmul.f32 %v3991, %v4026
        %v4028 = vmul.f32 %v3992, %v4026
        %4031 = vrot.lane.b32.xlu0 %v4027, 127
        %v4032 = vpop.permute.xlu0 %4031
        %4033 = vrot.lane.b32.xlu0 %v4028, 127
        %v4034 = vpop.permute.xlu0 %4033
        %v4037 = vadd.f32 %v4003, %v4032
        %v4038 = vadd.f32 %v4004, %v4034
        %s4039 = sld [smem:[#allocation9 + $0xdd]]
        %v4040 = vstv %s4039
        %v4041 = vmul.f32 %v3991, %v4040
        %v4042 = vmul.f32 %v3992, %v4040
        %4045 = vrot.lane.b32.xlu0 %v4041, 127
        %v4046 = vpop.permute.xlu0 %4045
        %4047 = vrot.lane.b32.xlu0 %v4042, 127
        %v4048 = vpop.permute.xlu0 %4047
        %v4051 = vadd.f32 %v4009, %v4046
        %v4052 = vadd.f32 %v4010, %v4048
        %s4053 = sld [smem:[#allocation9 + $0x48]]
        %v4054 = vstv %s4053
        %v4055 = vmul.f32 %v3991, %v4054
        %v4056 = vmul.f32 %v3992, %v4054
        %4059 = vrot.lane.b32.xlu0 %v4055, 126
        %v4060 = vpop.permute.xlu0 %4059
        %4061 = vrot.lane.b32.xlu0 %v4056, 126
        %v4062 = vpop.permute.xlu0 %4061
        %v4065 = vadd.f32 %v4023, %v4060
        %v4066 = vadd.f32 %v4024, %v4062
        %s4067 = sld [smem:[#allocation9 + $0x93]]
        %v4068 = vstv %s4067
        %v4069 = vmul.f32 %v3991, %v4068
        %v4070 = vmul.f32 %v3992, %v4068
        %4073 = vrot.lane.b32.xlu0 %v4069, 126
        %v4074 = vpop.permute.xlu0 %4073
        %4075 = vrot.lane.b32.xlu0 %v4070, 126
        %v4076 = vpop.permute.xlu0 %4075
        %v4079 = vadd.f32 %v4037, %v4074
        %v4080 = vadd.f32 %v4038, %v4076
        %s4081 = sld [smem:[#allocation9 + $0xde]]
        %v4082 = vstv %s4081
        %v4083 = vmul.f32 %v3991, %v4082
        %v4084 = vmul.f32 %v3992, %v4082
        %4087 = vrot.lane.b32.xlu0 %v4083, 126
        %v4088 = vpop.permute.xlu0 %4087
        %4089 = vrot.lane.b32.xlu0 %v4084, 126
        %v4090 = vpop.permute.xlu0 %4089
        %v4093 = vadd.f32 %v4051, %v4088
        %v4094 = vadd.f32 %v4052, %v4090
        %s4095 = sld [smem:[#allocation9 + $0x49]]
        %v4096 = vstv %s4095
        %v4097 = vmul.f32 %v3991, %v4096
        %v4098 = vmul.f32 %v3992, %v4096
        %4101 = vrot.lane.b32.xlu0 %v4097, 125
        %v4102 = vpop.permute.xlu0 %4101
        %4103 = vrot.lane.b32.xlu0 %v4098, 125
        %v4104 = vpop.permute.xlu0 %4103
        %v4107 = vadd.f32 %v4065, %v4102
        %v4108 = vadd.f32 %v4066, %v4104
        %s4109 = sld [smem:[#allocation9 + $0x94]]
        %v4110 = vstv %s4109
        %v4111 = vmul.f32 %v3991, %v4110
        %v4112 = vmul.f32 %v3992, %v4110
        %4115 = vrot.lane.b32.xlu0 %v4111, 125
        %v4116 = vpop.permute.xlu0 %4115
        %4117 = vrot.lane.b32.xlu0 %v4112, 125
        %v4118 = vpop.permute.xlu0 %4117
        %v4121 = vadd.f32 %v4079, %v4116
        %v4122 = vadd.f32 %v4080, %v4118
        %s4123 = sld [smem:[#allocation9 + $0xdf]]
        %v4124 = vstv %s4123
        %v4125 = vmul.f32 %v3991, %v4124
        %v4126 = vmul.f32 %v3992, %v4124
        %4129 = vrot.lane.b32.xlu0 %v4125, 125
        %v4130 = vpop.permute.xlu0 %4129
        %4131 = vrot.lane.b32.xlu0 %v4126, 125
        %v4132 = vpop.permute.xlu0 %4131
        %v4135 = vadd.f32 %v4093, %v4130
        %v4136 = vadd.f32 %v4094, %v4132
        %s4137 = sld [smem:[#allocation9 + $0x4a]]
        %v4138 = vstv %s4137
        %v4139 = vmul.f32 %v3991, %v4138
        %v4140 = vmul.f32 %v3992, %v4138
        %4143 = vrot.lane.b32.xlu0 %v4139, 124
        %v4144 = vpop.permute.xlu0 %4143
        %4145 = vrot.lane.b32.xlu0 %v4140, 124
        %v4146 = vpop.permute.xlu0 %4145
        %v4149 = vadd.f32 %v4107, %v4144
        %v4150 = vadd.f32 %v4108, %v4146
        %s4151 = sld [smem:[#allocation9 + $0x95]]
        %v4152 = vstv %s4151
        %v4153 = vmul.f32 %v3991, %v4152
        %v4154 = vmul.f32 %v3992, %v4152
        %4157 = vrot.lane.b32.xlu0 %v4153, 124
        %v4158 = vpop.permute.xlu0 %4157
        %4159 = vrot.lane.b32.xlu0 %v4154, 124
        %v4160 = vpop.permute.xlu0 %4159
        %v4163 = vadd.f32 %v4121, %v4158
        %v4164 = vadd.f32 %v4122, %v4160
        %s4165 = sld [smem:[#allocation9 + $0xe0]]
        %v4166 = vstv %s4165
        %v4167 = vmul.f32 %v3991, %v4166
        %v4168 = vmul.f32 %v3992, %v4166
        %4171 = vrot.lane.b32.xlu0 %v4167, 124
        %v4172 = vpop.permute.xlu0 %4171
        %4173 = vrot.lane.b32.xlu0 %v4168, 124
        %v4174 = vpop.permute.xlu0 %4173
        %v4177 = vadd.f32 %v4135, %v4172
        %v4178 = vadd.f32 %v4136, %v4174
        %s4179 = sld [smem:[#allocation10]]
        %v4180 = vstv %s4179
        %v4181 = vadd.f32 %v4149, %v4180
        %v4182 = vadd.f32 %v4150, %v4180
        %s4183 = sld [smem:[#allocation10 + $0x1]]
        %v4184 = vstv %s4183
        %v4185 = vadd.f32 %v4163, %v4184
        %v4186 = vadd.f32 %v4164, %v4184
        %s4187 = sld [smem:[#allocation10 + $0x2]]
        %v4188 = vstv %s4187
        %v4189 = vadd.f32 %v4177, %v4188
        %v4190 = vadd.f32 %v4178, %v4188
        %4193 = vrot.lane.b32.xlu0 %v4181, 2
        %v4194 = vpop.permute.xlu0 %4193
        %4195 = vrot.lane.b32.xlu0 %v4182, 2
        %v4196 = vpop.permute.xlu0 %4195
        %4199 = vst.msk [vmem:[#allocation2 + $0x2] sm:$0xff] %vm375, %v4194
        %4200 = vst.msk [vmem:[#allocation2 + $0xa] sm:$0xff] %vm375, %v4196
        %4203 = vrot.lane.b32.xlu0 %v4185, 2
        %v4204 = vpop.permute.xlu0 %4203
        %4205 = vrot.lane.b32.xlu0 %v4186, 2
        %v4206 = vpop.permute.xlu0 %4205
        %s4209 = scalar_lea.vmem [#allocation2], 24
        %4210 = vst.msk [vmem:[%s4209 + $0x2] sm:$0xff] %vm375, %v4204
        %4211 = vst.msk [vmem:[%s4209 + $0xa] sm:$0xff] %vm375, %v4206
        %4214 = vrot.lane.b32.xlu0 %v4189, 2
        %v4215 = vpop.permute.xlu0 %4214
        %4216 = vrot.lane.b32.xlu0 %v4190, 2
        %v4217 = vpop.permute.xlu0 %4216
        %s4220 = scalar_lea.vmem [#allocation2], 48
        %4221 = vst.msk [vmem:[%s4220 + $0x2] sm:$0xff] %vm375, %v4215
        %4222 = vst.msk [vmem:[%s4220 + $0xa] sm:$0xff] %vm375, %v4217
        %v4223 = vld [vmem:[#allocation2] sm:$0xff]
        %v4224 = vld [vmem:[#allocation2 + $0x8] sm:$0xff]
        %s4225 = sld [smem:[#allocation12]]
        %v4226 = vstv %s4225
        %v4227 = vmul.f32 %v4223, %v4226
        %v4228 = vmul.f32 %v4224, %v4226
        %s4229 = sld [smem:[#allocation12 + $0x4b]]
        %v4230 = vstv %s4229
        %v4231 = vmul.f32 %v4223, %v4230
        %v4232 = vmul.f32 %v4224, %v4230
        %s4233 = sld [smem:[#allocation12 + $0x96]]
        %v4234 = vstv %s4233
        %v4235 = vmul.f32 %v4223, %v4234
        %v4236 = vmul.f32 %v4224, %v4234
        %s4237 = sld [smem:[#allocation12 + $0x1]]
        %v4238 = vstv %s4237
        %v4239 = vmul.f32 %v4223, %v4238
        %v4240 = vmul.f32 %v4224, %v4238
        %4243 = vrot.lane.b32.xlu0 %v4239, 127
        %v4244 = vpop.permute.xlu0 %4243
        %4245 = vrot.lane.b32.xlu0 %v4240, 127
        %v4246 = vpop.permute.xlu0 %4245
        %v4249 = vadd.f32 %v4227, %v4244
        %v4250 = vadd.f32 %v4228, %v4246
        %s4251 = sld [smem:[#allocation12 + $0x4c]]
        %v4252 = vstv %s4251
        %v4253 = vmul.f32 %v4223, %v4252
        %v4254 = vmul.f32 %v4224, %v4252
        %4257 = vrot.lane.b32.xlu0 %v4253, 127
        %v4258 = vpop.permute.xlu0 %4257
        %4259 = vrot.lane.b32.xlu0 %v4254, 127
        %v4260 = vpop.permute.xlu0 %4259
        %v4263 = vadd.f32 %v4231, %v4258
        %v4264 = vadd.f32 %v4232, %v4260
        %s4265 = sld [smem:[#allocation12 + $0x97]]
        %v4266 = vstv %s4265
        %v4267 = vmul.f32 %v4223, %v4266
        %v4268 = vmul.f32 %v4224, %v4266
        %4271 = vrot.lane.b32.xlu0 %v4267, 127
        %v4272 = vpop.permute.xlu0 %4271
        %4273 = vrot.lane.b32.xlu0 %v4268, 127
        %v4274 = vpop.permute.xlu0 %4273
        %v4277 = vadd.f32 %v4235, %v4272
        %v4278 = vadd.f32 %v4236, %v4274
        %s4279 = sld [smem:[#allocation12 + $0x2]]
        %v4280 = vstv %s4279
        %v4281 = vmul.f32 %v4223, %v4280
        %v4282 = vmul.f32 %v4224, %v4280
        %4285 = vrot.lane.b32.xlu0 %v4281, 126
        %v4286 = vpop.permute.xlu0 %4285
        %4287 = vrot.lane.b32.xlu0 %v4282, 126
        %v4288 = vpop.permute.xlu0 %4287
        %v4291 = vadd.f32 %v4249, %v4286
        %v4292 = vadd.f32 %v4250, %v4288
        %s4293 = sld [smem:[#allocation12 + $0x4d]]
        %v4294 = vstv %s4293
        %v4295 = vmul.f32 %v4223, %v4294
        %v4296 = vmul.f32 %v4224, %v4294
        %4299 = vrot.lane.b32.xlu0 %v4295, 126
        %v4300 = vpop.permute.xlu0 %4299
        %4301 = vrot.lane.b32.xlu0 %v4296, 126
        %v4302 = vpop.permute.xlu0 %4301
        %v4305 = vadd.f32 %v4263, %v4300
        %v4306 = vadd.f32 %v4264, %v4302
        %s4307 = sld [smem:[#allocation12 + $0x98]]
        %v4308 = vstv %s4307
        %v4309 = vmul.f32 %v4223, %v4308
        %v4310 = vmul.f32 %v4224, %v4308
        %4313 = vrot.lane.b32.xlu0 %v4309, 126
        %v4314 = vpop.permute.xlu0 %4313
        %4315 = vrot.lane.b32.xlu0 %v4310, 126
        %v4316 = vpop.permute.xlu0 %4315
        %v4319 = vadd.f32 %v4277, %v4314
        %v4320 = vadd.f32 %v4278, %v4316
        %s4321 = sld [smem:[#allocation12 + $0x3]]
        %v4322 = vstv %s4321
        %v4323 = vmul.f32 %v4223, %v4322
        %v4324 = vmul.f32 %v4224, %v4322
        %4327 = vrot.lane.b32.xlu0 %v4323, 125
        %v4328 = vpop.permute.xlu0 %4327
        %4329 = vrot.lane.b32.xlu0 %v4324, 125
        %v4330 = vpop.permute.xlu0 %4329
        %v4333 = vadd.f32 %v4291, %v4328
        %v4334 = vadd.f32 %v4292, %v4330
        %s4335 = sld [smem:[#allocation12 + $0x4e]]
        %v4336 = vstv %s4335
        %v4337 = vmul.f32 %v4223, %v4336
        %v4338 = vmul.f32 %v4224, %v4336
        %4341 = vrot.lane.b32.xlu0 %v4337, 125
        %v4342 = vpop.permute.xlu0 %4341
        %4343 = vrot.lane.b32.xlu0 %v4338, 125
        %v4344 = vpop.permute.xlu0 %4343
        %v4347 = vadd.f32 %v4305, %v4342
        %v4348 = vadd.f32 %v4306, %v4344
        %s4349 = sld [smem:[#allocation12 + $0x99]]
        %v4350 = vstv %s4349
        %v4351 = vmul.f32 %v4223, %v4350
        %v4352 = vmul.f32 %v4224, %v4350
        %4355 = vrot.lane.b32.xlu0 %v4351, 125
        %v4356 = vpop.permute.xlu0 %4355
        %4357 = vrot.lane.b32.xlu0 %v4352, 125
        %v4358 = vpop.permute.xlu0 %4357
        %v4361 = vadd.f32 %v4319, %v4356
        %v4362 = vadd.f32 %v4320, %v4358
        %s4363 = sld [smem:[#allocation12 + $0x4]]
        %v4364 = vstv %s4363
        %v4365 = vmul.f32 %v4223, %v4364
        %v4366 = vmul.f32 %v4224, %v4364
        %4369 = vrot.lane.b32.xlu0 %v4365, 124
        %v4370 = vpop.permute.xlu0 %4369
        %4371 = vrot.lane.b32.xlu0 %v4366, 124
        %v4372 = vpop.permute.xlu0 %4371
        %v4375 = vadd.f32 %v4333, %v4370
        %v4376 = vadd.f32 %v4334, %v4372
        %s4377 = sld [smem:[#allocation12 + $0x4f]]
        %v4378 = vstv %s4377
        %v4379 = vmul.f32 %v4223, %v4378
        %v4380 = vmul.f32 %v4224, %v4378
        %4383 = vrot.lane.b32.xlu0 %v4379, 124
        %v4384 = vpop.permute.xlu0 %4383
        %4385 = vrot.lane.b32.xlu0 %v4380, 124
        %v4386 = vpop.permute.xlu0 %4385
        %v4389 = vadd.f32 %v4347, %v4384
        %v4390 = vadd.f32 %v4348, %v4386
        %s4391 = sld [smem:[#allocation12 + $0x9a]]
        %v4392 = vstv %s4391
        %v4393 = vmul.f32 %v4223, %v4392
        %v4394 = vmul.f32 %v4224, %v4392
        %4397 = vrot.lane.b32.xlu0 %v4393, 124
        %v4398 = vpop.permute.xlu0 %4397
        %4399 = vrot.lane.b32.xlu0 %v4394, 124
        %v4400 = vpop.permute.xlu0 %4399
        %v4403 = vadd.f32 %v4361, %v4398
        %v4404 = vadd.f32 %v4362, %v4400
        %v4405 = vld [vmem:[#allocation2 + $0x1] sm:$0xff]
        %v4406 = vld [vmem:[#allocation2 + $0x9] sm:$0xff]
        %s4407 = sld [smem:[#allocation12 + $0x5]]
        %v4408 = vstv %s4407
        %v4409 = vmul.f32 %v4405, %v4408
        %v4410 = vmul.f32 %v4406, %v4408
        %v4411 = vadd.f32 %v4375, %v4409
        %v4412 = vadd.f32 %v4376, %v4410
        %s4413 = sld [smem:[#allocation12 + $0x50]]
        %v4414 = vstv %s4413
        %v4415 = vmul.f32 %v4405, %v4414
        %v4416 = vmul.f32 %v4406, %v4414
        %v4417 = vadd.f32 %v4389, %v4415
        %v4418 = vadd.f32 %v4390, %v4416
        %s4419 = sld [smem:[#allocation12 + $0x9b]]
        %v4420 = vstv %s4419
        %v4421 = vmul.f32 %v4405, %v4420
        %v4422 = vmul.f32 %v4406, %v4420
        %v4423 = vadd.f32 %v4403, %v4421
        %v4424 = vadd.f32 %v4404, %v4422
        %s4425 = sld [smem:[#allocation12 + $0x6]]
        %v4426 = vstv %s4425
        %v4427 = vmul.f32 %v4405, %v4426
        %v4428 = vmul.f32 %v4406, %v4426
        %4431 = vrot.lane.b32.xlu0 %v4427, 127
        %v4432 = vpop.permute.xlu0 %4431
        %4433 = vrot.lane.b32.xlu0 %v4428, 127
        %v4434 = vpop.permute.xlu0 %4433
        %v4437 = vadd.f32 %v4411, %v4432
        %v4438 = vadd.f32 %v4412, %v4434
        %s4439 = sld [smem:[#allocation12 + $0x51]]
        %v4440 = vstv %s4439
        %v4441 = vmul.f32 %v4405, %v4440
        %v4442 = vmul.f32 %v4406, %v4440
        %4445 = vrot.lane.b32.xlu0 %v4441, 127
        %v4446 = vpop.permute.xlu0 %4445
        %4447 = vrot.lane.b32.xlu0 %v4442, 127
        %v4448 = vpop.permute.xlu0 %4447
        %v4451 = vadd.f32 %v4417, %v4446
        %v4452 = vadd.f32 %v4418, %v4448
        %s4453 = sld [smem:[#allocation12 + $0x9c]]
        %v4454 = vstv %s4453
        %v4455 = vmul.f32 %v4405, %v4454
        %v4456 = vmul.f32 %v4406, %v4454
        %4459 = vrot.lane.b32.xlu0 %v4455, 127
        %v4460 = vpop.permute.xlu0 %4459
        %4461 = vrot.lane.b32.xlu0 %v4456, 127
        %v4462 = vpop.permute.xlu0 %4461
        %v4465 = vadd.f32 %v4423, %v4460
        %v4466 = vadd.f32 %v4424, %v4462
        %s4467 = sld [smem:[#allocation12 + $0x7]]
        %v4468 = vstv %s4467
        %v4469 = vmul.f32 %v4405, %v4468
        %v4470 = vmul.f32 %v4406, %v4468
        %4473 = vrot.lane.b32.xlu0 %v4469, 126
        %v4474 = vpop.permute.xlu0 %4473
        %4475 = vrot.lane.b32.xlu0 %v4470, 126
        %v4476 = vpop.permute.xlu0 %4475
        %v4479 = vadd.f32 %v4437, %v4474
        %v4480 = vadd.f32 %v4438, %v4476
        %s4481 = sld [smem:[#allocation12 + $0x52]]
        %v4482 = vstv %s4481
        %v4483 = vmul.f32 %v4405, %v4482
        %v4484 = vmul.f32 %v4406, %v4482
        %4487 = vrot.lane.b32.xlu0 %v4483, 126
        %v4488 = vpop.permute.xlu0 %4487
        %4489 = vrot.lane.b32.xlu0 %v4484, 126
        %v4490 = vpop.permute.xlu0 %4489
        %v4493 = vadd.f32 %v4451, %v4488
        %v4494 = vadd.f32 %v4452, %v4490
        %s4495 = sld [smem:[#allocation12 + $0x9d]]
        %v4496 = vstv %s4495
        %v4497 = vmul.f32 %v4405, %v4496
        %v4498 = vmul.f32 %v4406, %v4496
        %4501 = vrot.lane.b32.xlu0 %v4497, 126
        %v4502 = vpop.permute.xlu0 %4501
        %4503 = vrot.lane.b32.xlu0 %v4498, 126
        %v4504 = vpop.permute.xlu0 %4503
        %v4507 = vadd.f32 %v4465, %v4502
        %v4508 = vadd.f32 %v4466, %v4504
        %s4509 = sld [smem:[#allocation12 + $0x8]]
        %v4510 = vstv %s4509
        %v4511 = vmul.f32 %v4405, %v4510
        %v4512 = vmul.f32 %v4406, %v4510
        %4515 = vrot.lane.b32.xlu0 %v4511, 125
        %v4516 = vpop.permute.xlu0 %4515
        %4517 = vrot.lane.b32.xlu0 %v4512, 125
        %v4518 = vpop.permute.xlu0 %4517
        %v4521 = vadd.f32 %v4479, %v4516
        %v4522 = vadd.f32 %v4480, %v4518
        %s4523 = sld [smem:[#allocation12 + $0x53]]
        %v4524 = vstv %s4523
        %v4525 = vmul.f32 %v4405, %v4524
        %v4526 = vmul.f32 %v4406, %v4524
        %4529 = vrot.lane.b32.xlu0 %v4525, 125
        %v4530 = vpop.permute.xlu0 %4529
        %4531 = vrot.lane.b32.xlu0 %v4526, 125
        %v4532 = vpop.permute.xlu0 %4531
        %v4535 = vadd.f32 %v4493, %v4530
        %v4536 = vadd.f32 %v4494, %v4532
        %s4537 = sld [smem:[#allocation12 + $0x9e]]
        %v4538 = vstv %s4537
        %v4539 = vmul.f32 %v4405, %v4538
        %v4540 = vmul.f32 %v4406, %v4538
        %4543 = vrot.lane.b32.xlu0 %v4539, 125
        %v4544 = vpop.permute.xlu0 %4543
        %4545 = vrot.lane.b32.xlu0 %v4540, 125
        %v4546 = vpop.permute.xlu0 %4545
        %v4549 = vadd.f32 %v4507, %v4544
        %v4550 = vadd.f32 %v4508, %v4546
        %s4551 = sld [smem:[#allocation12 + $0x9]]
        %v4552 = vstv %s4551
        %v4553 = vmul.f32 %v4405, %v4552
        %v4554 = vmul.f32 %v4406, %v4552
        %4557 = vrot.lane.b32.xlu0 %v4553, 124
        %v4558 = vpop.permute.xlu0 %4557
        %4559 = vrot.lane.b32.xlu0 %v4554, 124
        %v4560 = vpop.permute.xlu0 %4559
        %v4563 = vadd.f32 %v4521, %v4558
        %v4564 = vadd.f32 %v4522, %v4560
        %s4565 = sld [smem:[#allocation12 + $0x54]]
        %v4566 = vstv %s4565
        %v4567 = vmul.f32 %v4405, %v4566
        %v4568 = vmul.f32 %v4406, %v4566
        %4571 = vrot.lane.b32.xlu0 %v4567, 124
        %v4572 = vpop.permute.xlu0 %4571
        %4573 = vrot.lane.b32.xlu0 %v4568, 124
        %v4574 = vpop.permute.xlu0 %4573
        %v4577 = vadd.f32 %v4535, %v4572
        %v4578 = vadd.f32 %v4536, %v4574
        %s4579 = sld [smem:[#allocation12 + $0x9f]]
        %v4580 = vstv %s4579
        %v4581 = vmul.f32 %v4405, %v4580
        %v4582 = vmul.f32 %v4406, %v4580
        %4585 = vrot.lane.b32.xlu0 %v4581, 124
        %v4586 = vpop.permute.xlu0 %4585
        %4587 = vrot.lane.b32.xlu0 %v4582, 124
        %v4588 = vpop.permute.xlu0 %4587
        %v4591 = vadd.f32 %v4549, %v4586
        %v4592 = vadd.f32 %v4550, %v4588
        %v4593 = vld [vmem:[#allocation2 + $0x2] sm:$0xff]
        %v4594 = vld [vmem:[#allocation2 + $0xa] sm:$0xff]
        %s4595 = sld [smem:[#allocation12 + $0xa]]
        %v4596 = vstv %s4595
        %v4597 = vmul.f32 %v4593, %v4596
        %v4598 = vmul.f32 %v4594, %v4596
        %v4599 = vadd.f32 %v4563, %v4597
        %v4600 = vadd.f32 %v4564, %v4598
        %s4601 = sld [smem:[#allocation12 + $0x55]]
        %v4602 = vstv %s4601
        %v4603 = vmul.f32 %v4593, %v4602
        %v4604 = vmul.f32 %v4594, %v4602
        %v4605 = vadd.f32 %v4577, %v4603
        %v4606 = vadd.f32 %v4578, %v4604
        %s4607 = sld [smem:[#allocation12 + $0xa0]]
        %v4608 = vstv %s4607
        %v4609 = vmul.f32 %v4593, %v4608
        %v4610 = vmul.f32 %v4594, %v4608
        %v4611 = vadd.f32 %v4591, %v4609
        %v4612 = vadd.f32 %v4592, %v4610
        %s4613 = sld [smem:[#allocation12 + $0xb]]
        %v4614 = vstv %s4613
        %v4615 = vmul.f32 %v4593, %v4614
        %v4616 = vmul.f32 %v4594, %v4614
        %4619 = vrot.lane.b32.xlu0 %v4615, 127
        %v4620 = vpop.permute.xlu0 %4619
        %4621 = vrot.lane.b32.xlu0 %v4616, 127
        %v4622 = vpop.permute.xlu0 %4621
        %v4625 = vadd.f32 %v4599, %v4620
        %v4626 = vadd.f32 %v4600, %v4622
        %s4627 = sld [smem:[#allocation12 + $0x56]]
        %v4628 = vstv %s4627
        %v4629 = vmul.f32 %v4593, %v4628
        %v4630 = vmul.f32 %v4594, %v4628
        %4633 = vrot.lane.b32.xlu0 %v4629, 127
        %v4634 = vpop.permute.xlu0 %4633
        %4635 = vrot.lane.b32.xlu0 %v4630, 127
        %v4636 = vpop.permute.xlu0 %4635
        %v4639 = vadd.f32 %v4605, %v4634
        %v4640 = vadd.f32 %v4606, %v4636
        %s4641 = sld [smem:[#allocation12 + $0xa1]]
        %v4642 = vstv %s4641
        %v4643 = vmul.f32 %v4593, %v4642
        %v4644 = vmul.f32 %v4594, %v4642
        %4647 = vrot.lane.b32.xlu0 %v4643, 127
        %v4648 = vpop.permute.xlu0 %4647
        %4649 = vrot.lane.b32.xlu0 %v4644, 127
        %v4650 = vpop.permute.xlu0 %4649
        %v4653 = vadd.f32 %v4611, %v4648
        %v4654 = vadd.f32 %v4612, %v4650
        %s4655 = sld [smem:[#allocation12 + $0xc]]
        %v4656 = vstv %s4655
        %v4657 = vmul.f32 %v4593, %v4656
        %v4658 = vmul.f32 %v4594, %v4656
        %4661 = vrot.lane.b32.xlu0 %v4657, 126
        %v4662 = vpop.permute.xlu0 %4661
        %4663 = vrot.lane.b32.xlu0 %v4658, 126
        %v4664 = vpop.permute.xlu0 %4663
        %v4667 = vadd.f32 %v4625, %v4662
        %v4668 = vadd.f32 %v4626, %v4664
        %s4669 = sld [smem:[#allocation12 + $0x57]]
        %v4670 = vstv %s4669
        %v4671 = vmul.f32 %v4593, %v4670
        %v4672 = vmul.f32 %v4594, %v4670
        %4675 = vrot.lane.b32.xlu0 %v4671, 126
        %v4676 = vpop.permute.xlu0 %4675
        %4677 = vrot.lane.b32.xlu0 %v4672, 126
        %v4678 = vpop.permute.xlu0 %4677
        %v4681 = vadd.f32 %v4639, %v4676
        %v4682 = vadd.f32 %v4640, %v4678
        %s4683 = sld [smem:[#allocation12 + $0xa2]]
        %v4684 = vstv %s4683
        %v4685 = vmul.f32 %v4593, %v4684
        %v4686 = vmul.f32 %v4594, %v4684
        %4689 = vrot.lane.b32.xlu0 %v4685, 126
        %v4690 = vpop.permute.xlu0 %4689
        %4691 = vrot.lane.b32.xlu0 %v4686, 126
        %v4692 = vpop.permute.xlu0 %4691
        %v4695 = vadd.f32 %v4653, %v4690
        %v4696 = vadd.f32 %v4654, %v4692
        %s4697 = sld [smem:[#allocation12 + $0xd]]
        %v4698 = vstv %s4697
        %v4699 = vmul.f32 %v4593, %v4698
        %v4700 = vmul.f32 %v4594, %v4698
        %4703 = vrot.lane.b32.xlu0 %v4699, 125
        %v4704 = vpop.permute.xlu0 %4703
        %4705 = vrot.lane.b32.xlu0 %v4700, 125
        %v4706 = vpop.permute.xlu0 %4705
        %v4709 = vadd.f32 %v4667, %v4704
        %v4710 = vadd.f32 %v4668, %v4706
        %s4711 = sld [smem:[#allocation12 + $0x58]]
        %v4712 = vstv %s4711
        %v4713 = vmul.f32 %v4593, %v4712
        %v4714 = vmul.f32 %v4594, %v4712
        %4717 = vrot.lane.b32.xlu0 %v4713, 125
        %v4718 = vpop.permute.xlu0 %4717
        %4719 = vrot.lane.b32.xlu0 %v4714, 125
        %v4720 = vpop.permute.xlu0 %4719
        %v4723 = vadd.f32 %v4681, %v4718
        %v4724 = vadd.f32 %v4682, %v4720
        %s4725 = sld [smem:[#allocation12 + $0xa3]]
        %v4726 = vstv %s4725
        %v4727 = vmul.f32 %v4593, %v4726
        %v4728 = vmul.f32 %v4594, %v4726
        %4731 = vrot.lane.b32.xlu0 %v4727, 125
        %v4732 = vpop.permute.xlu0 %4731
        %4733 = vrot.lane.b32.xlu0 %v4728, 125
        %v4734 = vpop.permute.xlu0 %4733
        %v4737 = vadd.f32 %v4695, %v4732
        %v4738 = vadd.f32 %v4696, %v4734
        %s4739 = sld [smem:[#allocation12 + $0xe]]
        %v4740 = vstv %s4739
        %v4741 = vmul.f32 %v4593, %v4740
        %v4742 = vmul.f32 %v4594, %v4740
        %4745 = vrot.lane.b32.xlu0 %v4741, 124
        %v4746 = vpop.permute.xlu0 %4745
        %4747 = vrot.lane.b32.xlu0 %v4742, 124
        %v4748 = vpop.permute.xlu0 %4747
        %v4751 = vadd.f32 %v4709, %v4746
        %v4752 = vadd.f32 %v4710, %v4748
        %s4753 = sld [smem:[#allocation12 + $0x59]]
        %v4754 = vstv %s4753
        %v4755 = vmul.f32 %v4593, %v4754
        %v4756 = vmul.f32 %v4594, %v4754
        %4759 = vrot.lane.b32.xlu0 %v4755, 124
        %v4760 = vpop.permute.xlu0 %4759
        %4761 = vrot.lane.b32.xlu0 %v4756, 124
        %v4762 = vpop.permute.xlu0 %4761
        %v4765 = vadd.f32 %v4723, %v4760
        %v4766 = vadd.f32 %v4724, %v4762
        %s4767 = sld [smem:[#allocation12 + $0xa4]]
        %v4768 = vstv %s4767
        %v4769 = vmul.f32 %v4593, %v4768
        %v4770 = vmul.f32 %v4594, %v4768
        %4773 = vrot.lane.b32.xlu0 %v4769, 124
        %v4774 = vpop.permute.xlu0 %4773
        %4775 = vrot.lane.b32.xlu0 %v4770, 124
        %v4776 = vpop.permute.xlu0 %4775
        %v4779 = vadd.f32 %v4737, %v4774
        %v4780 = vadd.f32 %v4738, %v4776
        %v4781 = vld [vmem:[#allocation2 + $0x3] sm:$0xff]
        %v4782 = vld [vmem:[#allocation2 + $0xb] sm:$0xff]
        %s4783 = sld [smem:[#allocation12 + $0xf]]
        %v4784 = vstv %s4783
        %v4785 = vmul.f32 %v4781, %v4784
        %v4786 = vmul.f32 %v4782, %v4784
        %v4787 = vadd.f32 %v4751, %v4785
        %v4788 = vadd.f32 %v4752, %v4786
        %s4789 = sld [smem:[#allocation12 + $0x5a]]
        %v4790 = vstv %s4789
        %v4791 = vmul.f32 %v4781, %v4790
        %v4792 = vmul.f32 %v4782, %v4790
        %v4793 = vadd.f32 %v4765, %v4791
        %v4794 = vadd.f32 %v4766, %v4792
        %s4795 = sld [smem:[#allocation12 + $0xa5]]
        %v4796 = vstv %s4795
        %v4797 = vmul.f32 %v4781, %v4796
        %v4798 = vmul.f32 %v4782, %v4796
        %v4799 = vadd.f32 %v4779, %v4797
        %v4800 = vadd.f32 %v4780, %v4798
        %s4801 = sld [smem:[#allocation12 + $0x10]]
        %v4802 = vstv %s4801
        %v4803 = vmul.f32 %v4781, %v4802
        %v4804 = vmul.f32 %v4782, %v4802
        %4807 = vrot.lane.b32.xlu0 %v4803, 127
        %v4808 = vpop.permute.xlu0 %4807
        %4809 = vrot.lane.b32.xlu0 %v4804, 127
        %v4810 = vpop.permute.xlu0 %4809
        %v4813 = vadd.f32 %v4787, %v4808
        %v4814 = vadd.f32 %v4788, %v4810
        %s4815 = sld [smem:[#allocation12 + $0x5b]]
        %v4816 = vstv %s4815
        %v4817 = vmul.f32 %v4781, %v4816
        %v4818 = vmul.f32 %v4782, %v4816
        %4821 = vrot.lane.b32.xlu0 %v4817, 127
        %v4822 = vpop.permute.xlu0 %4821
        %4823 = vrot.lane.b32.xlu0 %v4818, 127
        %v4824 = vpop.permute.xlu0 %4823
        %v4827 = vadd.f32 %v4793, %v4822
        %v4828 = vadd.f32 %v4794, %v4824
        %s4829 = sld [smem:[#allocation12 + $0xa6]]
        %v4830 = vstv %s4829
        %v4831 = vmul.f32 %v4781, %v4830
        %v4832 = vmul.f32 %v4782, %v4830
        %4835 = vrot.lane.b32.xlu0 %v4831, 127
        %v4836 = vpop.permute.xlu0 %4835
        %4837 = vrot.lane.b32.xlu0 %v4832, 127
        %v4838 = vpop.permute.xlu0 %4837
        %v4841 = vadd.f32 %v4799, %v4836
        %v4842 = vadd.f32 %v4800, %v4838
        %s4843 = sld [smem:[#allocation12 + $0x11]]
        %v4844 = vstv %s4843
        %v4845 = vmul.f32 %v4781, %v4844
        %v4846 = vmul.f32 %v4782, %v4844
        %4849 = vrot.lane.b32.xlu0 %v4845, 126
        %v4850 = vpop.permute.xlu0 %4849
        %4851 = vrot.lane.b32.xlu0 %v4846, 126
        %v4852 = vpop.permute.xlu0 %4851
        %v4855 = vadd.f32 %v4813, %v4850
        %v4856 = vadd.f32 %v4814, %v4852
        %s4857 = sld [smem:[#allocation12 + $0x5c]]
        %v4858 = vstv %s4857
        %v4859 = vmul.f32 %v4781, %v4858
        %v4860 = vmul.f32 %v4782, %v4858
        %4863 = vrot.lane.b32.xlu0 %v4859, 126
        %v4864 = vpop.permute.xlu0 %4863
        %4865 = vrot.lane.b32.xlu0 %v4860, 126
        %v4866 = vpop.permute.xlu0 %4865
        %v4869 = vadd.f32 %v4827, %v4864
        %v4870 = vadd.f32 %v4828, %v4866
        %s4871 = sld [smem:[#allocation12 + $0xa7]]
        %v4872 = vstv %s4871
        %v4873 = vmul.f32 %v4781, %v4872
        %v4874 = vmul.f32 %v4782, %v4872
        %4877 = vrot.lane.b32.xlu0 %v4873, 126
        %v4878 = vpop.permute.xlu0 %4877
        %4879 = vrot.lane.b32.xlu0 %v4874, 126
        %v4880 = vpop.permute.xlu0 %4879
        %v4883 = vadd.f32 %v4841, %v4878
        %v4884 = vadd.f32 %v4842, %v4880
        %s4885 = sld [smem:[#allocation12 + $0x12]]
        %v4886 = vstv %s4885
        %v4887 = vmul.f32 %v4781, %v4886
        %v4888 = vmul.f32 %v4782, %v4886
        %4891 = vrot.lane.b32.xlu0 %v4887, 125
        %v4892 = vpop.permute.xlu0 %4891
        %4893 = vrot.lane.b32.xlu0 %v4888, 125
        %v4894 = vpop.permute.xlu0 %4893
        %v4897 = vadd.f32 %v4855, %v4892
        %v4898 = vadd.f32 %v4856, %v4894
        %s4899 = sld [smem:[#allocation12 + $0x5d]]
        %v4900 = vstv %s4899
        %v4901 = vmul.f32 %v4781, %v4900
        %v4902 = vmul.f32 %v4782, %v4900
        %4905 = vrot.lane.b32.xlu0 %v4901, 125
        %v4906 = vpop.permute.xlu0 %4905
        %4907 = vrot.lane.b32.xlu0 %v4902, 125
        %v4908 = vpop.permute.xlu0 %4907
        %v4911 = vadd.f32 %v4869, %v4906
        %v4912 = vadd.f32 %v4870, %v4908
        %s4913 = sld [smem:[#allocation12 + $0xa8]]
        %v4914 = vstv %s4913
        %v4915 = vmul.f32 %v4781, %v4914
        %v4916 = vmul.f32 %v4782, %v4914
        %4919 = vrot.lane.b32.xlu0 %v4915, 125
        %v4920 = vpop.permute.xlu0 %4919
        %4921 = vrot.lane.b32.xlu0 %v4916, 125
        %v4922 = vpop.permute.xlu0 %4921
        %v4925 = vadd.f32 %v4883, %v4920
        %v4926 = vadd.f32 %v4884, %v4922
        %s4927 = sld [smem:[#allocation12 + $0x13]]
        %v4928 = vstv %s4927
        %v4929 = vmul.f32 %v4781, %v4928
        %v4930 = vmul.f32 %v4782, %v4928
        %4933 = vrot.lane.b32.xlu0 %v4929, 124
        %v4934 = vpop.permute.xlu0 %4933
        %4935 = vrot.lane.b32.xlu0 %v4930, 124
        %v4936 = vpop.permute.xlu0 %4935
        %v4939 = vadd.f32 %v4897, %v4934
        %v4940 = vadd.f32 %v4898, %v4936
        %s4941 = sld [smem:[#allocation12 + $0x5e]]
        %v4942 = vstv %s4941
        %v4943 = vmul.f32 %v4781, %v4942
        %v4944 = vmul.f32 %v4782, %v4942
        %4947 = vrot.lane.b32.xlu0 %v4943, 124
        %v4948 = vpop.permute.xlu0 %4947
        %4949 = vrot.lane.b32.xlu0 %v4944, 124
        %v4950 = vpop.permute.xlu0 %4949
        %v4953 = vadd.f32 %v4911, %v4948
        %v4954 = vadd.f32 %v4912, %v4950
        %s4955 = sld [smem:[#allocation12 + $0xa9]]
        %v4956 = vstv %s4955
        %v4957 = vmul.f32 %v4781, %v4956
        %v4958 = vmul.f32 %v4782, %v4956
        %4961 = vrot.lane.b32.xlu0 %v4957, 124
        %v4962 = vpop.permute.xlu0 %4961
        %4963 = vrot.lane.b32.xlu0 %v4958, 124
        %v4964 = vpop.permute.xlu0 %4963
        %v4967 = vadd.f32 %v4925, %v4962
        %v4968 = vadd.f32 %v4926, %v4964
        %v4969 = vld [vmem:[#allocation2 + $0x4] sm:$0xff]
        %v4970 = vld [vmem:[#allocation2 + $0xc] sm:$0xff]
        %s4971 = sld [smem:[#allocation12 + $0x14]]
        %v4972 = vstv %s4971
        %v4973 = vmul.f32 %v4969, %v4972
        %v4974 = vmul.f32 %v4970, %v4972
        %v4975 = vadd.f32 %v4939, %v4973
        %v4976 = vadd.f32 %v4940, %v4974
        %s4977 = sld [smem:[#allocation12 + $0x5f]]
        %v4978 = vstv %s4977
        %v4979 = vmul.f32 %v4969, %v4978
        %v4980 = vmul.f32 %v4970, %v4978
        %v4981 = vadd.f32 %v4953, %v4979
        %v4982 = vadd.f32 %v4954, %v4980
        %s4983 = sld [smem:[#allocation12 + $0xaa]]
        %v4984 = vstv %s4983
        %v4985 = vmul.f32 %v4969, %v4984
        %v4986 = vmul.f32 %v4970, %v4984
        %v4987 = vadd.f32 %v4967, %v4985
        %v4988 = vadd.f32 %v4968, %v4986
        %s4989 = sld [smem:[#allocation12 + $0x15]]
        %v4990 = vstv %s4989
        %v4991 = vmul.f32 %v4969, %v4990
        %v4992 = vmul.f32 %v4970, %v4990
        %4995 = vrot.lane.b32.xlu0 %v4991, 127
        %v4996 = vpop.permute.xlu0 %4995
        %4997 = vrot.lane.b32.xlu0 %v4992, 127
        %v4998 = vpop.permute.xlu0 %4997
        %v5001 = vadd.f32 %v4975, %v4996
        %v5002 = vadd.f32 %v4976, %v4998
        %s5003 = sld [smem:[#allocation12 + $0x60]]
        %v5004 = vstv %s5003
        %v5005 = vmul.f32 %v4969, %v5004
        %v5006 = vmul.f32 %v4970, %v5004
        %5009 = vrot.lane.b32.xlu0 %v5005, 127
        %v5010 = vpop.permute.xlu0 %5009
        %5011 = vrot.lane.b32.xlu0 %v5006, 127
        %v5012 = vpop.permute.xlu0 %5011
        %v5015 = vadd.f32 %v4981, %v5010
        %v5016 = vadd.f32 %v4982, %v5012
        %s5017 = sld [smem:[#allocation12 + $0xab]]
        %v5018 = vstv %s5017
        %v5019 = vmul.f32 %v4969, %v5018
        %v5020 = vmul.f32 %v4970, %v5018
        %5023 = vrot.lane.b32.xlu0 %v5019, 127
        %v5024 = vpop.permute.xlu0 %5023
        %5025 = vrot.lane.b32.xlu0 %v5020, 127
        %v5026 = vpop.permute.xlu0 %5025
        %v5029 = vadd.f32 %v4987, %v5024
        %v5030 = vadd.f32 %v4988, %v5026
        %s5031 = sld [smem:[#allocation12 + $0x16]]
        %v5032 = vstv %s5031
        %v5033 = vmul.f32 %v4969, %v5032
        %v5034 = vmul.f32 %v4970, %v5032
        %5037 = vrot.lane.b32.xlu0 %v5033, 126
        %v5038 = vpop.permute.xlu0 %5037
        %5039 = vrot.lane.b32.xlu0 %v5034, 126
        %v5040 = vpop.permute.xlu0 %5039
        %v5043 = vadd.f32 %v5001, %v5038
        %v5044 = vadd.f32 %v5002, %v5040
        %s5045 = sld [smem:[#allocation12 + $0x61]]
        %v5046 = vstv %s5045
        %v5047 = vmul.f32 %v4969, %v5046
        %v5048 = vmul.f32 %v4970, %v5046
        %5051 = vrot.lane.b32.xlu0 %v5047, 126
        %v5052 = vpop.permute.xlu0 %5051
        %5053 = vrot.lane.b32.xlu0 %v5048, 126
        %v5054 = vpop.permute.xlu0 %5053
        %v5057 = vadd.f32 %v5015, %v5052
        %v5058 = vadd.f32 %v5016, %v5054
        %s5059 = sld [smem:[#allocation12 + $0xac]]
        %v5060 = vstv %s5059
        %v5061 = vmul.f32 %v4969, %v5060
        %v5062 = vmul.f32 %v4970, %v5060
        %5065 = vrot.lane.b32.xlu0 %v5061, 126
        %v5066 = vpop.permute.xlu0 %5065
        %5067 = vrot.lane.b32.xlu0 %v5062, 126
        %v5068 = vpop.permute.xlu0 %5067
        %v5071 = vadd.f32 %v5029, %v5066
        %v5072 = vadd.f32 %v5030, %v5068
        %s5073 = sld [smem:[#allocation12 + $0x17]]
        %v5074 = vstv %s5073
        %v5075 = vmul.f32 %v4969, %v5074
        %v5076 = vmul.f32 %v4970, %v5074
        %5079 = vrot.lane.b32.xlu0 %v5075, 125
        %v5080 = vpop.permute.xlu0 %5079
        %5081 = vrot.lane.b32.xlu0 %v5076, 125
        %v5082 = vpop.permute.xlu0 %5081
        %v5085 = vadd.f32 %v5043, %v5080
        %v5086 = vadd.f32 %v5044, %v5082
        %s5087 = sld [smem:[#allocation12 + $0x62]]
        %v5088 = vstv %s5087
        %v5089 = vmul.f32 %v4969, %v5088
        %v5090 = vmul.f32 %v4970, %v5088
        %5093 = vrot.lane.b32.xlu0 %v5089, 125
        %v5094 = vpop.permute.xlu0 %5093
        %5095 = vrot.lane.b32.xlu0 %v5090, 125
        %v5096 = vpop.permute.xlu0 %5095
        %v5099 = vadd.f32 %v5057, %v5094
        %v5100 = vadd.f32 %v5058, %v5096
        %s5101 = sld [smem:[#allocation12 + $0xad]]
        %v5102 = vstv %s5101
        %v5103 = vmul.f32 %v4969, %v5102
        %v5104 = vmul.f32 %v4970, %v5102
        %5107 = vrot.lane.b32.xlu0 %v5103, 125
        %v5108 = vpop.permute.xlu0 %5107
        %5109 = vrot.lane.b32.xlu0 %v5104, 125
        %v5110 = vpop.permute.xlu0 %5109
        %v5113 = vadd.f32 %v5071, %v5108
        %v5114 = vadd.f32 %v5072, %v5110
        %s5115 = sld [smem:[#allocation12 + $0x18]]
        %v5116 = vstv %s5115
        %v5117 = vmul.f32 %v4969, %v5116
        %v5118 = vmul.f32 %v4970, %v5116
        %5121 = vrot.lane.b32.xlu0 %v5117, 124
        %v5122 = vpop.permute.xlu0 %5121
        %5123 = vrot.lane.b32.xlu0 %v5118, 124
        %v5124 = vpop.permute.xlu0 %5123
        %v5127 = vadd.f32 %v5085, %v5122
        %v5128 = vadd.f32 %v5086, %v5124
        %s5129 = sld [smem:[#allocation12 + $0x63]]
        %v5130 = vstv %s5129
        %v5131 = vmul.f32 %v4969, %v5130
        %v5132 = vmul.f32 %v4970, %v5130
        %5135 = vrot.lane.b32.xlu0 %v5131, 124
        %v5136 = vpop.permute.xlu0 %5135
        %5137 = vrot.lane.b32.xlu0 %v5132, 124
        %v5138 = vpop.permute.xlu0 %5137
        %v5141 = vadd.f32 %v5099, %v5136
        %v5142 = vadd.f32 %v5100, %v5138
        %s5143 = sld [smem:[#allocation12 + $0xae]]
        %v5144 = vstv %s5143
        %v5145 = vmul.f32 %v4969, %v5144
        %v5146 = vmul.f32 %v4970, %v5144
        %5149 = vrot.lane.b32.xlu0 %v5145, 124
        %v5150 = vpop.permute.xlu0 %5149
        %5151 = vrot.lane.b32.xlu0 %v5146, 124
        %v5152 = vpop.permute.xlu0 %5151
        %v5155 = vadd.f32 %v5113, %v5150
        %v5156 = vadd.f32 %v5114, %v5152
        %v5157 = vld [vmem:[%s4209] sm:$0xff]
        %v5158 = vld [vmem:[%s4209 + $0x8] sm:$0xff]
        %s5159 = sld [smem:[#allocation12 + $0x19]]
        %v5160 = vstv %s5159
        %v5161 = vmul.f32 %v5157, %v5160
        %v5162 = vmul.f32 %v5158, %v5160
        %v5163 = vadd.f32 %v5127, %v5161
        %v5164 = vadd.f32 %v5128, %v5162
        %s5165 = sld [smem:[#allocation12 + $0x64]]
        %v5166 = vstv %s5165
        %v5167 = vmul.f32 %v5157, %v5166
        %v5168 = vmul.f32 %v5158, %v5166
        %v5169 = vadd.f32 %v5141, %v5167
        %v5170 = vadd.f32 %v5142, %v5168
        %s5171 = sld [smem:[#allocation12 + $0xaf]]
        %v5172 = vstv %s5171
        %v5173 = vmul.f32 %v5157, %v5172
        %v5174 = vmul.f32 %v5158, %v5172
        %v5175 = vadd.f32 %v5155, %v5173
        %v5176 = vadd.f32 %v5156, %v5174
        %s5177 = sld [smem:[#allocation12 + $0x1a]]
        %v5178 = vstv %s5177
        %v5179 = vmul.f32 %v5157, %v5178
        %v5180 = vmul.f32 %v5158, %v5178
        %5183 = vrot.lane.b32.xlu0 %v5179, 127
        %v5184 = vpop.permute.xlu0 %5183
        %5185 = vrot.lane.b32.xlu0 %v5180, 127
        %v5186 = vpop.permute.xlu0 %5185
        %v5189 = vadd.f32 %v5163, %v5184
        %v5190 = vadd.f32 %v5164, %v5186
        %s5191 = sld [smem:[#allocation12 + $0x65]]
        %v5192 = vstv %s5191
        %v5193 = vmul.f32 %v5157, %v5192
        %v5194 = vmul.f32 %v5158, %v5192
        %5197 = vrot.lane.b32.xlu0 %v5193, 127
        %v5198 = vpop.permute.xlu0 %5197
        %5199 = vrot.lane.b32.xlu0 %v5194, 127
        %v5200 = vpop.permute.xlu0 %5199
        %v5203 = vadd.f32 %v5169, %v5198
        %v5204 = vadd.f32 %v5170, %v5200
        %s5205 = sld [smem:[#allocation12 + $0xb0]]
        %v5206 = vstv %s5205
        %v5207 = vmul.f32 %v5157, %v5206
        %v5208 = vmul.f32 %v5158, %v5206
        %5211 = vrot.lane.b32.xlu0 %v5207, 127
        %v5212 = vpop.permute.xlu0 %5211
        %5213 = vrot.lane.b32.xlu0 %v5208, 127
        %v5214 = vpop.permute.xlu0 %5213
        %v5217 = vadd.f32 %v5175, %v5212
        %v5218 = vadd.f32 %v5176, %v5214
        %s5219 = sld [smem:[#allocation12 + $0x1b]]
        %v5220 = vstv %s5219
        %v5221 = vmul.f32 %v5157, %v5220
        %v5222 = vmul.f32 %v5158, %v5220
        %5225 = vrot.lane.b32.xlu0 %v5221, 126
        %v5226 = vpop.permute.xlu0 %5225
        %5227 = vrot.lane.b32.xlu0 %v5222, 126
        %v5228 = vpop.permute.xlu0 %5227
        %v5231 = vadd.f32 %v5189, %v5226
        %v5232 = vadd.f32 %v5190, %v5228
        %s5233 = sld [smem:[#allocation12 + $0x66]]
        %v5234 = vstv %s5233
        %v5235 = vmul.f32 %v5157, %v5234
        %v5236 = vmul.f32 %v5158, %v5234
        %5239 = vrot.lane.b32.xlu0 %v5235, 126
        %v5240 = vpop.permute.xlu0 %5239
        %5241 = vrot.lane.b32.xlu0 %v5236, 126
        %v5242 = vpop.permute.xlu0 %5241
        %v5245 = vadd.f32 %v5203, %v5240
        %v5246 = vadd.f32 %v5204, %v5242
        %s5247 = sld [smem:[#allocation12 + $0xb1]]
        %v5248 = vstv %s5247
        %v5249 = vmul.f32 %v5157, %v5248
        %v5250 = vmul.f32 %v5158, %v5248
        %5253 = vrot.lane.b32.xlu0 %v5249, 126
        %v5254 = vpop.permute.xlu0 %5253
        %5255 = vrot.lane.b32.xlu0 %v5250, 126
        %v5256 = vpop.permute.xlu0 %5255
        %v5259 = vadd.f32 %v5217, %v5254
        %v5260 = vadd.f32 %v5218, %v5256
        %s5261 = sld [smem:[#allocation12 + $0x1c]]
        %v5262 = vstv %s5261
        %v5263 = vmul.f32 %v5157, %v5262
        %v5264 = vmul.f32 %v5158, %v5262
        %5267 = vrot.lane.b32.xlu0 %v5263, 125
        %v5268 = vpop.permute.xlu0 %5267
        %5269 = vrot.lane.b32.xlu0 %v5264, 125
        %v5270 = vpop.permute.xlu0 %5269
        %v5273 = vadd.f32 %v5231, %v5268
        %v5274 = vadd.f32 %v5232, %v5270
        %s5275 = sld [smem:[#allocation12 + $0x67]]
        %v5276 = vstv %s5275
        %v5277 = vmul.f32 %v5157, %v5276
        %v5278 = vmul.f32 %v5158, %v5276
        %5281 = vrot.lane.b32.xlu0 %v5277, 125
        %v5282 = vpop.permute.xlu0 %5281
        %5283 = vrot.lane.b32.xlu0 %v5278, 125
        %v5284 = vpop.permute.xlu0 %5283
        %v5287 = vadd.f32 %v5245, %v5282
        %v5288 = vadd.f32 %v5246, %v5284
        %s5289 = sld [smem:[#allocation12 + $0xb2]]
        %v5290 = vstv %s5289
        %v5291 = vmul.f32 %v5157, %v5290
        %v5292 = vmul.f32 %v5158, %v5290
        %5295 = vrot.lane.b32.xlu0 %v5291, 125
        %v5296 = vpop.permute.xlu0 %5295
        %5297 = vrot.lane.b32.xlu0 %v5292, 125
        %v5298 = vpop.permute.xlu0 %5297
        %v5301 = vadd.f32 %v5259, %v5296
        %v5302 = vadd.f32 %v5260, %v5298
        %s5303 = sld [smem:[#allocation12 + $0x1d]]
        %v5304 = vstv %s5303
        %v5305 = vmul.f32 %v5157, %v5304
        %v5306 = vmul.f32 %v5158, %v5304
        %5309 = vrot.lane.b32.xlu0 %v5305, 124
        %v5310 = vpop.permute.xlu0 %5309
        %5311 = vrot.lane.b32.xlu0 %v5306, 124
        %v5312 = vpop.permute.xlu0 %5311
        %v5315 = vadd.f32 %v5273, %v5310
        %v5316 = vadd.f32 %v5274, %v5312
        %s5317 = sld [smem:[#allocation12 + $0x68]]
        %v5318 = vstv %s5317
        %v5319 = vmul.f32 %v5157, %v5318
        %v5320 = vmul.f32 %v5158, %v5318
        %5323 = vrot.lane.b32.xlu0 %v5319, 124
        %v5324 = vpop.permute.xlu0 %5323
        %5325 = vrot.lane.b32.xlu0 %v5320, 124
        %v5326 = vpop.permute.xlu0 %5325
        %v5329 = vadd.f32 %v5287, %v5324
        %v5330 = vadd.f32 %v5288, %v5326
        %s5331 = sld [smem:[#allocation12 + $0xb3]]
        %v5332 = vstv %s5331
        %v5333 = vmul.f32 %v5157, %v5332
        %v5334 = vmul.f32 %v5158, %v5332
        %5337 = vrot.lane.b32.xlu0 %v5333, 124
        %v5338 = vpop.permute.xlu0 %5337
        %5339 = vrot.lane.b32.xlu0 %v5334, 124
        %v5340 = vpop.permute.xlu0 %5339
        %v5343 = vadd.f32 %v5301, %v5338
        %v5344 = vadd.f32 %v5302, %v5340
        %v5345 = vld [vmem:[%s4209 + $0x1] sm:$0xff]
        %v5346 = vld [vmem:[%s4209 + $0x9] sm:$0xff]
        %s5347 = sld [smem:[#allocation12 + $0x1e]]
        %v5348 = vstv %s5347
        %v5349 = vmul.f32 %v5345, %v5348
        %v5350 = vmul.f32 %v5346, %v5348
        %v5351 = vadd.f32 %v5315, %v5349
        %v5352 = vadd.f32 %v5316, %v5350
        %s5353 = sld [smem:[#allocation12 + $0x69]]
        %v5354 = vstv %s5353
        %v5355 = vmul.f32 %v5345, %v5354
        %v5356 = vmul.f32 %v5346, %v5354
        %v5357 = vadd.f32 %v5329, %v5355
        %v5358 = vadd.f32 %v5330, %v5356
        %s5359 = sld [smem:[#allocation12 + $0xb4]]
        %v5360 = vstv %s5359
        %v5361 = vmul.f32 %v5345, %v5360
        %v5362 = vmul.f32 %v5346, %v5360
        %v5363 = vadd.f32 %v5343, %v5361
        %v5364 = vadd.f32 %v5344, %v5362
        %s5365 = sld [smem:[#allocation12 + $0x1f]]
        %v5366 = vstv %s5365
        %v5367 = vmul.f32 %v5345, %v5366
        %v5368 = vmul.f32 %v5346, %v5366
        %5371 = vrot.lane.b32.xlu0 %v5367, 127
        %v5372 = vpop.permute.xlu0 %5371
        %5373 = vrot.lane.b32.xlu0 %v5368, 127
        %v5374 = vpop.permute.xlu0 %5373
        %v5377 = vadd.f32 %v5351, %v5372
        %v5378 = vadd.f32 %v5352, %v5374
        %s5379 = sld [smem:[#allocation12 + $0x6a]]
        %v5380 = vstv %s5379
        %v5381 = vmul.f32 %v5345, %v5380
        %v5382 = vmul.f32 %v5346, %v5380
        %5385 = vrot.lane.b32.xlu0 %v5381, 127
        %v5386 = vpop.permute.xlu0 %5385
        %5387 = vrot.lane.b32.xlu0 %v5382, 127
        %v5388 = vpop.permute.xlu0 %5387
        %v5391 = vadd.f32 %v5357, %v5386
        %v5392 = vadd.f32 %v5358, %v5388
        %s5393 = sld [smem:[#allocation12 + $0xb5]]
        %v5394 = vstv %s5393
        %v5395 = vmul.f32 %v5345, %v5394
        %v5396 = vmul.f32 %v5346, %v5394
        %5399 = vrot.lane.b32.xlu0 %v5395, 127
        %v5400 = vpop.permute.xlu0 %5399
        %5401 = vrot.lane.b32.xlu0 %v5396, 127
        %v5402 = vpop.permute.xlu0 %5401
        %v5405 = vadd.f32 %v5363, %v5400
        %v5406 = vadd.f32 %v5364, %v5402
        %s5407 = sld [smem:[#allocation12 + $0x20]]
        %v5408 = vstv %s5407
        %v5409 = vmul.f32 %v5345, %v5408
        %v5410 = vmul.f32 %v5346, %v5408
        %5413 = vrot.lane.b32.xlu0 %v5409, 126
        %v5414 = vpop.permute.xlu0 %5413
        %5415 = vrot.lane.b32.xlu0 %v5410, 126
        %v5416 = vpop.permute.xlu0 %5415
        %v5419 = vadd.f32 %v5377, %v5414
        %v5420 = vadd.f32 %v5378, %v5416
        %s5421 = sld [smem:[#allocation12 + $0x6b]]
        %v5422 = vstv %s5421
        %v5423 = vmul.f32 %v5345, %v5422
        %v5424 = vmul.f32 %v5346, %v5422
        %5427 = vrot.lane.b32.xlu0 %v5423, 126
        %v5428 = vpop.permute.xlu0 %5427
        %5429 = vrot.lane.b32.xlu0 %v5424, 126
        %v5430 = vpop.permute.xlu0 %5429
        %v5433 = vadd.f32 %v5391, %v5428
        %v5434 = vadd.f32 %v5392, %v5430
        %s5435 = sld [smem:[#allocation12 + $0xb6]]
        %v5436 = vstv %s5435
        %v5437 = vmul.f32 %v5345, %v5436
        %v5438 = vmul.f32 %v5346, %v5436
        %5441 = vrot.lane.b32.xlu0 %v5437, 126
        %v5442 = vpop.permute.xlu0 %5441
        %5443 = vrot.lane.b32.xlu0 %v5438, 126
        %v5444 = vpop.permute.xlu0 %5443
        %v5447 = vadd.f32 %v5405, %v5442
        %v5448 = vadd.f32 %v5406, %v5444
        %s5449 = sld [smem:[#allocation12 + $0x21]]
        %v5450 = vstv %s5449
        %v5451 = vmul.f32 %v5345, %v5450
        %v5452 = vmul.f32 %v5346, %v5450
        %5455 = vrot.lane.b32.xlu0 %v5451, 125
        %v5456 = vpop.permute.xlu0 %5455
        %5457 = vrot.lane.b32.xlu0 %v5452, 125
        %v5458 = vpop.permute.xlu0 %5457
        %v5461 = vadd.f32 %v5419, %v5456
        %v5462 = vadd.f32 %v5420, %v5458
        %s5463 = sld [smem:[#allocation12 + $0x6c]]
        %v5464 = vstv %s5463
        %v5465 = vmul.f32 %v5345, %v5464
        %v5466 = vmul.f32 %v5346, %v5464
        %5469 = vrot.lane.b32.xlu0 %v5465, 125
        %v5470 = vpop.permute.xlu0 %5469
        %5471 = vrot.lane.b32.xlu0 %v5466, 125
        %v5472 = vpop.permute.xlu0 %5471
        %v5475 = vadd.f32 %v5433, %v5470
        %v5476 = vadd.f32 %v5434, %v5472
        %s5477 = sld [smem:[#allocation12 + $0xb7]]
        %v5478 = vstv %s5477
        %v5479 = vmul.f32 %v5345, %v5478
        %v5480 = vmul.f32 %v5346, %v5478
        %5483 = vrot.lane.b32.xlu0 %v5479, 125
        %v5484 = vpop.permute.xlu0 %5483
        %5485 = vrot.lane.b32.xlu0 %v5480, 125
        %v5486 = vpop.permute.xlu0 %5485
        %v5489 = vadd.f32 %v5447, %v5484
        %v5490 = vadd.f32 %v5448, %v5486
        %s5491 = sld [smem:[#allocation12 + $0x22]]
        %v5492 = vstv %s5491
        %v5493 = vmul.f32 %v5345, %v5492
        %v5494 = vmul.f32 %v5346, %v5492
        %5497 = vrot.lane.b32.xlu0 %v5493, 124
        %v5498 = vpop.permute.xlu0 %5497
        %5499 = vrot.lane.b32.xlu0 %v5494, 124
        %v5500 = vpop.permute.xlu0 %5499
        %v5503 = vadd.f32 %v5461, %v5498
        %v5504 = vadd.f32 %v5462, %v5500
        %s5505 = sld [smem:[#allocation12 + $0x6d]]
        %v5506 = vstv %s5505
        %v5507 = vmul.f32 %v5345, %v5506
        %v5508 = vmul.f32 %v5346, %v5506
        %5511 = vrot.lane.b32.xlu0 %v5507, 124
        %v5512 = vpop.permute.xlu0 %5511
        %5513 = vrot.lane.b32.xlu0 %v5508, 124
        %v5514 = vpop.permute.xlu0 %5513
        %v5517 = vadd.f32 %v5475, %v5512
        %v5518 = vadd.f32 %v5476, %v5514
        %s5519 = sld [smem:[#allocation12 + $0xb8]]
        %v5520 = vstv %s5519
        %v5521 = vmul.f32 %v5345, %v5520
        %v5522 = vmul.f32 %v5346, %v5520
        %5525 = vrot.lane.b32.xlu0 %v5521, 124
        %v5526 = vpop.permute.xlu0 %5525
        %5527 = vrot.lane.b32.xlu0 %v5522, 124
        %v5528 = vpop.permute.xlu0 %5527
        %v5531 = vadd.f32 %v5489, %v5526
        %v5532 = vadd.f32 %v5490, %v5528
        %v5533 = vld [vmem:[%s4209 + $0x2] sm:$0xff]
        %v5534 = vld [vmem:[%s4209 + $0xa] sm:$0xff]
        %s5535 = sld [smem:[#allocation12 + $0x23]]
        %v5536 = vstv %s5535
        %v5537 = vmul.f32 %v5533, %v5536
        %v5538 = vmul.f32 %v5534, %v5536
        %v5539 = vadd.f32 %v5503, %v5537
        %v5540 = vadd.f32 %v5504, %v5538
        %s5541 = sld [smem:[#allocation12 + $0x6e]]
        %v5542 = vstv %s5541
        %v5543 = vmul.f32 %v5533, %v5542
        %v5544 = vmul.f32 %v5534, %v5542
        %v5545 = vadd.f32 %v5517, %v5543
        %v5546 = vadd.f32 %v5518, %v5544
        %s5547 = sld [smem:[#allocation12 + $0xb9]]
        %v5548 = vstv %s5547
        %v5549 = vmul.f32 %v5533, %v5548
        %v5550 = vmul.f32 %v5534, %v5548
        %v5551 = vadd.f32 %v5531, %v5549
        %v5552 = vadd.f32 %v5532, %v5550
        %s5553 = sld [smem:[#allocation12 + $0x24]]
        %v5554 = vstv %s5553
        %v5555 = vmul.f32 %v5533, %v5554
        %v5556 = vmul.f32 %v5534, %v5554
        %5559 = vrot.lane.b32.xlu0 %v5555, 127
        %v5560 = vpop.permute.xlu0 %5559
        %5561 = vrot.lane.b32.xlu0 %v5556, 127
        %v5562 = vpop.permute.xlu0 %5561
        %v5565 = vadd.f32 %v5539, %v5560
        %v5566 = vadd.f32 %v5540, %v5562
        %s5567 = sld [smem:[#allocation12 + $0x6f]]
        %v5568 = vstv %s5567
        %v5569 = vmul.f32 %v5533, %v5568
        %v5570 = vmul.f32 %v5534, %v5568
        %5573 = vrot.lane.b32.xlu0 %v5569, 127
        %v5574 = vpop.permute.xlu0 %5573
        %5575 = vrot.lane.b32.xlu0 %v5570, 127
        %v5576 = vpop.permute.xlu0 %5575
        %v5579 = vadd.f32 %v5545, %v5574
        %v5580 = vadd.f32 %v5546, %v5576
        %s5581 = sld [smem:[#allocation12 + $0xba]]
        %v5582 = vstv %s5581
        %v5583 = vmul.f32 %v5533, %v5582
        %v5584 = vmul.f32 %v5534, %v5582
        %5587 = vrot.lane.b32.xlu0 %v5583, 127
        %v5588 = vpop.permute.xlu0 %5587
        %5589 = vrot.lane.b32.xlu0 %v5584, 127
        %v5590 = vpop.permute.xlu0 %5589
        %v5593 = vadd.f32 %v5551, %v5588
        %v5594 = vadd.f32 %v5552, %v5590
        %s5595 = sld [smem:[#allocation12 + $0x25]]
        %v5596 = vstv %s5595
        %v5597 = vmul.f32 %v5533, %v5596
        %v5598 = vmul.f32 %v5534, %v5596
        %5601 = vrot.lane.b32.xlu0 %v5597, 126
        %v5602 = vpop.permute.xlu0 %5601
        %5603 = vrot.lane.b32.xlu0 %v5598, 126
        %v5604 = vpop.permute.xlu0 %5603
        %v5607 = vadd.f32 %v5565, %v5602
        %v5608 = vadd.f32 %v5566, %v5604
        %s5609 = sld [smem:[#allocation12 + $0x70]]
        %v5610 = vstv %s5609
        %v5611 = vmul.f32 %v5533, %v5610
        %v5612 = vmul.f32 %v5534, %v5610
        %5615 = vrot.lane.b32.xlu0 %v5611, 126
        %v5616 = vpop.permute.xlu0 %5615
        %5617 = vrot.lane.b32.xlu0 %v5612, 126
        %v5618 = vpop.permute.xlu0 %5617
        %v5621 = vadd.f32 %v5579, %v5616
        %v5622 = vadd.f32 %v5580, %v5618
        %s5623 = sld [smem:[#allocation12 + $0xbb]]
        %v5624 = vstv %s5623
        %v5625 = vmul.f32 %v5533, %v5624
        %v5626 = vmul.f32 %v5534, %v5624
        %5629 = vrot.lane.b32.xlu0 %v5625, 126
        %v5630 = vpop.permute.xlu0 %5629
        %5631 = vrot.lane.b32.xlu0 %v5626, 126
        %v5632 = vpop.permute.xlu0 %5631
        %v5635 = vadd.f32 %v5593, %v5630
        %v5636 = vadd.f32 %v5594, %v5632
        %s5637 = sld [smem:[#allocation12 + $0x26]]
        %v5638 = vstv %s5637
        %v5639 = vmul.f32 %v5533, %v5638
        %v5640 = vmul.f32 %v5534, %v5638
        %5643 = vrot.lane.b32.xlu0 %v5639, 125
        %v5644 = vpop.permute.xlu0 %5643
        %5645 = vrot.lane.b32.xlu0 %v5640, 125
        %v5646 = vpop.permute.xlu0 %5645
        %v5649 = vadd.f32 %v5607, %v5644
        %v5650 = vadd.f32 %v5608, %v5646
        %s5651 = sld [smem:[#allocation12 + $0x71]]
        %v5652 = vstv %s5651
        %v5653 = vmul.f32 %v5533, %v5652
        %v5654 = vmul.f32 %v5534, %v5652
        %5657 = vrot.lane.b32.xlu0 %v5653, 125
        %v5658 = vpop.permute.xlu0 %5657
        %5659 = vrot.lane.b32.xlu0 %v5654, 125
        %v5660 = vpop.permute.xlu0 %5659
        %v5663 = vadd.f32 %v5621, %v5658
        %v5664 = vadd.f32 %v5622, %v5660
        %s5665 = sld [smem:[#allocation12 + $0xbc]]
        %v5666 = vstv %s5665
        %v5667 = vmul.f32 %v5533, %v5666
        %v5668 = vmul.f32 %v5534, %v5666
        %5671 = vrot.lane.b32.xlu0 %v5667, 125
        %v5672 = vpop.permute.xlu0 %5671
        %5673 = vrot.lane.b32.xlu0 %v5668, 125
        %v5674 = vpop.permute.xlu0 %5673
        %v5677 = vadd.f32 %v5635, %v5672
        %v5678 = vadd.f32 %v5636, %v5674
        %s5679 = sld [smem:[#allocation12 + $0x27]]
        %v5680 = vstv %s5679
        %v5681 = vmul.f32 %v5533, %v5680
        %v5682 = vmul.f32 %v5534, %v5680
        %5685 = vrot.lane.b32.xlu0 %v5681, 124
        %v5686 = vpop.permute.xlu0 %5685
        %5687 = vrot.lane.b32.xlu0 %v5682, 124
        %v5688 = vpop.permute.xlu0 %5687
        %v5691 = vadd.f32 %v5649, %v5686
        %v5692 = vadd.f32 %v5650, %v5688
        %s5693 = sld [smem:[#allocation12 + $0x72]]
        %v5694 = vstv %s5693
        %v5695 = vmul.f32 %v5533, %v5694
        %v5696 = vmul.f32 %v5534, %v5694
        %5699 = vrot.lane.b32.xlu0 %v5695, 124
        %v5700 = vpop.permute.xlu0 %5699
        %5701 = vrot.lane.b32.xlu0 %v5696, 124
        %v5702 = vpop.permute.xlu0 %5701
        %v5705 = vadd.f32 %v5663, %v5700
        %v5706 = vadd.f32 %v5664, %v5702
        %s5707 = sld [smem:[#allocation12 + $0xbd]]
        %v5708 = vstv %s5707
        %v5709 = vmul.f32 %v5533, %v5708
        %v5710 = vmul.f32 %v5534, %v5708
        %5713 = vrot.lane.b32.xlu0 %v5709, 124
        %v5714 = vpop.permute.xlu0 %5713
        %5715 = vrot.lane.b32.xlu0 %v5710, 124
        %v5716 = vpop.permute.xlu0 %5715
        %v5719 = vadd.f32 %v5677, %v5714
        %v5720 = vadd.f32 %v5678, %v5716
        %v5721 = vld [vmem:[%s4209 + $0x3] sm:$0xff]
        %v5722 = vld [vmem:[%s4209 + $0xb] sm:$0xff]
        %s5723 = sld [smem:[#allocation12 + $0x28]]
        %v5724 = vstv %s5723
        %v5725 = vmul.f32 %v5721, %v5724
        %v5726 = vmul.f32 %v5722, %v5724
        %v5727 = vadd.f32 %v5691, %v5725
        %v5728 = vadd.f32 %v5692, %v5726
        %s5729 = sld [smem:[#allocation12 + $0x73]]
        %v5730 = vstv %s5729
        %v5731 = vmul.f32 %v5721, %v5730
        %v5732 = vmul.f32 %v5722, %v5730
        %v5733 = vadd.f32 %v5705, %v5731
        %v5734 = vadd.f32 %v5706, %v5732
        %s5735 = sld [smem:[#allocation12 + $0xbe]]
        %v5736 = vstv %s5735
        %v5737 = vmul.f32 %v5721, %v5736
        %v5738 = vmul.f32 %v5722, %v5736
        %v5739 = vadd.f32 %v5719, %v5737
        %v5740 = vadd.f32 %v5720, %v5738
        %s5741 = sld [smem:[#allocation12 + $0x29]]
        %v5742 = vstv %s5741
        %v5743 = vmul.f32 %v5721, %v5742
        %v5744 = vmul.f32 %v5722, %v5742
        %5747 = vrot.lane.b32.xlu0 %v5743, 127
        %v5748 = vpop.permute.xlu0 %5747
        %5749 = vrot.lane.b32.xlu0 %v5744, 127
        %v5750 = vpop.permute.xlu0 %5749
        %v5753 = vadd.f32 %v5727, %v5748
        %v5754 = vadd.f32 %v5728, %v5750
        %s5755 = sld [smem:[#allocation12 + $0x74]]
        %v5756 = vstv %s5755
        %v5757 = vmul.f32 %v5721, %v5756
        %v5758 = vmul.f32 %v5722, %v5756
        %5761 = vrot.lane.b32.xlu0 %v5757, 127
        %v5762 = vpop.permute.xlu0 %5761
        %5763 = vrot.lane.b32.xlu0 %v5758, 127
        %v5764 = vpop.permute.xlu0 %5763
        %v5767 = vadd.f32 %v5733, %v5762
        %v5768 = vadd.f32 %v5734, %v5764
        %s5769 = sld [smem:[#allocation12 + $0xbf]]
        %v5770 = vstv %s5769
        %v5771 = vmul.f32 %v5721, %v5770
        %v5772 = vmul.f32 %v5722, %v5770
        %5775 = vrot.lane.b32.xlu0 %v5771, 127
        %v5776 = vpop.permute.xlu0 %5775
        %5777 = vrot.lane.b32.xlu0 %v5772, 127
        %v5778 = vpop.permute.xlu0 %5777
        %v5781 = vadd.f32 %v5739, %v5776
        %v5782 = vadd.f32 %v5740, %v5778
        %s5783 = sld [smem:[#allocation12 + $0x2a]]
        %v5784 = vstv %s5783
        %v5785 = vmul.f32 %v5721, %v5784
        %v5786 = vmul.f32 %v5722, %v5784
        %5789 = vrot.lane.b32.xlu0 %v5785, 126
        %v5790 = vpop.permute.xlu0 %5789
        %5791 = vrot.lane.b32.xlu0 %v5786, 126
        %v5792 = vpop.permute.xlu0 %5791
        %v5795 = vadd.f32 %v5753, %v5790
        %v5796 = vadd.f32 %v5754, %v5792
        %s5797 = sld [smem:[#allocation12 + $0x75]]
        %v5798 = vstv %s5797
        %v5799 = vmul.f32 %v5721, %v5798
        %v5800 = vmul.f32 %v5722, %v5798
        %5803 = vrot.lane.b32.xlu0 %v5799, 126
        %v5804 = vpop.permute.xlu0 %5803
        %5805 = vrot.lane.b32.xlu0 %v5800, 126
        %v5806 = vpop.permute.xlu0 %5805
        %v5809 = vadd.f32 %v5767, %v5804
        %v5810 = vadd.f32 %v5768, %v5806
        %s5811 = sld [smem:[#allocation12 + $0xc0]]
        %v5812 = vstv %s5811
        %v5813 = vmul.f32 %v5721, %v5812
        %v5814 = vmul.f32 %v5722, %v5812
        %5817 = vrot.lane.b32.xlu0 %v5813, 126
        %v5818 = vpop.permute.xlu0 %5817
        %5819 = vrot.lane.b32.xlu0 %v5814, 126
        %v5820 = vpop.permute.xlu0 %5819
        %v5823 = vadd.f32 %v5781, %v5818
        %v5824 = vadd.f32 %v5782, %v5820
        %s5825 = sld [smem:[#allocation12 + $0x2b]]
        %v5826 = vstv %s5825
        %v5827 = vmul.f32 %v5721, %v5826
        %v5828 = vmul.f32 %v5722, %v5826
        %5831 = vrot.lane.b32.xlu0 %v5827, 125
        %v5832 = vpop.permute.xlu0 %5831
        %5833 = vrot.lane.b32.xlu0 %v5828, 125
        %v5834 = vpop.permute.xlu0 %5833
        %v5837 = vadd.f32 %v5795, %v5832
        %v5838 = vadd.f32 %v5796, %v5834
        %s5839 = sld [smem:[#allocation12 + $0x76]]
        %v5840 = vstv %s5839
        %v5841 = vmul.f32 %v5721, %v5840
        %v5842 = vmul.f32 %v5722, %v5840
        %5845 = vrot.lane.b32.xlu0 %v5841, 125
        %v5846 = vpop.permute.xlu0 %5845
        %5847 = vrot.lane.b32.xlu0 %v5842, 125
        %v5848 = vpop.permute.xlu0 %5847
        %v5851 = vadd.f32 %v5809, %v5846
        %v5852 = vadd.f32 %v5810, %v5848
        %s5853 = sld [smem:[#allocation12 + $0xc1]]
        %v5854 = vstv %s5853
        %v5855 = vmul.f32 %v5721, %v5854
        %v5856 = vmul.f32 %v5722, %v5854
        %5859 = vrot.lane.b32.xlu0 %v5855, 125
        %v5860 = vpop.permute.xlu0 %5859
        %5861 = vrot.lane.b32.xlu0 %v5856, 125
        %v5862 = vpop.permute.xlu0 %5861
        %v5865 = vadd.f32 %v5823, %v5860
        %v5866 = vadd.f32 %v5824, %v5862
        %s5867 = sld [smem:[#allocation12 + $0x2c]]
        %v5868 = vstv %s5867
        %v5869 = vmul.f32 %v5721, %v5868
        %v5870 = vmul.f32 %v5722, %v5868
        %5873 = vrot.lane.b32.xlu0 %v5869, 124
        %v5874 = vpop.permute.xlu0 %5873
        %5875 = vrot.lane.b32.xlu0 %v5870, 124
        %v5876 = vpop.permute.xlu0 %5875
        %v5879 = vadd.f32 %v5837, %v5874
        %v5880 = vadd.f32 %v5838, %v5876
        %s5881 = sld [smem:[#allocation12 + $0x77]]
        %v5882 = vstv %s5881
        %v5883 = vmul.f32 %v5721, %v5882
        %v5884 = vmul.f32 %v5722, %v5882
        %5887 = vrot.lane.b32.xlu0 %v5883, 124
        %v5888 = vpop.permute.xlu0 %5887
        %5889 = vrot.lane.b32.xlu0 %v5884, 124
        %v5890 = vpop.permute.xlu0 %5889
        %v5893 = vadd.f32 %v5851, %v5888
        %v5894 = vadd.f32 %v5852, %v5890
        %s5895 = sld [smem:[#allocation12 + $0xc2]]
        %v5896 = vstv %s5895
        %v5897 = vmul.f32 %v5721, %v5896
        %v5898 = vmul.f32 %v5722, %v5896
        %5901 = vrot.lane.b32.xlu0 %v5897, 124
        %v5902 = vpop.permute.xlu0 %5901
        %5903 = vrot.lane.b32.xlu0 %v5898, 124
        %v5904 = vpop.permute.xlu0 %5903
        %v5907 = vadd.f32 %v5865, %v5902
        %v5908 = vadd.f32 %v5866, %v5904
        %v5909 = vld [vmem:[%s4209 + $0x4] sm:$0xff]
        %v5910 = vld [vmem:[%s4209 + $0xc] sm:$0xff]
        %s5911 = sld [smem:[#allocation12 + $0x2d]]
        %v5912 = vstv %s5911
        %v5913 = vmul.f32 %v5909, %v5912
        %v5914 = vmul.f32 %v5910, %v5912
        %v5915 = vadd.f32 %v5879, %v5913
        %v5916 = vadd.f32 %v5880, %v5914
        %s5917 = sld [smem:[#allocation12 + $0x78]]
        %v5918 = vstv %s5917
        %v5919 = vmul.f32 %v5909, %v5918
        %v5920 = vmul.f32 %v5910, %v5918
        %v5921 = vadd.f32 %v5893, %v5919
        %v5922 = vadd.f32 %v5894, %v5920
        %s5923 = sld [smem:[#allocation12 + $0xc3]]
        %v5924 = vstv %s5923
        %v5925 = vmul.f32 %v5909, %v5924
        %v5926 = vmul.f32 %v5910, %v5924
        %v5927 = vadd.f32 %v5907, %v5925
        %v5928 = vadd.f32 %v5908, %v5926
        %s5929 = sld [smem:[#allocation12 + $0x2e]]
        %v5930 = vstv %s5929
        %v5931 = vmul.f32 %v5909, %v5930
        %v5932 = vmul.f32 %v5910, %v5930
        %5935 = vrot.lane.b32.xlu0 %v5931, 127
        %v5936 = vpop.permute.xlu0 %5935
        %5937 = vrot.lane.b32.xlu0 %v5932, 127
        %v5938 = vpop.permute.xlu0 %5937
        %v5941 = vadd.f32 %v5915, %v5936
        %v5942 = vadd.f32 %v5916, %v5938
        %s5943 = sld [smem:[#allocation12 + $0x79]]
        %v5944 = vstv %s5943
        %v5945 = vmul.f32 %v5909, %v5944
        %v5946 = vmul.f32 %v5910, %v5944
        %5949 = vrot.lane.b32.xlu0 %v5945, 127
        %v5950 = vpop.permute.xlu0 %5949
        %5951 = vrot.lane.b32.xlu0 %v5946, 127
        %v5952 = vpop.permute.xlu0 %5951
        %v5955 = vadd.f32 %v5921, %v5950
        %v5956 = vadd.f32 %v5922, %v5952
        %s5957 = sld [smem:[#allocation12 + $0xc4]]
        %v5958 = vstv %s5957
        %v5959 = vmul.f32 %v5909, %v5958
        %v5960 = vmul.f32 %v5910, %v5958
        %5963 = vrot.lane.b32.xlu0 %v5959, 127
        %v5964 = vpop.permute.xlu0 %5963
        %5965 = vrot.lane.b32.xlu0 %v5960, 127
        %v5966 = vpop.permute.xlu0 %5965
        %v5969 = vadd.f32 %v5927, %v5964
        %v5970 = vadd.f32 %v5928, %v5966
        %s5971 = sld [smem:[#allocation12 + $0x2f]]
        %v5972 = vstv %s5971
        %v5973 = vmul.f32 %v5909, %v5972
        %v5974 = vmul.f32 %v5910, %v5972
        %5977 = vrot.lane.b32.xlu0 %v5973, 126
        %v5978 = vpop.permute.xlu0 %5977
        %5979 = vrot.lane.b32.xlu0 %v5974, 126
        %v5980 = vpop.permute.xlu0 %5979
        %v5983 = vadd.f32 %v5941, %v5978
        %v5984 = vadd.f32 %v5942, %v5980
        %s5985 = sld [smem:[#allocation12 + $0x7a]]
        %v5986 = vstv %s5985
        %v5987 = vmul.f32 %v5909, %v5986
        %v5988 = vmul.f32 %v5910, %v5986
        %5991 = vrot.lane.b32.xlu0 %v5987, 126
        %v5992 = vpop.permute.xlu0 %5991
        %5993 = vrot.lane.b32.xlu0 %v5988, 126
        %v5994 = vpop.permute.xlu0 %5993
        %v5997 = vadd.f32 %v5955, %v5992
        %v5998 = vadd.f32 %v5956, %v5994
        %s5999 = sld [smem:[#allocation12 + $0xc5]]
        %v6000 = vstv %s5999
        %v6001 = vmul.f32 %v5909, %v6000
        %v6002 = vmul.f32 %v5910, %v6000
        %6005 = vrot.lane.b32.xlu0 %v6001, 126
        %v6006 = vpop.permute.xlu0 %6005
        %6007 = vrot.lane.b32.xlu0 %v6002, 126
        %v6008 = vpop.permute.xlu0 %6007
        %v6011 = vadd.f32 %v5969, %v6006
        %v6012 = vadd.f32 %v5970, %v6008
        %s6013 = sld [smem:[#allocation12 + $0x30]]
        %v6014 = vstv %s6013
        %v6015 = vmul.f32 %v5909, %v6014
        %v6016 = vmul.f32 %v5910, %v6014
        %6019 = vrot.lane.b32.xlu0 %v6015, 125
        %v6020 = vpop.permute.xlu0 %6019
        %6021 = vrot.lane.b32.xlu0 %v6016, 125
        %v6022 = vpop.permute.xlu0 %6021
        %v6025 = vadd.f32 %v5983, %v6020
        %v6026 = vadd.f32 %v5984, %v6022
        %s6027 = sld [smem:[#allocation12 + $0x7b]]
        %v6028 = vstv %s6027
        %v6029 = vmul.f32 %v5909, %v6028
        %v6030 = vmul.f32 %v5910, %v6028
        %6033 = vrot.lane.b32.xlu0 %v6029, 125
        %v6034 = vpop.permute.xlu0 %6033
        %6035 = vrot.lane.b32.xlu0 %v6030, 125
        %v6036 = vpop.permute.xlu0 %6035
        %v6039 = vadd.f32 %v5997, %v6034
        %v6040 = vadd.f32 %v5998, %v6036
        %s6041 = sld [smem:[#allocation12 + $0xc6]]
        %v6042 = vstv %s6041
        %v6043 = vmul.f32 %v5909, %v6042
        %v6044 = vmul.f32 %v5910, %v6042
        %6047 = vrot.lane.b32.xlu0 %v6043, 125
        %v6048 = vpop.permute.xlu0 %6047
        %6049 = vrot.lane.b32.xlu0 %v6044, 125
        %v6050 = vpop.permute.xlu0 %6049
        %v6053 = vadd.f32 %v6011, %v6048
        %v6054 = vadd.f32 %v6012, %v6050
        %s6055 = sld [smem:[#allocation12 + $0x31]]
        %v6056 = vstv %s6055
        %v6057 = vmul.f32 %v5909, %v6056
        %v6058 = vmul.f32 %v5910, %v6056
        %6061 = vrot.lane.b32.xlu0 %v6057, 124
        %v6062 = vpop.permute.xlu0 %6061
        %6063 = vrot.lane.b32.xlu0 %v6058, 124
        %v6064 = vpop.permute.xlu0 %6063
        %v6067 = vadd.f32 %v6025, %v6062
        %v6068 = vadd.f32 %v6026, %v6064
        %s6069 = sld [smem:[#allocation12 + $0x7c]]
        %v6070 = vstv %s6069
        %v6071 = vmul.f32 %v5909, %v6070
        %v6072 = vmul.f32 %v5910, %v6070
        %6075 = vrot.lane.b32.xlu0 %v6071, 124
        %v6076 = vpop.permute.xlu0 %6075
        %6077 = vrot.lane.b32.xlu0 %v6072, 124
        %v6078 = vpop.permute.xlu0 %6077
        %v6081 = vadd.f32 %v6039, %v6076
        %v6082 = vadd.f32 %v6040, %v6078
        %s6083 = sld [smem:[#allocation12 + $0xc7]]
        %v6084 = vstv %s6083
        %v6085 = vmul.f32 %v5909, %v6084
        %v6086 = vmul.f32 %v5910, %v6084
        %6089 = vrot.lane.b32.xlu0 %v6085, 124
        %v6090 = vpop.permute.xlu0 %6089
        %6091 = vrot.lane.b32.xlu0 %v6086, 124
        %v6092 = vpop.permute.xlu0 %6091
        %v6095 = vadd.f32 %v6053, %v6090
        %v6096 = vadd.f32 %v6054, %v6092
        %v6097 = vld [vmem:[%s4220] sm:$0xff]
        %v6098 = vld [vmem:[%s4220 + $0x8] sm:$0xff]
        %s6099 = sld [smem:[#allocation12 + $0x32]]
        %v6100 = vstv %s6099
        %v6101 = vmul.f32 %v6097, %v6100
        %v6102 = vmul.f32 %v6098, %v6100
        %v6103 = vadd.f32 %v6067, %v6101
        %v6104 = vadd.f32 %v6068, %v6102
        %s6105 = sld [smem:[#allocation12 + $0x7d]]
        %v6106 = vstv %s6105
        %v6107 = vmul.f32 %v6097, %v6106
        %v6108 = vmul.f32 %v6098, %v6106
        %v6109 = vadd.f32 %v6081, %v6107
        %v6110 = vadd.f32 %v6082, %v6108
        %s6111 = sld [smem:[#allocation12 + $0xc8]]
        %v6112 = vstv %s6111
        %v6113 = vmul.f32 %v6097, %v6112
        %v6114 = vmul.f32 %v6098, %v6112
        %v6115 = vadd.f32 %v6095, %v6113
        %v6116 = vadd.f32 %v6096, %v6114
        %s6117 = sld [smem:[#allocation12 + $0x33]]
        %v6118 = vstv %s6117
        %v6119 = vmul.f32 %v6097, %v6118
        %v6120 = vmul.f32 %v6098, %v6118
        %6123 = vrot.lane.b32.xlu0 %v6119, 127
        %v6124 = vpop.permute.xlu0 %6123
        %6125 = vrot.lane.b32.xlu0 %v6120, 127
        %v6126 = vpop.permute.xlu0 %6125
        %v6129 = vadd.f32 %v6103, %v6124
        %v6130 = vadd.f32 %v6104, %v6126
        %s6131 = sld [smem:[#allocation12 + $0x7e]]
        %v6132 = vstv %s6131
        %v6133 = vmul.f32 %v6097, %v6132
        %v6134 = vmul.f32 %v6098, %v6132
        %6137 = vrot.lane.b32.xlu0 %v6133, 127
        %v6138 = vpop.permute.xlu0 %6137
        %6139 = vrot.lane.b32.xlu0 %v6134, 127
        %v6140 = vpop.permute.xlu0 %6139
        %v6143 = vadd.f32 %v6109, %v6138
        %v6144 = vadd.f32 %v6110, %v6140
        %s6145 = sld [smem:[#allocation12 + $0xc9]]
        %v6146 = vstv %s6145
        %v6147 = vmul.f32 %v6097, %v6146
        %v6148 = vmul.f32 %v6098, %v6146
        %6151 = vrot.lane.b32.xlu0 %v6147, 127
        %v6152 = vpop.permute.xlu0 %6151
        %6153 = vrot.lane.b32.xlu0 %v6148, 127
        %v6154 = vpop.permute.xlu0 %6153
        %v6157 = vadd.f32 %v6115, %v6152
        %v6158 = vadd.f32 %v6116, %v6154
        %s6159 = sld [smem:[#allocation12 + $0x34]]
        %v6160 = vstv %s6159
        %v6161 = vmul.f32 %v6097, %v6160
        %v6162 = vmul.f32 %v6098, %v6160
        %6165 = vrot.lane.b32.xlu0 %v6161, 126
        %v6166 = vpop.permute.xlu0 %6165
        %6167 = vrot.lane.b32.xlu0 %v6162, 126
        %v6168 = vpop.permute.xlu0 %6167
        %v6171 = vadd.f32 %v6129, %v6166
        %v6172 = vadd.f32 %v6130, %v6168
        %s6173 = sld [smem:[#allocation12 + $0x7f]]
        %v6174 = vstv %s6173
        %v6175 = vmul.f32 %v6097, %v6174
        %v6176 = vmul.f32 %v6098, %v6174
        %6179 = vrot.lane.b32.xlu0 %v6175, 126
        %v6180 = vpop.permute.xlu0 %6179
        %6181 = vrot.lane.b32.xlu0 %v6176, 126
        %v6182 = vpop.permute.xlu0 %6181
        %v6185 = vadd.f32 %v6143, %v6180
        %v6186 = vadd.f32 %v6144, %v6182
        %s6187 = sld [smem:[#allocation12 + $0xca]]
        %v6188 = vstv %s6187
        %v6189 = vmul.f32 %v6097, %v6188
        %v6190 = vmul.f32 %v6098, %v6188
        %6193 = vrot.lane.b32.xlu0 %v6189, 126
        %v6194 = vpop.permute.xlu0 %6193
        %6195 = vrot.lane.b32.xlu0 %v6190, 126
        %v6196 = vpop.permute.xlu0 %6195
        %v6199 = vadd.f32 %v6157, %v6194
        %v6200 = vadd.f32 %v6158, %v6196
        %s6201 = sld [smem:[#allocation12 + $0x35]]
        %v6202 = vstv %s6201
        %v6203 = vmul.f32 %v6097, %v6202
        %v6204 = vmul.f32 %v6098, %v6202
        %6207 = vrot.lane.b32.xlu0 %v6203, 125
        %v6208 = vpop.permute.xlu0 %6207
        %6209 = vrot.lane.b32.xlu0 %v6204, 125
        %v6210 = vpop.permute.xlu0 %6209
        %v6213 = vadd.f32 %v6171, %v6208
        %v6214 = vadd.f32 %v6172, %v6210
        %s6215 = sld [smem:[#allocation12 + $0x80]]
        %v6216 = vstv %s6215
        %v6217 = vmul.f32 %v6097, %v6216
        %v6218 = vmul.f32 %v6098, %v6216
        %6221 = vrot.lane.b32.xlu0 %v6217, 125
        %v6222 = vpop.permute.xlu0 %6221
        %6223 = vrot.lane.b32.xlu0 %v6218, 125
        %v6224 = vpop.permute.xlu0 %6223
        %v6227 = vadd.f32 %v6185, %v6222
        %v6228 = vadd.f32 %v6186, %v6224
        %s6229 = sld [smem:[#allocation12 + $0xcb]]
        %v6230 = vstv %s6229
        %v6231 = vmul.f32 %v6097, %v6230
        %v6232 = vmul.f32 %v6098, %v6230
        %6235 = vrot.lane.b32.xlu0 %v6231, 125
        %v6236 = vpop.permute.xlu0 %6235
        %6237 = vrot.lane.b32.xlu0 %v6232, 125
        %v6238 = vpop.permute.xlu0 %6237
        %v6241 = vadd.f32 %v6199, %v6236
        %v6242 = vadd.f32 %v6200, %v6238
        %s6243 = sld [smem:[#allocation12 + $0x36]]
        %v6244 = vstv %s6243
        %v6245 = vmul.f32 %v6097, %v6244
        %v6246 = vmul.f32 %v6098, %v6244
        %6249 = vrot.lane.b32.xlu0 %v6245, 124
        %v6250 = vpop.permute.xlu0 %6249
        %6251 = vrot.lane.b32.xlu0 %v6246, 124
        %v6252 = vpop.permute.xlu0 %6251
        %v6255 = vadd.f32 %v6213, %v6250
        %v6256 = vadd.f32 %v6214, %v6252
        %s6257 = sld [smem:[#allocation12 + $0x81]]
        %v6258 = vstv %s6257
        %v6259 = vmul.f32 %v6097, %v6258
        %v6260 = vmul.f32 %v6098, %v6258
        %6263 = vrot.lane.b32.xlu0 %v6259, 124
        %v6264 = vpop.permute.xlu0 %6263
        %6265 = vrot.lane.b32.xlu0 %v6260, 124
        %v6266 = vpop.permute.xlu0 %6265
        %v6269 = vadd.f32 %v6227, %v6264
        %v6270 = vadd.f32 %v6228, %v6266
        %s6271 = sld [smem:[#allocation12 + $0xcc]]
        %v6272 = vstv %s6271
        %v6273 = vmul.f32 %v6097, %v6272
        %v6274 = vmul.f32 %v6098, %v6272
        %6277 = vrot.lane.b32.xlu0 %v6273, 124
        %v6278 = vpop.permute.xlu0 %6277
        %6279 = vrot.lane.b32.xlu0 %v6274, 124
        %v6280 = vpop.permute.xlu0 %6279
        %v6283 = vadd.f32 %v6241, %v6278
        %v6284 = vadd.f32 %v6242, %v6280
        %v6285 = vld [vmem:[%s4220 + $0x1] sm:$0xff]
        %v6286 = vld [vmem:[%s4220 + $0x9] sm:$0xff]
        %s6287 = sld [smem:[#allocation12 + $0x37]]
        %v6288 = vstv %s6287
        %v6289 = vmul.f32 %v6285, %v6288
        %v6290 = vmul.f32 %v6286, %v6288
        %v6291 = vadd.f32 %v6255, %v6289
        %v6292 = vadd.f32 %v6256, %v6290
        %s6293 = sld [smem:[#allocation12 + $0x82]]
        %v6294 = vstv %s6293
        %v6295 = vmul.f32 %v6285, %v6294
        %v6296 = vmul.f32 %v6286, %v6294
        %v6297 = vadd.f32 %v6269, %v6295
        %v6298 = vadd.f32 %v6270, %v6296
        %s6299 = sld [smem:[#allocation12 + $0xcd]]
        %v6300 = vstv %s6299
        %v6301 = vmul.f32 %v6285, %v6300
        %v6302 = vmul.f32 %v6286, %v6300
        %v6303 = vadd.f32 %v6283, %v6301
        %v6304 = vadd.f32 %v6284, %v6302
        %s6305 = sld [smem:[#allocation12 + $0x38]]
        %v6306 = vstv %s6305
        %v6307 = vmul.f32 %v6285, %v6306
        %v6308 = vmul.f32 %v6286, %v6306
        %6311 = vrot.lane.b32.xlu0 %v6307, 127
        %v6312 = vpop.permute.xlu0 %6311
        %6313 = vrot.lane.b32.xlu0 %v6308, 127
        %v6314 = vpop.permute.xlu0 %6313
        %v6317 = vadd.f32 %v6291, %v6312
        %v6318 = vadd.f32 %v6292, %v6314
        %s6319 = sld [smem:[#allocation12 + $0x83]]
        %v6320 = vstv %s6319
        %v6321 = vmul.f32 %v6285, %v6320
        %v6322 = vmul.f32 %v6286, %v6320
        %6325 = vrot.lane.b32.xlu0 %v6321, 127
        %v6326 = vpop.permute.xlu0 %6325
        %6327 = vrot.lane.b32.xlu0 %v6322, 127
        %v6328 = vpop.permute.xlu0 %6327
        %v6331 = vadd.f32 %v6297, %v6326
        %v6332 = vadd.f32 %v6298, %v6328
        %s6333 = sld [smem:[#allocation12 + $0xce]]
        %v6334 = vstv %s6333
        %v6335 = vmul.f32 %v6285, %v6334
        %v6336 = vmul.f32 %v6286, %v6334
        %6339 = vrot.lane.b32.xlu0 %v6335, 127
        %v6340 = vpop.permute.xlu0 %6339
        %6341 = vrot.lane.b32.xlu0 %v6336, 127
        %v6342 = vpop.permute.xlu0 %6341
        %v6345 = vadd.f32 %v6303, %v6340
        %v6346 = vadd.f32 %v6304, %v6342
        %s6347 = sld [smem:[#allocation12 + $0x39]]
        %v6348 = vstv %s6347
        %v6349 = vmul.f32 %v6285, %v6348
        %v6350 = vmul.f32 %v6286, %v6348
        %6353 = vrot.lane.b32.xlu0 %v6349, 126
        %v6354 = vpop.permute.xlu0 %6353
        %6355 = vrot.lane.b32.xlu0 %v6350, 126
        %v6356 = vpop.permute.xlu0 %6355
        %v6359 = vadd.f32 %v6317, %v6354
        %v6360 = vadd.f32 %v6318, %v6356
        %s6361 = sld [smem:[#allocation12 + $0x84]]
        %v6362 = vstv %s6361
        %v6363 = vmul.f32 %v6285, %v6362
        %v6364 = vmul.f32 %v6286, %v6362
        %6367 = vrot.lane.b32.xlu0 %v6363, 126
        %v6368 = vpop.permute.xlu0 %6367
        %6369 = vrot.lane.b32.xlu0 %v6364, 126
        %v6370 = vpop.permute.xlu0 %6369
        %v6373 = vadd.f32 %v6331, %v6368
        %v6374 = vadd.f32 %v6332, %v6370
        %s6375 = sld [smem:[#allocation12 + $0xcf]]
        %v6376 = vstv %s6375
        %v6377 = vmul.f32 %v6285, %v6376
        %v6378 = vmul.f32 %v6286, %v6376
        %6381 = vrot.lane.b32.xlu0 %v6377, 126
        %v6382 = vpop.permute.xlu0 %6381
        %6383 = vrot.lane.b32.xlu0 %v6378, 126
        %v6384 = vpop.permute.xlu0 %6383
        %v6387 = vadd.f32 %v6345, %v6382
        %v6388 = vadd.f32 %v6346, %v6384
        %s6389 = sld [smem:[#allocation12 + $0x3a]]
        %v6390 = vstv %s6389
        %v6391 = vmul.f32 %v6285, %v6390
        %v6392 = vmul.f32 %v6286, %v6390
        %6395 = vrot.lane.b32.xlu0 %v6391, 125
        %v6396 = vpop.permute.xlu0 %6395
        %6397 = vrot.lane.b32.xlu0 %v6392, 125
        %v6398 = vpop.permute.xlu0 %6397
        %v6401 = vadd.f32 %v6359, %v6396
        %v6402 = vadd.f32 %v6360, %v6398
        %s6403 = sld [smem:[#allocation12 + $0x85]]
        %v6404 = vstv %s6403
        %v6405 = vmul.f32 %v6285, %v6404
        %v6406 = vmul.f32 %v6286, %v6404
        %6409 = vrot.lane.b32.xlu0 %v6405, 125
        %v6410 = vpop.permute.xlu0 %6409
        %6411 = vrot.lane.b32.xlu0 %v6406, 125
        %v6412 = vpop.permute.xlu0 %6411
        %v6415 = vadd.f32 %v6373, %v6410
        %v6416 = vadd.f32 %v6374, %v6412
        %s6417 = sld [smem:[#allocation12 + $0xd0]]
        %v6418 = vstv %s6417
        %v6419 = vmul.f32 %v6285, %v6418
        %v6420 = vmul.f32 %v6286, %v6418
        %6423 = vrot.lane.b32.xlu0 %v6419, 125
        %v6424 = vpop.permute.xlu0 %6423
        %6425 = vrot.lane.b32.xlu0 %v6420, 125
        %v6426 = vpop.permute.xlu0 %6425
        %v6429 = vadd.f32 %v6387, %v6424
        %v6430 = vadd.f32 %v6388, %v6426
        %s6431 = sld [smem:[#allocation12 + $0x3b]]
        %v6432 = vstv %s6431
        %v6433 = vmul.f32 %v6285, %v6432
        %v6434 = vmul.f32 %v6286, %v6432
        %6437 = vrot.lane.b32.xlu0 %v6433, 124
        %v6438 = vpop.permute.xlu0 %6437
        %6439 = vrot.lane.b32.xlu0 %v6434, 124
        %v6440 = vpop.permute.xlu0 %6439
        %v6443 = vadd.f32 %v6401, %v6438
        %v6444 = vadd.f32 %v6402, %v6440
        %s6445 = sld [smem:[#allocation12 + $0x86]]
        %v6446 = vstv %s6445
        %v6447 = vmul.f32 %v6285, %v6446
        %v6448 = vmul.f32 %v6286, %v6446
        %6451 = vrot.lane.b32.xlu0 %v6447, 124
        %v6452 = vpop.permute.xlu0 %6451
        %6453 = vrot.lane.b32.xlu0 %v6448, 124
        %v6454 = vpop.permute.xlu0 %6453
        %v6457 = vadd.f32 %v6415, %v6452
        %v6458 = vadd.f32 %v6416, %v6454
        %s6459 = sld [smem:[#allocation12 + $0xd1]]
        %v6460 = vstv %s6459
        %v6461 = vmul.f32 %v6285, %v6460
        %v6462 = vmul.f32 %v6286, %v6460
        %6465 = vrot.lane.b32.xlu0 %v6461, 124
        %v6466 = vpop.permute.xlu0 %6465
        %6467 = vrot.lane.b32.xlu0 %v6462, 124
        %v6468 = vpop.permute.xlu0 %6467
        %v6471 = vadd.f32 %v6429, %v6466
        %v6472 = vadd.f32 %v6430, %v6468
        %v6473 = vld [vmem:[%s4220 + $0x2] sm:$0xff]
        %v6474 = vld [vmem:[%s4220 + $0xa] sm:$0xff]
        %s6475 = sld [smem:[#allocation12 + $0x3c]]
        %v6476 = vstv %s6475
        %v6477 = vmul.f32 %v6473, %v6476
        %v6478 = vmul.f32 %v6474, %v6476
        %v6479 = vadd.f32 %v6443, %v6477
        %v6480 = vadd.f32 %v6444, %v6478
        %s6481 = sld [smem:[#allocation12 + $0x87]]
        %v6482 = vstv %s6481
        %v6483 = vmul.f32 %v6473, %v6482
        %v6484 = vmul.f32 %v6474, %v6482
        %v6485 = vadd.f32 %v6457, %v6483
        %v6486 = vadd.f32 %v6458, %v6484
        %s6487 = sld [smem:[#allocation12 + $0xd2]]
        %v6488 = vstv %s6487
        %v6489 = vmul.f32 %v6473, %v6488
        %v6490 = vmul.f32 %v6474, %v6488
        %v6491 = vadd.f32 %v6471, %v6489
        %v6492 = vadd.f32 %v6472, %v6490
        %s6493 = sld [smem:[#allocation12 + $0x3d]]
        %v6494 = vstv %s6493
        %v6495 = vmul.f32 %v6473, %v6494
        %v6496 = vmul.f32 %v6474, %v6494
        %6499 = vrot.lane.b32.xlu0 %v6495, 127
        %v6500 = vpop.permute.xlu0 %6499
        %6501 = vrot.lane.b32.xlu0 %v6496, 127
        %v6502 = vpop.permute.xlu0 %6501
        %v6505 = vadd.f32 %v6479, %v6500
        %v6506 = vadd.f32 %v6480, %v6502
        %s6507 = sld [smem:[#allocation12 + $0x88]]
        %v6508 = vstv %s6507
        %v6509 = vmul.f32 %v6473, %v6508
        %v6510 = vmul.f32 %v6474, %v6508
        %6513 = vrot.lane.b32.xlu0 %v6509, 127
        %v6514 = vpop.permute.xlu0 %6513
        %6515 = vrot.lane.b32.xlu0 %v6510, 127
        %v6516 = vpop.permute.xlu0 %6515
        %v6519 = vadd.f32 %v6485, %v6514
        %v6520 = vadd.f32 %v6486, %v6516
        %s6521 = sld [smem:[#allocation12 + $0xd3]]
        %v6522 = vstv %s6521
        %v6523 = vmul.f32 %v6473, %v6522
        %v6524 = vmul.f32 %v6474, %v6522
        %6527 = vrot.lane.b32.xlu0 %v6523, 127
        %v6528 = vpop.permute.xlu0 %6527
        %6529 = vrot.lane.b32.xlu0 %v6524, 127
        %v6530 = vpop.permute.xlu0 %6529
        %v6533 = vadd.f32 %v6491, %v6528
        %v6534 = vadd.f32 %v6492, %v6530
        %s6535 = sld [smem:[#allocation12 + $0x3e]]
        %v6536 = vstv %s6535
        %v6537 = vmul.f32 %v6473, %v6536
        %v6538 = vmul.f32 %v6474, %v6536
        %6541 = vrot.lane.b32.xlu0 %v6537, 126
        %v6542 = vpop.permute.xlu0 %6541
        %6543 = vrot.lane.b32.xlu0 %v6538, 126
        %v6544 = vpop.permute.xlu0 %6543
        %v6547 = vadd.f32 %v6505, %v6542
        %v6548 = vadd.f32 %v6506, %v6544
        %s6549 = sld [smem:[#allocation12 + $0x89]]
        %v6550 = vstv %s6549
        %v6551 = vmul.f32 %v6473, %v6550
        %v6552 = vmul.f32 %v6474, %v6550
        %6555 = vrot.lane.b32.xlu0 %v6551, 126
        %v6556 = vpop.permute.xlu0 %6555
        %6557 = vrot.lane.b32.xlu0 %v6552, 126
        %v6558 = vpop.permute.xlu0 %6557
        %v6561 = vadd.f32 %v6519, %v6556
        %v6562 = vadd.f32 %v6520, %v6558
        %s6563 = sld [smem:[#allocation12 + $0xd4]]
        %v6564 = vstv %s6563
        %v6565 = vmul.f32 %v6473, %v6564
        %v6566 = vmul.f32 %v6474, %v6564
        %6569 = vrot.lane.b32.xlu0 %v6565, 126
        %v6570 = vpop.permute.xlu0 %6569
        %6571 = vrot.lane.b32.xlu0 %v6566, 126
        %v6572 = vpop.permute.xlu0 %6571
        %v6575 = vadd.f32 %v6533, %v6570
        %v6576 = vadd.f32 %v6534, %v6572
        %s6577 = sld [smem:[#allocation12 + $0x3f]]
        %v6578 = vstv %s6577
        %v6579 = vmul.f32 %v6473, %v6578
        %v6580 = vmul.f32 %v6474, %v6578
        %6583 = vrot.lane.b32.xlu0 %v6579, 125
        %v6584 = vpop.permute.xlu0 %6583
        %6585 = vrot.lane.b32.xlu0 %v6580, 125
        %v6586 = vpop.permute.xlu0 %6585
        %v6589 = vadd.f32 %v6547, %v6584
        %v6590 = vadd.f32 %v6548, %v6586
        %s6591 = sld [smem:[#allocation12 + $0x8a]]
        %v6592 = vstv %s6591
        %v6593 = vmul.f32 %v6473, %v6592
        %v6594 = vmul.f32 %v6474, %v6592
        %6597 = vrot.lane.b32.xlu0 %v6593, 125
        %v6598 = vpop.permute.xlu0 %6597
        %6599 = vrot.lane.b32.xlu0 %v6594, 125
        %v6600 = vpop.permute.xlu0 %6599
        %v6603 = vadd.f32 %v6561, %v6598
        %v6604 = vadd.f32 %v6562, %v6600
        %s6605 = sld [smem:[#allocation12 + $0xd5]]
        %v6606 = vstv %s6605
        %v6607 = vmul.f32 %v6473, %v6606
        %v6608 = vmul.f32 %v6474, %v6606
        %6611 = vrot.lane.b32.xlu0 %v6607, 125
        %v6612 = vpop.permute.xlu0 %6611
        %6613 = vrot.lane.b32.xlu0 %v6608, 125
        %v6614 = vpop.permute.xlu0 %6613
        %v6617 = vadd.f32 %v6575, %v6612
        %v6618 = vadd.f32 %v6576, %v6614
        %s6619 = sld [smem:[#allocation12 + $0x40]]
        %v6620 = vstv %s6619
        %v6621 = vmul.f32 %v6473, %v6620
        %v6622 = vmul.f32 %v6474, %v6620
        %6625 = vrot.lane.b32.xlu0 %v6621, 124
        %v6626 = vpop.permute.xlu0 %6625
        %6627 = vrot.lane.b32.xlu0 %v6622, 124
        %v6628 = vpop.permute.xlu0 %6627
        %v6631 = vadd.f32 %v6589, %v6626
        %v6632 = vadd.f32 %v6590, %v6628
        %s6633 = sld [smem:[#allocation12 + $0x8b]]
        %v6634 = vstv %s6633
        %v6635 = vmul.f32 %v6473, %v6634
        %v6636 = vmul.f32 %v6474, %v6634
        %6639 = vrot.lane.b32.xlu0 %v6635, 124
        %v6640 = vpop.permute.xlu0 %6639
        %6641 = vrot.lane.b32.xlu0 %v6636, 124
        %v6642 = vpop.permute.xlu0 %6641
        %v6645 = vadd.f32 %v6603, %v6640
        %v6646 = vadd.f32 %v6604, %v6642
        %s6647 = sld [smem:[#allocation12 + $0xd6]]
        %v6648 = vstv %s6647
        %v6649 = vmul.f32 %v6473, %v6648
        %v6650 = vmul.f32 %v6474, %v6648
        %6653 = vrot.lane.b32.xlu0 %v6649, 124
        %v6654 = vpop.permute.xlu0 %6653
        %6655 = vrot.lane.b32.xlu0 %v6650, 124
        %v6656 = vpop.permute.xlu0 %6655
        %v6659 = vadd.f32 %v6617, %v6654
        %v6660 = vadd.f32 %v6618, %v6656
        %v6661 = vld [vmem:[%s4220 + $0x3] sm:$0xff]
        %v6662 = vld [vmem:[%s4220 + $0xb] sm:$0xff]
        %s6663 = sld [smem:[#allocation12 + $0x41]]
        %v6664 = vstv %s6663
        %v6665 = vmul.f32 %v6661, %v6664
        %v6666 = vmul.f32 %v6662, %v6664
        %v6667 = vadd.f32 %v6631, %v6665
        %v6668 = vadd.f32 %v6632, %v6666
        %s6669 = sld [smem:[#allocation12 + $0x8c]]
        %v6670 = vstv %s6669
        %v6671 = vmul.f32 %v6661, %v6670
        %v6672 = vmul.f32 %v6662, %v6670
        %v6673 = vadd.f32 %v6645, %v6671
        %v6674 = vadd.f32 %v6646, %v6672
        %s6675 = sld [smem:[#allocation12 + $0xd7]]
        %v6676 = vstv %s6675
        %v6677 = vmul.f32 %v6661, %v6676
        %v6678 = vmul.f32 %v6662, %v6676
        %v6679 = vadd.f32 %v6659, %v6677
        %v6680 = vadd.f32 %v6660, %v6678
        %s6681 = sld [smem:[#allocation12 + $0x42]]
        %v6682 = vstv %s6681
        %v6683 = vmul.f32 %v6661, %v6682
        %v6684 = vmul.f32 %v6662, %v6682
        %6687 = vrot.lane.b32.xlu0 %v6683, 127
        %v6688 = vpop.permute.xlu0 %6687
        %6689 = vrot.lane.b32.xlu0 %v6684, 127
        %v6690 = vpop.permute.xlu0 %6689
        %v6693 = vadd.f32 %v6667, %v6688
        %v6694 = vadd.f32 %v6668, %v6690
        %s6695 = sld [smem:[#allocation12 + $0x8d]]
        %v6696 = vstv %s6695
        %v6697 = vmul.f32 %v6661, %v6696
        %v6698 = vmul.f32 %v6662, %v6696
        %6701 = vrot.lane.b32.xlu0 %v6697, 127
        %v6702 = vpop.permute.xlu0 %6701
        %6703 = vrot.lane.b32.xlu0 %v6698, 127
        %v6704 = vpop.permute.xlu0 %6703
        %v6707 = vadd.f32 %v6673, %v6702
        %v6708 = vadd.f32 %v6674, %v6704
        %s6709 = sld [smem:[#allocation12 + $0xd8]]
        %v6710 = vstv %s6709
        %v6711 = vmul.f32 %v6661, %v6710
        %v6712 = vmul.f32 %v6662, %v6710
        %6715 = vrot.lane.b32.xlu0 %v6711, 127
        %v6716 = vpop.permute.xlu0 %6715
        %6717 = vrot.lane.b32.xlu0 %v6712, 127
        %v6718 = vpop.permute.xlu0 %6717
        %v6721 = vadd.f32 %v6679, %v6716
        %v6722 = vadd.f32 %v6680, %v6718
        %s6723 = sld [smem:[#allocation12 + $0x43]]
        %v6724 = vstv %s6723
        %v6725 = vmul.f32 %v6661, %v6724
        %v6726 = vmul.f32 %v6662, %v6724
        %6729 = vrot.lane.b32.xlu0 %v6725, 126
        %v6730 = vpop.permute.xlu0 %6729
        %6731 = vrot.lane.b32.xlu0 %v6726, 126
        %v6732 = vpop.permute.xlu0 %6731
        %v6735 = vadd.f32 %v6693, %v6730
        %v6736 = vadd.f32 %v6694, %v6732
        %s6737 = sld [smem:[#allocation12 + $0x8e]]
        %v6738 = vstv %s6737
        %v6739 = vmul.f32 %v6661, %v6738
        %v6740 = vmul.f32 %v6662, %v6738
        %6743 = vrot.lane.b32.xlu0 %v6739, 126
        %v6744 = vpop.permute.xlu0 %6743
        %6745 = vrot.lane.b32.xlu0 %v6740, 126
        %v6746 = vpop.permute.xlu0 %6745
        %v6749 = vadd.f32 %v6707, %v6744
        %v6750 = vadd.f32 %v6708, %v6746
        %s6751 = sld [smem:[#allocation12 + $0xd9]]
        %v6752 = vstv %s6751
        %v6753 = vmul.f32 %v6661, %v6752
        %v6754 = vmul.f32 %v6662, %v6752
        %6757 = vrot.lane.b32.xlu0 %v6753, 126
        %v6758 = vpop.permute.xlu0 %6757
        %6759 = vrot.lane.b32.xlu0 %v6754, 126
        %v6760 = vpop.permute.xlu0 %6759
        %v6763 = vadd.f32 %v6721, %v6758
        %v6764 = vadd.f32 %v6722, %v6760
        %s6765 = sld [smem:[#allocation12 + $0x44]]
        %v6766 = vstv %s6765
        %v6767 = vmul.f32 %v6661, %v6766
        %v6768 = vmul.f32 %v6662, %v6766
        %6771 = vrot.lane.b32.xlu0 %v6767, 125
        %v6772 = vpop.permute.xlu0 %6771
        %6773 = vrot.lane.b32.xlu0 %v6768, 125
        %v6774 = vpop.permute.xlu0 %6773
        %v6777 = vadd.f32 %v6735, %v6772
        %v6778 = vadd.f32 %v6736, %v6774
        %s6779 = sld [smem:[#allocation12 + $0x8f]]
        %v6780 = vstv %s6779
        %v6781 = vmul.f32 %v6661, %v6780
        %v6782 = vmul.f32 %v6662, %v6780
        %6785 = vrot.lane.b32.xlu0 %v6781, 125
        %v6786 = vpop.permute.xlu0 %6785
        %6787 = vrot.lane.b32.xlu0 %v6782, 125
        %v6788 = vpop.permute.xlu0 %6787
        %v6791 = vadd.f32 %v6749, %v6786
        %v6792 = vadd.f32 %v6750, %v6788
        %s6793 = sld [smem:[#allocation12 + $0xda]]
        %v6794 = vstv %s6793
        %v6795 = vmul.f32 %v6661, %v6794
        %v6796 = vmul.f32 %v6662, %v6794
        %6799 = vrot.lane.b32.xlu0 %v6795, 125
        %v6800 = vpop.permute.xlu0 %6799
        %6801 = vrot.lane.b32.xlu0 %v6796, 125
        %v6802 = vpop.permute.xlu0 %6801
        %v6805 = vadd.f32 %v6763, %v6800
        %v6806 = vadd.f32 %v6764, %v6802
        %s6807 = sld [smem:[#allocation12 + $0x45]]
        %v6808 = vstv %s6807
        %v6809 = vmul.f32 %v6661, %v6808
        %v6810 = vmul.f32 %v6662, %v6808
        %6813 = vrot.lane.b32.xlu0 %v6809, 124
        %v6814 = vpop.permute.xlu0 %6813
        %6815 = vrot.lane.b32.xlu0 %v6810, 124
        %v6816 = vpop.permute.xlu0 %6815
        %v6819 = vadd.f32 %v6777, %v6814
        %v6820 = vadd.f32 %v6778, %v6816
        %s6821 = sld [smem:[#allocation12 + $0x90]]
        %v6822 = vstv %s6821
        %v6823 = vmul.f32 %v6661, %v6822
        %v6824 = vmul.f32 %v6662, %v6822
        %6827 = vrot.lane.b32.xlu0 %v6823, 124
        %v6828 = vpop.permute.xlu0 %6827
        %6829 = vrot.lane.b32.xlu0 %v6824, 124
        %v6830 = vpop.permute.xlu0 %6829
        %v6833 = vadd.f32 %v6791, %v6828
        %v6834 = vadd.f32 %v6792, %v6830
        %s6835 = sld [smem:[#allocation12 + $0xdb]]
        %v6836 = vstv %s6835
        %v6837 = vmul.f32 %v6661, %v6836
        %v6838 = vmul.f32 %v6662, %v6836
        %6841 = vrot.lane.b32.xlu0 %v6837, 124
        %v6842 = vpop.permute.xlu0 %6841
        %6843 = vrot.lane.b32.xlu0 %v6838, 124
        %v6844 = vpop.permute.xlu0 %6843
        %v6847 = vadd.f32 %v6805, %v6842
        %v6848 = vadd.f32 %v6806, %v6844
        %v6849 = vld [vmem:[%s4220 + $0x4] sm:$0xff]
        %v6850 = vld [vmem:[%s4220 + $0xc] sm:$0xff]
        %s6851 = sld [smem:[#allocation12 + $0x46]]
        %v6852 = vstv %s6851
        %v6853 = vmul.f32 %v6849, %v6852
        %v6854 = vmul.f32 %v6850, %v6852
        %v6855 = vadd.f32 %v6819, %v6853
        %v6856 = vadd.f32 %v6820, %v6854
        %s6857 = sld [smem:[#allocation12 + $0x91]]
        %v6858 = vstv %s6857
        %v6859 = vmul.f32 %v6849, %v6858
        %v6860 = vmul.f32 %v6850, %v6858
        %v6861 = vadd.f32 %v6833, %v6859
        %v6862 = vadd.f32 %v6834, %v6860
        %s6863 = sld [smem:[#allocation12 + $0xdc]]
        %v6864 = vstv %s6863
        %v6865 = vmul.f32 %v6849, %v6864
        %v6866 = vmul.f32 %v6850, %v6864
        %v6867 = vadd.f32 %v6847, %v6865
        %v6868 = vadd.f32 %v6848, %v6866
        %s6869 = sld [smem:[#allocation12 + $0x47]]
        %v6870 = vstv %s6869
        %v6871 = vmul.f32 %v6849, %v6870
        %v6872 = vmul.f32 %v6850, %v6870
        %6875 = vrot.lane.b32.xlu0 %v6871, 127
        %v6876 = vpop.permute.xlu0 %6875
        %6877 = vrot.lane.b32.xlu0 %v6872, 127
        %v6878 = vpop.permute.xlu0 %6877
        %v6881 = vadd.f32 %v6855, %v6876
        %v6882 = vadd.f32 %v6856, %v6878
        %s6883 = sld [smem:[#allocation12 + $0x92]]
        %v6884 = vstv %s6883
        %v6885 = vmul.f32 %v6849, %v6884
        %v6886 = vmul.f32 %v6850, %v6884
        %6889 = vrot.lane.b32.xlu0 %v6885, 127
        %v6890 = vpop.permute.xlu0 %6889
        %6891 = vrot.lane.b32.xlu0 %v6886, 127
        %v6892 = vpop.permute.xlu0 %6891
        %v6895 = vadd.f32 %v6861, %v6890
        %v6896 = vadd.f32 %v6862, %v6892
        %s6897 = sld [smem:[#allocation12 + $0xdd]]
        %v6898 = vstv %s6897
        %v6899 = vmul.f32 %v6849, %v6898
        %v6900 = vmul.f32 %v6850, %v6898
        %6903 = vrot.lane.b32.xlu0 %v6899, 127
        %v6904 = vpop.permute.xlu0 %6903
        %6905 = vrot.lane.b32.xlu0 %v6900, 127
        %v6906 = vpop.permute.xlu0 %6905
        %v6909 = vadd.f32 %v6867, %v6904
        %v6910 = vadd.f32 %v6868, %v6906
        %s6911 = sld [smem:[#allocation12 + $0x48]]
        %v6912 = vstv %s6911
        %v6913 = vmul.f32 %v6849, %v6912
        %v6914 = vmul.f32 %v6850, %v6912
        %6917 = vrot.lane.b32.xlu0 %v6913, 126
        %v6918 = vpop.permute.xlu0 %6917
        %6919 = vrot.lane.b32.xlu0 %v6914, 126
        %v6920 = vpop.permute.xlu0 %6919
        %v6923 = vadd.f32 %v6881, %v6918
        %v6924 = vadd.f32 %v6882, %v6920
        %s6925 = sld [smem:[#allocation12 + $0x93]]
        %v6926 = vstv %s6925
        %v6927 = vmul.f32 %v6849, %v6926
        %v6928 = vmul.f32 %v6850, %v6926
        %6931 = vrot.lane.b32.xlu0 %v6927, 126
        %v6932 = vpop.permute.xlu0 %6931
        %6933 = vrot.lane.b32.xlu0 %v6928, 126
        %v6934 = vpop.permute.xlu0 %6933
        %v6937 = vadd.f32 %v6895, %v6932
        %v6938 = vadd.f32 %v6896, %v6934
        %s6939 = sld [smem:[#allocation12 + $0xde]]
        %v6940 = vstv %s6939
        %v6941 = vmul.f32 %v6849, %v6940
        %v6942 = vmul.f32 %v6850, %v6940
        %6945 = vrot.lane.b32.xlu0 %v6941, 126
        %v6946 = vpop.permute.xlu0 %6945
        %6947 = vrot.lane.b32.xlu0 %v6942, 126
        %v6948 = vpop.permute.xlu0 %6947
        %v6951 = vadd.f32 %v6909, %v6946
        %v6952 = vadd.f32 %v6910, %v6948
        %s6953 = sld [smem:[#allocation12 + $0x49]]
        %v6954 = vstv %s6953
        %v6955 = vmul.f32 %v6849, %v6954
        %v6956 = vmul.f32 %v6850, %v6954
        %6959 = vrot.lane.b32.xlu0 %v6955, 125
        %v6960 = vpop.permute.xlu0 %6959
        %6961 = vrot.lane.b32.xlu0 %v6956, 125
        %v6962 = vpop.permute.xlu0 %6961
        %v6965 = vadd.f32 %v6923, %v6960
        %v6966 = vadd.f32 %v6924, %v6962
        %s6967 = sld [smem:[#allocation12 + $0x94]]
        %v6968 = vstv %s6967
        %v6969 = vmul.f32 %v6849, %v6968
        %v6970 = vmul.f32 %v6850, %v6968
        %6973 = vrot.lane.b32.xlu0 %v6969, 125
        %v6974 = vpop.permute.xlu0 %6973
        %6975 = vrot.lane.b32.xlu0 %v6970, 125
        %v6976 = vpop.permute.xlu0 %6975
        %v6979 = vadd.f32 %v6937, %v6974
        %v6980 = vadd.f32 %v6938, %v6976
        %s6981 = sld [smem:[#allocation12 + $0xdf]]
        %v6982 = vstv %s6981
        %v6983 = vmul.f32 %v6849, %v6982
        %v6984 = vmul.f32 %v6850, %v6982
        %6987 = vrot.lane.b32.xlu0 %v6983, 125
        %v6988 = vpop.permute.xlu0 %6987
        %6989 = vrot.lane.b32.xlu0 %v6984, 125
        %v6990 = vpop.permute.xlu0 %6989
        %v6993 = vadd.f32 %v6951, %v6988
        %v6994 = vadd.f32 %v6952, %v6990
        %s6995 = sld [smem:[#allocation12 + $0x4a]]
        %v6996 = vstv %s6995
        %v6997 = vmul.f32 %v6849, %v6996
        %v6998 = vmul.f32 %v6850, %v6996
        %7001 = vrot.lane.b32.xlu0 %v6997, 124
        %v7002 = vpop.permute.xlu0 %7001
        %7003 = vrot.lane.b32.xlu0 %v6998, 124
        %v7004 = vpop.permute.xlu0 %7003
        %v7007 = vadd.f32 %v6965, %v7002
        %v7008 = vadd.f32 %v6966, %v7004
        %s7009 = sld [smem:[#allocation12 + $0x95]]
        %v7010 = vstv %s7009
        %v7011 = vmul.f32 %v6849, %v7010
        %v7012 = vmul.f32 %v6850, %v7010
        %7015 = vrot.lane.b32.xlu0 %v7011, 124
        %v7016 = vpop.permute.xlu0 %7015
        %7017 = vrot.lane.b32.xlu0 %v7012, 124
        %v7018 = vpop.permute.xlu0 %7017
        %v7021 = vadd.f32 %v6979, %v7016
        %v7022 = vadd.f32 %v6980, %v7018
        %s7023 = sld [smem:[#allocation12 + $0xe0]]
        %v7024 = vstv %s7023
        %v7025 = vmul.f32 %v6849, %v7024
        %v7026 = vmul.f32 %v6850, %v7024
        %7029 = vrot.lane.b32.xlu0 %v7025, 124
        %v7030 = vpop.permute.xlu0 %7029
        %7031 = vrot.lane.b32.xlu0 %v7026, 124
        %v7032 = vpop.permute.xlu0 %7031
        %v7035 = vadd.f32 %v6993, %v7030
        %v7036 = vadd.f32 %v6994, %v7032
        %s7037 = sld [smem:[#allocation13]]
        %v7038 = vstv %s7037
        %v7039 = vadd.f32 %v7007, %v7038
        %v7040 = vadd.f32 %v7008, %v7038
        %s7041 = sld [smem:[#allocation13 + $0x1]]
        %v7042 = vstv %s7041
        %v7043 = vadd.f32 %v7021, %v7042
        %v7044 = vadd.f32 %v7022, %v7042
        %s7045 = sld [smem:[#allocation13 + $0x2]]
        %v7046 = vstv %s7045
        %v7047 = vadd.f32 %v7035, %v7046
        %v7048 = vadd.f32 %v7036, %v7046
        %v7049 = vadd.f32 %v7039, %v354
        %v7050 = vadd.f32 %v7040, %v355
        %vm7051 = vcmask 130048
        %7052 = vst.msk [vmem:[%s348] sm:$0xff] %vm7051, %v7049
        %7053 = vst.msk [vmem:[%s348 + $0x8] sm:$0xff] %vm7051, %v7050
        %v7054 = vadd.f32 %v7043, %v354
        %v7055 = vadd.f32 %v7044, %v355
        %s7056 = scalar_lea.vmem %s348, 16 [#allocation15]
        %7057 = vst.msk [vmem:[%s7056] sm:$0xff] %vm7051, %v7054
        %7058 = vst.msk [vmem:[%s7056 + $0x8] sm:$0xff] %vm7051, %v7055
        %v7059 = vadd.f32 %v7047, %v354
        %v7060 = vadd.f32 %v7048, %v355
        %s7061 = scalar_lea.vmem %s348, 32 [#allocation15]
        %7062 = vst.msk [vmem:[%s7061] sm:$0xff] %vm7051, %v7059
        %7063 = vst.msk [vmem:[%s7061 + $0x8] sm:$0xff] %vm7051, %v7060
        %s7064 = sand.u32 %s185, 1
        %s7065 = scalar_lea.sflag [#allocation5], %s7064
        %s7066 = sand.u32 %s185, 1
        %s7067 = smul.addr %s7066, 48
        %s7068 = scalar_lea.vmem [#allocation15], %s7067
        // Predicated region
        $region73: #{colorizer_forward.1} parent=47 // pred_check
          %p7069 = pneg %p195
        $region74: #{colorizer_forward.1} parent=47 // pred_check_branch
          %7071 = sbr.rel (%p7069) target = $region76
        $region75: #{colorizer_forward.1} parent=47 // pred_region
          %s7073 = ssub.s32 768, 768
          %7074 = vsyncadd %s7065, %s7073
          %s7075 = smul.addr %s25, 6
          %s7076 = smul.addr %s7075, 128
          %s7077 = scalar_lea.hbm %s7, %s7076
          %s7078 = sshll.u32 %s7068, 4
          %s7079 = int_to_ptr.vmem [resolvable:$true] %s7078
          %7084 = dma.vmem_to_hbm [thread:$0]  %s7079, 768, %s7077, %s7065, 128, 128, 8
        $region76: #{colorizer_forward.1} parent=47 // pred_fallthru
          _
      $region48: #{colorizer_forward.1} parent=5 // pred_fallthru
        _
      %p7085 = scmp.le.s32.totalorder 2, %s20
      // Predicated region
      $region77: #{colorizer_forward.1} parent=5 // pred_check
        %p7086 = pneg %p7085
      $region78: #{colorizer_forward.1} parent=5 // pred_check_branch
        %7088 = sbr.rel (%p7086) target = $region80
      $region79: #{colorizer_forward.1} parent=5 // pred_region
        %s7089 = ssub.s32 %s20, 2
        // Predicated region
        $region81: #{colorizer_forward.1} parent=79 // pred_check
          %p7090 = pneg %p201
        $region82: #{colorizer_forward.1} parent=79 // pred_check_branch
          %7092 = sbr.rel (%p7090) target = $region84
        $region83: #{colorizer_forward.1} parent=79 // pred_region
          %s7093 = sand.u32 %s186, 1
          %s7094 = scalar_lea.sflag [#allocation5], %s7093
          %s7095 = sand.u32 %s186, 1
          %s7096 = smul.addr %s7095, 48
          %s7097 = scalar_lea.vmem [#allocation15], %s7096
          %7098 = dma.done %s7094, 768
        $region84: #{colorizer_forward.1} parent=79 // pred_fallthru
          _
      $region80: #{colorizer_forward.1} parent=5 // pred_fallthru
        _
    $region6: #{colorizer_forward.1} parent=1 // loop_footer
      %s24 = sadd.s32 1, %s20
    $region7: #{colorizer_forward.1} parent=1 // loop_footer_branch
      %19 = sbr.rel target = $region3
    $region8: #{colorizer_forward.1} parent=1 // loop_exit
      _
    %7099 = vsyncpa [#allocation5], 1
    %s7100 = scalar_lea.sflag [#allocation5], 1
    %7101 = vsyncpa %s7100, 1
    %7102 = vsyncpa [#allocation6], 1
    %s7103 = scalar_lea.sflag [#allocation6], 1
    %7104 = vsyncpa %s7103, 1
    %7105 = vsyncpa [#allocation8], 1
    %7106 = vsyncpa [#allocation11], 1
    %7107 = vsyncpa [#allocation14], 1

</llo_original>
